<compile_context>
chip_gen: v7x
topology: tpu7x:2x2x1
jax: 0.10.0
libtpu: 0.0.40
codegen_flags: <defaults>
</compile_context>

<pallas_src>
import functools

import jax
import jax.numpy as jnp
from jax.experimental import pallas as pl
from jax.experimental.pallas import tpu as pltpu

# ----------------------------- config (small) -------------------------------
T = 6          # target sequence length
B = 8          # batch (sublane-full; kernel pads any B up to a multiple of 8)
E = 32         # emb_size
H = 32         # hidden_size
L = 2          # num_layers (kernel unrolls layers statically)
S = 10         # source / context length
V = 50         # vocab_size


# ------------------------------- Pallas kernel ------------------------------
def _decoder_kernel(
    emb_ref, ctx_ref, h0_ref, c0_ref,
    wf0_ref, b0_ref, wf1_ref, b1_ref,
    win_ref, bin_ref, woutc_ref, woutx_ref, bout_ref,
    packed_ref, hN_ref, cN_ref,
    *, hidden_size, src_len, seq_len, num_layers, pack_lanes,
):
    Hh, Ss, Tt, Ll = hidden_size, src_len, seq_len, num_layers
    Bb = emb_ref.shape[1]

    # ---- loop-invariant loads / broadcasts (hoisted out of the time loop) ----
    ctx = ctx_ref[...]                                        # [B, S, H]
    layer_w = (wf0_ref[...], wf1_ref[...])                    # fused [E+H,4H]/[2H,4H]
    layer_b = (jnp.broadcast_to(b0_ref[...], (Bb, 4 * Hh)),
               jnp.broadcast_to(b1_ref[...], (Bb, 4 * Hh)))
    win = win_ref[...]
    b_in = jnp.broadcast_to(bin_ref[...], (Bb, Hh))
    woutc = woutc_ref[...]
    woutx = woutx_ref[...]
    b_out = jnp.broadcast_to(bout_ref[...], (Bb, Hh))
    pad_w = pack_lanes - Hh - Ss
    lane_pad = jnp.zeros((Bb, pad_w), jnp.float32) if pad_w > 0 else None

    # recurrent state carried as vreg values (no VMEM scratch round-trips)
    h = [h0_ref[l] for l in range(Ll)]
    c = [c0_ref[l] for l in range(Ll)]

    for t in range(Tt):                                       # unrolled recurrence
        x = emb_ref[t]                                        # [B, E]

        # ---- StackedLSTM (PyTorch LSTMCell gate order: i, f, g, o) ----
        for l in range(Ll):
            xh = jnp.concatenate([x, h[l]], axis=-1)          # [B, E+H]
            gates = jnp.dot(xh, layer_w[l],
                            preferred_element_type=jnp.float32) + layer_b[l]
            sig = jax.nn.sigmoid(gates)                       # one EUP push for i/f/o
            i_g = sig[:, 0 * Hh:1 * Hh]
            f_g = sig[:, 1 * Hh:2 * Hh]
            o_g = sig[:, 3 * Hh:4 * Hh]
            g_g = jnp.tanh(gates[:, 2 * Hh:3 * Hh])
            c_new = f_g * c[l] + i_g * g_g
            h_new = o_g * jnp.tanh(c_new)
            h[l], c[l] = h_new, c_new
            x = h_new                                         # inter-layer dropout == id

        # ---- global attention: score = ctx . W_in(h); softmax; mix; tanh(out)
        gamma = jnp.dot(x, win, preferred_element_type=jnp.float32) + b_in
        scores = jnp.sum(ctx * gamma[:, None, :], axis=-1)    # [B, S]  (VPU + XLU)
        s_max = jnp.max(scores, axis=-1, keepdims=True)
        e = jnp.exp(scores - s_max)
        weights = e * pl.reciprocal(
            jnp.sum(e, axis=-1, keepdims=True), approx=True)  # softmax
        c_t = jnp.sum(weights[:, :, None] * ctx, axis=1)      # [B, H]
        # linear_out on concat([c_t, h]) as split matmuls (W_out = [W_c; W_x])
        out = jnp.tanh(
            jnp.dot(c_t, woutc, preferred_element_type=jnp.float32)
            + jnp.dot(x, woutx, preferred_element_type=jnp.float32)
            + b_out)                                          # [B, H]

        # lane-dense packed store: [ out (H) | attn (S) | zero pad ] = 128 lanes
        pieces = [out, weights] + ([lane_pad] if lane_pad is not None else [])
        packed_ref[t] = jnp.concatenate(pieces, axis=-1)

    # final state, written once after the whole recurrence
    for l in range(Ll):
        hN_ref[l] = h[l]
        cN_ref[l] = c[l]


# --------------------------------- wrapper ----------------------------------
def rnn_decoder_forward(inputs, init_state, contexts, params):
    h0, c0 = init_state
    Tt, Bb = inputs.shape
    Ll, _, Hh = h0.shape
    Ss = contexts.shape[1]
    emb_table = params['embedding']
    Ee = emb_table.shape[1]

    # glue: embedding lookup (gather) in plain JAX
    embs = emb_table[inputs].astype(jnp.float32)              # [T, B, E]

    # fuse input/recurrent gate weights -> one dot per layer per step
    wf0 = jnp.concatenate([params['w_ih0'], params['w_hh0']], axis=0)  # [E+H, 4H]
    wf1 = jnp.concatenate([params['w_ih1'], params['w_hh1']], axis=0)  # [2H, 4H]

    # pad batch up to a multiple of the sublane-full batch block (8)
    BB = 8
    nb = -(-Bb // BB)
    Bp = nb * BB
    if Bp != Bb:
        bpad = ((0, 0), (0, Bp - Bb), (0, 0))
        embs = jnp.pad(embs, bpad)
        contexts_k = jnp.pad(contexts, ((0, Bp - Bb), (0, 0), (0, 0)))
        h0_k = jnp.pad(h0, bpad)
        c0_k = jnp.pad(c0, bpad)
    else:
        contexts_k, h0_k, c0_k = contexts, h0, c0

    P = ((Hh + Ss + 127) // 128) * 128        # lane-dense packed output width

    kernel = functools.partial(
        _decoder_kernel, hidden_size=Hh, src_len=Ss, seq_len=Tt,
        num_layers=Ll, pack_lanes=P)

    wconst = lambda b: (0, 0)

    # TODO(synk): at production H (>=128) cast weight/activation dots to bf16
    # (f32 accumulate) on v6e/v7x; at H=32 the MXU is idle so it is not done.
    packed, h_n, c_n = pl.pallas_call(
        kernel,
        out_shape=(
            jax.ShapeDtypeStruct((Tt, Bp, P), jnp.float32),   # [out | attn | pad]
            jax.ShapeDtypeStruct((Ll, Bp, Hh), jnp.float32),  # h_n
            jax.ShapeDtypeStruct((Ll, Bp, Hh), jnp.float32),  # c_n
        ),
        grid_spec=pltpu.PrefetchScalarGridSpec(
            num_scalar_prefetch=0,
            grid=(nb,),                                       # batch blocks only
            in_specs=[
                pl.BlockSpec((Tt, BB, Ee), lambda b: (0, b, 0)),   # embs (all T)
                pl.BlockSpec((BB, Ss, Hh), lambda b: (b, 0, 0)),   # contexts
                pl.BlockSpec((Ll, BB, Hh), lambda b: (0, b, 0)),   # h0
                pl.BlockSpec((Ll, BB, Hh), lambda b: (0, b, 0)),   # c0
                pl.BlockSpec((Ee + Hh, 4 * Hh), wconst),           # fused W layer0
                pl.BlockSpec((1, 4 * Hh), wconst),                 # bias  layer0
                pl.BlockSpec((2 * Hh, 4 * Hh), wconst),            # fused W layer1
                pl.BlockSpec((1, 4 * Hh), wconst),                 # bias  layer1
                pl.BlockSpec((Hh, Hh), wconst),                    # attn linear_in W
                pl.BlockSpec((1, Hh), wconst),                     # attn linear_in b
                pl.BlockSpec((Hh, Hh), wconst),                    # linear_out W (c_t)
                pl.BlockSpec((Hh, Hh), wconst),                    # linear_out W (h)
                pl.BlockSpec((1, Hh), wconst),                     # linear_out b
            ],
            out_specs=[
                pl.BlockSpec((Tt, BB, P), lambda b: (0, b, 0)),
                pl.BlockSpec((Ll, BB, Hh), lambda b: (0, b, 0)),
                pl.BlockSpec((Ll, BB, Hh), lambda b: (0, b, 0)),
            ],
        ),
        compiler_params=pltpu.CompilerParams(
            dimension_semantics=("parallel",)),   # batch-parallel (v7x 2nd TC)
    )(embs, contexts_k, h0_k, c0_k,
      wf0, params['b0'], wf1, params['b1'],
      params['w_in'], params['b_in'],
      params['w_out_c'], params['w_out_x'], params['b_out'])

    outputs = packed[:, :Bb, :Hh]
    attns = packed[:, :Bb, Hh:Hh + Ss]
    return outputs, (h_n[:, :Bb, :], c_n[:, :Bb, :]), attns


# ----------------------------- pure-JAX reference ---------------------------
def reference_forward(inputs, init_state, contexts, params):
    h, c = init_state
    embs = params['embedding'][inputs]
    Hh = h.shape[-1]

    def lstm_cell(x, h_prev, c_prev, wih, whh, b):
        gates = x @ wih + h_prev @ whh + b
        i = jax.nn.sigmoid(gates[:, :Hh])
        f = jax.nn.sigmoid(gates[:, Hh:2 * Hh])
        g = jnp.tanh(gates[:, 2 * Hh:3 * Hh])
        o = jax.nn.sigmoid(gates[:, 3 * Hh:])
        c_new = f * c_prev + i * g
        return o * jnp.tanh(c_new), c_new

    layer_p = [(params['w_ih0'], params['w_hh0'], params['b0']),
               (params['w_ih1'], params['w_hh1'], params['b1'])]
    outs, attns = [], []
    for t in range(inputs.shape[0]):
        x = embs[t]
        new_h, new_c = [], []
        for l, (wih, whh, b) in enumerate(layer_p):
            hn, cn = lstm_cell(x, h[l], c[l], wih, whh, b)
            new_h.append(hn)
            new_c.append(cn)
            x = hn
        h, c = jnp.stack(new_h), jnp.stack(new_c)
        gamma = x @ params['w_in'] + params['b_in']
        scores = jnp.einsum('bsh,bh->bs', contexts, gamma)
        w = jax.nn.softmax(scores, axis=-1)
        c_t = jnp.einsum('bs,bsh->bh', w, contexts)
        out = jnp.tanh(c_t @ params['w_out_c'] + x @ params['w_out_x']
                       + params['b_out'])
        outs.append(out)
        attns.append(w)
    return jnp.stack(outs), (h, c), jnp.stack(attns)


# ------------------------------------ main -----------------------------------
if __name__ == "__main__":
    key = jax.random.PRNGKey(0)
    ks = jax.random.split(key, 20)

    def nrm(k, shape, scale=0.1):
        return (scale * jax.random.normal(k, shape)).astype(jnp.float32)

    params = dict(
        embedding=nrm(ks[0], (V, E)),
        w_ih0=nrm(ks[1], (E, 4 * H)),
        w_hh0=nrm(ks[2], (H, 4 * H)),
        b0=nrm(ks[3], (1, 4 * H)),
        w_ih1=nrm(ks[4], (H, 4 * H)),
        w_hh1=nrm(ks[5], (H, 4 * H)),
        b1=nrm(ks[6], (1, 4 * H)),
        w_in=nrm(ks[7], (H, H)),
        b_in=nrm(ks[8], (1, H)),
        w_out_c=nrm(ks[9], (H, H)),
        w_out_x=nrm(ks[10], (H, H)),
        b_out=nrm(ks[11], (1, H)),
    )

    inputs = jax.random.randint(ks[12], (T, B), 0, V, dtype=jnp.int32)
    h0 = nrm(ks[13], (L, B, H))
    c0 = nrm(ks[14], (L, B, H))
    contexts = nrm(ks[15], (B, S, H))

    outputs, (h_n, c_n), attns = rnn_decoder_forward(
        inputs, (h0, c0), contexts, params)
    jax.block_until_ready((outputs, h_n, c_n, attns))

    # correctness check vs pure-JAX reference (loose tol: MXU f32 + approx recip)
    r_out, (r_h, r_c), r_attn = reference_forward(
        inputs, (h0, c0), contexts, params)
    assert jnp.allclose(outputs, r_out, atol=2e-2, rtol=2e-2)
    assert jnp.allclose(attns, r_attn, atol=2e-2, rtol=2e-2)
    assert jnp.allclose(h_n, r_h, atol=2e-2, rtol=2e-2)
    assert jnp.allclose(c_n, r_c, atol=2e-2, rtol=2e-2)

    # TODO(synk): score_fn / generate / sample paths (log_softmax over vocab)
    # are not part of forward() and are omitted.
    print("KERNEL_OK")
</pallas_src>

<mosaic_0001>
module attributes {stable_mosaic.version = 11 : i64} {
  func.func @_decoder_kernel(%arg0: i32, %arg1: memref<6x8x32xf32, #tpu.memory_space<vmem>>, %arg2: memref<8x10x32xf32, #tpu.memory_space<vmem>>, %arg3: memref<2x8x32xf32, #tpu.memory_space<vmem>>, %arg4: memref<2x8x32xf32, #tpu.memory_space<vmem>>, %arg5: memref<64x128xf32, #tpu.memory_space<vmem>>, %arg6: memref<1x128xf32, #tpu.memory_space<vmem>>, %arg7: memref<64x128xf32, #tpu.memory_space<vmem>>, %arg8: memref<1x128xf32, #tpu.memory_space<vmem>>, %arg9: memref<32x32xf32, #tpu.memory_space<vmem>>, %arg10: memref<1x32xf32, #tpu.memory_space<vmem>>, %arg11: memref<32x32xf32, #tpu.memory_space<vmem>>, %arg12: memref<32x32xf32, #tpu.memory_space<vmem>>, %arg13: memref<1x32xf32, #tpu.memory_space<vmem>>, %arg14: memref<6x8x128xf32, #tpu.memory_space<vmem>>, %arg15: memref<2x8x32xf32, #tpu.memory_space<vmem>>, %arg16: memref<2x8x32xf32, #tpu.memory_space<vmem>>) attributes {dimension_semantics = [#tpu.dimension_semantics<parallel>], iteration_bounds = array<i64: 1>, scalar_prefetch = 0 : i64, scratch_operands = 0 : i64, tpu.core_type = #tpu.core_type<tc>, window_params = [{transform_indices = @transform_0, window_bounds = array<i64: 6, 8, 32>}, {transform_indices = @transform_1, window_bounds = array<i64: 8, 10, 32>}, {transform_indices = @transform_2, window_bounds = array<i64: 2, 8, 32>}, {transform_indices = @transform_3, window_bounds = array<i64: 2, 8, 32>}, {pipeline_mode = #tpu.pipeline_mode<synchronous>, transform_indices = @transform_4, window_bounds = array<i64: 64, 128>}, {pipeline_mode = #tpu.pipeline_mode<synchronous>, transform_indices = @transform_5, window_bounds = array<i64: 1, 128>}, {pipeline_mode = #tpu.pipeline_mode<synchronous>, transform_indices = @transform_6, window_bounds = array<i64: 64, 128>}, {pipeline_mode = #tpu.pipeline_mode<synchronous>, transform_indices = @transform_7, window_bounds = array<i64: 1, 128>}, {pipeline_mode = #tpu.pipeline_mode<synchronous>, transform_indices = @transform_8, window_bounds = array<i64: 32, 32>}, {pipeline_mode = #tpu.pipeline_mode<synchronous>, transform_indices = @transform_9, window_bounds = array<i64: 1, 32>}, {pipeline_mode = #tpu.pipeline_mode<synchronous>, transform_indices = @transform_10, window_bounds = array<i64: 32, 32>}, {pipeline_mode = #tpu.pipeline_mode<synchronous>, transform_indices = @transform_11, window_bounds = array<i64: 32, 32>}, {pipeline_mode = #tpu.pipeline_mode<synchronous>, transform_indices = @transform_12, window_bounds = array<i64: 1, 32>}, {transform_indices = @transform_13, window_bounds = array<i64: 6, 8, 128>}, {transform_indices = @transform_14, window_bounds = array<i64: 2, 8, 32>}, {transform_indices = @transform_15, window_bounds = array<i64: 2, 8, 32>}]} {
    %c0 = arith.constant 0 : index
    %c0_0 = arith.constant 0 : index
    %c0_1 = arith.constant 0 : index
    %0 = vector.load %arg2[%c0, %c0_0, %c0_1] : memref<8x10x32xf32, #tpu.memory_space<vmem>>, vector<8x10x32xf32>
    %c0_2 = arith.constant 0 : index
    %c0_3 = arith.constant 0 : index
    %1 = vector.load %arg5[%c0_2, %c0_3] : memref<64x128xf32, #tpu.memory_space<vmem>>, vector<64x128xf32>
    %c0_4 = arith.constant 0 : index
    %c0_5 = arith.constant 0 : index
    %2 = vector.load %arg7[%c0_4, %c0_5] : memref<64x128xf32, #tpu.memory_space<vmem>>, vector<64x128xf32>
    %c0_6 = arith.constant 0 : index
    %c0_7 = arith.constant 0 : index
    %3 = vector.load %arg6[%c0_6, %c0_7] : memref<1x128xf32, #tpu.memory_space<vmem>>, vector<1x128xf32>
    %4 = vector.shape_cast %3 : vector<1x128xf32> to vector<1x128xf32>
    %5 = vector.broadcast %4 : vector<1x128xf32> to vector<8x128xf32>
    %c0_8 = arith.constant 0 : index
    %c0_9 = arith.constant 0 : index
    %6 = vector.load %arg8[%c0_8, %c0_9] : memref<1x128xf32, #tpu.memory_space<vmem>>, vector<1x128xf32>
    %7 = vector.shape_cast %6 : vector<1x128xf32> to vector<1x128xf32>
    %8 = vector.broadcast %7 : vector<1x128xf32> to vector<8x128xf32>
    %c0_10 = arith.constant 0 : index
    %c0_11 = arith.constant 0 : index
    %9 = vector.load %arg9[%c0_10, %c0_11] : memref<32x32xf32, #tpu.memory_space<vmem>>, vector<32x32xf32>
    %c0_12 = arith.constant 0 : index
    %c0_13 = arith.constant 0 : index
    %10 = vector.load %arg10[%c0_12, %c0_13] : memref<1x32xf32, #tpu.memory_space<vmem>>, vector<1x32xf32>
    %11 = vector.shape_cast %10 : vector<1x32xf32> to vector<1x32xf32>
    %12 = vector.broadcast %11 : vector<1x32xf32> to vector<8x32xf32>
    %c0_14 = arith.constant 0 : index
    %c0_15 = arith.constant 0 : index
    %13 = vector.load %arg11[%c0_14, %c0_15] : memref<32x32xf32, #tpu.memory_space<vmem>>, vector<32x32xf32>
    %c0_16 = arith.constant 0 : index
    %c0_17 = arith.constant 0 : index
    %14 = vector.load %arg12[%c0_16, %c0_17] : memref<32x32xf32, #tpu.memory_space<vmem>>, vector<32x32xf32>
    %c0_18 = arith.constant 0 : index
    %c0_19 = arith.constant 0 : index
    %15 = vector.load %arg13[%c0_18, %c0_19] : memref<1x32xf32, #tpu.memory_space<vmem>>, vector<1x32xf32>
    %16 = vector.shape_cast %15 : vector<1x32xf32> to vector<1x32xf32>
    %17 = vector.broadcast %16 : vector<1x32xf32> to vector<8x32xf32>
    %cst = arith.constant 0.000000e+00 : f32
    %18 = vector.broadcast %cst : f32 to vector<8x86xf32>
    %c0_20 = arith.constant 0 : index
    %c0_21 = arith.constant 0 : index
    %c0_22 = arith.constant 0 : index
    %19 = vector.load %arg3[%c0_20, %c0_21, %c0_22] : memref<2x8x32xf32, #tpu.memory_space<vmem>>, vector<1x8x32xf32>
    %20 = vector.shape_cast %19 : vector<1x8x32xf32> to vector<8x32xf32>
    %c1 = arith.constant 1 : index
    %c0_23 = arith.constant 0 : index
    %c0_24 = arith.constant 0 : index
    %21 = vector.load %arg3[%c1, %c0_23, %c0_24] : memref<2x8x32xf32, #tpu.memory_space<vmem>>, vector<1x8x32xf32>
    %22 = vector.shape_cast %21 : vector<1x8x32xf32> to vector<8x32xf32>
    %c0_25 = arith.constant 0 : index
    %c0_26 = arith.constant 0 : index
    %c0_27 = arith.constant 0 : index
    %23 = vector.load %arg4[%c0_25, %c0_26, %c0_27] : memref<2x8x32xf32, #tpu.memory_space<vmem>>, vector<1x8x32xf32>
    %24 = vector.shape_cast %23 : vector<1x8x32xf32> to vector<8x32xf32>
    %c1_28 = arith.constant 1 : index
    %c0_29 = arith.constant 0 : index
    %c0_30 = arith.constant 0 : index
    %25 = vector.load %arg4[%c1_28, %c0_29, %c0_30] : memref<2x8x32xf32, #tpu.memory_space<vmem>>, vector<1x8x32xf32>
    %26 = vector.shape_cast %25 : vector<1x8x32xf32> to vector<8x32xf32>
    %c0_31 = arith.constant 0 : index
    %c0_32 = arith.constant 0 : index
    %c0_33 = arith.constant 0 : index
    %27 = vector.load %arg1[%c0_31, %c0_32, %c0_33] : memref<6x8x32xf32, #tpu.memory_space<vmem>>, vector<1x8x32xf32>
    %28 = vector.shape_cast %27 : vector<1x8x32xf32> to vector<8x32xf32>
    %29 = tpu.concatenate %28, %20 in 1 : vector<8x32xf32>, vector<8x32xf32> -> vector<8x64xf32>
    %cst_34 = arith.constant dense<0.000000e+00> : vector<8x128xf32>
    %30 = tpu.matmul %29, %1, %cst_34 {dimension_numbers = #tpu.dot_dimension_numbers<[1], [0], [0], [1], [0, 0, 1, 1], [], []>} : vector<8x64xf32>, vector<64x128xf32>, vector<8x128xf32> -> vector<8x128xf32>
    %31 = arith.addf %30, %5 : vector<8x128xf32>
    %32 = arith.negf %31 : vector<8x128xf32>
    %33 = math.exp %32 : vector<8x128xf32>
    %cst_35 = arith.constant 1.000000e+00 : f32
    %34 = vector.broadcast %cst_35 : f32 to vector<8x128xf32>
    %35 = arith.addf %34, %33 : vector<8x128xf32>
    %36 = arith.divf %34, %35 : vector<8x128xf32>
    %37 = vector.extract_strided_slice %36 {offsets = [0, 0], sizes = [8, 32], strides = [1, 1]} : vector<8x128xf32> to vector<8x32xf32>
    %38 = vector.extract_strided_slice %36 {offsets = [0, 32], sizes = [8, 32], strides = [1, 1]} : vector<8x128xf32> to vector<8x32xf32>
    %39 = vector.extract_strided_slice %36 {offsets = [0, 96], sizes = [8, 32], strides = [1, 1]} : vector<8x128xf32> to vector<8x32xf32>
    %40 = vector.extract_strided_slice %31 {offsets = [0, 64], sizes = [8, 32], strides = [1, 1]} : vector<8x128xf32> to vector<8x32xf32>
    %41 = math.tanh %40 : vector<8x32xf32>
    %42 = arith.mulf %38, %24 : vector<8x32xf32>
    %43 = arith.mulf %37, %41 : vector<8x32xf32>
    %44 = arith.addf %42, %43 : vector<8x32xf32>
    %45 = math.tanh %44 : vector<8x32xf32>
    %46 = arith.mulf %39, %45 : vector<8x32xf32>
    %47 = tpu.concatenate %46, %22 in 1 : vector<8x32xf32>, vector<8x32xf32> -> vector<8x64xf32>
    %cst_36 = arith.constant dense<0.000000e+00> : vector<8x128xf32>
    %48 = tpu.matmul %47, %2, %cst_36 {dimension_numbers = #tpu.dot_dimension_numbers<[1], [0], [0], [1], [0, 0, 1, 1], [], []>} : vector<8x64xf32>, vector<64x128xf32>, vector<8x128xf32> -> vector<8x128xf32>
    %49 = arith.addf %48, %8 : vector<8x128xf32>
    %50 = arith.negf %49 : vector<8x128xf32>
    %51 = math.exp %50 : vector<8x128xf32>
    %cst_37 = arith.constant 1.000000e+00 : f32
    %52 = vector.broadcast %cst_37 : f32 to vector<8x128xf32>
    %53 = arith.addf %52, %51 : vector<8x128xf32>
    %54 = arith.divf %52, %53 : vector<8x128xf32>
    %55 = vector.extract_strided_slice %54 {offsets = [0, 0], sizes = [8, 32], strides = [1, 1]} : vector<8x128xf32> to vector<8x32xf32>
    %56 = vector.extract_strided_slice %54 {offsets = [0, 32], sizes = [8, 32], strides = [1, 1]} : vector<8x128xf32> to vector<8x32xf32>
    %57 = vector.extract_strided_slice %54 {offsets = [0, 96], sizes = [8, 32], strides = [1, 1]} : vector<8x128xf32> to vector<8x32xf32>
    %58 = vector.extract_strided_slice %49 {offsets = [0, 64], sizes = [8, 32], strides = [1, 1]} : vector<8x128xf32> to vector<8x32xf32>
    %59 = math.tanh %58 : vector<8x32xf32>
    %60 = arith.mulf %56, %26 : vector<8x32xf32>
    %61 = arith.mulf %55, %59 : vector<8x32xf32>
    %62 = arith.addf %60, %61 : vector<8x32xf32>
    %63 = math.tanh %62 : vector<8x32xf32>
    %64 = arith.mulf %57, %63 : vector<8x32xf32>
    %cst_38 = arith.constant dense<0.000000e+00> : vector<8x32xf32>
    %65 = tpu.matmul %64, %9, %cst_38 {dimension_numbers = #tpu.dot_dimension_numbers<[1], [0], [0], [1], [0, 0, 1, 1], [], []>} : vector<8x32xf32>, vector<32x32xf32>, vector<8x32xf32> -> vector<8x32xf32>
    %66 = arith.addf %65, %12 : vector<8x32xf32>
    %67 = vector.shape_cast %66 : vector<8x32xf32> to vector<8x1x32xf32>
    %68 = vector.broadcast %67 : vector<8x1x32xf32> to vector<8x10x32xf32>
    %69 = arith.mulf %0, %68 : vector<8x10x32xf32>
    %cst_39 = arith.constant dense<0.000000e+00> : vector<8x10xf32>
    %70 = vector.multi_reduction <add>, %69, %cst_39 [2] : vector<8x10x32xf32> to vector<8x10xf32>
    %cst_40 = arith.constant dense<0xFF800000> : vector<8xf32>
    %71 = vector.multi_reduction <maximumf>, %70, %cst_40 [1] : vector<8x10xf32> to vector<8xf32>
    %72 = vector.shape_cast %71 : vector<8xf32> to vector<8x1xf32>
    %73 = vector.broadcast %72 : vector<8x1xf32> to vector<8x10xf32>
    %74 = arith.subf %70, %73 : vector<8x10xf32>
    %75 = math.exp %74 : vector<8x10xf32>
    %cst_41 = arith.constant dense<0.000000e+00> : vector<8xf32>
    %76 = vector.multi_reduction <add>, %75, %cst_41 [1] : vector<8x10xf32> to vector<8xf32>
    %77 = vector.shape_cast %76 : vector<8xf32> to vector<8x1xf32>
    %78 = tpu.reciprocal %77 {approx = true} : vector<8x1xf32> -> vector<8x1xf32>
    %79 = vector.broadcast %78 : vector<8x1xf32> to vector<8x10xf32>
    %80 = arith.mulf %75, %79 : vector<8x10xf32>
    %81 = vector.shape_cast %80 : vector<8x10xf32> to vector<8x10x1xf32>
    %82 = vector.broadcast %81 : vector<8x10x1xf32> to vector<8x10x32xf32>
    %83 = arith.mulf %82, %0 : vector<8x10x32xf32>
    %cst_42 = arith.constant dense<0.000000e+00> : vector<8x32xf32>
    %84 = vector.multi_reduction <add>, %83, %cst_42 [1] : vector<8x10x32xf32> to vector<8x32xf32>
    %cst_43 = arith.constant dense<0.000000e+00> : vector<8x32xf32>
    %85 = tpu.matmul %84, %13, %cst_43 {dimension_numbers = #tpu.dot_dimension_numbers<[1], [0], [0], [1], [0, 0, 1, 1], [], []>} : vector<8x32xf32>, vector<32x32xf32>, vector<8x32xf32> -> vector<8x32xf32>
    %cst_44 = arith.constant dense<0.000000e+00> : vector<8x32xf32>
    %86 = tpu.matmul %64, %14, %cst_44 {dimension_numbers = #tpu.dot_dimension_numbers<[1], [0], [0], [1], [0, 0, 1, 1], [], []>} : vector<8x32xf32>, vector<32x32xf32>, vector<8x32xf32> -> vector<8x32xf32>
    %87 = arith.addf %85, %86 : vector<8x32xf32>
    %88 = arith.addf %87, %17 : vector<8x32xf32>
    %89 = math.tanh %88 : vector<8x32xf32>
    %90 = tpu.concatenate %89, %80, %18 in 1 : vector<8x32xf32>, vector<8x10xf32>, vector<8x86xf32> -> vector<8x128xf32>
    %c0_45 = arith.constant 0 : index
    %c0_46 = arith.constant 0 : index
    %c0_47 = arith.constant 0 : index
    %91 = vector.load %arg14[%c0_45, %c0_46, %c0_47] : memref<6x8x128xf32, #tpu.memory_space<vmem>>, vector<1x8x128xf32>
    %92 = vector.shape_cast %91 : vector<1x8x128xf32> to vector<8x128xf32>
    %93 = vector.shape_cast %90 : vector<8x128xf32> to vector<1x8x128xf32>
    tpu.vector_store %arg14[%c0_45, %c0_46, %c0_47], %93 {strides = array<i32>} : memref<6x8x128xf32, #tpu.memory_space<vmem>>, vector<1x8x128xf32>,
    %c1_48 = arith.constant 1 : index
    %c0_49 = arith.constant 0 : index
    %c0_50 = arith.constant 0 : index
    %94 = vector.load %arg1[%c1_48, %c0_49, %c0_50] : memref<6x8x32xf32, #tpu.memory_space<vmem>>, vector<1x8x32xf32>
    %95 = vector.shape_cast %94 : vector<1x8x32xf32> to vector<8x32xf32>
    %96 = tpu.concatenate %95, %46 in 1 : vector<8x32xf32>, vector<8x32xf32> -> vector<8x64xf32>
    %cst_51 = arith.constant dense<0.000000e+00> : vector<8x128xf32>
    %97 = tpu.matmul %96, %1, %cst_51 {dimension_numbers = #tpu.dot_dimension_numbers<[1], [0], [0], [1], [0, 0, 1, 1], [], []>} : vector<8x64xf32>, vector<64x128xf32>, vector<8x128xf32> -> vector<8x128xf32>
    %98 = arith.addf %97, %5 : vector<8x128xf32>
    %99 = arith.negf %98 : vector<8x128xf32>
    %100 = math.exp %99 : vector<8x128xf32>
    %cst_52 = arith.constant 1.000000e+00 : f32
    %101 = vector.broadcast %cst_52 : f32 to vector<8x128xf32>
    %102 = arith.addf %101, %100 : vector<8x128xf32>
    %103 = arith.divf %101, %102 : vector<8x128xf32>
    %104 = vector.extract_strided_slice %103 {offsets = [0, 0], sizes = [8, 32], strides = [1, 1]} : vector<8x128xf32> to vector<8x32xf32>
    %105 = vector.extract_strided_slice %103 {offsets = [0, 32], sizes = [8, 32], strides = [1, 1]} : vector<8x128xf32> to vector<8x32xf32>
    %106 = vector.extract_strided_slice %103 {offsets = [0, 96], sizes = [8, 32], strides = [1, 1]} : vector<8x128xf32> to vector<8x32xf32>
    %107 = vector.extract_strided_slice %98 {offsets = [0, 64], sizes = [8, 32], strides = [1, 1]} : vector<8x128xf32> to vector<8x32xf32>
    %108 = math.tanh %107 : vector<8x32xf32>
    %109 = arith.mulf %105, %44 : vector<8x32xf32>
    %110 = arith.mulf %104, %108 : vector<8x32xf32>
    %111 = arith.addf %109, %110 : vector<8x32xf32>
    %112 = math.tanh %111 : vector<8x32xf32>
    %113 = arith.mulf %106, %112 : vector<8x32xf32>
    %114 = tpu.concatenate %113, %64 in 1 : vector<8x32xf32>, vector<8x32xf32> -> vector<8x64xf32>
    %cst_53 = arith.constant dense<0.000000e+00> : vector<8x128xf32>
    %115 = tpu.matmul %114, %2, %cst_53 {dimension_numbers = #tpu.dot_dimension_numbers<[1], [0], [0], [1], [0, 0, 1, 1], [], []>} : vector<8x64xf32>, vector<64x128xf32>, vector<8x128xf32> -> vector<8x128xf32>
    %116 = arith.addf %115, %8 : vector<8x128xf32>
    %117 = arith.negf %116 : vector<8x128xf32>
    %118 = math.exp %117 : vector<8x128xf32>
    %cst_54 = arith.constant 1.000000e+00 : f32
    %119 = vector.broadcast %cst_54 : f32 to vector<8x128xf32>
    %120 = arith.addf %119, %118 : vector<8x128xf32>
    %121 = arith.divf %119, %120 : vector<8x128xf32>
    %122 = vector.extract_strided_slice %121 {offsets = [0, 0], sizes = [8, 32], strides = [1, 1]} : vector<8x128xf32> to vector<8x32xf32>
    %123 = vector.extract_strided_slice %121 {offsets = [0, 32], sizes = [8, 32], strides = [1, 1]} : vector<8x128xf32> to vector<8x32xf32>
    %124 = vector.extract_strided_slice %121 {offsets = [0, 96], sizes = [8, 32], strides = [1, 1]} : vector<8x128xf32> to vector<8x32xf32>
    %125 = vector.extract_strided_slice %116 {offsets = [0, 64], sizes = [8, 32], strides = [1, 1]} : vector<8x128xf32> to vector<8x32xf32>
    %126 = math.tanh %125 : vector<8x32xf32>
    %127 = arith.mulf %123, %62 : vector<8x32xf32>
    %128 = arith.mulf %122, %126 : vector<8x32xf32>
    %129 = arith.addf %127, %128 : vector<8x32xf32>
    %130 = math.tanh %129 : vector<8x32xf32>
    %131 = arith.mulf %124, %130 : vector<8x32xf32>
    %cst_55 = arith.constant dense<0.000000e+00> : vector<8x32xf32>
    %132 = tpu.matmul %131, %9, %cst_55 {dimension_numbers = #tpu.dot_dimension_numbers<[1], [0], [0], [1], [0, 0, 1, 1], [], []>} : vector<8x32xf32>, vector<32x32xf32>, vector<8x32xf32> -> vector<8x32xf32>
    %133 = arith.addf %132, %12 : vector<8x32xf32>
    %134 = vector.shape_cast %133 : vector<8x32xf32> to vector<8x1x32xf32>
    %135 = vector.broadcast %134 : vector<8x1x32xf32> to vector<8x10x32xf32>
    %136 = arith.mulf %0, %135 : vector<8x10x32xf32>
    %cst_56 = arith.constant dense<0.000000e+00> : vector<8x10xf32>
    %137 = vector.multi_reduction <add>, %136, %cst_56 [2] : vector<8x10x32xf32> to vector<8x10xf32>
    %cst_57 = arith.constant dense<0xFF800000> : vector<8xf32>
    %138 = vector.multi_reduction <maximumf>, %137, %cst_57 [1] : vector<8x10xf32> to vector<8xf32>
    %139 = vector.shape_cast %138 : vector<8xf32> to vector<8x1xf32>
    %140 = vector.broadcast %139 : vector<8x1xf32> to vector<8x10xf32>
    %141 = arith.subf %137, %140 : vector<8x10xf32>
    %142 = math.exp %141 : vector<8x10xf32>
    %cst_58 = arith.constant dense<0.000000e+00> : vector<8xf32>
    %143 = vector.multi_reduction <add>, %142, %cst_58 [1] : vector<8x10xf32> to vector<8xf32>
    %144 = vector.shape_cast %143 : vector<8xf32> to vector<8x1xf32>
    %145 = tpu.reciprocal %144 {approx = true} : vector<8x1xf32> -> vector<8x1xf32>
    %146 = vector.broadcast %145 : vector<8x1xf32> to vector<8x10xf32>
    %147 = arith.mulf %142, %146 : vector<8x10xf32>
    %148 = vector.shape_cast %147 : vector<8x10xf32> to vector<8x10x1xf32>
    %149 = vector.broadcast %148 : vector<8x10x1xf32> to vector<8x10x32xf32>
    %150 = arith.mulf %149, %0 : vector<8x10x32xf32>
    %cst_59 = arith.constant dense<0.000000e+00> : vector<8x32xf32>
    %151 = vector.multi_reduction <add>, %150, %cst_59 [1] : vector<8x10x32xf32> to vector<8x32xf32>
    %cst_60 = arith.constant dense<0.000000e+00> : vector<8x32xf32>
    %152 = tpu.matmul %151, %13, %cst_60 {dimension_numbers = #tpu.dot_dimension_numbers<[1], [0], [0], [1], [0, 0, 1, 1], [], []>} : vector<8x32xf32>, vector<32x32xf32>, vector<8x32xf32> -> vector<8x32xf32>
    %cst_61 = arith.constant dense<0.000000e+00> : vector<8x32xf32>
    %153 = tpu.matmul %131, %14, %cst_61 {dimension_numbers = #tpu.dot_dimension_numbers<[1], [0], [0], [1], [0, 0, 1, 1], [], []>} : vector<8x32xf32>, vector<32x32xf32>, vector<8x32xf32> -> vector<8x32xf32>
    %154 = arith.addf %152, %153 : vector<8x32xf32>
    %155 = arith.addf %154, %17 : vector<8x32xf32>
    %156 = math.tanh %155 : vector<8x32xf32>
    %157 = tpu.concatenate %156, %147, %18 in 1 : vector<8x32xf32>, vector<8x10xf32>, vector<8x86xf32> -> vector<8x128xf32>
    %c1_62 = arith.constant 1 : index
    %c0_63 = arith.constant 0 : index
    %c0_64 = arith.constant 0 : index
    %158 = vector.load %arg14[%c1_62, %c0_63, %c0_64] : memref<6x8x128xf32, #tpu.memory_space<vmem>>, vector<1x8x128xf32>
    %159 = vector.shape_cast %158 : vector<1x8x128xf32> to vector<8x128xf32>
    %160 = vector.shape_cast %157 : vector<8x128xf32> to vector<1x8x128xf32>
    tpu.vector_store %arg14[%c1_62, %c0_63, %c0_64], %160 {strides = array<i32>} : memref<6x8x128xf32, #tpu.memory_space<vmem>>, vector<1x8x128xf32>,
    %c2 = arith.constant 2 : index
    %c0_65 = arith.constant 0 : index
    %c0_66 = arith.constant 0 : index
    %161 = vector.load %arg1[%c2, %c0_65, %c0_66] : memref<6x8x32xf32, #tpu.memory_space<vmem>>, vector<1x8x32xf32>
    %162 = vector.shape_cast %161 : vector<1x8x32xf32> to vector<8x32xf32>
    %163 = tpu.concatenate %162, %113 in 1 : vector<8x32xf32>, vector<8x32xf32> -> vector<8x64xf32>
    %cst_67 = arith.constant dense<0.000000e+00> : vector<8x128xf32>
    %164 = tpu.matmul %163, %1, %cst_67 {dimension_numbers = #tpu.dot_dimension_numbers<[1], [0], [0], [1], [0, 0, 1, 1], [], []>} : vector<8x64xf32>, vector<64x128xf32>, vector<8x128xf32> -> vector<8x128xf32>
    %165 = arith.addf %164, %5 : vector<8x128xf32>
    %166 = arith.negf %165 : vector<8x128xf32>
    %167 = math.exp %166 : vector<8x128xf32>
    %cst_68 = arith.constant 1.000000e+00 : f32
    %168 = vector.broadcast %cst_68 : f32 to vector<8x128xf32>
    %169 = arith.addf %168, %167 : vector<8x128xf32>
    %170 = arith.divf %168, %169 : vector<8x128xf32>
    %171 = vector.extract_strided_slice %170 {offsets = [0, 0], sizes = [8, 32], strides = [1, 1]} : vector<8x128xf32> to vector<8x32xf32>
    %172 = vector.extract_strided_slice %170 {offsets = [0, 32], sizes = [8, 32], strides = [1, 1]} : vector<8x128xf32> to vector<8x32xf32>
    %173 = vector.extract_strided_slice %170 {offsets = [0, 96], sizes = [8, 32], strides = [1, 1]} : vector<8x128xf32> to vector<8x32xf32>
    %174 = vector.extract_strided_slice %165 {offsets = [0, 64], sizes = [8, 32], strides = [1, 1]} : vector<8x128xf32> to vector<8x32xf32>
    %175 = math.tanh %174 : vector<8x32xf32>
    %176 = arith.mulf %172, %111 : vector<8x32xf32>
    %177 = arith.mulf %171, %175 : vector<8x32xf32>
    %178 = arith.addf %176, %177 : vector<8x32xf32>
    %179 = math.tanh %178 : vector<8x32xf32>
    %180 = arith.mulf %173, %179 : vector<8x32xf32>
    %181 = tpu.concatenate %180, %131 in 1 : vector<8x32xf32>, vector<8x32xf32> -> vector<8x64xf32>
    %cst_69 = arith.constant dense<0.000000e+00> : vector<8x128xf32>
    %182 = tpu.matmul %181, %2, %cst_69 {dimension_numbers = #tpu.dot_dimension_numbers<[1], [0], [0], [1], [0, 0, 1, 1], [], []>} : vector<8x64xf32>, vector<64x128xf32>, vector<8x128xf32> -> vector<8x128xf32>
    %183 = arith.addf %182, %8 : vector<8x128xf32>
    %184 = arith.negf %183 : vector<8x128xf32>
    %185 = math.exp %184 : vector<8x128xf32>
    %cst_70 = arith.constant 1.000000e+00 : f32
    %186 = vector.broadcast %cst_70 : f32 to vector<8x128xf32>
    %187 = arith.addf %186, %185 : vector<8x128xf32>
    %188 = arith.divf %186, %187 : vector<8x128xf32>
    %189 = vector.extract_strided_slice %188 {offsets = [0, 0], sizes = [8, 32], strides = [1, 1]} : vector<8x128xf32> to vector<8x32xf32>
    %190 = vector.extract_strided_slice %188 {offsets = [0, 32], sizes = [8, 32], strides = [1, 1]} : vector<8x128xf32> to vector<8x32xf32>
    %191 = vector.extract_strided_slice %188 {offsets = [0, 96], sizes = [8, 32], strides = [1, 1]} : vector<8x128xf32> to vector<8x32xf32>
    %192 = vector.extract_strided_slice %183 {offsets = [0, 64], sizes = [8, 32], strides = [1, 1]} : vector<8x128xf32> to vector<8x32xf32>
    %193 = math.tanh %192 : vector<8x32xf32>
    %194 = arith.mulf %190, %129 : vector<8x32xf32>
    %195 = arith.mulf %189, %193 : vector<8x32xf32>
    %196 = arith.addf %194, %195 : vector<8x32xf32>
    %197 = math.tanh %196 : vector<8x32xf32>
    %198 = arith.mulf %191, %197 : vector<8x32xf32>
    %cst_71 = arith.constant dense<0.000000e+00> : vector<8x32xf32>
    %199 = tpu.matmul %198, %9, %cst_71 {dimension_numbers = #tpu.dot_dimension_numbers<[1], [0], [0], [1], [0, 0, 1, 1], [], []>} : vector<8x32xf32>, vector<32x32xf32>, vector<8x32xf32> -> vector<8x32xf32>
    %200 = arith.addf %199, %12 : vector<8x32xf32>
    %201 = vector.shape_cast %200 : vector<8x32xf32> to vector<8x1x32xf32>
    %202 = vector.broadcast %201 : vector<8x1x32xf32> to vector<8x10x32xf32>
    %203 = arith.mulf %0, %202 : vector<8x10x32xf32>
    %cst_72 = arith.constant dense<0.000000e+00> : vector<8x10xf32>
    %204 = vector.multi_reduction <add>, %203, %cst_72 [2] : vector<8x10x32xf32> to vector<8x10xf32>
    %cst_73 = arith.constant dense<0xFF800000> : vector<8xf32>
    %205 = vector.multi_reduction <maximumf>, %204, %cst_73 [1] : vector<8x10xf32> to vector<8xf32>
    %206 = vector.shape_cast %205 : vector<8xf32> to vector<8x1xf32>
    %207 = vector.broadcast %206 : vector<8x1xf32> to vector<8x10xf32>
    %208 = arith.subf %204, %207 : vector<8x10xf32>
    %209 = math.exp %208 : vector<8x10xf32>
    %cst_74 = arith.constant dense<0.000000e+00> : vector<8xf32>
    %210 = vector.multi_reduction <add>, %209, %cst_74 [1] : vector<8x10xf32> to vector<8xf32>
    %211 = vector.shape_cast %210 : vector<8xf32> to vector<8x1xf32>
    %212 = tpu.reciprocal %211 {approx = true} : vector<8x1xf32> -> vector<8x1xf32>
    %213 = vector.broadcast %212 : vector<8x1xf32> to vector<8x10xf32>
    %214 = arith.mulf %209, %213 : vector<8x10xf32>
    %215 = vector.shape_cast %214 : vector<8x10xf32> to vector<8x10x1xf32>
    %216 = vector.broadcast %215 : vector<8x10x1xf32> to vector<8x10x32xf32>
    %217 = arith.mulf %216, %0 : vector<8x10x32xf32>
    %cst_75 = arith.constant dense<0.000000e+00> : vector<8x32xf32>
    %218 = vector.multi_reduction <add>, %217, %cst_75 [1] : vector<8x10x32xf32> to vector<8x32xf32>
    %cst_76 = arith.constant dense<0.000000e+00> : vector<8x32xf32>
    %219 = tpu.matmul %218, %13, %cst_76 {dimension_numbers = #tpu.dot_dimension_numbers<[1], [0], [0], [1], [0, 0, 1, 1], [], []>} : vector<8x32xf32>, vector<32x32xf32>, vector<8x32xf32> -> vector<8x32xf32>
    %cst_77 = arith.constant dense<0.000000e+00> : vector<8x32xf32>
    %220 = tpu.matmul %198, %14, %cst_77 {dimension_numbers = #tpu.dot_dimension_numbers<[1], [0], [0], [1], [0, 0, 1, 1], [], []>} : vector<8x32xf32>, vector<32x32xf32>, vector<8x32xf32> -> vector<8x32xf32>
    %221 = arith.addf %219, %220 : vector<8x32xf32>
    %222 = arith.addf %221, %17 : vector<8x32xf32>
    %223 = math.tanh %222 : vector<8x32xf32>
    %224 = tpu.concatenate %223, %214, %18 in 1 : vector<8x32xf32>, vector<8x10xf32>, vector<8x86xf32> -> vector<8x128xf32>
    %c2_78 = arith.constant 2 : index
    %c0_79 = arith.constant 0 : index
    %c0_80 = arith.constant 0 : index
    %225 = vector.load %arg14[%c2_78, %c0_79, %c0_80] : memref<6x8x128xf32, #tpu.memory_space<vmem>>, vector<1x8x128xf32>
    %226 = vector.shape_cast %225 : vector<1x8x128xf32> to vector<8x128xf32>
    %227 = vector.shape_cast %224 : vector<8x128xf32> to vector<1x8x128xf32>
    tpu.vector_store %arg14[%c2_78, %c0_79, %c0_80], %227 {strides = array<i32>} : memref<6x8x128xf32, #tpu.memory_space<vmem>>, vector<1x8x128xf32>,
    %c3 = arith.constant 3 : index
    %c0_81 = arith.constant 0 : index
    %c0_82 = arith.constant 0 : index
    %228 = vector.load %arg1[%c3, %c0_81, %c0_82] : memref<6x8x32xf32, #tpu.memory_space<vmem>>, vector<1x8x32xf32>
    %229 = vector.shape_cast %228 : vector<1x8x32xf32> to vector<8x32xf32>
    %230 = tpu.concatenate %229, %180 in 1 : vector<8x32xf32>, vector<8x32xf32> -> vector<8x64xf32>
    %cst_83 = arith.constant dense<0.000000e+00> : vector<8x128xf32>
    %231 = tpu.matmul %230, %1, %cst_83 {dimension_numbers = #tpu.dot_dimension_numbers<[1], [0], [0], [1], [0, 0, 1, 1], [], []>} : vector<8x64xf32>, vector<64x128xf32>, vector<8x128xf32> -> vector<8x128xf32>
    %232 = arith.addf %231, %5 : vector<8x128xf32>
    %233 = arith.negf %232 : vector<8x128xf32>
    %234 = math.exp %233 : vector<8x128xf32>
    %cst_84 = arith.constant 1.000000e+00 : f32
    %235 = vector.broadcast %cst_84 : f32 to vector<8x128xf32>
    %236 = arith.addf %235, %234 : vector<8x128xf32>
    %237 = arith.divf %235, %236 : vector<8x128xf32>
    %238 = vector.extract_strided_slice %237 {offsets = [0, 0], sizes = [8, 32], strides = [1, 1]} : vector<8x128xf32> to vector<8x32xf32>
    %239 = vector.extract_strided_slice %237 {offsets = [0, 32], sizes = [8, 32], strides = [1, 1]} : vector<8x128xf32> to vector<8x32xf32>
    %240 = vector.extract_strided_slice %237 {offsets = [0, 96], sizes = [8, 32], strides = [1, 1]} : vector<8x128xf32> to vector<8x32xf32>
    %241 = vector.extract_strided_slice %232 {offsets = [0, 64], sizes = [8, 32], strides = [1, 1]} : vector<8x128xf32> to vector<8x32xf32>
    %242 = math.tanh %241 : vector<8x32xf32>
    %243 = arith.mulf %239, %178 : vector<8x32xf32>
    %244 = arith.mulf %238, %242 : vector<8x32xf32>
    %245 = arith.addf %243, %244 : vector<8x32xf32>
    %246 = math.tanh %245 : vector<8x32xf32>
    %247 = arith.mulf %240, %246 : vector<8x32xf32>
    %248 = tpu.concatenate %247, %198 in 1 : vector<8x32xf32>, vector<8x32xf32> -> vector<8x64xf32>
    %cst_85 = arith.constant dense<0.000000e+00> : vector<8x128xf32>
    %249 = tpu.matmul %248, %2, %cst_85 {dimension_numbers = #tpu.dot_dimension_numbers<[1], [0], [0], [1], [0, 0, 1, 1], [], []>} : vector<8x64xf32>, vector<64x128xf32>, vector<8x128xf32> -> vector<8x128xf32>
    %250 = arith.addf %249, %8 : vector<8x128xf32>
    %251 = arith.negf %250 : vector<8x128xf32>
    %252 = math.exp %251 : vector<8x128xf32>
    %cst_86 = arith.constant 1.000000e+00 : f32
    %253 = vector.broadcast %cst_86 : f32 to vector<8x128xf32>
    %254 = arith.addf %253, %252 : vector<8x128xf32>
    %255 = arith.divf %253, %254 : vector<8x128xf32>
    %256 = vector.extract_strided_slice %255 {offsets = [0, 0], sizes = [8, 32], strides = [1, 1]} : vector<8x128xf32> to vector<8x32xf32>
    %257 = vector.extract_strided_slice %255 {offsets = [0, 32], sizes = [8, 32], strides = [1, 1]} : vector<8x128xf32> to vector<8x32xf32>
    %258 = vector.extract_strided_slice %255 {offsets = [0, 96], sizes = [8, 32], strides = [1, 1]} : vector<8x128xf32> to vector<8x32xf32>
    %259 = vector.extract_strided_slice %250 {offsets = [0, 64], sizes = [8, 32], strides = [1, 1]} : vector<8x128xf32> to vector<8x32xf32>
    %260 = math.tanh %259 : vector<8x32xf32>
    %261 = arith.mulf %257, %196 : vector<8x32xf32>
    %262 = arith.mulf %256, %260 : vector<8x32xf32>
    %263 = arith.addf %261, %262 : vector<8x32xf32>
    %264 = math.tanh %263 : vector<8x32xf32>
    %265 = arith.mulf %258, %264 : vector<8x32xf32>
    %cst_87 = arith.constant dense<0.000000e+00> : vector<8x32xf32>
    %266 = tpu.matmul %265, %9, %cst_87 {dimension_numbers = #tpu.dot_dimension_numbers<[1], [0], [0], [1], [0, 0, 1, 1], [], []>} : vector<8x32xf32>, vector<32x32xf32>, vector<8x32xf32> -> vector<8x32xf32>
    %267 = arith.addf %266, %12 : vector<8x32xf32>
    %268 = vector.shape_cast %267 : vector<8x32xf32> to vector<8x1x32xf32>
    %269 = vector.broadcast %268 : vector<8x1x32xf32> to vector<8x10x32xf32>
    %270 = arith.mulf %0, %269 : vector<8x10x32xf32>
    %cst_88 = arith.constant dense<0.000000e+00> : vector<8x10xf32>
    %271 = vector.multi_reduction <add>, %270, %cst_88 [2] : vector<8x10x32xf32> to vector<8x10xf32>
    %cst_89 = arith.constant dense<0xFF800000> : vector<8xf32>
    %272 = vector.multi_reduction <maximumf>, %271, %cst_89 [1] : vector<8x10xf32> to vector<8xf32>
    %273 = vector.shape_cast %272 : vector<8xf32> to vector<8x1xf32>
    %274 = vector.broadcast %273 : vector<8x1xf32> to vector<8x10xf32>
    %275 = arith.subf %271, %274 : vector<8x10xf32>
    %276 = math.exp %275 : vector<8x10xf32>
    %cst_90 = arith.constant dense<0.000000e+00> : vector<8xf32>
    %277 = vector.multi_reduction <add>, %276, %cst_90 [1] : vector<8x10xf32> to vector<8xf32>
    %278 = vector.shape_cast %277 : vector<8xf32> to vector<8x1xf32>
    %279 = tpu.reciprocal %278 {approx = true} : vector<8x1xf32> -> vector<8x1xf32>
    %280 = vector.broadcast %279 : vector<8x1xf32> to vector<8x10xf32>
    %281 = arith.mulf %276, %280 : vector<8x10xf32>
    %282 = vector.shape_cast %281 : vector<8x10xf32> to vector<8x10x1xf32>
    %283 = vector.broadcast %282 : vector<8x10x1xf32> to vector<8x10x32xf32>
    %284 = arith.mulf %283, %0 : vector<8x10x32xf32>
    %cst_91 = arith.constant dense<0.000000e+00> : vector<8x32xf32>
    %285 = vector.multi_reduction <add>, %284, %cst_91 [1] : vector<8x10x32xf32> to vector<8x32xf32>
    %cst_92 = arith.constant dense<0.000000e+00> : vector<8x32xf32>
    %286 = tpu.matmul %285, %13, %cst_92 {dimension_numbers = #tpu.dot_dimension_numbers<[1], [0], [0], [1], [0, 0, 1, 1], [], []>} : vector<8x32xf32>, vector<32x32xf32>, vector<8x32xf32> -> vector<8x32xf32>
    %cst_93 = arith.constant dense<0.000000e+00> : vector<8x32xf32>
    %287 = tpu.matmul %265, %14, %cst_93 {dimension_numbers = #tpu.dot_dimension_numbers<[1], [0], [0], [1], [0, 0, 1, 1], [], []>} : vector<8x32xf32>, vector<32x32xf32>, vector<8x32xf32> -> vector<8x32xf32>
    %288 = arith.addf %286, %287 : vector<8x32xf32>
    %289 = arith.addf %288, %17 : vector<8x32xf32>
    %290 = math.tanh %289 : vector<8x32xf32>
    %291 = tpu.concatenate %290, %281, %18 in 1 : vector<8x32xf32>, vector<8x10xf32>, vector<8x86xf32> -> vector<8x128xf32>
    %c3_94 = arith.constant 3 : index
    %c0_95 = arith.constant 0 : index
    %c0_96 = arith.constant 0 : index
    %292 = vector.load %arg14[%c3_94, %c0_95, %c0_96] : memref<6x8x128xf32, #tpu.memory_space<vmem>>, vector<1x8x128xf32>
    %293 = vector.shape_cast %292 : vector<1x8x128xf32> to vector<8x128xf32>
    %294 = vector.shape_cast %291 : vector<8x128xf32> to vector<1x8x128xf32>
    tpu.vector_store %arg14[%c3_94, %c0_95, %c0_96], %294 {strides = array<i32>} : memref<6x8x128xf32, #tpu.memory_space<vmem>>, vector<1x8x128xf32>,
    %c4 = arith.constant 4 : index
    %c0_97 = arith.constant 0 : index
    %c0_98 = arith.constant 0 : index
    %295 = vector.load %arg1[%c4, %c0_97, %c0_98] : memref<6x8x32xf32, #tpu.memory_space<vmem>>, vector<1x8x32xf32>
    %296 = vector.shape_cast %295 : vector<1x8x32xf32> to vector<8x32xf32>
    %297 = tpu.concatenate %296, %247 in 1 : vector<8x32xf32>, vector<8x32xf32> -> vector<8x64xf32>
    %cst_99 = arith.constant dense<0.000000e+00> : vector<8x128xf32>
    %298 = tpu.matmul %297, %1, %cst_99 {dimension_numbers = #tpu.dot_dimension_numbers<[1], [0], [0], [1], [0, 0, 1, 1], [], []>} : vector<8x64xf32>, vector<64x128xf32>, vector<8x128xf32> -> vector<8x128xf32>
    %299 = arith.addf %298, %5 : vector<8x128xf32>
    %300 = arith.negf %299 : vector<8x128xf32>
    %301 = math.exp %300 : vector<8x128xf32>
    %cst_100 = arith.constant 1.000000e+00 : f32
    %302 = vector.broadcast %cst_100 : f32 to vector<8x128xf32>
    %303 = arith.addf %302, %301 : vector<8x128xf32>
    %304 = arith.divf %302, %303 : vector<8x128xf32>
    %305 = vector.extract_strided_slice %304 {offsets = [0, 0], sizes = [8, 32], strides = [1, 1]} : vector<8x128xf32> to vector<8x32xf32>
    %306 = vector.extract_strided_slice %304 {offsets = [0, 32], sizes = [8, 32], strides = [1, 1]} : vector<8x128xf32> to vector<8x32xf32>
    %307 = vector.extract_strided_slice %304 {offsets = [0, 96], sizes = [8, 32], strides = [1, 1]} : vector<8x128xf32> to vector<8x32xf32>
    %308 = vector.extract_strided_slice %299 {offsets = [0, 64], sizes = [8, 32], strides = [1, 1]} : vector<8x128xf32> to vector<8x32xf32>
    %309 = math.tanh %308 : vector<8x32xf32>
    %310 = arith.mulf %306, %245 : vector<8x32xf32>
    %311 = arith.mulf %305, %309 : vector<8x32xf32>
    %312 = arith.addf %310, %311 : vector<8x32xf32>
    %313 = math.tanh %312 : vector<8x32xf32>
    %314 = arith.mulf %307, %313 : vector<8x32xf32>
    %315 = tpu.concatenate %314, %265 in 1 : vector<8x32xf32>, vector<8x32xf32> -> vector<8x64xf32>
    %cst_101 = arith.constant dense<0.000000e+00> : vector<8x128xf32>
    %316 = tpu.matmul %315, %2, %cst_101 {dimension_numbers = #tpu.dot_dimension_numbers<[1], [0], [0], [1], [0, 0, 1, 1], [], []>} : vector<8x64xf32>, vector<64x128xf32>, vector<8x128xf32> -> vector<8x128xf32>
    %317 = arith.addf %316, %8 : vector<8x128xf32>
    %318 = arith.negf %317 : vector<8x128xf32>
    %319 = math.exp %318 : vector<8x128xf32>
    %cst_102 = arith.constant 1.000000e+00 : f32
    %320 = vector.broadcast %cst_102 : f32 to vector<8x128xf32>
    %321 = arith.addf %320, %319 : vector<8x128xf32>
    %322 = arith.divf %320, %321 : vector<8x128xf32>
    %323 = vector.extract_strided_slice %322 {offsets = [0, 0], sizes = [8, 32], strides = [1, 1]} : vector<8x128xf32> to vector<8x32xf32>
    %324 = vector.extract_strided_slice %322 {offsets = [0, 32], sizes = [8, 32], strides = [1, 1]} : vector<8x128xf32> to vector<8x32xf32>
    %325 = vector.extract_strided_slice %322 {offsets = [0, 96], sizes = [8, 32], strides = [1, 1]} : vector<8x128xf32> to vector<8x32xf32>
    %326 = vector.extract_strided_slice %317 {offsets = [0, 64], sizes = [8, 32], strides = [1, 1]} : vector<8x128xf32> to vector<8x32xf32>
    %327 = math.tanh %326 : vector<8x32xf32>
    %328 = arith.mulf %324, %263 : vector<8x32xf32>
    %329 = arith.mulf %323, %327 : vector<8x32xf32>
    %330 = arith.addf %328, %329 : vector<8x32xf32>
    %331 = math.tanh %330 : vector<8x32xf32>
    %332 = arith.mulf %325, %331 : vector<8x32xf32>
    %cst_103 = arith.constant dense<0.000000e+00> : vector<8x32xf32>
    %333 = tpu.matmul %332, %9, %cst_103 {dimension_numbers = #tpu.dot_dimension_numbers<[1], [0], [0], [1], [0, 0, 1, 1], [], []>} : vector<8x32xf32>, vector<32x32xf32>, vector<8x32xf32> -> vector<8x32xf32>
    %334 = arith.addf %333, %12 : vector<8x32xf32>
    %335 = vector.shape_cast %334 : vector<8x32xf32> to vector<8x1x32xf32>
    %336 = vector.broadcast %335 : vector<8x1x32xf32> to vector<8x10x32xf32>
    %337 = arith.mulf %0, %336 : vector<8x10x32xf32>
    %cst_104 = arith.constant dense<0.000000e+00> : vector<8x10xf32>
    %338 = vector.multi_reduction <add>, %337, %cst_104 [2] : vector<8x10x32xf32> to vector<8x10xf32>
    %cst_105 = arith.constant dense<0xFF800000> : vector<8xf32>
    %339 = vector.multi_reduction <maximumf>, %338, %cst_105 [1] : vector<8x10xf32> to vector<8xf32>
    %340 = vector.shape_cast %339 : vector<8xf32> to vector<8x1xf32>
    %341 = vector.broadcast %340 : vector<8x1xf32> to vector<8x10xf32>
    %342 = arith.subf %338, %341 : vector<8x10xf32>
    %343 = math.exp %342 : vector<8x10xf32>
    %cst_106 = arith.constant dense<0.000000e+00> : vector<8xf32>
    %344 = vector.multi_reduction <add>, %343, %cst_106 [1] : vector<8x10xf32> to vector<8xf32>
    %345 = vector.shape_cast %344 : vector<8xf32> to vector<8x1xf32>
    %346 = tpu.reciprocal %345 {approx = true} : vector<8x1xf32> -> vector<8x1xf32>
    %347 = vector.broadcast %346 : vector<8x1xf32> to vector<8x10xf32>
    %348 = arith.mulf %343, %347 : vector<8x10xf32>
    %349 = vector.shape_cast %348 : vector<8x10xf32> to vector<8x10x1xf32>
    %350 = vector.broadcast %349 : vector<8x10x1xf32> to vector<8x10x32xf32>
    %351 = arith.mulf %350, %0 : vector<8x10x32xf32>
    %cst_107 = arith.constant dense<0.000000e+00> : vector<8x32xf32>
    %352 = vector.multi_reduction <add>, %351, %cst_107 [1] : vector<8x10x32xf32> to vector<8x32xf32>
    %cst_108 = arith.constant dense<0.000000e+00> : vector<8x32xf32>
    %353 = tpu.matmul %352, %13, %cst_108 {dimension_numbers = #tpu.dot_dimension_numbers<[1], [0], [0], [1], [0, 0, 1, 1], [], []>} : vector<8x32xf32>, vector<32x32xf32>, vector<8x32xf32> -> vector<8x32xf32>
    %cst_109 = arith.constant dense<0.000000e+00> : vector<8x32xf32>
    %354 = tpu.matmul %332, %14, %cst_109 {dimension_numbers = #tpu.dot_dimension_numbers<[1], [0], [0], [1], [0, 0, 1, 1], [], []>} : vector<8x32xf32>, vector<32x32xf32>, vector<8x32xf32> -> vector<8x32xf32>
    %355 = arith.addf %353, %354 : vector<8x32xf32>
    %356 = arith.addf %355, %17 : vector<8x32xf32>
    %357 = math.tanh %356 : vector<8x32xf32>
    %358 = tpu.concatenate %357, %348, %18 in 1 : vector<8x32xf32>, vector<8x10xf32>, vector<8x86xf32> -> vector<8x128xf32>
    %c4_110 = arith.constant 4 : index
    %c0_111 = arith.constant 0 : index
    %c0_112 = arith.constant 0 : index
    %359 = vector.load %arg14[%c4_110, %c0_111, %c0_112] : memref<6x8x128xf32, #tpu.memory_space<vmem>>, vector<1x8x128xf32>
    %360 = vector.shape_cast %359 : vector<1x8x128xf32> to vector<8x128xf32>
    %361 = vector.shape_cast %358 : vector<8x128xf32> to vector<1x8x128xf32>
    tpu.vector_store %arg14[%c4_110, %c0_111, %c0_112], %361 {strides = array<i32>} : memref<6x8x128xf32, #tpu.memory_space<vmem>>, vector<1x8x128xf32>,
    %c5 = arith.constant 5 : index
    %c0_113 = arith.constant 0 : index
    %c0_114 = arith.constant 0 : index
    %362 = vector.load %arg1[%c5, %c0_113, %c0_114] : memref<6x8x32xf32, #tpu.memory_space<vmem>>, vector<1x8x32xf32>
    %363 = vector.shape_cast %362 : vector<1x8x32xf32> to vector<8x32xf32>
    %364 = tpu.concatenate %363, %314 in 1 : vector<8x32xf32>, vector<8x32xf32> -> vector<8x64xf32>
    %cst_115 = arith.constant dense<0.000000e+00> : vector<8x128xf32>
    %365 = tpu.matmul %364, %1, %cst_115 {dimension_numbers = #tpu.dot_dimension_numbers<[1], [0], [0], [1], [0, 0, 1, 1], [], []>} : vector<8x64xf32>, vector<64x128xf32>, vector<8x128xf32> -> vector<8x128xf32>
    %366 = arith.addf %365, %5 : vector<8x128xf32>
    %367 = arith.negf %366 : vector<8x128xf32>
    %368 = math.exp %367 : vector<8x128xf32>
    %cst_116 = arith.constant 1.000000e+00 : f32
    %369 = vector.broadcast %cst_116 : f32 to vector<8x128xf32>
    %370 = arith.addf %369, %368 : vector<8x128xf32>
    %371 = arith.divf %369, %370 : vector<8x128xf32>
    %372 = vector.extract_strided_slice %371 {offsets = [0, 0], sizes = [8, 32], strides = [1, 1]} : vector<8x128xf32> to vector<8x32xf32>
    %373 = vector.extract_strided_slice %371 {offsets = [0, 32], sizes = [8, 32], strides = [1, 1]} : vector<8x128xf32> to vector<8x32xf32>
    %374 = vector.extract_strided_slice %371 {offsets = [0, 96], sizes = [8, 32], strides = [1, 1]} : vector<8x128xf32> to vector<8x32xf32>
    %375 = vector.extract_strided_slice %366 {offsets = [0, 64], sizes = [8, 32], strides = [1, 1]} : vector<8x128xf32> to vector<8x32xf32>
    %376 = math.tanh %375 : vector<8x32xf32>
    %377 = arith.mulf %373, %312 : vector<8x32xf32>
    %378 = arith.mulf %372, %376 : vector<8x32xf32>
    %379 = arith.addf %377, %378 : vector<8x32xf32>
    %380 = math.tanh %379 : vector<8x32xf32>
    %381 = arith.mulf %374, %380 : vector<8x32xf32>
    %382 = tpu.concatenate %381, %332 in 1 : vector<8x32xf32>, vector<8x32xf32> -> vector<8x64xf32>
    %cst_117 = arith.constant dense<0.000000e+00> : vector<8x128xf32>
    %383 = tpu.matmul %382, %2, %cst_117 {dimension_numbers = #tpu.dot_dimension_numbers<[1], [0], [0], [1], [0, 0, 1, 1], [], []>} : vector<8x64xf32>, vector<64x128xf32>, vector<8x128xf32> -> vector<8x128xf32>
    %384 = arith.addf %383, %8 : vector<8x128xf32>
    %385 = arith.negf %384 : vector<8x128xf32>
    %386 = math.exp %385 : vector<8x128xf32>
    %cst_118 = arith.constant 1.000000e+00 : f32
    %387 = vector.broadcast %cst_118 : f32 to vector<8x128xf32>
    %388 = arith.addf %387, %386 : vector<8x128xf32>
    %389 = arith.divf %387, %388 : vector<8x128xf32>
    %390 = vector.extract_strided_slice %389 {offsets = [0, 0], sizes = [8, 32], strides = [1, 1]} : vector<8x128xf32> to vector<8x32xf32>
    %391 = vector.extract_strided_slice %389 {offsets = [0, 32], sizes = [8, 32], strides = [1, 1]} : vector<8x128xf32> to vector<8x32xf32>
    %392 = vector.extract_strided_slice %389 {offsets = [0, 96], sizes = [8, 32], strides = [1, 1]} : vector<8x128xf32> to vector<8x32xf32>
    %393 = vector.extract_strided_slice %384 {offsets = [0, 64], sizes = [8, 32], strides = [1, 1]} : vector<8x128xf32> to vector<8x32xf32>
    %394 = math.tanh %393 : vector<8x32xf32>
    %395 = arith.mulf %391, %330 : vector<8x32xf32>
    %396 = arith.mulf %390, %394 : vector<8x32xf32>
    %397 = arith.addf %395, %396 : vector<8x32xf32>
    %398 = math.tanh %397 : vector<8x32xf32>
    %399 = arith.mulf %392, %398 : vector<8x32xf32>
    %cst_119 = arith.constant dense<0.000000e+00> : vector<8x32xf32>
    %400 = tpu.matmul %399, %9, %cst_119 {dimension_numbers = #tpu.dot_dimension_numbers<[1], [0], [0], [1], [0, 0, 1, 1], [], []>} : vector<8x32xf32>, vector<32x32xf32>, vector<8x32xf32> -> vector<8x32xf32>
    %401 = arith.addf %400, %12 : vector<8x32xf32>
    %402 = vector.shape_cast %401 : vector<8x32xf32> to vector<8x1x32xf32>
    %403 = vector.broadcast %402 : vector<8x1x32xf32> to vector<8x10x32xf32>
    %404 = arith.mulf %0, %403 : vector<8x10x32xf32>
    %cst_120 = arith.constant dense<0.000000e+00> : vector<8x10xf32>
    %405 = vector.multi_reduction <add>, %404, %cst_120 [2] : vector<8x10x32xf32> to vector<8x10xf32>
    %cst_121 = arith.constant dense<0xFF800000> : vector<8xf32>
    %406 = vector.multi_reduction <maximumf>, %405, %cst_121 [1] : vector<8x10xf32> to vector<8xf32>
    %407 = vector.shape_cast %406 : vector<8xf32> to vector<8x1xf32>
    %408 = vector.broadcast %407 : vector<8x1xf32> to vector<8x10xf32>
    %409 = arith.subf %405, %408 : vector<8x10xf32>
    %410 = math.exp %409 : vector<8x10xf32>
    %cst_122 = arith.constant dense<0.000000e+00> : vector<8xf32>
    %411 = vector.multi_reduction <add>, %410, %cst_122 [1] : vector<8x10xf32> to vector<8xf32>
    %412 = vector.shape_cast %411 : vector<8xf32> to vector<8x1xf32>
    %413 = tpu.reciprocal %412 {approx = true} : vector<8x1xf32> -> vector<8x1xf32>
    %414 = vector.broadcast %413 : vector<8x1xf32> to vector<8x10xf32>
    %415 = arith.mulf %410, %414 : vector<8x10xf32>
    %416 = vector.shape_cast %415 : vector<8x10xf32> to vector<8x10x1xf32>
    %417 = vector.broadcast %416 : vector<8x10x1xf32> to vector<8x10x32xf32>
    %418 = arith.mulf %417, %0 : vector<8x10x32xf32>
    %cst_123 = arith.constant dense<0.000000e+00> : vector<8x32xf32>
    %419 = vector.multi_reduction <add>, %418, %cst_123 [1] : vector<8x10x32xf32> to vector<8x32xf32>
    %cst_124 = arith.constant dense<0.000000e+00> : vector<8x32xf32>
    %420 = tpu.matmul %419, %13, %cst_124 {dimension_numbers = #tpu.dot_dimension_numbers<[1], [0], [0], [1], [0, 0, 1, 1], [], []>} : vector<8x32xf32>, vector<32x32xf32>, vector<8x32xf32> -> vector<8x32xf32>
    %cst_125 = arith.constant dense<0.000000e+00> : vector<8x32xf32>
    %421 = tpu.matmul %399, %14, %cst_125 {dimension_numbers = #tpu.dot_dimension_numbers<[1], [0], [0], [1], [0, 0, 1, 1], [], []>} : vector<8x32xf32>, vector<32x32xf32>, vector<8x32xf32> -> vector<8x32xf32>
    %422 = arith.addf %420, %421 : vector<8x32xf32>
    %423 = arith.addf %422, %17 : vector<8x32xf32>
    %424 = math.tanh %423 : vector<8x32xf32>
    %425 = tpu.concatenate %424, %415, %18 in 1 : vector<8x32xf32>, vector<8x10xf32>, vector<8x86xf32> -> vector<8x128xf32>
    %c5_126 = arith.constant 5 : index
    %c0_127 = arith.constant 0 : index
    %c0_128 = arith.constant 0 : index
    %426 = vector.load %arg14[%c5_126, %c0_127, %c0_128] : memref<6x8x128xf32, #tpu.memory_space<vmem>>, vector<1x8x128xf32>
    %427 = vector.shape_cast %426 : vector<1x8x128xf32> to vector<8x128xf32>
    %428 = vector.shape_cast %425 : vector<8x128xf32> to vector<1x8x128xf32>
    tpu.vector_store %arg14[%c5_126, %c0_127, %c0_128], %428 {strides = array<i32>} : memref<6x8x128xf32, #tpu.memory_space<vmem>>, vector<1x8x128xf32>,
    %c0_129 = arith.constant 0 : index
    %c0_130 = arith.constant 0 : index
    %c0_131 = arith.constant 0 : index
    %429 = vector.load %arg15[%c0_129, %c0_130, %c0_131] : memref<2x8x32xf32, #tpu.memory_space<vmem>>, vector<1x8x32xf32>
    %430 = vector.shape_cast %429 : vector<1x8x32xf32> to vector<8x32xf32>
    %431 = vector.shape_cast %381 : vector<8x32xf32> to vector<1x8x32xf32>
    tpu.vector_store %arg15[%c0_129, %c0_130, %c0_131], %431 {strides = array<i32>} : memref<2x8x32xf32, #tpu.memory_space<vmem>>, vector<1x8x32xf32>,
    %c0_132 = arith.constant 0 : index
    %c0_133 = arith.constant 0 : index
    %c0_134 = arith.constant 0 : index
    %432 = vector.load %arg16[%c0_132, %c0_133, %c0_134] : memref<2x8x32xf32, #tpu.memory_space<vmem>>, vector<1x8x32xf32>
    %433 = vector.shape_cast %432 : vector<1x8x32xf32> to vector<8x32xf32>
    %434 = vector.shape_cast %379 : vector<8x32xf32> to vector<1x8x32xf32>
    tpu.vector_store %arg16[%c0_132, %c0_133, %c0_134], %434 {strides = array<i32>} : memref<2x8x32xf32, #tpu.memory_space<vmem>>, vector<1x8x32xf32>,
    %c1_135 = arith.constant 1 : index
    %c0_136 = arith.constant 0 : index
    %c0_137 = arith.constant 0 : index
    %435 = vector.load %arg15[%c1_135, %c0_136, %c0_137] : memref<2x8x32xf32, #tpu.memory_space<vmem>>, vector<1x8x32xf32>
    %436 = vector.shape_cast %435 : vector<1x8x32xf32> to vector<8x32xf32>
    %437 = vector.shape_cast %399 : vector<8x32xf32> to vector<1x8x32xf32>
    tpu.vector_store %arg15[%c1_135, %c0_136, %c0_137], %437 {strides = array<i32>} : memref<2x8x32xf32, #tpu.memory_space<vmem>>, vector<1x8x32xf32>,
    %c1_138 = arith.constant 1 : index
    %c0_139 = arith.constant 0 : index
    %c0_140 = arith.constant 0 : index
    %438 = vector.load %arg16[%c1_138, %c0_139, %c0_140] : memref<2x8x32xf32, #tpu.memory_space<vmem>>, vector<1x8x32xf32>
    %439 = vector.shape_cast %438 : vector<1x8x32xf32> to vector<8x32xf32>
    %440 = vector.shape_cast %397 : vector<8x32xf32> to vector<1x8x32xf32>
    tpu.vector_store %arg16[%c1_138, %c0_139, %c0_140], %440 {strides = array<i32>} : memref<2x8x32xf32, #tpu.memory_space<vmem>>, vector<1x8x32xf32>,
    return
  }
  func.func @transform_0(%arg0: i32) -> (i32, i32, i32) {
    %c0_i32 = arith.constant 0 : i32
    %c0_i32_0 = arith.constant 0 : i32
    %c0_i32_1 = arith.constant 0 : i32
    return %c0_i32, %arg0, %c0_i32_0 : i32, i32, i32
  }
  func.func @transform_1(%arg0: i32) -> (i32, i32, i32) {
    %c0_i32 = arith.constant 0 : i32
    %c0_i32_0 = arith.constant 0 : i32
    %c0_i32_1 = arith.constant 0 : i32
    return %arg0, %c0_i32, %c0_i32_0 : i32, i32, i32
  }
  func.func @transform_2(%arg0: i32) -> (i32, i32, i32) {
    %c0_i32 = arith.constant 0 : i32
    %c0_i32_0 = arith.constant 0 : i32
    %c0_i32_1 = arith.constant 0 : i32
    return %c0_i32, %arg0, %c0_i32_0 : i32, i32, i32
  }
  func.func @transform_3(%arg0: i32) -> (i32, i32, i32) {
    %c0_i32 = arith.constant 0 : i32
    %c0_i32_0 = arith.constant 0 : i32
    %c0_i32_1 = arith.constant 0 : i32
    return %c0_i32, %arg0, %c0_i32_0 : i32, i32, i32
  }
  func.func @transform_4(%arg0: i32) -> (i32, i32) {
    %c0_i32 = arith.constant 0 : i32
    %c0_i32_0 = arith.constant 0 : i32
    %c0_i32_1 = arith.constant 0 : i32
    return %c0_i32, %c0_i32_0 : i32, i32
  }
  func.func @transform_5(%arg0: i32) -> (i32, i32) {
    %c0_i32 = arith.constant 0 : i32
    %c0_i32_0 = arith.constant 0 : i32
    %c0_i32_1 = arith.constant 0 : i32
    return %c0_i32, %c0_i32_0 : i32, i32
  }
  func.func @transform_6(%arg0: i32) -> (i32, i32) {
    %c0_i32 = arith.constant 0 : i32
    %c0_i32_0 = arith.constant 0 : i32
    %c0_i32_1 = arith.constant 0 : i32
    return %c0_i32, %c0_i32_0 : i32, i32
  }
  func.func @transform_7(%arg0: i32) -> (i32, i32) {
    %c0_i32 = arith.constant 0 : i32
    %c0_i32_0 = arith.constant 0 : i32
    %c0_i32_1 = arith.constant 0 : i32
    return %c0_i32, %c0_i32_0 : i32, i32
  }
  func.func @transform_8(%arg0: i32) -> (i32, i32) {
    %c0_i32 = arith.constant 0 : i32
    %c0_i32_0 = arith.constant 0 : i32
    %c0_i32_1 = arith.constant 0 : i32
    return %c0_i32, %c0_i32_0 : i32, i32
  }
  func.func @transform_9(%arg0: i32) -> (i32, i32) {
    %c0_i32 = arith.constant 0 : i32
    %c0_i32_0 = arith.constant 0 : i32
    %c0_i32_1 = arith.constant 0 : i32
    return %c0_i32, %c0_i32_0 : i32, i32
  }
  func.func @transform_10(%arg0: i32) -> (i32, i32) {
    %c0_i32 = arith.constant 0 : i32
    %c0_i32_0 = arith.constant 0 : i32
    %c0_i32_1 = arith.constant 0 : i32
    return %c0_i32, %c0_i32_0 : i32, i32
  }
  func.func @transform_11(%arg0: i32) -> (i32, i32) {
    %c0_i32 = arith.constant 0 : i32
    %c0_i32_0 = arith.constant 0 : i32
    %c0_i32_1 = arith.constant 0 : i32
    return %c0_i32, %c0_i32_0 : i32, i32
  }
  func.func @transform_12(%arg0: i32) -> (i32, i32) {
    %c0_i32 = arith.constant 0 : i32
    %c0_i32_0 = arith.constant 0 : i32
    %c0_i32_1 = arith.constant 0 : i32
    return %c0_i32, %c0_i32_0 : i32, i32
  }
  func.func @transform_13(%arg0: i32) -> (i32, i32, i32) {
    %c0_i32 = arith.constant 0 : i32
    %c0_i32_0 = arith.constant 0 : i32
    %c0_i32_1 = arith.constant 0 : i32
    return %c0_i32, %arg0, %c0_i32_0 : i32, i32, i32
  }
  func.func @transform_14(%arg0: i32) -> (i32, i32, i32) {
    %c0_i32 = arith.constant 0 : i32
    %c0_i32_0 = arith.constant 0 : i32
    %c0_i32_1 = arith.constant 0 : i32
    return %c0_i32, %arg0, %c0_i32_0 : i32, i32, i32
  }
  func.func @transform_15(%arg0: i32) -> (i32, i32, i32) {
    %c0_i32 = arith.constant 0 : i32
    %c0_i32_0 = arith.constant 0 : i32
    %c0_i32_1 = arith.constant 0 : i32
    return %c0_i32, %arg0, %c0_i32_0 : i32, i32, i32
  }
}

</mosaic_0001>

<llo_original>
// kernel: tpu_custom_call.1
$region0: #{tpu_custom_call.1}
  #allocation0 [shape = 'u32[]', space=smem, size = 0x4, offset = 0x4, fixed_abs, tag = 'smem constant byte address 0x4 - core index']
  #allocation1 [shape = 'u32[144,128]{1,0:T(1,128)}', space=vmem, size = 0x12000, scoped, tag = 'internal scratch']
  %s0 = inlined_call_operand.vmem [shape: f32[6,8,32], index: 0, kind: input, shape index: {}]
  %s1 = inlined_call_operand.vmem [shape: f32[8,10,32], index: 1, kind: input, shape index: {}]
  %s2 = inlined_call_operand.hbm [shape: f32[2,8,32], index: 2, kind: input, shape index: {}]
  %s3 = inlined_call_operand.hbm [shape: f32[2,8,32], index: 3, kind: input, shape index: {}]
  %s4 = inlined_call_operand.vmem [shape: f32[64,128], index: 4, kind: input, shape index: {}]
  %s5 = inlined_call_operand.vmem [shape: f32[1,128], index: 5, kind: input, shape index: {}]
  %s6 = inlined_call_operand.vmem [shape: f32[64,128], index: 6, kind: input, shape index: {}]
  %s7 = inlined_call_operand.vmem [shape: f32[1,128], index: 7, kind: input, shape index: {}]
  %s8 = inlined_call_operand.vmem [shape: f32[32,32], index: 8, kind: input, shape index: {}]
  %s9 = inlined_call_operand.hbm [shape: f32[1,32], index: 9, kind: input, shape index: {}]
  %s10 = inlined_call_operand.vmem [shape: f32[32,32], index: 10, kind: input, shape index: {}]
  %s11 = inlined_call_operand.hbm [shape: f32[32,32], index: 11, kind: input, shape index: {}]
  %s12 = inlined_call_operand.vmem [shape: f32[1,32], index: 12, kind: input, shape index: {}]
  %s13 = inlined_call_operand.hbm [shape: f32[6,8,128], index: 13, kind: output, shape index: {0}]
  %s14 = inlined_call_operand.hbm [shape: f32[2,8,32], index: 14, kind: output, shape index: {1}]
  %s15 = inlined_call_operand.hbm [shape: f32[2,8,32], index: 15, kind: output, shape index: {2}]
  %16 = xla_tuple %s13, %s14, %s15
  %s17 = sld [smem:[#allocation0]]
  $region94: #{tpu_custom_call.1} parent=0
    _
  %s19 = ssub.s32 1, %s17
  %s20 = scalar_select 0, %s19, %s17
  $region1: #{tpu_custom_call.1} parent=0
    #allocation2 [shape = 'u8[8192]{0}', space=vmem, size = 0x2000, scoped, tag = 'input window, operand 2, single buffered']
    #allocation3 [shape = 's32[1]{0}', space=sflag, size = 0x4, scoped, tag = 'scoped memory for tpu_custom_call.1']
    #allocation4 [shape = 's32[1]{0}', space=sflag, size = 0x4, scoped, tag = 'scoped memory for tpu_custom_call.1']
    #allocation5 [shape = 'u8[8192]{0}', space=vmem, size = 0x2000, scoped, tag = 'input window, operand 3, single buffered']
    #allocation6 [shape = 's32[1]{0}', space=sflag, size = 0x4, scoped, tag = 'scoped memory for tpu_custom_call.1']
    #allocation7 [shape = 'u8[512]{0}', space=vmem, size = 0x400, scoped, tag = 'input window, operand 9, single buffered']
    #allocation8 [shape = 'u8[16384]{0}', space=vmem, size = 0x4000, scoped, tag = 'input window, operand 11, single buffered']
    #allocation9 [shape = 's32[1]{0}', space=sflag, size = 0x4, scoped, tag = 'scoped memory for tpu_custom_call.1']
    #allocation10 [shape = 'u8[24576]{0}', space=vmem, size = 0x6000, scoped, tag = 'output window, operand 0, single buffered']
    #allocation11 [shape = 'u8[8192]{0}', space=vmem, size = 0x2000, scoped, tag = 'output window, operand 1, single buffered']
    #allocation12 [shape = 's32[1]{0}', space=sflag, size = 0x4, scoped, tag = 'scoped memory for tpu_custom_call.1']
    #allocation13 [shape = 'u8[8192]{0}', space=vmem, size = 0x2000, scoped, tag = 'output window, operand 2, single buffered']
    %21 = vsyncpa [#allocation3], 0
    %22 = vsyncpa [#allocation6], 0
    %23 = vsyncpa [#allocation9], 0
    %24 = vsyncpa [#allocation4], 0
    %25 = vsyncpa [#allocation12], 0
    // Predicated region
    $region2: #{tpu_custom_call.1} parent=1 // pred_check
      _
    $region3: #{tpu_custom_call.1} parent=1 // pred_check_branch
      %27 = sbr.rel (0) target = $region5
    $region4: #{tpu_custom_call.1} parent=1 // pred_region
      _
    $region5: #{tpu_custom_call.1} parent=1 // pred_fallthru
      _
    // Predicated region
    $region6: #{tpu_custom_call.1} parent=1 // pred_check
      _
    $region7: #{tpu_custom_call.1} parent=1 // pred_check_branch
      %29 = sbr.rel (0) target = $region9
    $region8: #{tpu_custom_call.1} parent=1 // pred_region
      _
    $region9: #{tpu_custom_call.1} parent=1 // pred_fallthru
      _
    // Predicated region
    $region10: #{tpu_custom_call.1} parent=1 // pred_check
      _
    $region11: #{tpu_custom_call.1} parent=1 // pred_check_branch
      %31 = sbr.rel (0) target = $region13
    $region12: #{tpu_custom_call.1} parent=1 // pred_region
      %s33 = ssub.s32 256, 256
      %34 = vsyncadd [#allocation3], %s33
      %s35 = sshll.u32 [#allocation2], 4
      %s36 = int_to_ptr.vmem [resolvable:$true] %s35
      %41 = dma.hbm_to_vmem [thread:$0]  %s2, 256, %s36, [#allocation3], 128, 128, 8
    $region13: #{tpu_custom_call.1} parent=1 // pred_fallthru
      _
    // Predicated region
    $region14: #{tpu_custom_call.1} parent=1 // pred_check
      _
    $region15: #{tpu_custom_call.1} parent=1 // pred_check_branch
      %43 = sbr.rel (0) target = $region17
    $region16: #{tpu_custom_call.1} parent=1 // pred_region
      %s45 = ssub.s32 256, 256
      %46 = vsyncadd [#allocation6], %s45
      %s47 = sshll.u32 [#allocation5], 4
      %s48 = int_to_ptr.vmem [resolvable:$true] %s47
      %53 = dma.hbm_to_vmem [thread:$0]  %s3, 256, %s48, [#allocation6], 128, 128, 8
    $region17: #{tpu_custom_call.1} parent=1 // pred_fallthru
      _
    // Predicated region
    $region18: #{tpu_custom_call.1} parent=1 // pred_check
      _
    $region19: #{tpu_custom_call.1} parent=1 // pred_check_branch
      %55 = sbr.rel (0) target = $region21
    $region20: #{tpu_custom_call.1} parent=1 // pred_region
      _
    $region21: #{tpu_custom_call.1} parent=1 // pred_fallthru
      _
    // Predicated region
    $region22: #{tpu_custom_call.1} parent=1 // pred_check
      _
    $region23: #{tpu_custom_call.1} parent=1 // pred_check_branch
      %57 = sbr.rel (0) target = $region25
    $region24: #{tpu_custom_call.1} parent=1 // pred_region
      _
    $region25: #{tpu_custom_call.1} parent=1 // pred_fallthru
      _
    // Predicated region
    $region26: #{tpu_custom_call.1} parent=1 // pred_check
      _
    $region27: #{tpu_custom_call.1} parent=1 // pred_check_branch
      %59 = sbr.rel (0) target = $region29
    $region28: #{tpu_custom_call.1} parent=1 // pred_region
      _
    $region29: #{tpu_custom_call.1} parent=1 // pred_fallthru
      _
    // Predicated region
    $region30: #{tpu_custom_call.1} parent=1 // pred_check
      _
    $region31: #{tpu_custom_call.1} parent=1 // pred_check_branch
      %61 = sbr.rel (0) target = $region33
    $region32: #{tpu_custom_call.1} parent=1 // pred_region
      _
    $region33: #{tpu_custom_call.1} parent=1 // pred_fallthru
      _
    // Predicated region
    $region34: #{tpu_custom_call.1} parent=1 // pred_check
      _
    $region35: #{tpu_custom_call.1} parent=1 // pred_check_branch
      %63 = sbr.rel (0) target = $region37
    $region36: #{tpu_custom_call.1} parent=1 // pred_region
      _
    $region37: #{tpu_custom_call.1} parent=1 // pred_fallthru
      _
    // Predicated region
    $region38: #{tpu_custom_call.1} parent=1 // pred_check
      _
    $region39: #{tpu_custom_call.1} parent=1 // pred_check_branch
      %65 = sbr.rel (0) target = $region41
    $region40: #{tpu_custom_call.1} parent=1 // pred_region
      %s67 = ssub.s32 16, 16
      %68 = vsyncadd [#allocation6], %s67
      %s70 = sshll.u32 [#allocation7], 4
      %s71 = int_to_ptr.vmem [resolvable:$true] %s70
      %73 = dma.hbm_to_vmem [thread:$0]  %s9, 16, %s71, [#allocation6]
    $region41: #{tpu_custom_call.1} parent=1 // pred_fallthru
      _
    // Predicated region
    $region42: #{tpu_custom_call.1} parent=1 // pred_check
      _
    $region43: #{tpu_custom_call.1} parent=1 // pred_check_branch
      %75 = sbr.rel (0) target = $region45
    $region44: #{tpu_custom_call.1} parent=1 // pred_region
      _
    $region45: #{tpu_custom_call.1} parent=1 // pred_fallthru
      _
    // Predicated region
    $region46: #{tpu_custom_call.1} parent=1 // pred_check
      _
    $region47: #{tpu_custom_call.1} parent=1 // pred_check_branch
      %77 = sbr.rel (0) target = $region49
    $region48: #{tpu_custom_call.1} parent=1 // pred_region
      %s79 = ssub.s32 512, 512
      %80 = vsyncadd [#allocation9], %s79
      %s81 = sshll.u32 [#allocation8], 4
      %s82 = int_to_ptr.vmem [resolvable:$true] %s81
      %87 = dma.hbm_to_vmem [thread:$0]  %s11, 512, %s82, [#allocation9], 128, 128, 8
    $region49: #{tpu_custom_call.1} parent=1 // pred_fallthru
      _
    // Predicated region
    $region50: #{tpu_custom_call.1} parent=1 // pred_check
      _
    $region51: #{tpu_custom_call.1} parent=1 // pred_check_branch
      %89 = sbr.rel (0) target = $region53
    $region52: #{tpu_custom_call.1} parent=1 // pred_region
      _
    $region53: #{tpu_custom_call.1} parent=1 // pred_fallthru
      _
    // Predicated region
    $region54: #{tpu_custom_call.1} parent=1 // pred_check
      _
    $region55: #{tpu_custom_call.1} parent=1 // pred_check_branch
      %91 = sbr.rel (0) target = $region57
    $region56: #{tpu_custom_call.1} parent=1 // pred_region
      %92 = dma.done [#allocation3], 256
    $region57: #{tpu_custom_call.1} parent=1 // pred_fallthru
      _
    // Predicated region
    $region58: #{tpu_custom_call.1} parent=1 // pred_check
      _
    $region59: #{tpu_custom_call.1} parent=1 // pred_check_branch
      %94 = sbr.rel (0) target = $region61
    $region60: #{tpu_custom_call.1} parent=1 // pred_region
      %95 = dma.done [#allocation6], 256
    $region61: #{tpu_custom_call.1} parent=1 // pred_fallthru
      _
    // Predicated region
    $region62: #{tpu_custom_call.1} parent=1 // pred_check
      _
    $region63: #{tpu_custom_call.1} parent=1 // pred_check_branch
      %97 = sbr.rel (0) target = $region65
    $region64: #{tpu_custom_call.1} parent=1 // pred_region
      %98 = dma.done [#allocation6], 16
    $region65: #{tpu_custom_call.1} parent=1 // pred_fallthru
      _
    // Predicated region
    $region66: #{tpu_custom_call.1} parent=1 // pred_check
      _
    $region67: #{tpu_custom_call.1} parent=1 // pred_check_branch
      %100 = sbr.rel (0) target = $region69
    $region68: #{tpu_custom_call.1} parent=1 // pred_region
      %101 = dma.done [#allocation9], 512
    $region69: #{tpu_custom_call.1} parent=1 // pred_fallthru
      _
    %v102 = vld [vmem:[%s1] sm:$0xff]
    %v103 = vld [vmem:[%s1 + $0x8] sm:$0x3]
    %v104 = vld [vmem:[%s1 + $0x10] sm:$0xff]
    %v105 = vld [vmem:[%s1 + $0x18] sm:$0x3]
    %v106 = vld [vmem:[%s1 + $0x20] sm:$0xff]
    %v107 = vld [vmem:[%s1 + $0x28] sm:$0x3]
    %v108 = vld [vmem:[%s1 + $0x30] sm:$0xff]
    %v109 = vld [vmem:[%s1 + $0x38] sm:$0x3]
    %v110 = vld [vmem:[%s1 + $0x40] sm:$0xff]
    %v111 = vld [vmem:[%s1 + $0x48] sm:$0x3]
    %v112 = vld [vmem:[%s1 + $0x50] sm:$0xff]
    %v113 = vld [vmem:[%s1 + $0x58] sm:$0x3]
    %v114 = vld [vmem:[%s1 + $0x60] sm:$0xff]
    %v115 = vld [vmem:[%s1 + $0x68] sm:$0x3]
    %v116 = vld [vmem:[%s1 + $0x70] sm:$0xff]
    %v117 = vld [vmem:[%s1 + $0x78] sm:$0x3]
    %v118 = vld [vmem:[%s4] sm:$0xff]
    %v119 = vld [vmem:[%s4 + $0x8] sm:$0xff]
    %v120 = vld [vmem:[%s4 + $0x10] sm:$0xff]
    %v121 = vld [vmem:[%s4 + $0x18] sm:$0xff]
    %v122 = vld [vmem:[%s4 + $0x20] sm:$0xff]
    %v123 = vld [vmem:[%s4 + $0x28] sm:$0xff]
    %v124 = vld [vmem:[%s4 + $0x30] sm:$0xff]
    %v125 = vld [vmem:[%s4 + $0x38] sm:$0xff]
    %v126 = vld [vmem:[%s6] sm:$0xff]
    %v127 = vld [vmem:[%s6 + $0x8] sm:$0xff]
    %v128 = vld [vmem:[%s6 + $0x10] sm:$0xff]
    %v129 = vld [vmem:[%s6 + $0x18] sm:$0xff]
    %v130 = vld [vmem:[%s6 + $0x20] sm:$0xff]
    %v131 = vld [vmem:[%s6 + $0x28] sm:$0xff]
    %v132 = vld [vmem:[%s6 + $0x30] sm:$0xff]
    %v133 = vld [vmem:[%s6 + $0x38] sm:$0xff]
    %v134 = vld [vmem:[%s5] sm:$0x1]
    %v136 = vlaneseq
    %v137 = vshrl.u32 %v136, 7
    %v138 = vsub.s32 0, %v137
    %v139 = vrot.slane %v134, %v138
    %v141 = vld [vmem:[%s7] sm:$0x1]
    %v143 = vlaneseq
    %v144 = vshrl.u32 %v143, 7
    %v145 = vsub.s32 0, %v144
    %v146 = vrot.slane %v141, %v145
    %v148 = vld [vmem:[%s8] sm:$0xff]
    %v149 = vld [vmem:[%s8 + $0x8] sm:$0xff]
    %v150 = vld [vmem:[%s8 + $0x10] sm:$0xff]
    %v151 = vld [vmem:[%s8 + $0x18] sm:$0xff]
    %v152 = vld [vmem:[#allocation7] sm:$0x1]
    %v154 = vlaneseq
    %v155 = vshrl.u32 %v154, 7
    %v156 = vsub.s32 0, %v155
    %v157 = vrot.slane %v152, %v156
    %v159 = vld [vmem:[%s10] sm:$0xff]
    %v160 = vld [vmem:[%s10 + $0x8] sm:$0xff]
    %v161 = vld [vmem:[%s10 + $0x10] sm:$0xff]
    %v162 = vld [vmem:[%s10 + $0x18] sm:$0xff]
    %v163 = vld [vmem:[#allocation8] sm:$0xff]
    %v164 = vld [vmem:[#allocation8 + $0x8] sm:$0xff]
    %v165 = vld [vmem:[#allocation8 + $0x10] sm:$0xff]
    %v166 = vld [vmem:[#allocation8 + $0x18] sm:$0xff]
    %v167 = vld [vmem:[%s12] sm:$0x1]
    %v169 = vlaneseq
    %v170 = vshrl.u32 %v169, 7
    %v171 = vsub.s32 0, %v170
    %v172 = vrot.slane %v167, %v171
    %v174 = vld [vmem:[#allocation2] sm:$0xff]
    %s175 = scalar_lea.vmem [#allocation2], 8
    %v176 = vld [vmem:[%s175] sm:$0xff]
    %v177 = vld [vmem:[#allocation5] sm:$0xff]
    %s178 = scalar_lea.vmem [#allocation5], 8
    %v179 = vld [vmem:[%s178] sm:$0xff]
    %v180 = vld [vmem:[%s0] sm:$0xff]
    %182 = vrot.lane.b32.xlu0 %v174, 32
    %v183 = vpop.permute.xlu0 %182
    %vm185 = vcmask 261120
    %v186 = vsel %vm185, %v180, %v183
    %vm187 = vcmask 523264
    %v189 = vsel %vm187, %v186, 0
    %191 = vmatprep.subr.mxu0 0.0
    %192 = vmatpush1.msra.mxu0 %v118
    %193 = vmatprep.subr.mxu0 0.0
    %194 = vmatpush1.msra.mxu0 %v119
    %195 = vmatprep.subr.mxu0 0.0
    %196 = vmatpush1.msra.mxu0 %v120
    %197 = vmatprep.subr.mxu0 0.0
    %198 = vmatpush1.msra.mxu0 %v121
    %199 = vmatprep.subr.mxu0 0.0
    %200 = vmatpush1.msra.mxu0 %v122
    %201 = vmatprep.subr.mxu0 0.0
    %202 = vmatpush1.msra.mxu0 %v123
    %203 = vmatprep.subr.mxu0 0.0
    %204 = vmatpush1.msra.mxu0 %v124
    %205 = vmatprep.subr.mxu0 0.0
    %206 = vmatpush1.msra.mxu0 %v125
    %207 = vmatprep.subr.mxu0 0.0
    %208 = vmatpush1.msra.mxu0 0.0
    %209 = vmatprep.subr.mxu0 0.0
    %210 = vmatpush1.msra.mxu0 0.0
    %211 = vmatprep.subr.mxu0 0.0
    %212 = vmatpush1.msra.mxu0 0.0
    %213 = vmatprep.subr.mxu0 0.0
    %214 = vmatpush1.msra.mxu0 0.0
    %215 = vmatprep.subr.mxu0 0.0
    %216 = vmatpush1.msra.mxu0 0.0
    %217 = vmatprep.subr.mxu0 0.0
    %218 = vmatpush1.msra.mxu0 0.0
    %219 = vmatprep.subr.mxu0 0.0
    %220 = vmatpush1.msra.mxu0 0.0
    %221 = vmatprep.subr.mxu0 0.0
    %222 = vmatpush1.msra.mxu0 0.0
    %223 = vmatprep.subr.mxu0 0.0
    %224 = vmatpush1.msra.mxu0 0.0
    %225 = vmatprep.subr.mxu0 0.0
    %226 = vmatpush1.msra.mxu0 0.0
    %227 = vmatprep.subr.mxu0 0.0
    %228 = vmatpush1.msra.mxu0 0.0
    %229 = vmatprep.subr.mxu0 0.0
    %230 = vmatpush1.msra.mxu0 0.0
    %231 = vmatprep.subr.mxu0 0.0
    %232 = vmatpush1.msra.mxu0 0.0
    %233 = vmatprep.subr.mxu0 0.0
    %234 = vmatpush1.msra.mxu0 0.0
    %235 = vmatprep.subr.mxu0 0.0
    %236 = vmatpush1.msra.mxu0 0.0
    %237 = vmatprep.subr.mxu0 0.0
    %238 = vmatpush1.msra.mxu0 0.0
    %239 = vmatprep.subr.mxu0 0.0
    %240 = vmatpush1.msra.mxu0 0.0
    %241 = vmatprep.subr.mxu0 0.0
    %242 = vmatpush1.msra.mxu0 0.0
    %243 = vmatprep.subr.mxu0 0.0
    %244 = vmatpush1.msra.mxu0 0.0
    %245 = vmatprep.subr.mxu0 0.0
    %246 = vmatpush1.msra.mxu0 0.0
    %247 = vmatprep.subr.mxu0 0.0
    %248 = vmatpush1.msra.mxu0 0.0
    %249 = vmatprep.subr.mxu0 0.0
    %250 = vmatpush1.msra.mxu0 0.0
    %251 = vmatprep.subr.mxu0 0.0
    %252 = vmatpush1.msra.mxu0 0.0
    %253 = vmatprep.subr.mxu0 0.0
    %254 = vmatpush1.msra.mxu0 0.0
    %255 = vmatprep.mubr.f32.mxu0 0.0
    %256 = vmatmul.mubr.f32.gmra.mrb[0].mxu0 %v189
    %v257 = vpop.f32.mrb[0].mxu0
    %v258 = vadd.f32 %v139, %v257
    %v259 = vpop.f32.mrb[0].mxu0
    %260 = vdwg.mxu0
    %v261 = vxor.u32 %v258, 2147483648
    %v262 = vmul.f32 %v261, 1.442695
    %v263 = vpow.pop %v262
    %v264 = vadd.f32 %v263, 1.0
    %v265 = vrcp.pop %v264
    %v266 = vmul.f32 1.0, %v265
    %v267 = vtanh.pop %v258
    %269 = vrot.lane.b32.xlu0 %v177, 32
    %v270 = vpop.permute.xlu0 %269
    %v272 = vmul.f32 %v266, %v270
    %274 = vrot.lane.b32.xlu0 %v267, 64
    %v275 = vpop.permute.xlu0 %274
    %v277 = vmul.f32 %v266, %v275
    %279 = vrot.lane.b32.xlu0 %v277, 32
    %v280 = vpop.permute.xlu0 %279
    %v282 = vadd.f32 %v272, %v280
    %v283 = vtanh.pop %v282
    %285 = vrot.lane.b32.xlu0 %v283, 64
    %v286 = vpop.permute.xlu0 %285
    %v288 = vmul.f32 %v266, %v286
    %290 = vrot.lane.b32.xlu0 %v288, 32
    %v291 = vpop.permute.xlu0 %290
    %294 = vrot.lane.b32.xlu0 %v176, 32
    %v295 = vpop.permute.xlu0 %294
    %v297 = vsel %vm185, %v291, %v295
    %v299 = vsel %vm187, %v297, 0
    %301 = vmatprep.subr.mxu0 0.0
    %302 = vmatpush1.msra.mxu0 %v126
    %303 = vmatprep.subr.mxu0 0.0
    %304 = vmatpush1.msra.mxu0 %v127
    %305 = vmatprep.subr.mxu0 0.0
    %306 = vmatpush1.msra.mxu0 %v128
    %307 = vmatprep.subr.mxu0 0.0
    %308 = vmatpush1.msra.mxu0 %v129
    %309 = vmatprep.subr.mxu0 0.0
    %310 = vmatpush1.msra.mxu0 %v130
    %311 = vmatprep.subr.mxu0 0.0
    %312 = vmatpush1.msra.mxu0 %v131
    %313 = vmatprep.subr.mxu0 0.0
    %314 = vmatpush1.msra.mxu0 %v132
    %315 = vmatprep.subr.mxu0 0.0
    %316 = vmatpush1.msra.mxu0 %v133
    %317 = vmatprep.subr.mxu0 0.0
    %318 = vmatpush1.msra.mxu0 0.0
    %319 = vmatprep.subr.mxu0 0.0
    %320 = vmatpush1.msra.mxu0 0.0
    %321 = vmatprep.subr.mxu0 0.0
    %322 = vmatpush1.msra.mxu0 0.0
    %323 = vmatprep.subr.mxu0 0.0
    %324 = vmatpush1.msra.mxu0 0.0
    %325 = vmatprep.subr.mxu0 0.0
    %326 = vmatpush1.msra.mxu0 0.0
    %327 = vmatprep.subr.mxu0 0.0
    %328 = vmatpush1.msra.mxu0 0.0
    %329 = vmatprep.subr.mxu0 0.0
    %330 = vmatpush1.msra.mxu0 0.0
    %331 = vmatprep.subr.mxu0 0.0
    %332 = vmatpush1.msra.mxu0 0.0
    %333 = vmatprep.subr.mxu0 0.0
    %334 = vmatpush1.msra.mxu0 0.0
    %335 = vmatprep.subr.mxu0 0.0
    %336 = vmatpush1.msra.mxu0 0.0
    %337 = vmatprep.subr.mxu0 0.0
    %338 = vmatpush1.msra.mxu0 0.0
    %339 = vmatprep.subr.mxu0 0.0
    %340 = vmatpush1.msra.mxu0 0.0
    %341 = vmatprep.subr.mxu0 0.0
    %342 = vmatpush1.msra.mxu0 0.0
    %343 = vmatprep.subr.mxu0 0.0
    %344 = vmatpush1.msra.mxu0 0.0
    %345 = vmatprep.subr.mxu0 0.0
    %346 = vmatpush1.msra.mxu0 0.0
    %347 = vmatprep.subr.mxu0 0.0
    %348 = vmatpush1.msra.mxu0 0.0
    %349 = vmatprep.subr.mxu0 0.0
    %350 = vmatpush1.msra.mxu0 0.0
    %351 = vmatprep.subr.mxu0 0.0
    %352 = vmatpush1.msra.mxu0 0.0
    %353 = vmatprep.subr.mxu0 0.0
    %354 = vmatpush1.msra.mxu0 0.0
    %355 = vmatprep.subr.mxu0 0.0
    %356 = vmatpush1.msra.mxu0 0.0
    %357 = vmatprep.subr.mxu0 0.0
    %358 = vmatpush1.msra.mxu0 0.0
    %359 = vmatprep.subr.mxu0 0.0
    %360 = vmatpush1.msra.mxu0 0.0
    %361 = vmatprep.subr.mxu0 0.0
    %362 = vmatpush1.msra.mxu0 0.0
    %363 = vmatprep.subr.mxu0 0.0
    %364 = vmatpush1.msra.mxu0 0.0
    %365 = vmatprep.mubr.f32.mxu0 0.0
    %366 = vmatmul.mubr.f32.gmra.mrb[0].mxu0 %v299
    %v367 = vpop.f32.mrb[0].mxu0
    %v368 = vadd.f32 %v146, %v367
    %v369 = vpop.f32.mrb[0].mxu0
    %370 = vdwg.mxu0
    %v371 = vxor.u32 %v368, 2147483648
    %v372 = vmul.f32 %v371, 1.442695
    %v373 = vpow.pop %v372
    %v374 = vadd.f32 %v373, 1.0
    %v375 = vrcp.pop %v374
    %v376 = vmul.f32 1.0, %v375
    %v377 = vtanh.pop %v368
    %379 = vrot.lane.b32.xlu0 %v179, 32
    %v380 = vpop.permute.xlu0 %379
    %v382 = vmul.f32 %v376, %v380
    %384 = vrot.lane.b32.xlu0 %v377, 64
    %v385 = vpop.permute.xlu0 %384
    %v387 = vmul.f32 %v376, %v385
    %389 = vrot.lane.b32.xlu0 %v387, 32
    %v390 = vpop.permute.xlu0 %389
    %v392 = vadd.f32 %v382, %v390
    %v393 = vtanh.pop %v392
    %395 = vrot.lane.b32.xlu0 %v393, 64
    %v396 = vpop.permute.xlu0 %395
    %v398 = vmul.f32 %v376, %v396
    %400 = vrot.lane.b32.xlu0 %v398, 32
    %v401 = vpop.permute.xlu0 %400
    %v402 = vsel %vm185, %v401, 0
    %404 = vmatprep.subr.mxu0 0.0
    %405 = vmatpush1.msra.mxu0 %v148
    %406 = vmatprep.subr.mxu0 0.0
    %407 = vmatpush1.msra.mxu0 %v149
    %408 = vmatprep.subr.mxu0 0.0
    %409 = vmatpush1.msra.mxu0 %v150
    %410 = vmatprep.subr.mxu0 0.0
    %411 = vmatpush1.msra.mxu0 %v151
    %412 = vmatprep.subr.mxu0 0.0
    %413 = vmatpush1.msra.mxu0 0.0
    %414 = vmatprep.subr.mxu0 0.0
    %415 = vmatpush1.msra.mxu0 0.0
    %416 = vmatprep.subr.mxu0 0.0
    %417 = vmatpush1.msra.mxu0 0.0
    %418 = vmatprep.subr.mxu0 0.0
    %419 = vmatpush1.msra.mxu0 0.0
    %420 = vmatprep.subr.mxu0 0.0
    %421 = vmatpush1.msra.mxu0 0.0
    %422 = vmatprep.subr.mxu0 0.0
    %423 = vmatpush1.msra.mxu0 0.0
    %424 = vmatprep.subr.mxu0 0.0
    %425 = vmatpush1.msra.mxu0 0.0
    %426 = vmatprep.subr.mxu0 0.0
    %427 = vmatpush1.msra.mxu0 0.0
    %428 = vmatprep.subr.mxu0 0.0
    %429 = vmatpush1.msra.mxu0 0.0
    %430 = vmatprep.subr.mxu0 0.0
    %431 = vmatpush1.msra.mxu0 0.0
    %432 = vmatprep.subr.mxu0 0.0
    %433 = vmatpush1.msra.mxu0 0.0
    %434 = vmatprep.subr.mxu0 0.0
    %435 = vmatpush1.msra.mxu0 0.0
    %436 = vmatprep.subr.mxu0 0.0
    %437 = vmatpush1.msra.mxu0 0.0
    %438 = vmatprep.subr.mxu0 0.0
    %439 = vmatpush1.msra.mxu0 0.0
    %440 = vmatprep.subr.mxu0 0.0
    %441 = vmatpush1.msra.mxu0 0.0
    %442 = vmatprep.subr.mxu0 0.0
    %443 = vmatpush1.msra.mxu0 0.0
    %444 = vmatprep.subr.mxu0 0.0
    %445 = vmatpush1.msra.mxu0 0.0
    %446 = vmatprep.subr.mxu0 0.0
    %447 = vmatpush1.msra.mxu0 0.0
    %448 = vmatprep.subr.mxu0 0.0
    %449 = vmatpush1.msra.mxu0 0.0
    %450 = vmatprep.subr.mxu0 0.0
    %451 = vmatpush1.msra.mxu0 0.0
    %452 = vmatprep.subr.mxu0 0.0
    %453 = vmatpush1.msra.mxu0 0.0
    %454 = vmatprep.subr.mxu0 0.0
    %455 = vmatpush1.msra.mxu0 0.0
    %456 = vmatprep.subr.mxu0 0.0
    %457 = vmatpush1.msra.mxu0 0.0
    %458 = vmatprep.subr.mxu0 0.0
    %459 = vmatpush1.msra.mxu0 0.0
    %460 = vmatprep.subr.mxu0 0.0
    %461 = vmatpush1.msra.mxu0 0.0
    %462 = vmatprep.subr.mxu0 0.0
    %463 = vmatpush1.msra.mxu0 0.0
    %464 = vmatprep.subr.mxu0 0.0
    %465 = vmatpush1.msra.mxu0 0.0
    %466 = vmatprep.subr.mxu0 0.0
    %467 = vmatpush1.msra.mxu0 0.0
    %468 = vmatprep.mubr.f32.mxu0 0.0
    %469 = vmatmul.mubr.f32.gmra.mrb[0].mxu0 %v402
    %v470 = vpop.f32.mrb[0].mxu0
    %v471 = vadd.f32 %v157, %v470
    %v472 = vpop.f32.mrb[0].mxu0
    %473 = vdwg.mxu0
    %v475 = vcombine.high %v471, %v471
    %v477 = vunpack.c.l.s4 1966171168
    %v478 = vunpack.c.0.s8 %v477
    %v479 = vlaneseq
    %v480 = vshrl.u32 %v479, 7
    %v481 = vsub.s32 %v478, %v480
    %v482 = vrot.slane %v471, %v481
    %v484 = vunpack.c.l.s4 1966171168
    %v485 = vunpack.c.0.s8 %v484
    %v486 = vlaneseq
    %v487 = vshrl.u32 %v486, 7
    %v488 = vsub.s32 %v485, %v487
    %v489 = vrot.slane %v475, %v488
    %v490 = vcombine.high %v482, %v482
    %v491 = vcombine.high %v489, %v489
    %v493 = vunpack.c.l.s4 1966171168
    %v494 = vunpack.c.0.s8 %v493
    %v495 = vlaneseq
    %v496 = vshrl.u32 %v495, 7
    %v497 = vsub.s32 %v494, %v496
    %v498 = vrot.slane %v482, %v497
    %v500 = vunpack.c.l.s4 1966171168
    %v501 = vunpack.c.0.s8 %v500
    %v502 = vlaneseq
    %v503 = vshrl.u32 %v502, 7
    %v504 = vsub.s32 %v501, %v503
    %v505 = vrot.slane %v489, %v504
    %v507 = vunpack.c.l.s4 1966171168
    %v508 = vunpack.c.0.s8 %v507
    %v509 = vlaneseq
    %v510 = vshrl.u32 %v509, 7
    %v511 = vsub.s32 %v508, %v510
    %v512 = vrot.slane %v490, %v511
    %v514 = vunpack.c.l.s4 1966171168
    %v515 = vunpack.c.0.s8 %v514
    %v516 = vlaneseq
    %v517 = vshrl.u32 %v516, 7
    %v518 = vsub.s32 %v515, %v517
    %v519 = vrot.slane %v491, %v518
    %v520 = vcombine.high %v498, %v498
    %v521 = vcombine.high %v505, %v505
    %v522 = vcombine.high %v512, %v512
    %v523 = vcombine.high %v519, %v519
    %v524 = vlaneseq
    %v525 = vshrl.u32 %v524, 7
    %v526 = vsub.s32 0, %v525
    %v527 = vrot.slane %v498, %v526
    %v528 = vlaneseq
    %v529 = vshrl.u32 %v528, 7
    %v530 = vsub.s32 0, %v529
    %v531 = vrot.slane %v512, %v530
    %v532 = vlaneseq
    %v533 = vshrl.u32 %v532, 7
    %v534 = vsub.s32 0, %v533
    %v535 = vrot.slane %v520, %v534
    %v536 = vlaneseq
    %v537 = vshrl.u32 %v536, 7
    %v538 = vsub.s32 0, %v537
    %v539 = vrot.slane %v522, %v538
    %v540 = vlaneseq
    %v541 = vshrl.u32 %v540, 7
    %v542 = vsub.s32 0, %v541
    %v543 = vrot.slane %v505, %v542
    %v544 = vlaneseq
    %v545 = vshrl.u32 %v544, 7
    %v546 = vsub.s32 0, %v545
    %v547 = vrot.slane %v519, %v546
    %v548 = vlaneseq
    %v549 = vshrl.u32 %v548, 7
    %v550 = vsub.s32 0, %v549
    %v551 = vrot.slane %v521, %v550
    %v552 = vlaneseq
    %v553 = vshrl.u32 %v552, 7
    %v554 = vsub.s32 0, %v553
    %v555 = vrot.slane %v523, %v554
    %v564 = vmul.f32 %v102, %v527
    %v565 = vmul.f32 %v103, %v527
    %v566 = vmul.f32 %v104, %v531
    %v567 = vmul.f32 %v105, %v531
    %v568 = vmul.f32 %v106, %v535
    %v569 = vmul.f32 %v107, %v535
    %v570 = vmul.f32 %v108, %v539
    %v571 = vmul.f32 %v109, %v539
    %v572 = vmul.f32 %v110, %v543
    %v573 = vmul.f32 %v111, %v543
    %v574 = vmul.f32 %v112, %v547
    %v575 = vmul.f32 %v113, %v547
    %v576 = vmul.f32 %v114, %v551
    %v577 = vmul.f32 %v115, %v551
    %v578 = vmul.f32 %v116, %v555
    %v579 = vmul.f32 %v117, %v555
    %v580 = vsel %vm185, %v564, 0.0
    %581 = vadd.xlane.f32.xlu0 %v580
    %v582 = vpop.xlane.xlu0 %581
    %vm583 = vcmask 254976
    %v584 = vsel %vm583, %v565, 0.0
    %585 = vadd.xlane.f32.xlu0 %v584
    %v586 = vpop.xlane.xlu0 %585
    %v587 = vsel %vm185, %v566, 0.0
    %588 = vadd.xlane.f32.xlu0 %v587
    %v589 = vpop.xlane.xlu0 %588
    %v590 = vsel %vm583, %v567, 0.0
    %591 = vadd.xlane.f32.xlu0 %v590
    %v592 = vpop.xlane.xlu0 %591
    %v593 = vsel %vm185, %v568, 0.0
    %594 = vadd.xlane.f32.xlu0 %v593
    %v595 = vpop.xlane.xlu0 %594
    %v596 = vsel %vm583, %v569, 0.0
    %597 = vadd.xlane.f32.xlu0 %v596
    %v598 = vpop.xlane.xlu0 %597
    %v599 = vsel %vm185, %v570, 0.0
    %600 = vadd.xlane.f32.xlu0 %v599
    %v601 = vpop.xlane.xlu0 %600
    %v602 = vsel %vm583, %v571, 0.0
    %603 = vadd.xlane.f32.xlu0 %v602
    %v604 = vpop.xlane.xlu0 %603
    %v605 = vsel %vm185, %v572, 0.0
    %606 = vadd.xlane.f32.xlu0 %v605
    %v607 = vpop.xlane.xlu0 %606
    %v608 = vsel %vm583, %v573, 0.0
    %609 = vadd.xlane.f32.xlu0 %v608
    %v610 = vpop.xlane.xlu0 %609
    %v611 = vsel %vm185, %v574, 0.0
    %612 = vadd.xlane.f32.xlu0 %v611
    %v613 = vpop.xlane.xlu0 %612
    %v614 = vsel %vm583, %v575, 0.0
    %615 = vadd.xlane.f32.xlu0 %v614
    %v616 = vpop.xlane.xlu0 %615
    %v617 = vsel %vm185, %v576, 0.0
    %618 = vadd.xlane.f32.xlu0 %v617
    %v619 = vpop.xlane.xlu0 %618
    %v620 = vsel %vm583, %v577, 0.0
    %621 = vadd.xlane.f32.xlu0 %v620
    %v622 = vpop.xlane.xlu0 %621
    %v623 = vsel %vm185, %v578, 0.0
    %624 = vadd.xlane.f32.xlu0 %v623
    %v625 = vpop.xlane.xlu0 %624
    %v626 = vsel %vm583, %v579, 0.0
    %627 = vadd.xlane.f32.xlu0 %v626
    %v628 = vpop.xlane.xlu0 %627
    %v645 = vlaneseq
    %v646 = vand.u32 %v645, 127
    %v647 = vlaneseq
    %v648 = vshrl.u32 %v647, 7
    %v649 = vsub.s32 %v646, %v648
    %v650 = vrot.slane %v582, %v649
    %v651 = vadd.s32 %v646, 4294967288
    %v652 = vlaneseq
    %v653 = vshrl.u32 %v652, 7
    %v654 = vsub.s32 %v651, %v653
    %v655 = vrot.slane %v586, %v654
    %vm656 = vcmask 130112
    %v657 = vsel %vm656, %v655, %v650
    %v658 = vlaneseq
    %v659 = vshrl.u32 %v658, 7
    %v660 = vsub.s32 %v646, %v659
    %v661 = vrot.slane %v589, %v660
    %v662 = vlaneseq
    %v663 = vshrl.u32 %v662, 7
    %v664 = vsub.s32 %v651, %v663
    %v665 = vrot.slane %v592, %v664
    %v666 = vsel %vm656, %v665, %v661
    %v667 = vlaneseq
    %v668 = vshrl.u32 %v667, 7
    %v669 = vsub.s32 %v646, %v668
    %v670 = vrot.slane %v595, %v669
    %v671 = vlaneseq
    %v672 = vshrl.u32 %v671, 7
    %v673 = vsub.s32 %v651, %v672
    %v674 = vrot.slane %v598, %v673
    %v675 = vsel %vm656, %v674, %v670
    %v676 = vlaneseq
    %v677 = vshrl.u32 %v676, 7
    %v678 = vsub.s32 %v646, %v677
    %v679 = vrot.slane %v601, %v678
    %v680 = vlaneseq
    %v681 = vshrl.u32 %v680, 7
    %v682 = vsub.s32 %v651, %v681
    %v683 = vrot.slane %v604, %v682
    %v684 = vsel %vm656, %v683, %v679
    %v685 = vlaneseq
    %v686 = vshrl.u32 %v685, 7
    %v687 = vsub.s32 %v646, %v686
    %v688 = vrot.slane %v607, %v687
    %v689 = vlaneseq
    %v690 = vshrl.u32 %v689, 7
    %v691 = vsub.s32 %v651, %v690
    %v692 = vrot.slane %v610, %v691
    %v693 = vsel %vm656, %v692, %v688
    %v694 = vlaneseq
    %v695 = vshrl.u32 %v694, 7
    %v696 = vsub.s32 %v646, %v695
    %v697 = vrot.slane %v613, %v696
    %v698 = vlaneseq
    %v699 = vshrl.u32 %v698, 7
    %v700 = vsub.s32 %v651, %v699
    %v701 = vrot.slane %v616, %v700
    %v702 = vsel %vm656, %v701, %v697
    %v703 = vlaneseq
    %v704 = vshrl.u32 %v703, 7
    %v705 = vsub.s32 %v646, %v704
    %v706 = vrot.slane %v619, %v705
    %v707 = vlaneseq
    %v708 = vshrl.u32 %v707, 7
    %v709 = vsub.s32 %v651, %v708
    %v710 = vrot.slane %v622, %v709
    %v711 = vsel %vm656, %v710, %v706
    %v712 = vlaneseq
    %v713 = vshrl.u32 %v712, 7
    %v714 = vsub.s32 %v646, %v713
    %v715 = vrot.slane %v625, %v714
    %v716 = vlaneseq
    %v717 = vshrl.u32 %v716, 7
    %v718 = vsub.s32 %v651, %v717
    %v719 = vrot.slane %v628, %v718
    %v720 = vsel %vm656, %v719, %v715
    %vm721 = vcmask 1041409
    %v722 = vsel %vm721, %v666, %v657
    %vm723 = vcmask 1042434
    %v724 = vsel %vm723, %v675, %v722
    %vm725 = vcmask 1043459
    %v726 = vsel %vm725, %v684, %v724
    %vm727 = vcmask 1044484
    %v728 = vsel %vm727, %v693, %v726
    %vm729 = vcmask 1045509
    %v730 = vsel %vm729, %v702, %v728
    %vm731 = vcmask 1046534
    %v732 = vsel %vm731, %v711, %v730
    %vm733 = vcmask 1047559
    %v734 = vsel %vm733, %v720, %v732
    %vm736 = vcmask 80896
    %v737 = vsel %vm736, %v734, -inf
    %738 = vmax.xlane.f32.xlu0 %v737
    %v739 = vpop.xlane.xlu0 %738
    %v741 = vlaneseq
    %v742 = vshrl.u32 %v741, 7
    %v743 = vsub.s32 0, %v742
    %v744 = vrot.slane %v739, %v743
    %v745 = vlaneseq
    %v746 = vshrl.u32 %v745, 7
    %v747 = vsub.s32 1, %v746
    %v748 = vrot.slane %v739, %v747
    %v749 = vlaneseq
    %v750 = vshrl.u32 %v749, 7
    %v751 = vsub.s32 2, %v750
    %v752 = vrot.slane %v739, %v751
    %v753 = vlaneseq
    %v754 = vshrl.u32 %v753, 7
    %v755 = vsub.s32 3, %v754
    %v756 = vrot.slane %v739, %v755
    %v757 = vlaneseq
    %v758 = vshrl.u32 %v757, 7
    %v759 = vsub.s32 4, %v758
    %v760 = vrot.slane %v739, %v759
    %v761 = vlaneseq
    %v762 = vshrl.u32 %v761, 7
    %v763 = vsub.s32 5, %v762
    %v764 = vrot.slane %v739, %v763
    %v765 = vlaneseq
    %v766 = vshrl.u32 %v765, 7
    %v767 = vsub.s32 6, %v766
    %v768 = vrot.slane %v739, %v767
    %v769 = vlaneseq
    %v770 = vshrl.u32 %v769, 7
    %v771 = vsub.s32 7, %v770
    %v772 = vrot.slane %v739, %v771
    %v781 = vsub.f32 %v582, %v744
    %v782 = vsub.f32 %v586, %v744
    %v783 = vsub.f32 %v589, %v748
    %v784 = vsub.f32 %v592, %v748
    %v785 = vsub.f32 %v595, %v752
    %v786 = vsub.f32 %v598, %v752
    %v787 = vsub.f32 %v601, %v756
    %v788 = vsub.f32 %v604, %v756
    %v789 = vsub.f32 %v607, %v760
    %v790 = vsub.f32 %v610, %v760
    %v791 = vsub.f32 %v613, %v764
    %v792 = vsub.f32 %v616, %v764
    %v793 = vsub.f32 %v619, %v768
    %v794 = vsub.f32 %v622, %v768
    %v795 = vsub.f32 %v625, %v772
    %v796 = vsub.f32 %v628, %v772
    %v797 = vmul.f32 %v781, 1.442695
    %v798 = vpow.pop %v797
    %v799 = vmul.f32 %v782, 1.442695
    %v800 = vpow.pop %v799
    %v801 = vmul.f32 %v783, 1.442695
    %v802 = vpow.pop %v801
    %v803 = vmul.f32 %v784, 1.442695
    %v804 = vpow.pop %v803
    %v805 = vmul.f32 %v785, 1.442695
    %v806 = vpow.pop %v805
    %v807 = vmul.f32 %v786, 1.442695
    %v808 = vpow.pop %v807
    %v809 = vmul.f32 %v787, 1.442695
    %v810 = vpow.pop %v809
    %v811 = vmul.f32 %v788, 1.442695
    %v812 = vpow.pop %v811
    %v813 = vmul.f32 %v789, 1.442695
    %v814 = vpow.pop %v813
    %v815 = vmul.f32 %v790, 1.442695
    %v816 = vpow.pop %v815
    %v817 = vmul.f32 %v791, 1.442695
    %v818 = vpow.pop %v817
    %v819 = vmul.f32 %v792, 1.442695
    %v820 = vpow.pop %v819
    %v821 = vmul.f32 %v793, 1.442695
    %v822 = vpow.pop %v821
    %v823 = vmul.f32 %v794, 1.442695
    %v824 = vpow.pop %v823
    %v825 = vmul.f32 %v795, 1.442695
    %v826 = vpow.pop %v825
    %v827 = vmul.f32 %v796, 1.442695
    %v828 = vpow.pop %v827
    %845 = vset.pattern.permute.xlu0 0
    %846 = vperm.xlu0 %845, %v798
    %v847 = vpop.permute.xlu0 %846
    %848 = vset.pattern.permute.xlu0 0
    %849 = vperm.xlu0 %848, %v800
    %v850 = vpop.permute.xlu0 %849
    %851 = vset.pattern.permute.xlu0 0
    %852 = vperm.xlu0 %851, %v802
    %v853 = vpop.permute.xlu0 %852
    %854 = vset.pattern.permute.xlu0 0
    %855 = vperm.xlu0 %854, %v804
    %v856 = vpop.permute.xlu0 %855
    %857 = vset.pattern.permute.xlu0 0
    %858 = vperm.xlu0 %857, %v806
    %v859 = vpop.permute.xlu0 %858
    %860 = vset.pattern.permute.xlu0 0
    %861 = vperm.xlu0 %860, %v808
    %v862 = vpop.permute.xlu0 %861
    %863 = vset.pattern.permute.xlu0 0
    %864 = vperm.xlu0 %863, %v810
    %v865 = vpop.permute.xlu0 %864
    %866 = vset.pattern.permute.xlu0 0
    %867 = vperm.xlu0 %866, %v812
    %v868 = vpop.permute.xlu0 %867
    %869 = vset.pattern.permute.xlu0 0
    %870 = vperm.xlu0 %869, %v814
    %v871 = vpop.permute.xlu0 %870
    %872 = vset.pattern.permute.xlu0 0
    %873 = vperm.xlu0 %872, %v816
    %v874 = vpop.permute.xlu0 %873
    %875 = vset.pattern.permute.xlu0 0
    %876 = vperm.xlu0 %875, %v818
    %v877 = vpop.permute.xlu0 %876
    %878 = vset.pattern.permute.xlu0 0
    %879 = vperm.xlu0 %878, %v820
    %v880 = vpop.permute.xlu0 %879
    %881 = vset.pattern.permute.xlu0 0
    %882 = vperm.xlu0 %881, %v822
    %v883 = vpop.permute.xlu0 %882
    %884 = vset.pattern.permute.xlu0 0
    %885 = vperm.xlu0 %884, %v824
    %v886 = vpop.permute.xlu0 %885
    %887 = vset.pattern.permute.xlu0 0
    %888 = vperm.xlu0 %887, %v826
    %v889 = vpop.permute.xlu0 %888
    %890 = vset.pattern.permute.xlu0 0
    %891 = vperm.xlu0 %890, %v828
    %v892 = vpop.permute.xlu0 %891
    %v893 = vlaneseq
    %v894 = vshrl.u32 %v893, 7
    %v895 = vsub.s32 %v646, %v894
    %v896 = vrot.slane %v847, %v895
    %v897 = vlaneseq
    %v898 = vshrl.u32 %v897, 7
    %v899 = vsub.s32 %v651, %v898
    %v900 = vrot.slane %v850, %v899
    %v901 = vsel %vm656, %v900, %v896
    %v902 = vlaneseq
    %v903 = vshrl.u32 %v902, 7
    %v904 = vsub.s32 %v646, %v903
    %v905 = vrot.slane %v853, %v904
    %v906 = vlaneseq
    %v907 = vshrl.u32 %v906, 7
    %v908 = vsub.s32 %v651, %v907
    %v909 = vrot.slane %v856, %v908
    %v910 = vsel %vm656, %v909, %v905
    %v911 = vlaneseq
    %v912 = vshrl.u32 %v911, 7
    %v913 = vsub.s32 %v646, %v912
    %v914 = vrot.slane %v859, %v913
    %v915 = vlaneseq
    %v916 = vshrl.u32 %v915, 7
    %v917 = vsub.s32 %v651, %v916
    %v918 = vrot.slane %v862, %v917
    %v919 = vsel %vm656, %v918, %v914
    %v920 = vlaneseq
    %v921 = vshrl.u32 %v920, 7
    %v922 = vsub.s32 %v646, %v921
    %v923 = vrot.slane %v865, %v922
    %v924 = vlaneseq
    %v925 = vshrl.u32 %v924, 7
    %v926 = vsub.s32 %v651, %v925
    %v927 = vrot.slane %v868, %v926
    %v928 = vsel %vm656, %v927, %v923
    %v929 = vlaneseq
    %v930 = vshrl.u32 %v929, 7
    %v931 = vsub.s32 %v646, %v930
    %v932 = vrot.slane %v871, %v931
    %v933 = vlaneseq
    %v934 = vshrl.u32 %v933, 7
    %v935 = vsub.s32 %v651, %v934
    %v936 = vrot.slane %v874, %v935
    %v937 = vsel %vm656, %v936, %v932
    %v938 = vlaneseq
    %v939 = vshrl.u32 %v938, 7
    %v940 = vsub.s32 %v646, %v939
    %v941 = vrot.slane %v877, %v940
    %v942 = vlaneseq
    %v943 = vshrl.u32 %v942, 7
    %v944 = vsub.s32 %v651, %v943
    %v945 = vrot.slane %v880, %v944
    %v946 = vsel %vm656, %v945, %v941
    %v947 = vlaneseq
    %v948 = vshrl.u32 %v947, 7
    %v949 = vsub.s32 %v646, %v948
    %v950 = vrot.slane %v883, %v949
    %v951 = vlaneseq
    %v952 = vshrl.u32 %v951, 7
    %v953 = vsub.s32 %v651, %v952
    %v954 = vrot.slane %v886, %v953
    %v955 = vsel %vm656, %v954, %v950
    %v956 = vlaneseq
    %v957 = vshrl.u32 %v956, 7
    %v958 = vsub.s32 %v646, %v957
    %v959 = vrot.slane %v889, %v958
    %v960 = vlaneseq
    %v961 = vshrl.u32 %v960, 7
    %v962 = vsub.s32 %v651, %v961
    %v963 = vrot.slane %v892, %v962
    %v964 = vsel %vm656, %v963, %v959
    %v965 = vsel %vm721, %v910, %v901
    %v966 = vsel %vm723, %v919, %v965
    %v967 = vsel %vm725, %v928, %v966
    %v968 = vsel %vm727, %v937, %v967
    %v969 = vsel %vm729, %v946, %v968
    %v970 = vsel %vm731, %v955, %v969
    %v971 = vsel %vm733, %v964, %v970
    %v973 = vsel %vm736, %v971, 0.0
    %974 = vadd.xlane.f32.xlu0 %v973
    %v975 = vpop.xlane.xlu0 %974
    %v976 = vrcp.pop %v975
    %v978 = vlaneseq
    %v979 = vshrl.u32 %v978, 7
    %v980 = vsub.s32 0, %v979
    %v981 = vrot.slane %v976, %v980
    %v982 = vlaneseq
    %v983 = vshrl.u32 %v982, 7
    %v984 = vsub.s32 1, %v983
    %v985 = vrot.slane %v976, %v984
    %v986 = vlaneseq
    %v987 = vshrl.u32 %v986, 7
    %v988 = vsub.s32 2, %v987
    %v989 = vrot.slane %v976, %v988
    %v990 = vlaneseq
    %v991 = vshrl.u32 %v990, 7
    %v992 = vsub.s32 3, %v991
    %v993 = vrot.slane %v976, %v992
    %v994 = vlaneseq
    %v995 = vshrl.u32 %v994, 7
    %v996 = vsub.s32 4, %v995
    %v997 = vrot.slane %v976, %v996
    %v998 = vlaneseq
    %v999 = vshrl.u32 %v998, 7
    %v1000 = vsub.s32 5, %v999
    %v1001 = vrot.slane %v976, %v1000
    %v1002 = vlaneseq
    %v1003 = vshrl.u32 %v1002, 7
    %v1004 = vsub.s32 6, %v1003
    %v1005 = vrot.slane %v976, %v1004
    %v1006 = vlaneseq
    %v1007 = vshrl.u32 %v1006, 7
    %v1008 = vsub.s32 7, %v1007
    %v1009 = vrot.slane %v976, %v1008
    %v1018 = vmul.f32 %v798, %v981
    %v1019 = vmul.f32 %v800, %v981
    %v1020 = vmul.f32 %v802, %v985
    %v1021 = vmul.f32 %v804, %v985
    %v1022 = vmul.f32 %v806, %v989
    %v1023 = vmul.f32 %v808, %v989
    %v1024 = vmul.f32 %v810, %v993
    %v1025 = vmul.f32 %v812, %v993
    %v1026 = vmul.f32 %v814, %v997
    %v1027 = vmul.f32 %v816, %v997
    %v1028 = vmul.f32 %v818, %v1001
    %v1029 = vmul.f32 %v820, %v1001
    %v1030 = vmul.f32 %v822, %v1005
    %v1031 = vmul.f32 %v824, %v1005
    %v1032 = vmul.f32 %v826, %v1009
    %v1033 = vmul.f32 %v828, %v1009
    %1035 = vset.pattern.permute.xlu0 0
    %1036 = vperm.xlu0 %1035, %v1018
    %v1037 = vpop.permute.xlu0 %1036
    %1040 = vset.pattern.permute.xlu0 0
    %1041 = vperm.xlu0 %1040, %v1019
    %v1042 = vpop.permute.xlu0 %1041
    %1045 = vset.pattern.permute.xlu0 0
    %1046 = vperm.xlu0 %1045, %v1020
    %v1047 = vpop.permute.xlu0 %1046
    %1050 = vset.pattern.permute.xlu0 0
    %1051 = vperm.xlu0 %1050, %v1021
    %v1052 = vpop.permute.xlu0 %1051
    %1055 = vset.pattern.permute.xlu0 0
    %1056 = vperm.xlu0 %1055, %v1022
    %v1057 = vpop.permute.xlu0 %1056
    %1060 = vset.pattern.permute.xlu0 0
    %1061 = vperm.xlu0 %1060, %v1023
    %v1062 = vpop.permute.xlu0 %1061
    %1065 = vset.pattern.permute.xlu0 0
    %1066 = vperm.xlu0 %1065, %v1024
    %v1067 = vpop.permute.xlu0 %1066
    %1070 = vset.pattern.permute.xlu0 0
    %1071 = vperm.xlu0 %1070, %v1025
    %v1072 = vpop.permute.xlu0 %1071
    %1075 = vset.pattern.permute.xlu0 0
    %1076 = vperm.xlu0 %1075, %v1026
    %v1077 = vpop.permute.xlu0 %1076
    %1080 = vset.pattern.permute.xlu0 0
    %1081 = vperm.xlu0 %1080, %v1027
    %v1082 = vpop.permute.xlu0 %1081
    %1085 = vset.pattern.permute.xlu0 0
    %1086 = vperm.xlu0 %1085, %v1028
    %v1087 = vpop.permute.xlu0 %1086
    %1090 = vset.pattern.permute.xlu0 0
    %1091 = vperm.xlu0 %1090, %v1029
    %v1092 = vpop.permute.xlu0 %1091
    %1095 = vset.pattern.permute.xlu0 0
    %1096 = vperm.xlu0 %1095, %v1030
    %v1097 = vpop.permute.xlu0 %1096
    %1100 = vset.pattern.permute.xlu0 0
    %1101 = vperm.xlu0 %1100, %v1031
    %v1102 = vpop.permute.xlu0 %1101
    %1105 = vset.pattern.permute.xlu0 0
    %1106 = vperm.xlu0 %1105, %v1032
    %v1107 = vpop.permute.xlu0 %1106
    %1110 = vset.pattern.permute.xlu0 0
    %1111 = vperm.xlu0 %1110, %v1033
    %v1112 = vpop.permute.xlu0 %1111
    %v1114 = vmul.f32 %v1037, %v102
    %v1115 = vmul.f32 %v1042, %v103
    %v1116 = vmul.f32 %v1047, %v104
    %v1117 = vmul.f32 %v1052, %v105
    %v1118 = vmul.f32 %v1057, %v106
    %v1119 = vmul.f32 %v1062, %v107
    %v1120 = vmul.f32 %v1067, %v108
    %v1121 = vmul.f32 %v1072, %v109
    %v1122 = vmul.f32 %v1077, %v110
    %v1123 = vmul.f32 %v1082, %v111
    %v1124 = vmul.f32 %v1087, %v112
    %v1125 = vmul.f32 %v1092, %v113
    %v1126 = vmul.f32 %v1097, %v114
    %v1127 = vmul.f32 %v1102, %v115
    %v1128 = vmul.f32 %v1107, %v116
    %v1129 = vmul.f32 %v1112, %v117
    %v1130 = vsel %vm185, %v1114, 0.0
    %v1131 = vsel %vm583, %v1115, 0.0
    %v1132 = vadd.f32 %v1130, %v1131
    %v1133 = vrot.slane %v1132, 4
    %v1134 = vadd.f32 %v1132, %v1133
    %v1135 = vrot.slane %v1134, 2
    %v1136 = vadd.f32 %v1134, %v1135
    %v1137 = vrot.slane %v1136, 1
    %v1138 = vadd.f32 %v1136, %v1137
    %v1139 = vsel %vm185, %v1116, 0.0
    %v1140 = vsel %vm583, %v1117, 0.0
    %v1141 = vadd.f32 %v1139, %v1140
    %v1142 = vrot.slane %v1141, 4
    %v1143 = vadd.f32 %v1141, %v1142
    %v1144 = vrot.slane %v1143, 2
    %v1145 = vadd.f32 %v1143, %v1144
    %v1146 = vrot.slane %v1145, 1
    %v1147 = vadd.f32 %v1145, %v1146
    %v1148 = vsel %vm185, %v1118, 0.0
    %v1149 = vsel %vm583, %v1119, 0.0
    %v1150 = vadd.f32 %v1148, %v1149
    %v1151 = vrot.slane %v1150, 4
    %v1152 = vadd.f32 %v1150, %v1151
    %v1153 = vrot.slane %v1152, 2
    %v1154 = vadd.f32 %v1152, %v1153
    %v1155 = vrot.slane %v1154, 1
    %v1156 = vadd.f32 %v1154, %v1155
    %v1157 = vsel %vm185, %v1120, 0.0
    %v1158 = vsel %vm583, %v1121, 0.0
    %v1159 = vadd.f32 %v1157, %v1158
    %v1160 = vrot.slane %v1159, 4
    %v1161 = vadd.f32 %v1159, %v1160
    %v1162 = vrot.slane %v1161, 2
    %v1163 = vadd.f32 %v1161, %v1162
    %v1164 = vrot.slane %v1163, 1
    %v1165 = vadd.f32 %v1163, %v1164
    %v1166 = vsel %vm185, %v1122, 0.0
    %v1167 = vsel %vm583, %v1123, 0.0
    %v1168 = vadd.f32 %v1166, %v1167
    %v1169 = vrot.slane %v1168, 4
    %v1170 = vadd.f32 %v1168, %v1169
    %v1171 = vrot.slane %v1170, 2
    %v1172 = vadd.f32 %v1170, %v1171
    %v1173 = vrot.slane %v1172, 1
    %v1174 = vadd.f32 %v1172, %v1173
    %v1175 = vsel %vm185, %v1124, 0.0
    %v1176 = vsel %vm583, %v1125, 0.0
    %v1177 = vadd.f32 %v1175, %v1176
    %v1178 = vrot.slane %v1177, 4
    %v1179 = vadd.f32 %v1177, %v1178
    %v1180 = vrot.slane %v1179, 2
    %v1181 = vadd.f32 %v1179, %v1180
    %v1182 = vrot.slane %v1181, 1
    %v1183 = vadd.f32 %v1181, %v1182
    %v1184 = vsel %vm185, %v1126, 0.0
    %v1185 = vsel %vm583, %v1127, 0.0
    %v1186 = vadd.f32 %v1184, %v1185
    %v1187 = vrot.slane %v1186, 4
    %v1188 = vadd.f32 %v1186, %v1187
    %v1189 = vrot.slane %v1188, 2
    %v1190 = vadd.f32 %v1188, %v1189
    %v1191 = vrot.slane %v1190, 1
    %v1192 = vadd.f32 %v1190, %v1191
    %v1193 = vsel %vm185, %v1128, 0.0
    %v1194 = vsel %vm583, %v1129, 0.0
    %v1195 = vadd.f32 %v1193, %v1194
    %v1196 = vrot.slane %v1195, 4
    %v1197 = vadd.f32 %v1195, %v1196
    %v1198 = vrot.slane %v1197, 2
    %v1199 = vadd.f32 %v1197, %v1198
    %v1200 = vrot.slane %v1199, 1
    %v1201 = vadd.f32 %v1199, %v1200
    %1202 = vmatprep.subr.mxu0 0.0
    %1203 = vmatpush1.msra.mxu0 %v163
    %1204 = vmatprep.subr.mxu0 0.0
    %1205 = vmatpush1.msra.mxu0 %v164
    %1206 = vmatprep.subr.mxu0 0.0
    %1207 = vmatpush1.msra.mxu0 %v165
    %1208 = vmatprep.subr.mxu0 0.0
    %1209 = vmatpush1.msra.mxu0 %v166
    %1210 = vmatprep.subr.mxu0 0.0
    %1211 = vmatpush1.msra.mxu0 0.0
    %1212 = vmatprep.subr.mxu0 0.0
    %1213 = vmatpush1.msra.mxu0 0.0
    %1214 = vmatprep.subr.mxu0 0.0
    %1215 = vmatpush1.msra.mxu0 0.0
    %1216 = vmatprep.subr.mxu0 0.0
    %1217 = vmatpush1.msra.mxu0 0.0
    %1218 = vmatprep.subr.mxu0 0.0
    %1219 = vmatpush1.msra.mxu0 0.0
    %1220 = vmatprep.subr.mxu0 0.0
    %1221 = vmatpush1.msra.mxu0 0.0
    %1222 = vmatprep.subr.mxu0 0.0
    %1223 = vmatpush1.msra.mxu0 0.0
    %1224 = vmatprep.subr.mxu0 0.0
    %1225 = vmatpush1.msra.mxu0 0.0
    %1226 = vmatprep.subr.mxu0 0.0
    %1227 = vmatpush1.msra.mxu0 0.0
    %1228 = vmatprep.subr.mxu0 0.0
    %1229 = vmatpush1.msra.mxu0 0.0
    %1230 = vmatprep.subr.mxu0 0.0
    %1231 = vmatpush1.msra.mxu0 0.0
    %1232 = vmatprep.subr.mxu0 0.0
    %1233 = vmatpush1.msra.mxu0 0.0
    %1234 = vmatprep.subr.mxu0 0.0
    %1235 = vmatpush1.msra.mxu0 0.0
    %1236 = vmatprep.subr.mxu0 0.0
    %1237 = vmatpush1.msra.mxu0 0.0
    %1238 = vmatprep.subr.mxu0 0.0
    %1239 = vmatpush1.msra.mxu0 0.0
    %1240 = vmatprep.subr.mxu0 0.0
    %1241 = vmatpush1.msra.mxu0 0.0
    %1242 = vmatprep.subr.mxu0 0.0
    %1243 = vmatpush1.msra.mxu0 0.0
    %1244 = vmatprep.subr.mxu0 0.0
    %1245 = vmatpush1.msra.mxu0 0.0
    %1246 = vmatprep.subr.mxu0 0.0
    %1247 = vmatpush1.msra.mxu0 0.0
    %1248 = vmatprep.subr.mxu0 0.0
    %1249 = vmatpush1.msra.mxu0 0.0
    %1250 = vmatprep.subr.mxu0 0.0
    %1251 = vmatpush1.msra.mxu0 0.0
    %1252 = vmatprep.subr.mxu0 0.0
    %1253 = vmatpush1.msra.mxu0 0.0
    %1254 = vmatprep.subr.mxu0 0.0
    %1255 = vmatpush1.msra.mxu0 0.0
    %1256 = vmatprep.subr.mxu0 0.0
    %1257 = vmatpush1.msra.mxu0 0.0
    %1258 = vmatprep.subr.mxu0 0.0
    %1259 = vmatpush1.msra.mxu0 0.0
    %1260 = vmatprep.subr.mxu0 0.0
    %1261 = vmatpush1.msra.mxu0 0.0
    %1262 = vmatprep.subr.mxu0 0.0
    %1263 = vmatpush1.msra.mxu0 0.0
    %1264 = vmatprep.subr.mxu0 0.0
    %1265 = vmatpush1.msra.mxu0 0.0
    %1266 = vmatprep.mubr.f32.mxu0 0.0
    %1267 = vmatmul.mubr.f32.gmra.mrb[0].mxu0 %v402
    %v1268 = vpop.f32.mrb[0].mxu0
    %v1269 = vadd.f32 0.0, %v1268
    %v1270 = vpop.f32.mrb[0].mxu0
    %1271 = vdwg.mxu0
    %v1280 = vsel %vm721, %v1147, %v1138
    %v1281 = vsel %vm723, %v1156, %v1280
    %v1282 = vsel %vm725, %v1165, %v1281
    %v1283 = vsel %vm727, %v1174, %v1282
    %v1284 = vsel %vm729, %v1183, %v1283
    %v1285 = vsel %vm731, %v1192, %v1284
    %v1286 = vsel %vm733, %v1201, %v1285
    %v1287 = vsel %vm185, %v1286, 0
    %1289 = vmatprep.subr.mxu0 0.0
    %1290 = vmatpush1.msra.mxu0 %v159
    %1291 = vmatprep.subr.mxu0 0.0
    %1292 = vmatpush1.msra.mxu0 %v160
    %1293 = vmatprep.subr.mxu0 0.0
    %1294 = vmatpush1.msra.mxu0 %v161
    %1295 = vmatprep.subr.mxu0 0.0
    %1296 = vmatpush1.msra.mxu0 %v162
    %1297 = vmatprep.subr.mxu0 0.0
    %1298 = vmatpush1.msra.mxu0 0.0
    %1299 = vmatprep.subr.mxu0 0.0
    %1300 = vmatpush1.msra.mxu0 0.0
    %1301 = vmatprep.subr.mxu0 0.0
    %1302 = vmatpush1.msra.mxu0 0.0
    %1303 = vmatprep.subr.mxu0 0.0
    %1304 = vmatpush1.msra.mxu0 0.0
    %1305 = vmatprep.subr.mxu0 0.0
    %1306 = vmatpush1.msra.mxu0 0.0
    %1307 = vmatprep.subr.mxu0 0.0
    %1308 = vmatpush1.msra.mxu0 0.0
    %1309 = vmatprep.subr.mxu0 0.0
    %1310 = vmatpush1.msra.mxu0 0.0
    %1311 = vmatprep.subr.mxu0 0.0
    %1312 = vmatpush1.msra.mxu0 0.0
    %1313 = vmatprep.subr.mxu0 0.0
    %1314 = vmatpush1.msra.mxu0 0.0
    %1315 = vmatprep.subr.mxu0 0.0
    %1316 = vmatpush1.msra.mxu0 0.0
    %1317 = vmatprep.subr.mxu0 0.0
    %1318 = vmatpush1.msra.mxu0 0.0
    %1319 = vmatprep.subr.mxu0 0.0
    %1320 = vmatpush1.msra.mxu0 0.0
    %1321 = vmatprep.subr.mxu0 0.0
    %1322 = vmatpush1.msra.mxu0 0.0
    %1323 = vmatprep.subr.mxu0 0.0
    %1324 = vmatpush1.msra.mxu0 0.0
    %1325 = vmatprep.subr.mxu0 0.0
    %1326 = vmatpush1.msra.mxu0 0.0
    %1327 = vmatprep.subr.mxu0 0.0
    %1328 = vmatpush1.msra.mxu0 0.0
    %1329 = vmatprep.subr.mxu0 0.0
    %1330 = vmatpush1.msra.mxu0 0.0
    %1331 = vmatprep.subr.mxu0 0.0
    %1332 = vmatpush1.msra.mxu0 0.0
    %1333 = vmatprep.subr.mxu0 0.0
    %1334 = vmatpush1.msra.mxu0 0.0
    %1335 = vmatprep.subr.mxu0 0.0
    %1336 = vmatpush1.msra.mxu0 0.0
    %1337 = vmatprep.subr.mxu0 0.0
    %1338 = vmatpush1.msra.mxu0 0.0
    %1339 = vmatprep.subr.mxu0 0.0
    %1340 = vmatpush1.msra.mxu0 0.0
    %1341 = vmatprep.subr.mxu0 0.0
    %1342 = vmatpush1.msra.mxu0 0.0
    %1343 = vmatprep.subr.mxu0 0.0
    %1344 = vmatpush1.msra.mxu0 0.0
    %1345 = vmatprep.subr.mxu0 0.0
    %1346 = vmatpush1.msra.mxu0 0.0
    %1347 = vmatprep.subr.mxu0 0.0
    %1348 = vmatpush1.msra.mxu0 0.0
    %1349 = vmatprep.subr.mxu0 0.0
    %1350 = vmatpush1.msra.mxu0 0.0
    %1351 = vmatprep.subr.mxu0 0.0
    %1352 = vmatpush1.msra.mxu0 0.0
    %1353 = vmatprep.mubr.f32.mxu0 0.0
    %1354 = vmatmul.mubr.f32.gmra.mrb[0].mxu0 %v1287
    %v1355 = vpop.f32.mrb[0].mxu0
    %v1356 = vadd.f32 %v1269, %v1355
    %v1357 = vpop.f32.mrb[0].mxu0
    %1358 = vdwg.mxu0
    %v1359 = vadd.f32 %v1356, %v172
    %v1360 = vtanh.pop %v1359
    %v1361 = vadd.s32 %v646, 4294967264
    %v1362 = vlaneseq
    %v1363 = vshrl.u32 %v1362, 7
    %v1364 = vsub.s32 %v1361, %v1363
    %v1365 = vrot.slane %v1037, %v1364
    %v1366 = vadd.s32 %v646, 4294967256
    %v1367 = vlaneseq
    %v1368 = vshrl.u32 %v1367, 7
    %v1369 = vsub.s32 %v1366, %v1368
    %v1370 = vrot.slane %v1042, %v1369
    %vm1371 = vcmask 392512
    %v1372 = vsel %vm1371, %v1370, %v1365
    %v1373 = vlaneseq
    %v1374 = vshrl.u32 %v1373, 7
    %v1375 = vsub.s32 %v1361, %v1374
    %v1376 = vrot.slane %v1047, %v1375
    %v1377 = vlaneseq
    %v1378 = vshrl.u32 %v1377, 7
    %v1379 = vsub.s32 %v1366, %v1378
    %v1380 = vrot.slane %v1052, %v1379
    %v1381 = vsel %vm1371, %v1380, %v1376
    %v1382 = vlaneseq
    %v1383 = vshrl.u32 %v1382, 7
    %v1384 = vsub.s32 %v1361, %v1383
    %v1385 = vrot.slane %v1057, %v1384
    %v1386 = vlaneseq
    %v1387 = vshrl.u32 %v1386, 7
    %v1388 = vsub.s32 %v1366, %v1387
    %v1389 = vrot.slane %v1062, %v1388
    %v1390 = vsel %vm1371, %v1389, %v1385
    %v1391 = vlaneseq
    %v1392 = vshrl.u32 %v1391, 7
    %v1393 = vsub.s32 %v1361, %v1392
    %v1394 = vrot.slane %v1067, %v1393
    %v1395 = vlaneseq
    %v1396 = vshrl.u32 %v1395, 7
    %v1397 = vsub.s32 %v1366, %v1396
    %v1398 = vrot.slane %v1072, %v1397
    %v1399 = vsel %vm1371, %v1398, %v1394
    %v1400 = vlaneseq
    %v1401 = vshrl.u32 %v1400, 7
    %v1402 = vsub.s32 %v1361, %v1401
    %v1403 = vrot.slane %v1077, %v1402
    %v1404 = vlaneseq
    %v1405 = vshrl.u32 %v1404, 7
    %v1406 = vsub.s32 %v1366, %v1405
    %v1407 = vrot.slane %v1082, %v1406
    %v1408 = vsel %vm1371, %v1407, %v1403
    %v1409 = vlaneseq
    %v1410 = vshrl.u32 %v1409, 7
    %v1411 = vsub.s32 %v1361, %v1410
    %v1412 = vrot.slane %v1087, %v1411
    %v1413 = vlaneseq
    %v1414 = vshrl.u32 %v1413, 7
    %v1415 = vsub.s32 %v1366, %v1414
    %v1416 = vrot.slane %v1092, %v1415
    %v1417 = vsel %vm1371, %v1416, %v1412
    %v1418 = vlaneseq
    %v1419 = vshrl.u32 %v1418, 7
    %v1420 = vsub.s32 %v1361, %v1419
    %v1421 = vrot.slane %v1097, %v1420
    %v1422 = vlaneseq
    %v1423 = vshrl.u32 %v1422, 7
    %v1424 = vsub.s32 %v1366, %v1423
    %v1425 = vrot.slane %v1102, %v1424
    %v1426 = vsel %vm1371, %v1425, %v1421
    %v1427 = vlaneseq
    %v1428 = vshrl.u32 %v1427, 7
    %v1429 = vsub.s32 %v1361, %v1428
    %v1430 = vrot.slane %v1107, %v1429
    %v1431 = vlaneseq
    %v1432 = vshrl.u32 %v1431, 7
    %v1433 = vsub.s32 %v1366, %v1432
    %v1434 = vrot.slane %v1112, %v1433
    %v1435 = vsel %vm1371, %v1434, %v1430
    %v1436 = vsel %vm721, %v1381, %v1372
    %v1437 = vsel %vm723, %v1390, %v1436
    %v1438 = vsel %vm725, %v1399, %v1437
    %v1439 = vsel %vm727, %v1408, %v1438
    %v1440 = vsel %vm729, %v1417, %v1439
    %v1441 = vsel %vm731, %v1426, %v1440
    %v1442 = vsel %vm733, %v1435, %v1441
    %v1444 = vsel %vm185, %v1360, %v1442
    %vm1445 = vcmask 343040
    %v1446 = vsel %vm1445, %v1444, 0.0
    %1447 = vst [vmem:[#allocation10] sm:$0xff] %v1446
    %s1448 = scalar_lea.vmem %s0, 8
    %v1449 = vld [vmem:[%s1448] sm:$0xff]
    %1450 = vrot.lane.b32.xlu0 %v288, 64
    %v1451 = vpop.permute.xlu0 %1450
    %v1453 = vsel %vm185, %v1449, %v1451
    %v1455 = vsel %vm187, %v1453, 0
    %1457 = vmatprep.subr.mxu0 0.0
    %1458 = vmatpush1.msra.mxu0 %v118
    %1459 = vmatprep.subr.mxu0 0.0
    %1460 = vmatpush1.msra.mxu0 %v119
    %1461 = vmatprep.subr.mxu0 0.0
    %1462 = vmatpush1.msra.mxu0 %v120
    %1463 = vmatprep.subr.mxu0 0.0
    %1464 = vmatpush1.msra.mxu0 %v121
    %1465 = vmatprep.subr.mxu0 0.0
    %1466 = vmatpush1.msra.mxu0 %v122
    %1467 = vmatprep.subr.mxu0 0.0
    %1468 = vmatpush1.msra.mxu0 %v123
    %1469 = vmatprep.subr.mxu0 0.0
    %1470 = vmatpush1.msra.mxu0 %v124
    %1471 = vmatprep.subr.mxu0 0.0
    %1472 = vmatpush1.msra.mxu0 %v125
    %1473 = vmatprep.subr.mxu0 0.0
    %1474 = vmatpush1.msra.mxu0 0.0
    %1475 = vmatprep.subr.mxu0 0.0
    %1476 = vmatpush1.msra.mxu0 0.0
    %1477 = vmatprep.subr.mxu0 0.0
    %1478 = vmatpush1.msra.mxu0 0.0
    %1479 = vmatprep.subr.mxu0 0.0
    %1480 = vmatpush1.msra.mxu0 0.0
    %1481 = vmatprep.subr.mxu0 0.0
    %1482 = vmatpush1.msra.mxu0 0.0
    %1483 = vmatprep.subr.mxu0 0.0
    %1484 = vmatpush1.msra.mxu0 0.0
    %1485 = vmatprep.subr.mxu0 0.0
    %1486 = vmatpush1.msra.mxu0 0.0
    %1487 = vmatprep.subr.mxu0 0.0
    %1488 = vmatpush1.msra.mxu0 0.0
    %1489 = vmatprep.subr.mxu0 0.0
    %1490 = vmatpush1.msra.mxu0 0.0
    %1491 = vmatprep.subr.mxu0 0.0
    %1492 = vmatpush1.msra.mxu0 0.0
    %1493 = vmatprep.subr.mxu0 0.0
    %1494 = vmatpush1.msra.mxu0 0.0
    %1495 = vmatprep.subr.mxu0 0.0
    %1496 = vmatpush1.msra.mxu0 0.0
    %1497 = vmatprep.subr.mxu0 0.0
    %1498 = vmatpush1.msra.mxu0 0.0
    %1499 = vmatprep.subr.mxu0 0.0
    %1500 = vmatpush1.msra.mxu0 0.0
    %1501 = vmatprep.subr.mxu0 0.0
    %1502 = vmatpush1.msra.mxu0 0.0
    %1503 = vmatprep.subr.mxu0 0.0
    %1504 = vmatpush1.msra.mxu0 0.0
    %1505 = vmatprep.subr.mxu0 0.0
    %1506 = vmatpush1.msra.mxu0 0.0
    %1507 = vmatprep.subr.mxu0 0.0
    %1508 = vmatpush1.msra.mxu0 0.0
    %1509 = vmatprep.subr.mxu0 0.0
    %1510 = vmatpush1.msra.mxu0 0.0
    %1511 = vmatprep.subr.mxu0 0.0
    %1512 = vmatpush1.msra.mxu0 0.0
    %1513 = vmatprep.subr.mxu0 0.0
    %1514 = vmatpush1.msra.mxu0 0.0
    %1515 = vmatprep.subr.mxu0 0.0
    %1516 = vmatpush1.msra.mxu0 0.0
    %1517 = vmatprep.subr.mxu0 0.0
    %1518 = vmatpush1.msra.mxu0 0.0
    %1519 = vmatprep.subr.mxu0 0.0
    %1520 = vmatpush1.msra.mxu0 0.0
    %1521 = vmatprep.mubr.f32.mxu0 0.0
    %1522 = vmatmul.mubr.f32.gmra.mrb[0].mxu0 %v1455
    %v1523 = vpop.f32.mrb[0].mxu0
    %v1524 = vadd.f32 %v139, %v1523
    %v1525 = vpop.f32.mrb[0].mxu0
    %1526 = vdwg.mxu0
    %v1527 = vxor.u32 %v1524, 2147483648
    %v1528 = vmul.f32 %v1527, 1.442695
    %v1529 = vpow.pop %v1528
    %v1530 = vadd.f32 %v1529, 1.0
    %v1531 = vrcp.pop %v1530
    %v1532 = vmul.f32 1.0, %v1531
    %v1533 = vtanh.pop %v1524
    %v1534 = vmul.f32 %v1532, %v282
    %1536 = vrot.lane.b32.xlu0 %v1533, 64
    %v1537 = vpop.permute.xlu0 %1536
    %v1539 = vmul.f32 %v1532, %v1537
    %1541 = vrot.lane.b32.xlu0 %v1539, 32
    %v1542 = vpop.permute.xlu0 %1541
    %v1544 = vadd.f32 %v1534, %v1542
    %v1545 = vtanh.pop %v1544
    %1547 = vrot.lane.b32.xlu0 %v1545, 64
    %v1548 = vpop.permute.xlu0 %1547
    %v1550 = vmul.f32 %v1532, %v1548
    %1552 = vrot.lane.b32.xlu0 %v1550, 32
    %v1553 = vpop.permute.xlu0 %1552
    %1555 = vrot.lane.b32.xlu0 %v398, 64
    %v1556 = vpop.permute.xlu0 %1555
    %v1558 = vsel %vm185, %v1553, %v1556
    %v1560 = vsel %vm187, %v1558, 0
    %1562 = vmatprep.subr.mxu0 0.0
    %1563 = vmatpush1.msra.mxu0 %v126
    %1564 = vmatprep.subr.mxu0 0.0
    %1565 = vmatpush1.msra.mxu0 %v127
    %1566 = vmatprep.subr.mxu0 0.0
    %1567 = vmatpush1.msra.mxu0 %v128
    %1568 = vmatprep.subr.mxu0 0.0
    %1569 = vmatpush1.msra.mxu0 %v129
    %1570 = vmatprep.subr.mxu0 0.0
    %1571 = vmatpush1.msra.mxu0 %v130
    %1572 = vmatprep.subr.mxu0 0.0
    %1573 = vmatpush1.msra.mxu0 %v131
    %1574 = vmatprep.subr.mxu0 0.0
    %1575 = vmatpush1.msra.mxu0 %v132
    %1576 = vmatprep.subr.mxu0 0.0
    %1577 = vmatpush1.msra.mxu0 %v133
    %1578 = vmatprep.subr.mxu0 0.0
    %1579 = vmatpush1.msra.mxu0 0.0
    %1580 = vmatprep.subr.mxu0 0.0
    %1581 = vmatpush1.msra.mxu0 0.0
    %1582 = vmatprep.subr.mxu0 0.0
    %1583 = vmatpush1.msra.mxu0 0.0
    %1584 = vmatprep.subr.mxu0 0.0
    %1585 = vmatpush1.msra.mxu0 0.0
    %1586 = vmatprep.subr.mxu0 0.0
    %1587 = vmatpush1.msra.mxu0 0.0
    %1588 = vmatprep.subr.mxu0 0.0
    %1589 = vmatpush1.msra.mxu0 0.0
    %1590 = vmatprep.subr.mxu0 0.0
    %1591 = vmatpush1.msra.mxu0 0.0
    %1592 = vmatprep.subr.mxu0 0.0
    %1593 = vmatpush1.msra.mxu0 0.0
    %1594 = vmatprep.subr.mxu0 0.0
    %1595 = vmatpush1.msra.mxu0 0.0
    %1596 = vmatprep.subr.mxu0 0.0
    %1597 = vmatpush1.msra.mxu0 0.0
    %1598 = vmatprep.subr.mxu0 0.0
    %1599 = vmatpush1.msra.mxu0 0.0
    %1600 = vmatprep.subr.mxu0 0.0
    %1601 = vmatpush1.msra.mxu0 0.0
    %1602 = vmatprep.subr.mxu0 0.0
    %1603 = vmatpush1.msra.mxu0 0.0
    %1604 = vmatprep.subr.mxu0 0.0
    %1605 = vmatpush1.msra.mxu0 0.0
    %1606 = vmatprep.subr.mxu0 0.0
    %1607 = vmatpush1.msra.mxu0 0.0
    %1608 = vmatprep.subr.mxu0 0.0
    %1609 = vmatpush1.msra.mxu0 0.0
    %1610 = vmatprep.subr.mxu0 0.0
    %1611 = vmatpush1.msra.mxu0 0.0
    %1612 = vmatprep.subr.mxu0 0.0
    %1613 = vmatpush1.msra.mxu0 0.0
    %1614 = vmatprep.subr.mxu0 0.0
    %1615 = vmatpush1.msra.mxu0 0.0
    %1616 = vmatprep.subr.mxu0 0.0
    %1617 = vmatpush1.msra.mxu0 0.0
    %1618 = vmatprep.subr.mxu0 0.0
    %1619 = vmatpush1.msra.mxu0 0.0
    %1620 = vmatprep.subr.mxu0 0.0
    %1621 = vmatpush1.msra.mxu0 0.0
    %1622 = vmatprep.subr.mxu0 0.0
    %1623 = vmatpush1.msra.mxu0 0.0
    %1624 = vmatprep.subr.mxu0 0.0
    %1625 = vmatpush1.msra.mxu0 0.0
    %1626 = vmatprep.mubr.f32.mxu0 0.0
    %1627 = vmatmul.mubr.f32.gmra.mrb[0].mxu0 %v1560
    %v1628 = vpop.f32.mrb[0].mxu0
    %v1629 = vadd.f32 %v146, %v1628
    %v1630 = vpop.f32.mrb[0].mxu0
    %1631 = vdwg.mxu0
    %v1632 = vxor.u32 %v1629, 2147483648
    %v1633 = vmul.f32 %v1632, 1.442695
    %v1634 = vpow.pop %v1633
    %v1635 = vadd.f32 %v1634, 1.0
    %v1636 = vrcp.pop %v1635
    %v1637 = vmul.f32 1.0, %v1636
    %v1638 = vtanh.pop %v1629
    %v1639 = vmul.f32 %v1637, %v392
    %1641 = vrot.lane.b32.xlu0 %v1638, 64
    %v1642 = vpop.permute.xlu0 %1641
    %v1644 = vmul.f32 %v1637, %v1642
    %1646 = vrot.lane.b32.xlu0 %v1644, 32
    %v1647 = vpop.permute.xlu0 %1646
    %v1649 = vadd.f32 %v1639, %v1647
    %v1650 = vtanh.pop %v1649
    %1652 = vrot.lane.b32.xlu0 %v1650, 64
    %v1653 = vpop.permute.xlu0 %1652
    %v1655 = vmul.f32 %v1637, %v1653
    %1657 = vrot.lane.b32.xlu0 %v1655, 32
    %v1658 = vpop.permute.xlu0 %1657
    %v1659 = vsel %vm185, %v1658, 0
    %1661 = vmatprep.subr.mxu0 0.0
    %1662 = vmatpush1.msra.mxu0 %v148
    %1663 = vmatprep.subr.mxu0 0.0
    %1664 = vmatpush1.msra.mxu0 %v149
    %1665 = vmatprep.subr.mxu0 0.0
    %1666 = vmatpush1.msra.mxu0 %v150
    %1667 = vmatprep.subr.mxu0 0.0
    %1668 = vmatpush1.msra.mxu0 %v151
    %1669 = vmatprep.subr.mxu0 0.0
    %1670 = vmatpush1.msra.mxu0 0.0
    %1671 = vmatprep.subr.mxu0 0.0
    %1672 = vmatpush1.msra.mxu0 0.0
    %1673 = vmatprep.subr.mxu0 0.0
    %1674 = vmatpush1.msra.mxu0 0.0
    %1675 = vmatprep.subr.mxu0 0.0
    %1676 = vmatpush1.msra.mxu0 0.0
    %1677 = vmatprep.subr.mxu0 0.0
    %1678 = vmatpush1.msra.mxu0 0.0
    %1679 = vmatprep.subr.mxu0 0.0
    %1680 = vmatpush1.msra.mxu0 0.0
    %1681 = vmatprep.subr.mxu0 0.0
    %1682 = vmatpush1.msra.mxu0 0.0
    %1683 = vmatprep.subr.mxu0 0.0
    %1684 = vmatpush1.msra.mxu0 0.0
    %1685 = vmatprep.subr.mxu0 0.0
    %1686 = vmatpush1.msra.mxu0 0.0
    %1687 = vmatprep.subr.mxu0 0.0
    %1688 = vmatpush1.msra.mxu0 0.0
    %1689 = vmatprep.subr.mxu0 0.0
    %1690 = vmatpush1.msra.mxu0 0.0
    %1691 = vmatprep.subr.mxu0 0.0
    %1692 = vmatpush1.msra.mxu0 0.0
    %1693 = vmatprep.subr.mxu0 0.0
    %1694 = vmatpush1.msra.mxu0 0.0
    %1695 = vmatprep.subr.mxu0 0.0
    %1696 = vmatpush1.msra.mxu0 0.0
    %1697 = vmatprep.subr.mxu0 0.0
    %1698 = vmatpush1.msra.mxu0 0.0
    %1699 = vmatprep.subr.mxu0 0.0
    %1700 = vmatpush1.msra.mxu0 0.0
    %1701 = vmatprep.subr.mxu0 0.0
    %1702 = vmatpush1.msra.mxu0 0.0
    %1703 = vmatprep.subr.mxu0 0.0
    %1704 = vmatpush1.msra.mxu0 0.0
    %1705 = vmatprep.subr.mxu0 0.0
    %1706 = vmatpush1.msra.mxu0 0.0
    %1707 = vmatprep.subr.mxu0 0.0
    %1708 = vmatpush1.msra.mxu0 0.0
    %1709 = vmatprep.subr.mxu0 0.0
    %1710 = vmatpush1.msra.mxu0 0.0
    %1711 = vmatprep.subr.mxu0 0.0
    %1712 = vmatpush1.msra.mxu0 0.0
    %1713 = vmatprep.subr.mxu0 0.0
    %1714 = vmatpush1.msra.mxu0 0.0
    %1715 = vmatprep.subr.mxu0 0.0
    %1716 = vmatpush1.msra.mxu0 0.0
    %1717 = vmatprep.subr.mxu0 0.0
    %1718 = vmatpush1.msra.mxu0 0.0
    %1719 = vmatprep.subr.mxu0 0.0
    %1720 = vmatpush1.msra.mxu0 0.0
    %1721 = vmatprep.subr.mxu0 0.0
    %1722 = vmatpush1.msra.mxu0 0.0
    %1723 = vmatprep.subr.mxu0 0.0
    %1724 = vmatpush1.msra.mxu0 0.0
    %1725 = vmatprep.mubr.f32.mxu0 0.0
    %1726 = vmatmul.mubr.f32.gmra.mrb[0].mxu0 %v1659
    %v1727 = vpop.f32.mrb[0].mxu0
    %v1728 = vadd.f32 %v157, %v1727
    %v1729 = vpop.f32.mrb[0].mxu0
    %1730 = vdwg.mxu0
    %v1732 = vcombine.high %v1728, %v1728
    %v1734 = vunpack.c.l.s4 1966171168
    %v1735 = vunpack.c.0.s8 %v1734
    %v1736 = vlaneseq
    %v1737 = vshrl.u32 %v1736, 7
    %v1738 = vsub.s32 %v1735, %v1737
    %v1739 = vrot.slane %v1728, %v1738
    %v1741 = vunpack.c.l.s4 1966171168
    %v1742 = vunpack.c.0.s8 %v1741
    %v1743 = vlaneseq
    %v1744 = vshrl.u32 %v1743, 7
    %v1745 = vsub.s32 %v1742, %v1744
    %v1746 = vrot.slane %v1732, %v1745
    %v1747 = vcombine.high %v1739, %v1739
    %v1748 = vcombine.high %v1746, %v1746
    %v1750 = vunpack.c.l.s4 1966171168
    %v1751 = vunpack.c.0.s8 %v1750
    %v1752 = vlaneseq
    %v1753 = vshrl.u32 %v1752, 7
    %v1754 = vsub.s32 %v1751, %v1753
    %v1755 = vrot.slane %v1739, %v1754
    %v1757 = vunpack.c.l.s4 1966171168
    %v1758 = vunpack.c.0.s8 %v1757
    %v1759 = vlaneseq
    %v1760 = vshrl.u32 %v1759, 7
    %v1761 = vsub.s32 %v1758, %v1760
    %v1762 = vrot.slane %v1746, %v1761
    %v1764 = vunpack.c.l.s4 1966171168
    %v1765 = vunpack.c.0.s8 %v1764
    %v1766 = vlaneseq
    %v1767 = vshrl.u32 %v1766, 7
    %v1768 = vsub.s32 %v1765, %v1767
    %v1769 = vrot.slane %v1747, %v1768
    %v1771 = vunpack.c.l.s4 1966171168
    %v1772 = vunpack.c.0.s8 %v1771
    %v1773 = vlaneseq
    %v1774 = vshrl.u32 %v1773, 7
    %v1775 = vsub.s32 %v1772, %v1774
    %v1776 = vrot.slane %v1748, %v1775
    %v1777 = vcombine.high %v1755, %v1755
    %v1778 = vcombine.high %v1762, %v1762
    %v1779 = vcombine.high %v1769, %v1769
    %v1780 = vcombine.high %v1776, %v1776
    %v1781 = vlaneseq
    %v1782 = vshrl.u32 %v1781, 7
    %v1783 = vsub.s32 0, %v1782
    %v1784 = vrot.slane %v1755, %v1783
    %v1785 = vlaneseq
    %v1786 = vshrl.u32 %v1785, 7
    %v1787 = vsub.s32 0, %v1786
    %v1788 = vrot.slane %v1769, %v1787
    %v1789 = vlaneseq
    %v1790 = vshrl.u32 %v1789, 7
    %v1791 = vsub.s32 0, %v1790
    %v1792 = vrot.slane %v1777, %v1791
    %v1793 = vlaneseq
    %v1794 = vshrl.u32 %v1793, 7
    %v1795 = vsub.s32 0, %v1794
    %v1796 = vrot.slane %v1779, %v1795
    %v1797 = vlaneseq
    %v1798 = vshrl.u32 %v1797, 7
    %v1799 = vsub.s32 0, %v1798
    %v1800 = vrot.slane %v1762, %v1799
    %v1801 = vlaneseq
    %v1802 = vshrl.u32 %v1801, 7
    %v1803 = vsub.s32 0, %v1802
    %v1804 = vrot.slane %v1776, %v1803
    %v1805 = vlaneseq
    %v1806 = vshrl.u32 %v1805, 7
    %v1807 = vsub.s32 0, %v1806
    %v1808 = vrot.slane %v1778, %v1807
    %v1809 = vlaneseq
    %v1810 = vshrl.u32 %v1809, 7
    %v1811 = vsub.s32 0, %v1810
    %v1812 = vrot.slane %v1780, %v1811
    %v1821 = vmul.f32 %v102, %v1784
    %v1822 = vmul.f32 %v103, %v1784
    %v1823 = vmul.f32 %v104, %v1788
    %v1824 = vmul.f32 %v105, %v1788
    %v1825 = vmul.f32 %v106, %v1792
    %v1826 = vmul.f32 %v107, %v1792
    %v1827 = vmul.f32 %v108, %v1796
    %v1828 = vmul.f32 %v109, %v1796
    %v1829 = vmul.f32 %v110, %v1800
    %v1830 = vmul.f32 %v111, %v1800
    %v1831 = vmul.f32 %v112, %v1804
    %v1832 = vmul.f32 %v113, %v1804
    %v1833 = vmul.f32 %v114, %v1808
    %v1834 = vmul.f32 %v115, %v1808
    %v1835 = vmul.f32 %v116, %v1812
    %v1836 = vmul.f32 %v117, %v1812
    %v1837 = vsel %vm185, %v1821, 0.0
    %1838 = vadd.xlane.f32.xlu0 %v1837
    %v1839 = vpop.xlane.xlu0 %1838
    %v1840 = vsel %vm583, %v1822, 0.0
    %1841 = vadd.xlane.f32.xlu0 %v1840
    %v1842 = vpop.xlane.xlu0 %1841
    %v1843 = vsel %vm185, %v1823, 0.0
    %1844 = vadd.xlane.f32.xlu0 %v1843
    %v1845 = vpop.xlane.xlu0 %1844
    %v1846 = vsel %vm583, %v1824, 0.0
    %1847 = vadd.xlane.f32.xlu0 %v1846
    %v1848 = vpop.xlane.xlu0 %1847
    %v1849 = vsel %vm185, %v1825, 0.0
    %1850 = vadd.xlane.f32.xlu0 %v1849
    %v1851 = vpop.xlane.xlu0 %1850
    %v1852 = vsel %vm583, %v1826, 0.0
    %1853 = vadd.xlane.f32.xlu0 %v1852
    %v1854 = vpop.xlane.xlu0 %1853
    %v1855 = vsel %vm185, %v1827, 0.0
    %1856 = vadd.xlane.f32.xlu0 %v1855
    %v1857 = vpop.xlane.xlu0 %1856
    %v1858 = vsel %vm583, %v1828, 0.0
    %1859 = vadd.xlane.f32.xlu0 %v1858
    %v1860 = vpop.xlane.xlu0 %1859
    %v1861 = vsel %vm185, %v1829, 0.0
    %1862 = vadd.xlane.f32.xlu0 %v1861
    %v1863 = vpop.xlane.xlu0 %1862
    %v1864 = vsel %vm583, %v1830, 0.0
    %1865 = vadd.xlane.f32.xlu0 %v1864
    %v1866 = vpop.xlane.xlu0 %1865
    %v1867 = vsel %vm185, %v1831, 0.0
    %1868 = vadd.xlane.f32.xlu0 %v1867
    %v1869 = vpop.xlane.xlu0 %1868
    %v1870 = vsel %vm583, %v1832, 0.0
    %1871 = vadd.xlane.f32.xlu0 %v1870
    %v1872 = vpop.xlane.xlu0 %1871
    %v1873 = vsel %vm185, %v1833, 0.0
    %1874 = vadd.xlane.f32.xlu0 %v1873
    %v1875 = vpop.xlane.xlu0 %1874
    %v1876 = vsel %vm583, %v1834, 0.0
    %1877 = vadd.xlane.f32.xlu0 %v1876
    %v1878 = vpop.xlane.xlu0 %1877
    %v1879 = vsel %vm185, %v1835, 0.0
    %1880 = vadd.xlane.f32.xlu0 %v1879
    %v1881 = vpop.xlane.xlu0 %1880
    %v1882 = vsel %vm583, %v1836, 0.0
    %1883 = vadd.xlane.f32.xlu0 %v1882
    %v1884 = vpop.xlane.xlu0 %1883
    %v1901 = vlaneseq
    %v1902 = vshrl.u32 %v1901, 7
    %v1903 = vsub.s32 %v646, %v1902
    %v1904 = vrot.slane %v1839, %v1903
    %v1905 = vlaneseq
    %v1906 = vshrl.u32 %v1905, 7
    %v1907 = vsub.s32 %v651, %v1906
    %v1908 = vrot.slane %v1842, %v1907
    %v1909 = vsel %vm656, %v1908, %v1904
    %v1910 = vlaneseq
    %v1911 = vshrl.u32 %v1910, 7
    %v1912 = vsub.s32 %v646, %v1911
    %v1913 = vrot.slane %v1845, %v1912
    %v1914 = vlaneseq
    %v1915 = vshrl.u32 %v1914, 7
    %v1916 = vsub.s32 %v651, %v1915
    %v1917 = vrot.slane %v1848, %v1916
    %v1918 = vsel %vm656, %v1917, %v1913
    %v1919 = vlaneseq
    %v1920 = vshrl.u32 %v1919, 7
    %v1921 = vsub.s32 %v646, %v1920
    %v1922 = vrot.slane %v1851, %v1921
    %v1923 = vlaneseq
    %v1924 = vshrl.u32 %v1923, 7
    %v1925 = vsub.s32 %v651, %v1924
    %v1926 = vrot.slane %v1854, %v1925
    %v1927 = vsel %vm656, %v1926, %v1922
    %v1928 = vlaneseq
    %v1929 = vshrl.u32 %v1928, 7
    %v1930 = vsub.s32 %v646, %v1929
    %v1931 = vrot.slane %v1857, %v1930
    %v1932 = vlaneseq
    %v1933 = vshrl.u32 %v1932, 7
    %v1934 = vsub.s32 %v651, %v1933
    %v1935 = vrot.slane %v1860, %v1934
    %v1936 = vsel %vm656, %v1935, %v1931
    %v1937 = vlaneseq
    %v1938 = vshrl.u32 %v1937, 7
    %v1939 = vsub.s32 %v646, %v1938
    %v1940 = vrot.slane %v1863, %v1939
    %v1941 = vlaneseq
    %v1942 = vshrl.u32 %v1941, 7
    %v1943 = vsub.s32 %v651, %v1942
    %v1944 = vrot.slane %v1866, %v1943
    %v1945 = vsel %vm656, %v1944, %v1940
    %v1946 = vlaneseq
    %v1947 = vshrl.u32 %v1946, 7
    %v1948 = vsub.s32 %v646, %v1947
    %v1949 = vrot.slane %v1869, %v1948
    %v1950 = vlaneseq
    %v1951 = vshrl.u32 %v1950, 7
    %v1952 = vsub.s32 %v651, %v1951
    %v1953 = vrot.slane %v1872, %v1952
    %v1954 = vsel %vm656, %v1953, %v1949
    %v1955 = vlaneseq
    %v1956 = vshrl.u32 %v1955, 7
    %v1957 = vsub.s32 %v646, %v1956
    %v1958 = vrot.slane %v1875, %v1957
    %v1959 = vlaneseq
    %v1960 = vshrl.u32 %v1959, 7
    %v1961 = vsub.s32 %v651, %v1960
    %v1962 = vrot.slane %v1878, %v1961
    %v1963 = vsel %vm656, %v1962, %v1958
    %v1964 = vlaneseq
    %v1965 = vshrl.u32 %v1964, 7
    %v1966 = vsub.s32 %v646, %v1965
    %v1967 = vrot.slane %v1881, %v1966
    %v1968 = vlaneseq
    %v1969 = vshrl.u32 %v1968, 7
    %v1970 = vsub.s32 %v651, %v1969
    %v1971 = vrot.slane %v1884, %v1970
    %v1972 = vsel %vm656, %v1971, %v1967
    %v1973 = vsel %vm721, %v1918, %v1909
    %v1974 = vsel %vm723, %v1927, %v1973
    %v1975 = vsel %vm725, %v1936, %v1974
    %v1976 = vsel %vm727, %v1945, %v1975
    %v1977 = vsel %vm729, %v1954, %v1976
    %v1978 = vsel %vm731, %v1963, %v1977
    %v1979 = vsel %vm733, %v1972, %v1978
    %v1981 = vsel %vm736, %v1979, -inf
    %1982 = vmax.xlane.f32.xlu0 %v1981
    %v1983 = vpop.xlane.xlu0 %1982
    %v1985 = vlaneseq
    %v1986 = vshrl.u32 %v1985, 7
    %v1987 = vsub.s32 0, %v1986
    %v1988 = vrot.slane %v1983, %v1987
    %v1989 = vlaneseq
    %v1990 = vshrl.u32 %v1989, 7
    %v1991 = vsub.s32 1, %v1990
    %v1992 = vrot.slane %v1983, %v1991
    %v1993 = vlaneseq
    %v1994 = vshrl.u32 %v1993, 7
    %v1995 = vsub.s32 2, %v1994
    %v1996 = vrot.slane %v1983, %v1995
    %v1997 = vlaneseq
    %v1998 = vshrl.u32 %v1997, 7
    %v1999 = vsub.s32 3, %v1998
    %v2000 = vrot.slane %v1983, %v1999
    %v2001 = vlaneseq
    %v2002 = vshrl.u32 %v2001, 7
    %v2003 = vsub.s32 4, %v2002
    %v2004 = vrot.slane %v1983, %v2003
    %v2005 = vlaneseq
    %v2006 = vshrl.u32 %v2005, 7
    %v2007 = vsub.s32 5, %v2006
    %v2008 = vrot.slane %v1983, %v2007
    %v2009 = vlaneseq
    %v2010 = vshrl.u32 %v2009, 7
    %v2011 = vsub.s32 6, %v2010
    %v2012 = vrot.slane %v1983, %v2011
    %v2013 = vlaneseq
    %v2014 = vshrl.u32 %v2013, 7
    %v2015 = vsub.s32 7, %v2014
    %v2016 = vrot.slane %v1983, %v2015
    %v2025 = vsub.f32 %v1839, %v1988
    %v2026 = vsub.f32 %v1842, %v1988
    %v2027 = vsub.f32 %v1845, %v1992
    %v2028 = vsub.f32 %v1848, %v1992
    %v2029 = vsub.f32 %v1851, %v1996
    %v2030 = vsub.f32 %v1854, %v1996
    %v2031 = vsub.f32 %v1857, %v2000
    %v2032 = vsub.f32 %v1860, %v2000
    %v2033 = vsub.f32 %v1863, %v2004
    %v2034 = vsub.f32 %v1866, %v2004
    %v2035 = vsub.f32 %v1869, %v2008
    %v2036 = vsub.f32 %v1872, %v2008
    %v2037 = vsub.f32 %v1875, %v2012
    %v2038 = vsub.f32 %v1878, %v2012
    %v2039 = vsub.f32 %v1881, %v2016
    %v2040 = vsub.f32 %v1884, %v2016
    %v2041 = vmul.f32 %v2025, 1.442695
    %v2042 = vpow.pop %v2041
    %v2043 = vmul.f32 %v2026, 1.442695
    %v2044 = vpow.pop %v2043
    %v2045 = vmul.f32 %v2027, 1.442695
    %v2046 = vpow.pop %v2045
    %v2047 = vmul.f32 %v2028, 1.442695
    %v2048 = vpow.pop %v2047
    %v2049 = vmul.f32 %v2029, 1.442695
    %v2050 = vpow.pop %v2049
    %v2051 = vmul.f32 %v2030, 1.442695
    %v2052 = vpow.pop %v2051
    %v2053 = vmul.f32 %v2031, 1.442695
    %v2054 = vpow.pop %v2053
    %v2055 = vmul.f32 %v2032, 1.442695
    %v2056 = vpow.pop %v2055
    %v2057 = vmul.f32 %v2033, 1.442695
    %v2058 = vpow.pop %v2057
    %v2059 = vmul.f32 %v2034, 1.442695
    %v2060 = vpow.pop %v2059
    %v2061 = vmul.f32 %v2035, 1.442695
    %v2062 = vpow.pop %v2061
    %v2063 = vmul.f32 %v2036, 1.442695
    %v2064 = vpow.pop %v2063
    %v2065 = vmul.f32 %v2037, 1.442695
    %v2066 = vpow.pop %v2065
    %v2067 = vmul.f32 %v2038, 1.442695
    %v2068 = vpow.pop %v2067
    %v2069 = vmul.f32 %v2039, 1.442695
    %v2070 = vpow.pop %v2069
    %v2071 = vmul.f32 %v2040, 1.442695
    %v2072 = vpow.pop %v2071
    %2089 = vset.pattern.permute.xlu0 0
    %2090 = vperm.xlu0 %2089, %v2042
    %v2091 = vpop.permute.xlu0 %2090
    %2092 = vset.pattern.permute.xlu0 0
    %2093 = vperm.xlu0 %2092, %v2044
    %v2094 = vpop.permute.xlu0 %2093
    %2095 = vset.pattern.permute.xlu0 0
    %2096 = vperm.xlu0 %2095, %v2046
    %v2097 = vpop.permute.xlu0 %2096
    %2098 = vset.pattern.permute.xlu0 0
    %2099 = vperm.xlu0 %2098, %v2048
    %v2100 = vpop.permute.xlu0 %2099
    %2101 = vset.pattern.permute.xlu0 0
    %2102 = vperm.xlu0 %2101, %v2050
    %v2103 = vpop.permute.xlu0 %2102
    %2104 = vset.pattern.permute.xlu0 0
    %2105 = vperm.xlu0 %2104, %v2052
    %v2106 = vpop.permute.xlu0 %2105
    %2107 = vset.pattern.permute.xlu0 0
    %2108 = vperm.xlu0 %2107, %v2054
    %v2109 = vpop.permute.xlu0 %2108
    %2110 = vset.pattern.permute.xlu0 0
    %2111 = vperm.xlu0 %2110, %v2056
    %v2112 = vpop.permute.xlu0 %2111
    %2113 = vset.pattern.permute.xlu0 0
    %2114 = vperm.xlu0 %2113, %v2058
    %v2115 = vpop.permute.xlu0 %2114
    %2116 = vset.pattern.permute.xlu0 0
    %2117 = vperm.xlu0 %2116, %v2060
    %v2118 = vpop.permute.xlu0 %2117
    %2119 = vset.pattern.permute.xlu0 0
    %2120 = vperm.xlu0 %2119, %v2062
    %v2121 = vpop.permute.xlu0 %2120
    %2122 = vset.pattern.permute.xlu0 0
    %2123 = vperm.xlu0 %2122, %v2064
    %v2124 = vpop.permute.xlu0 %2123
    %2125 = vset.pattern.permute.xlu0 0
    %2126 = vperm.xlu0 %2125, %v2066
    %v2127 = vpop.permute.xlu0 %2126
    %2128 = vset.pattern.permute.xlu0 0
    %2129 = vperm.xlu0 %2128, %v2068
    %v2130 = vpop.permute.xlu0 %2129
    %2131 = vset.pattern.permute.xlu0 0
    %2132 = vperm.xlu0 %2131, %v2070
    %v2133 = vpop.permute.xlu0 %2132
    %2134 = vset.pattern.permute.xlu0 0
    %2135 = vperm.xlu0 %2134, %v2072
    %v2136 = vpop.permute.xlu0 %2135
    %v2137 = vlaneseq
    %v2138 = vshrl.u32 %v2137, 7
    %v2139 = vsub.s32 %v646, %v2138
    %v2140 = vrot.slane %v2091, %v2139
    %v2141 = vlaneseq
    %v2142 = vshrl.u32 %v2141, 7
    %v2143 = vsub.s32 %v651, %v2142
    %v2144 = vrot.slane %v2094, %v2143
    %v2145 = vsel %vm656, %v2144, %v2140
    %v2146 = vlaneseq
    %v2147 = vshrl.u32 %v2146, 7
    %v2148 = vsub.s32 %v646, %v2147
    %v2149 = vrot.slane %v2097, %v2148
    %v2150 = vlaneseq
    %v2151 = vshrl.u32 %v2150, 7
    %v2152 = vsub.s32 %v651, %v2151
    %v2153 = vrot.slane %v2100, %v2152
    %v2154 = vsel %vm656, %v2153, %v2149
    %v2155 = vlaneseq
    %v2156 = vshrl.u32 %v2155, 7
    %v2157 = vsub.s32 %v646, %v2156
    %v2158 = vrot.slane %v2103, %v2157
    %v2159 = vlaneseq
    %v2160 = vshrl.u32 %v2159, 7
    %v2161 = vsub.s32 %v651, %v2160
    %v2162 = vrot.slane %v2106, %v2161
    %v2163 = vsel %vm656, %v2162, %v2158
    %v2164 = vlaneseq
    %v2165 = vshrl.u32 %v2164, 7
    %v2166 = vsub.s32 %v646, %v2165
    %v2167 = vrot.slane %v2109, %v2166
    %v2168 = vlaneseq
    %v2169 = vshrl.u32 %v2168, 7
    %v2170 = vsub.s32 %v651, %v2169
    %v2171 = vrot.slane %v2112, %v2170
    %v2172 = vsel %vm656, %v2171, %v2167
    %v2173 = vlaneseq
    %v2174 = vshrl.u32 %v2173, 7
    %v2175 = vsub.s32 %v646, %v2174
    %v2176 = vrot.slane %v2115, %v2175
    %v2177 = vlaneseq
    %v2178 = vshrl.u32 %v2177, 7
    %v2179 = vsub.s32 %v651, %v2178
    %v2180 = vrot.slane %v2118, %v2179
    %v2181 = vsel %vm656, %v2180, %v2176
    %v2182 = vlaneseq
    %v2183 = vshrl.u32 %v2182, 7
    %v2184 = vsub.s32 %v646, %v2183
    %v2185 = vrot.slane %v2121, %v2184
    %v2186 = vlaneseq
    %v2187 = vshrl.u32 %v2186, 7
    %v2188 = vsub.s32 %v651, %v2187
    %v2189 = vrot.slane %v2124, %v2188
    %v2190 = vsel %vm656, %v2189, %v2185
    %v2191 = vlaneseq
    %v2192 = vshrl.u32 %v2191, 7
    %v2193 = vsub.s32 %v646, %v2192
    %v2194 = vrot.slane %v2127, %v2193
    %v2195 = vlaneseq
    %v2196 = vshrl.u32 %v2195, 7
    %v2197 = vsub.s32 %v651, %v2196
    %v2198 = vrot.slane %v2130, %v2197
    %v2199 = vsel %vm656, %v2198, %v2194
    %v2200 = vlaneseq
    %v2201 = vshrl.u32 %v2200, 7
    %v2202 = vsub.s32 %v646, %v2201
    %v2203 = vrot.slane %v2133, %v2202
    %v2204 = vlaneseq
    %v2205 = vshrl.u32 %v2204, 7
    %v2206 = vsub.s32 %v651, %v2205
    %v2207 = vrot.slane %v2136, %v2206
    %v2208 = vsel %vm656, %v2207, %v2203
    %v2209 = vsel %vm721, %v2154, %v2145
    %v2210 = vsel %vm723, %v2163, %v2209
    %v2211 = vsel %vm725, %v2172, %v2210
    %v2212 = vsel %vm727, %v2181, %v2211
    %v2213 = vsel %vm729, %v2190, %v2212
    %v2214 = vsel %vm731, %v2199, %v2213
    %v2215 = vsel %vm733, %v2208, %v2214
    %v2217 = vsel %vm736, %v2215, 0.0
    %2218 = vadd.xlane.f32.xlu0 %v2217
    %v2219 = vpop.xlane.xlu0 %2218
    %v2220 = vrcp.pop %v2219
    %v2222 = vlaneseq
    %v2223 = vshrl.u32 %v2222, 7
    %v2224 = vsub.s32 0, %v2223
    %v2225 = vrot.slane %v2220, %v2224
    %v2226 = vlaneseq
    %v2227 = vshrl.u32 %v2226, 7
    %v2228 = vsub.s32 1, %v2227
    %v2229 = vrot.slane %v2220, %v2228
    %v2230 = vlaneseq
    %v2231 = vshrl.u32 %v2230, 7
    %v2232 = vsub.s32 2, %v2231
    %v2233 = vrot.slane %v2220, %v2232
    %v2234 = vlaneseq
    %v2235 = vshrl.u32 %v2234, 7
    %v2236 = vsub.s32 3, %v2235
    %v2237 = vrot.slane %v2220, %v2236
    %v2238 = vlaneseq
    %v2239 = vshrl.u32 %v2238, 7
    %v2240 = vsub.s32 4, %v2239
    %v2241 = vrot.slane %v2220, %v2240
    %v2242 = vlaneseq
    %v2243 = vshrl.u32 %v2242, 7
    %v2244 = vsub.s32 5, %v2243
    %v2245 = vrot.slane %v2220, %v2244
    %v2246 = vlaneseq
    %v2247 = vshrl.u32 %v2246, 7
    %v2248 = vsub.s32 6, %v2247
    %v2249 = vrot.slane %v2220, %v2248
    %v2250 = vlaneseq
    %v2251 = vshrl.u32 %v2250, 7
    %v2252 = vsub.s32 7, %v2251
    %v2253 = vrot.slane %v2220, %v2252
    %v2262 = vmul.f32 %v2042, %v2225
    %v2263 = vmul.f32 %v2044, %v2225
    %v2264 = vmul.f32 %v2046, %v2229
    %v2265 = vmul.f32 %v2048, %v2229
    %v2266 = vmul.f32 %v2050, %v2233
    %v2267 = vmul.f32 %v2052, %v2233
    %v2268 = vmul.f32 %v2054, %v2237
    %v2269 = vmul.f32 %v2056, %v2237
    %v2270 = vmul.f32 %v2058, %v2241
    %v2271 = vmul.f32 %v2060, %v2241
    %v2272 = vmul.f32 %v2062, %v2245
    %v2273 = vmul.f32 %v2064, %v2245
    %v2274 = vmul.f32 %v2066, %v2249
    %v2275 = vmul.f32 %v2068, %v2249
    %v2276 = vmul.f32 %v2070, %v2253
    %v2277 = vmul.f32 %v2072, %v2253
    %2279 = vset.pattern.permute.xlu0 0
    %2280 = vperm.xlu0 %2279, %v2262
    %v2281 = vpop.permute.xlu0 %2280
    %2284 = vset.pattern.permute.xlu0 0
    %2285 = vperm.xlu0 %2284, %v2263
    %v2286 = vpop.permute.xlu0 %2285
    %2289 = vset.pattern.permute.xlu0 0
    %2290 = vperm.xlu0 %2289, %v2264
    %v2291 = vpop.permute.xlu0 %2290
    %2294 = vset.pattern.permute.xlu0 0
    %2295 = vperm.xlu0 %2294, %v2265
    %v2296 = vpop.permute.xlu0 %2295
    %2299 = vset.pattern.permute.xlu0 0
    %2300 = vperm.xlu0 %2299, %v2266
    %v2301 = vpop.permute.xlu0 %2300
    %2304 = vset.pattern.permute.xlu0 0
    %2305 = vperm.xlu0 %2304, %v2267
    %v2306 = vpop.permute.xlu0 %2305
    %2309 = vset.pattern.permute.xlu0 0
    %2310 = vperm.xlu0 %2309, %v2268
    %v2311 = vpop.permute.xlu0 %2310
    %2314 = vset.pattern.permute.xlu0 0
    %2315 = vperm.xlu0 %2314, %v2269
    %v2316 = vpop.permute.xlu0 %2315
    %2319 = vset.pattern.permute.xlu0 0
    %2320 = vperm.xlu0 %2319, %v2270
    %v2321 = vpop.permute.xlu0 %2320
    %2324 = vset.pattern.permute.xlu0 0
    %2325 = vperm.xlu0 %2324, %v2271
    %v2326 = vpop.permute.xlu0 %2325
    %2329 = vset.pattern.permute.xlu0 0
    %2330 = vperm.xlu0 %2329, %v2272
    %v2331 = vpop.permute.xlu0 %2330
    %2334 = vset.pattern.permute.xlu0 0
    %2335 = vperm.xlu0 %2334, %v2273
    %v2336 = vpop.permute.xlu0 %2335
    %2339 = vset.pattern.permute.xlu0 0
    %2340 = vperm.xlu0 %2339, %v2274
    %v2341 = vpop.permute.xlu0 %2340
    %2344 = vset.pattern.permute.xlu0 0
    %2345 = vperm.xlu0 %2344, %v2275
    %v2346 = vpop.permute.xlu0 %2345
    %2349 = vset.pattern.permute.xlu0 0
    %2350 = vperm.xlu0 %2349, %v2276
    %v2351 = vpop.permute.xlu0 %2350
    %2354 = vset.pattern.permute.xlu0 0
    %2355 = vperm.xlu0 %2354, %v2277
    %v2356 = vpop.permute.xlu0 %2355
    %v2358 = vmul.f32 %v2281, %v102
    %v2359 = vmul.f32 %v2286, %v103
    %v2360 = vmul.f32 %v2291, %v104
    %v2361 = vmul.f32 %v2296, %v105
    %v2362 = vmul.f32 %v2301, %v106
    %v2363 = vmul.f32 %v2306, %v107
    %v2364 = vmul.f32 %v2311, %v108
    %v2365 = vmul.f32 %v2316, %v109
    %v2366 = vmul.f32 %v2321, %v110
    %v2367 = vmul.f32 %v2326, %v111
    %v2368 = vmul.f32 %v2331, %v112
    %v2369 = vmul.f32 %v2336, %v113
    %v2370 = vmul.f32 %v2341, %v114
    %v2371 = vmul.f32 %v2346, %v115
    %v2372 = vmul.f32 %v2351, %v116
    %v2373 = vmul.f32 %v2356, %v117
    %v2374 = vsel %vm185, %v2358, 0.0
    %v2375 = vsel %vm583, %v2359, 0.0
    %v2376 = vadd.f32 %v2374, %v2375
    %v2377 = vrot.slane %v2376, 4
    %v2378 = vadd.f32 %v2376, %v2377
    %v2379 = vrot.slane %v2378, 2
    %v2380 = vadd.f32 %v2378, %v2379
    %v2381 = vrot.slane %v2380, 1
    %v2382 = vadd.f32 %v2380, %v2381
    %v2383 = vsel %vm185, %v2360, 0.0
    %v2384 = vsel %vm583, %v2361, 0.0
    %v2385 = vadd.f32 %v2383, %v2384
    %v2386 = vrot.slane %v2385, 4
    %v2387 = vadd.f32 %v2385, %v2386
    %v2388 = vrot.slane %v2387, 2
    %v2389 = vadd.f32 %v2387, %v2388
    %v2390 = vrot.slane %v2389, 1
    %v2391 = vadd.f32 %v2389, %v2390
    %v2392 = vsel %vm185, %v2362, 0.0
    %v2393 = vsel %vm583, %v2363, 0.0
    %v2394 = vadd.f32 %v2392, %v2393
    %v2395 = vrot.slane %v2394, 4
    %v2396 = vadd.f32 %v2394, %v2395
    %v2397 = vrot.slane %v2396, 2
    %v2398 = vadd.f32 %v2396, %v2397
    %v2399 = vrot.slane %v2398, 1
    %v2400 = vadd.f32 %v2398, %v2399
    %v2401 = vsel %vm185, %v2364, 0.0
    %v2402 = vsel %vm583, %v2365, 0.0
    %v2403 = vadd.f32 %v2401, %v2402
    %v2404 = vrot.slane %v2403, 4
    %v2405 = vadd.f32 %v2403, %v2404
    %v2406 = vrot.slane %v2405, 2
    %v2407 = vadd.f32 %v2405, %v2406
    %v2408 = vrot.slane %v2407, 1
    %v2409 = vadd.f32 %v2407, %v2408
    %v2410 = vsel %vm185, %v2366, 0.0
    %v2411 = vsel %vm583, %v2367, 0.0
    %v2412 = vadd.f32 %v2410, %v2411
    %v2413 = vrot.slane %v2412, 4
    %v2414 = vadd.f32 %v2412, %v2413
    %v2415 = vrot.slane %v2414, 2
    %v2416 = vadd.f32 %v2414, %v2415
    %v2417 = vrot.slane %v2416, 1
    %v2418 = vadd.f32 %v2416, %v2417
    %v2419 = vsel %vm185, %v2368, 0.0
    %v2420 = vsel %vm583, %v2369, 0.0
    %v2421 = vadd.f32 %v2419, %v2420
    %v2422 = vrot.slane %v2421, 4
    %v2423 = vadd.f32 %v2421, %v2422
    %v2424 = vrot.slane %v2423, 2
    %v2425 = vadd.f32 %v2423, %v2424
    %v2426 = vrot.slane %v2425, 1
    %v2427 = vadd.f32 %v2425, %v2426
    %v2428 = vsel %vm185, %v2370, 0.0
    %v2429 = vsel %vm583, %v2371, 0.0
    %v2430 = vadd.f32 %v2428, %v2429
    %v2431 = vrot.slane %v2430, 4
    %v2432 = vadd.f32 %v2430, %v2431
    %v2433 = vrot.slane %v2432, 2
    %v2434 = vadd.f32 %v2432, %v2433
    %v2435 = vrot.slane %v2434, 1
    %v2436 = vadd.f32 %v2434, %v2435
    %v2437 = vsel %vm185, %v2372, 0.0
    %v2438 = vsel %vm583, %v2373, 0.0
    %v2439 = vadd.f32 %v2437, %v2438
    %v2440 = vrot.slane %v2439, 4
    %v2441 = vadd.f32 %v2439, %v2440
    %v2442 = vrot.slane %v2441, 2
    %v2443 = vadd.f32 %v2441, %v2442
    %v2444 = vrot.slane %v2443, 1
    %v2445 = vadd.f32 %v2443, %v2444
    %2446 = vmatprep.subr.mxu0 0.0
    %2447 = vmatpush1.msra.mxu0 %v163
    %2448 = vmatprep.subr.mxu0 0.0
    %2449 = vmatpush1.msra.mxu0 %v164
    %2450 = vmatprep.subr.mxu0 0.0
    %2451 = vmatpush1.msra.mxu0 %v165
    %2452 = vmatprep.subr.mxu0 0.0
    %2453 = vmatpush1.msra.mxu0 %v166
    %2454 = vmatprep.subr.mxu0 0.0
    %2455 = vmatpush1.msra.mxu0 0.0
    %2456 = vmatprep.subr.mxu0 0.0
    %2457 = vmatpush1.msra.mxu0 0.0
    %2458 = vmatprep.subr.mxu0 0.0
    %2459 = vmatpush1.msra.mxu0 0.0
    %2460 = vmatprep.subr.mxu0 0.0
    %2461 = vmatpush1.msra.mxu0 0.0
    %2462 = vmatprep.subr.mxu0 0.0
    %2463 = vmatpush1.msra.mxu0 0.0
    %2464 = vmatprep.subr.mxu0 0.0
    %2465 = vmatpush1.msra.mxu0 0.0
    %2466 = vmatprep.subr.mxu0 0.0
    %2467 = vmatpush1.msra.mxu0 0.0
    %2468 = vmatprep.subr.mxu0 0.0
    %2469 = vmatpush1.msra.mxu0 0.0
    %2470 = vmatprep.subr.mxu0 0.0
    %2471 = vmatpush1.msra.mxu0 0.0
    %2472 = vmatprep.subr.mxu0 0.0
    %2473 = vmatpush1.msra.mxu0 0.0
    %2474 = vmatprep.subr.mxu0 0.0
    %2475 = vmatpush1.msra.mxu0 0.0
    %2476 = vmatprep.subr.mxu0 0.0
    %2477 = vmatpush1.msra.mxu0 0.0
    %2478 = vmatprep.subr.mxu0 0.0
    %2479 = vmatpush1.msra.mxu0 0.0
    %2480 = vmatprep.subr.mxu0 0.0
    %2481 = vmatpush1.msra.mxu0 0.0
    %2482 = vmatprep.subr.mxu0 0.0
    %2483 = vmatpush1.msra.mxu0 0.0
    %2484 = vmatprep.subr.mxu0 0.0
    %2485 = vmatpush1.msra.mxu0 0.0
    %2486 = vmatprep.subr.mxu0 0.0
    %2487 = vmatpush1.msra.mxu0 0.0
    %2488 = vmatprep.subr.mxu0 0.0
    %2489 = vmatpush1.msra.mxu0 0.0
    %2490 = vmatprep.subr.mxu0 0.0
    %2491 = vmatpush1.msra.mxu0 0.0
    %2492 = vmatprep.subr.mxu0 0.0
    %2493 = vmatpush1.msra.mxu0 0.0
    %2494 = vmatprep.subr.mxu0 0.0
    %2495 = vmatpush1.msra.mxu0 0.0
    %2496 = vmatprep.subr.mxu0 0.0
    %2497 = vmatpush1.msra.mxu0 0.0
    %2498 = vmatprep.subr.mxu0 0.0
    %2499 = vmatpush1.msra.mxu0 0.0
    %2500 = vmatprep.subr.mxu0 0.0
    %2501 = vmatpush1.msra.mxu0 0.0
    %2502 = vmatprep.subr.mxu0 0.0
    %2503 = vmatpush1.msra.mxu0 0.0
    %2504 = vmatprep.subr.mxu0 0.0
    %2505 = vmatpush1.msra.mxu0 0.0
    %2506 = vmatprep.subr.mxu0 0.0
    %2507 = vmatpush1.msra.mxu0 0.0
    %2508 = vmatprep.subr.mxu0 0.0
    %2509 = vmatpush1.msra.mxu0 0.0
    %2510 = vmatprep.mubr.f32.mxu0 0.0
    %2511 = vmatmul.mubr.f32.gmra.mrb[0].mxu0 %v1659
    %v2512 = vpop.f32.mrb[0].mxu0
    %v2513 = vadd.f32 0.0, %v2512
    %v2514 = vpop.f32.mrb[0].mxu0
    %2515 = vdwg.mxu0
    %v2524 = vsel %vm721, %v2391, %v2382
    %v2525 = vsel %vm723, %v2400, %v2524
    %v2526 = vsel %vm725, %v2409, %v2525
    %v2527 = vsel %vm727, %v2418, %v2526
    %v2528 = vsel %vm729, %v2427, %v2527
    %v2529 = vsel %vm731, %v2436, %v2528
    %v2530 = vsel %vm733, %v2445, %v2529
    %v2531 = vsel %vm185, %v2530, 0
    %2533 = vmatprep.subr.mxu0 0.0
    %2534 = vmatpush1.msra.mxu0 %v159
    %2535 = vmatprep.subr.mxu0 0.0
    %2536 = vmatpush1.msra.mxu0 %v160
    %2537 = vmatprep.subr.mxu0 0.0
    %2538 = vmatpush1.msra.mxu0 %v161
    %2539 = vmatprep.subr.mxu0 0.0
    %2540 = vmatpush1.msra.mxu0 %v162
    %2541 = vmatprep.subr.mxu0 0.0
    %2542 = vmatpush1.msra.mxu0 0.0
    %2543 = vmatprep.subr.mxu0 0.0
    %2544 = vmatpush1.msra.mxu0 0.0
    %2545 = vmatprep.subr.mxu0 0.0
    %2546 = vmatpush1.msra.mxu0 0.0
    %2547 = vmatprep.subr.mxu0 0.0
    %2548 = vmatpush1.msra.mxu0 0.0
    %2549 = vmatprep.subr.mxu0 0.0
    %2550 = vmatpush1.msra.mxu0 0.0
    %2551 = vmatprep.subr.mxu0 0.0
    %2552 = vmatpush1.msra.mxu0 0.0
    %2553 = vmatprep.subr.mxu0 0.0
    %2554 = vmatpush1.msra.mxu0 0.0
    %2555 = vmatprep.subr.mxu0 0.0
    %2556 = vmatpush1.msra.mxu0 0.0
    %2557 = vmatprep.subr.mxu0 0.0
    %2558 = vmatpush1.msra.mxu0 0.0
    %2559 = vmatprep.subr.mxu0 0.0
    %2560 = vmatpush1.msra.mxu0 0.0
    %2561 = vmatprep.subr.mxu0 0.0
    %2562 = vmatpush1.msra.mxu0 0.0
    %2563 = vmatprep.subr.mxu0 0.0
    %2564 = vmatpush1.msra.mxu0 0.0
    %2565 = vmatprep.subr.mxu0 0.0
    %2566 = vmatpush1.msra.mxu0 0.0
    %2567 = vmatprep.subr.mxu0 0.0
    %2568 = vmatpush1.msra.mxu0 0.0
    %2569 = vmatprep.subr.mxu0 0.0
    %2570 = vmatpush1.msra.mxu0 0.0
    %2571 = vmatprep.subr.mxu0 0.0
    %2572 = vmatpush1.msra.mxu0 0.0
    %2573 = vmatprep.subr.mxu0 0.0
    %2574 = vmatpush1.msra.mxu0 0.0
    %2575 = vmatprep.subr.mxu0 0.0
    %2576 = vmatpush1.msra.mxu0 0.0
    %2577 = vmatprep.subr.mxu0 0.0
    %2578 = vmatpush1.msra.mxu0 0.0
    %2579 = vmatprep.subr.mxu0 0.0
    %2580 = vmatpush1.msra.mxu0 0.0
    %2581 = vmatprep.subr.mxu0 0.0
    %2582 = vmatpush1.msra.mxu0 0.0
    %2583 = vmatprep.subr.mxu0 0.0
    %2584 = vmatpush1.msra.mxu0 0.0
    %2585 = vmatprep.subr.mxu0 0.0
    %2586 = vmatpush1.msra.mxu0 0.0
    %2587 = vmatprep.subr.mxu0 0.0
    %2588 = vmatpush1.msra.mxu0 0.0
    %2589 = vmatprep.subr.mxu0 0.0
    %2590 = vmatpush1.msra.mxu0 0.0
    %2591 = vmatprep.subr.mxu0 0.0
    %2592 = vmatpush1.msra.mxu0 0.0
    %2593 = vmatprep.subr.mxu0 0.0
    %2594 = vmatpush1.msra.mxu0 0.0
    %2595 = vmatprep.subr.mxu0 0.0
    %2596 = vmatpush1.msra.mxu0 0.0
    %2597 = vmatprep.mubr.f32.mxu0 0.0
    %2598 = vmatmul.mubr.f32.gmra.mrb[0].mxu0 %v2531
    %v2599 = vpop.f32.mrb[0].mxu0
    %v2600 = vadd.f32 %v2513, %v2599
    %v2601 = vpop.f32.mrb[0].mxu0
    %2602 = vdwg.mxu0
    %v2603 = vadd.f32 %v2600, %v172
    %v2604 = vtanh.pop %v2603
    %v2605 = vlaneseq
    %v2606 = vshrl.u32 %v2605, 7
    %v2607 = vsub.s32 %v1361, %v2606
    %v2608 = vrot.slane %v2281, %v2607
    %v2609 = vlaneseq
    %v2610 = vshrl.u32 %v2609, 7
    %v2611 = vsub.s32 %v1366, %v2610
    %v2612 = vrot.slane %v2286, %v2611
    %v2613 = vsel %vm1371, %v2612, %v2608
    %v2614 = vlaneseq
    %v2615 = vshrl.u32 %v2614, 7
    %v2616 = vsub.s32 %v1361, %v2615
    %v2617 = vrot.slane %v2291, %v2616
    %v2618 = vlaneseq
    %v2619 = vshrl.u32 %v2618, 7
    %v2620 = vsub.s32 %v1366, %v2619
    %v2621 = vrot.slane %v2296, %v2620
    %v2622 = vsel %vm1371, %v2621, %v2617
    %v2623 = vlaneseq
    %v2624 = vshrl.u32 %v2623, 7
    %v2625 = vsub.s32 %v1361, %v2624
    %v2626 = vrot.slane %v2301, %v2625
    %v2627 = vlaneseq
    %v2628 = vshrl.u32 %v2627, 7
    %v2629 = vsub.s32 %v1366, %v2628
    %v2630 = vrot.slane %v2306, %v2629
    %v2631 = vsel %vm1371, %v2630, %v2626
    %v2632 = vlaneseq
    %v2633 = vshrl.u32 %v2632, 7
    %v2634 = vsub.s32 %v1361, %v2633
    %v2635 = vrot.slane %v2311, %v2634
    %v2636 = vlaneseq
    %v2637 = vshrl.u32 %v2636, 7
    %v2638 = vsub.s32 %v1366, %v2637
    %v2639 = vrot.slane %v2316, %v2638
    %v2640 = vsel %vm1371, %v2639, %v2635
    %v2641 = vlaneseq
    %v2642 = vshrl.u32 %v2641, 7
    %v2643 = vsub.s32 %v1361, %v2642
    %v2644 = vrot.slane %v2321, %v2643
    %v2645 = vlaneseq
    %v2646 = vshrl.u32 %v2645, 7
    %v2647 = vsub.s32 %v1366, %v2646
    %v2648 = vrot.slane %v2326, %v2647
    %v2649 = vsel %vm1371, %v2648, %v2644
    %v2650 = vlaneseq
    %v2651 = vshrl.u32 %v2650, 7
    %v2652 = vsub.s32 %v1361, %v2651
    %v2653 = vrot.slane %v2331, %v2652
    %v2654 = vlaneseq
    %v2655 = vshrl.u32 %v2654, 7
    %v2656 = vsub.s32 %v1366, %v2655
    %v2657 = vrot.slane %v2336, %v2656
    %v2658 = vsel %vm1371, %v2657, %v2653
    %v2659 = vlaneseq
    %v2660 = vshrl.u32 %v2659, 7
    %v2661 = vsub.s32 %v1361, %v2660
    %v2662 = vrot.slane %v2341, %v2661
    %v2663 = vlaneseq
    %v2664 = vshrl.u32 %v2663, 7
    %v2665 = vsub.s32 %v1366, %v2664
    %v2666 = vrot.slane %v2346, %v2665
    %v2667 = vsel %vm1371, %v2666, %v2662
    %v2668 = vlaneseq
    %v2669 = vshrl.u32 %v2668, 7
    %v2670 = vsub.s32 %v1361, %v2669
    %v2671 = vrot.slane %v2351, %v2670
    %v2672 = vlaneseq
    %v2673 = vshrl.u32 %v2672, 7
    %v2674 = vsub.s32 %v1366, %v2673
    %v2675 = vrot.slane %v2356, %v2674
    %v2676 = vsel %vm1371, %v2675, %v2671
    %v2677 = vsel %vm721, %v2622, %v2613
    %v2678 = vsel %vm723, %v2631, %v2677
    %v2679 = vsel %vm725, %v2640, %v2678
    %v2680 = vsel %vm727, %v2649, %v2679
    %v2681 = vsel %vm729, %v2658, %v2680
    %v2682 = vsel %vm731, %v2667, %v2681
    %v2683 = vsel %vm733, %v2676, %v2682
    %v2685 = vsel %vm185, %v2604, %v2683
    %v2686 = vsel %vm1445, %v2685, 0.0
    %s2687 = scalar_lea.vmem [#allocation10], 8
    %2688 = vst [vmem:[%s2687] sm:$0xff] %v2686
    %s2689 = scalar_lea.vmem %s0, 16
    %v2690 = vld [vmem:[%s2689] sm:$0xff]
    %2691 = vrot.lane.b32.xlu0 %v1550, 64
    %v2692 = vpop.permute.xlu0 %2691
    %v2694 = vsel %vm185, %v2690, %v2692
    %v2696 = vsel %vm187, %v2694, 0
    %2698 = vmatprep.subr.mxu0 0.0
    %2699 = vmatpush1.msra.mxu0 %v118
    %2700 = vmatprep.subr.mxu0 0.0
    %2701 = vmatpush1.msra.mxu0 %v119
    %2702 = vmatprep.subr.mxu0 0.0
    %2703 = vmatpush1.msra.mxu0 %v120
    %2704 = vmatprep.subr.mxu0 0.0
    %2705 = vmatpush1.msra.mxu0 %v121
    %2706 = vmatprep.subr.mxu0 0.0
    %2707 = vmatpush1.msra.mxu0 %v122
    %2708 = vmatprep.subr.mxu0 0.0
    %2709 = vmatpush1.msra.mxu0 %v123
    %2710 = vmatprep.subr.mxu0 0.0
    %2711 = vmatpush1.msra.mxu0 %v124
    %2712 = vmatprep.subr.mxu0 0.0
    %2713 = vmatpush1.msra.mxu0 %v125
    %2714 = vmatprep.subr.mxu0 0.0
    %2715 = vmatpush1.msra.mxu0 0.0
    %2716 = vmatprep.subr.mxu0 0.0
    %2717 = vmatpush1.msra.mxu0 0.0
    %2718 = vmatprep.subr.mxu0 0.0
    %2719 = vmatpush1.msra.mxu0 0.0
    %2720 = vmatprep.subr.mxu0 0.0
    %2721 = vmatpush1.msra.mxu0 0.0
    %2722 = vmatprep.subr.mxu0 0.0
    %2723 = vmatpush1.msra.mxu0 0.0
    %2724 = vmatprep.subr.mxu0 0.0
    %2725 = vmatpush1.msra.mxu0 0.0
    %2726 = vmatprep.subr.mxu0 0.0
    %2727 = vmatpush1.msra.mxu0 0.0
    %2728 = vmatprep.subr.mxu0 0.0
    %2729 = vmatpush1.msra.mxu0 0.0
    %2730 = vmatprep.subr.mxu0 0.0
    %2731 = vmatpush1.msra.mxu0 0.0
    %2732 = vmatprep.subr.mxu0 0.0
    %2733 = vmatpush1.msra.mxu0 0.0
    %2734 = vmatprep.subr.mxu0 0.0
    %2735 = vmatpush1.msra.mxu0 0.0
    %2736 = vmatprep.subr.mxu0 0.0
    %2737 = vmatpush1.msra.mxu0 0.0
    %2738 = vmatprep.subr.mxu0 0.0
    %2739 = vmatpush1.msra.mxu0 0.0
    %2740 = vmatprep.subr.mxu0 0.0
    %2741 = vmatpush1.msra.mxu0 0.0
    %2742 = vmatprep.subr.mxu0 0.0
    %2743 = vmatpush1.msra.mxu0 0.0
    %2744 = vmatprep.subr.mxu0 0.0
    %2745 = vmatpush1.msra.mxu0 0.0
    %2746 = vmatprep.subr.mxu0 0.0
    %2747 = vmatpush1.msra.mxu0 0.0
    %2748 = vmatprep.subr.mxu0 0.0
    %2749 = vmatpush1.msra.mxu0 0.0
    %2750 = vmatprep.subr.mxu0 0.0
    %2751 = vmatpush1.msra.mxu0 0.0
    %2752 = vmatprep.subr.mxu0 0.0
    %2753 = vmatpush1.msra.mxu0 0.0
    %2754 = vmatprep.subr.mxu0 0.0
    %2755 = vmatpush1.msra.mxu0 0.0
    %2756 = vmatprep.subr.mxu0 0.0
    %2757 = vmatpush1.msra.mxu0 0.0
    %2758 = vmatprep.subr.mxu0 0.0
    %2759 = vmatpush1.msra.mxu0 0.0
    %2760 = vmatprep.subr.mxu0 0.0
    %2761 = vmatpush1.msra.mxu0 0.0
    %2762 = vmatprep.mubr.f32.mxu0 0.0
    %2763 = vmatmul.mubr.f32.gmra.mrb[0].mxu0 %v2696
    %v2764 = vpop.f32.mrb[0].mxu0
    %v2765 = vadd.f32 %v139, %v2764
    %v2766 = vpop.f32.mrb[0].mxu0
    %2767 = vdwg.mxu0
    %v2768 = vxor.u32 %v2765, 2147483648
    %v2769 = vmul.f32 %v2768, 1.442695
    %v2770 = vpow.pop %v2769
    %v2771 = vadd.f32 %v2770, 1.0
    %v2772 = vrcp.pop %v2771
    %v2773 = vmul.f32 1.0, %v2772
    %v2774 = vtanh.pop %v2765
    %v2775 = vmul.f32 %v2773, %v1544
    %2777 = vrot.lane.b32.xlu0 %v2774, 64
    %v2778 = vpop.permute.xlu0 %2777
    %v2780 = vmul.f32 %v2773, %v2778
    %2782 = vrot.lane.b32.xlu0 %v2780, 32
    %v2783 = vpop.permute.xlu0 %2782
    %v2785 = vadd.f32 %v2775, %v2783
    %v2786 = vtanh.pop %v2785
    %2788 = vrot.lane.b32.xlu0 %v2786, 64
    %v2789 = vpop.permute.xlu0 %2788
    %v2791 = vmul.f32 %v2773, %v2789
    %2793 = vrot.lane.b32.xlu0 %v2791, 32
    %v2794 = vpop.permute.xlu0 %2793
    %2796 = vrot.lane.b32.xlu0 %v1655, 64
    %v2797 = vpop.permute.xlu0 %2796
    %v2799 = vsel %vm185, %v2794, %v2797
    %v2801 = vsel %vm187, %v2799, 0
    %2803 = vmatprep.subr.mxu0 0.0
    %2804 = vmatpush1.msra.mxu0 %v126
    %2805 = vmatprep.subr.mxu0 0.0
    %2806 = vmatpush1.msra.mxu0 %v127
    %2807 = vmatprep.subr.mxu0 0.0
    %2808 = vmatpush1.msra.mxu0 %v128
    %2809 = vmatprep.subr.mxu0 0.0
    %2810 = vmatpush1.msra.mxu0 %v129
    %2811 = vmatprep.subr.mxu0 0.0
    %2812 = vmatpush1.msra.mxu0 %v130
    %2813 = vmatprep.subr.mxu0 0.0
    %2814 = vmatpush1.msra.mxu0 %v131
    %2815 = vmatprep.subr.mxu0 0.0
    %2816 = vmatpush1.msra.mxu0 %v132
    %2817 = vmatprep.subr.mxu0 0.0
    %2818 = vmatpush1.msra.mxu0 %v133
    %2819 = vmatprep.subr.mxu0 0.0
    %2820 = vmatpush1.msra.mxu0 0.0
    %2821 = vmatprep.subr.mxu0 0.0
    %2822 = vmatpush1.msra.mxu0 0.0
    %2823 = vmatprep.subr.mxu0 0.0
    %2824 = vmatpush1.msra.mxu0 0.0
    %2825 = vmatprep.subr.mxu0 0.0
    %2826 = vmatpush1.msra.mxu0 0.0
    %2827 = vmatprep.subr.mxu0 0.0
    %2828 = vmatpush1.msra.mxu0 0.0
    %2829 = vmatprep.subr.mxu0 0.0
    %2830 = vmatpush1.msra.mxu0 0.0
    %2831 = vmatprep.subr.mxu0 0.0
    %2832 = vmatpush1.msra.mxu0 0.0
    %2833 = vmatprep.subr.mxu0 0.0
    %2834 = vmatpush1.msra.mxu0 0.0
    %2835 = vmatprep.subr.mxu0 0.0
    %2836 = vmatpush1.msra.mxu0 0.0
    %2837 = vmatprep.subr.mxu0 0.0
    %2838 = vmatpush1.msra.mxu0 0.0
    %2839 = vmatprep.subr.mxu0 0.0
    %2840 = vmatpush1.msra.mxu0 0.0
    %2841 = vmatprep.subr.mxu0 0.0
    %2842 = vmatpush1.msra.mxu0 0.0
    %2843 = vmatprep.subr.mxu0 0.0
    %2844 = vmatpush1.msra.mxu0 0.0
    %2845 = vmatprep.subr.mxu0 0.0
    %2846 = vmatpush1.msra.mxu0 0.0
    %2847 = vmatprep.subr.mxu0 0.0
    %2848 = vmatpush1.msra.mxu0 0.0
    %2849 = vmatprep.subr.mxu0 0.0
    %2850 = vmatpush1.msra.mxu0 0.0
    %2851 = vmatprep.subr.mxu0 0.0
    %2852 = vmatpush1.msra.mxu0 0.0
    %2853 = vmatprep.subr.mxu0 0.0
    %2854 = vmatpush1.msra.mxu0 0.0
    %2855 = vmatprep.subr.mxu0 0.0
    %2856 = vmatpush1.msra.mxu0 0.0
    %2857 = vmatprep.subr.mxu0 0.0
    %2858 = vmatpush1.msra.mxu0 0.0
    %2859 = vmatprep.subr.mxu0 0.0
    %2860 = vmatpush1.msra.mxu0 0.0
    %2861 = vmatprep.subr.mxu0 0.0
    %2862 = vmatpush1.msra.mxu0 0.0
    %2863 = vmatprep.subr.mxu0 0.0
    %2864 = vmatpush1.msra.mxu0 0.0
    %2865 = vmatprep.subr.mxu0 0.0
    %2866 = vmatpush1.msra.mxu0 0.0
    %2867 = vmatprep.mubr.f32.mxu0 0.0
    %2868 = vmatmul.mubr.f32.gmra.mrb[0].mxu0 %v2801
    %v2869 = vpop.f32.mrb[0].mxu0
    %v2870 = vadd.f32 %v146, %v2869
    %v2871 = vpop.f32.mrb[0].mxu0
    %2872 = vdwg.mxu0
    %v2873 = vxor.u32 %v2870, 2147483648
    %v2874 = vmul.f32 %v2873, 1.442695
    %v2875 = vpow.pop %v2874
    %v2876 = vadd.f32 %v2875, 1.0
    %v2877 = vrcp.pop %v2876
    %v2878 = vmul.f32 1.0, %v2877
    %v2879 = vtanh.pop %v2870
    %v2880 = vmul.f32 %v2878, %v1649
    %2882 = vrot.lane.b32.xlu0 %v2879, 64
    %v2883 = vpop.permute.xlu0 %2882
    %v2885 = vmul.f32 %v2878, %v2883
    %2887 = vrot.lane.b32.xlu0 %v2885, 32
    %v2888 = vpop.permute.xlu0 %2887
    %v2890 = vadd.f32 %v2880, %v2888
    %v2891 = vtanh.pop %v2890
    %2893 = vrot.lane.b32.xlu0 %v2891, 64
    %v2894 = vpop.permute.xlu0 %2893
    %v2896 = vmul.f32 %v2878, %v2894
    %2898 = vrot.lane.b32.xlu0 %v2896, 32
    %v2899 = vpop.permute.xlu0 %2898
    %v2900 = vsel %vm185, %v2899, 0
    %2902 = vmatprep.subr.mxu0 0.0
    %2903 = vmatpush1.msra.mxu0 %v148
    %2904 = vmatprep.subr.mxu0 0.0
    %2905 = vmatpush1.msra.mxu0 %v149
    %2906 = vmatprep.subr.mxu0 0.0
    %2907 = vmatpush1.msra.mxu0 %v150
    %2908 = vmatprep.subr.mxu0 0.0
    %2909 = vmatpush1.msra.mxu0 %v151
    %2910 = vmatprep.subr.mxu0 0.0
    %2911 = vmatpush1.msra.mxu0 0.0
    %2912 = vmatprep.subr.mxu0 0.0
    %2913 = vmatpush1.msra.mxu0 0.0
    %2914 = vmatprep.subr.mxu0 0.0
    %2915 = vmatpush1.msra.mxu0 0.0
    %2916 = vmatprep.subr.mxu0 0.0
    %2917 = vmatpush1.msra.mxu0 0.0
    %2918 = vmatprep.subr.mxu0 0.0
    %2919 = vmatpush1.msra.mxu0 0.0
    %2920 = vmatprep.subr.mxu0 0.0
    %2921 = vmatpush1.msra.mxu0 0.0
    %2922 = vmatprep.subr.mxu0 0.0
    %2923 = vmatpush1.msra.mxu0 0.0
    %2924 = vmatprep.subr.mxu0 0.0
    %2925 = vmatpush1.msra.mxu0 0.0
    %2926 = vmatprep.subr.mxu0 0.0
    %2927 = vmatpush1.msra.mxu0 0.0
    %2928 = vmatprep.subr.mxu0 0.0
    %2929 = vmatpush1.msra.mxu0 0.0
    %2930 = vmatprep.subr.mxu0 0.0
    %2931 = vmatpush1.msra.mxu0 0.0
    %2932 = vmatprep.subr.mxu0 0.0
    %2933 = vmatpush1.msra.mxu0 0.0
    %2934 = vmatprep.subr.mxu0 0.0
    %2935 = vmatpush1.msra.mxu0 0.0
    %2936 = vmatprep.subr.mxu0 0.0
    %2937 = vmatpush1.msra.mxu0 0.0
    %2938 = vmatprep.subr.mxu0 0.0
    %2939 = vmatpush1.msra.mxu0 0.0
    %2940 = vmatprep.subr.mxu0 0.0
    %2941 = vmatpush1.msra.mxu0 0.0
    %2942 = vmatprep.subr.mxu0 0.0
    %2943 = vmatpush1.msra.mxu0 0.0
    %2944 = vmatprep.subr.mxu0 0.0
    %2945 = vmatpush1.msra.mxu0 0.0
    %2946 = vmatprep.subr.mxu0 0.0
    %2947 = vmatpush1.msra.mxu0 0.0
    %2948 = vmatprep.subr.mxu0 0.0
    %2949 = vmatpush1.msra.mxu0 0.0
    %2950 = vmatprep.subr.mxu0 0.0
    %2951 = vmatpush1.msra.mxu0 0.0
    %2952 = vmatprep.subr.mxu0 0.0
    %2953 = vmatpush1.msra.mxu0 0.0
    %2954 = vmatprep.subr.mxu0 0.0
    %2955 = vmatpush1.msra.mxu0 0.0
    %2956 = vmatprep.subr.mxu0 0.0
    %2957 = vmatpush1.msra.mxu0 0.0
    %2958 = vmatprep.subr.mxu0 0.0
    %2959 = vmatpush1.msra.mxu0 0.0
    %2960 = vmatprep.subr.mxu0 0.0
    %2961 = vmatpush1.msra.mxu0 0.0
    %2962 = vmatprep.subr.mxu0 0.0
    %2963 = vmatpush1.msra.mxu0 0.0
    %2964 = vmatprep.subr.mxu0 0.0
    %2965 = vmatpush1.msra.mxu0 0.0
    %2966 = vmatprep.mubr.f32.mxu0 0.0
    %2967 = vmatmul.mubr.f32.gmra.mrb[0].mxu0 %v2900
    %v2968 = vpop.f32.mrb[0].mxu0
    %v2969 = vadd.f32 %v157, %v2968
    %v2970 = vpop.f32.mrb[0].mxu0
    %2971 = vdwg.mxu0
    %v2973 = vcombine.high %v2969, %v2969
    %v2975 = vunpack.c.l.s4 1966171168
    %v2976 = vunpack.c.0.s8 %v2975
    %v2977 = vlaneseq
    %v2978 = vshrl.u32 %v2977, 7
    %v2979 = vsub.s32 %v2976, %v2978
    %v2980 = vrot.slane %v2969, %v2979
    %v2982 = vunpack.c.l.s4 1966171168
    %v2983 = vunpack.c.0.s8 %v2982
    %v2984 = vlaneseq
    %v2985 = vshrl.u32 %v2984, 7
    %v2986 = vsub.s32 %v2983, %v2985
    %v2987 = vrot.slane %v2973, %v2986
    %v2988 = vcombine.high %v2980, %v2980
    %v2989 = vcombine.high %v2987, %v2987
    %v2991 = vunpack.c.l.s4 1966171168
    %v2992 = vunpack.c.0.s8 %v2991
    %v2993 = vlaneseq
    %v2994 = vshrl.u32 %v2993, 7
    %v2995 = vsub.s32 %v2992, %v2994
    %v2996 = vrot.slane %v2980, %v2995
    %v2998 = vunpack.c.l.s4 1966171168
    %v2999 = vunpack.c.0.s8 %v2998
    %v3000 = vlaneseq
    %v3001 = vshrl.u32 %v3000, 7
    %v3002 = vsub.s32 %v2999, %v3001
    %v3003 = vrot.slane %v2987, %v3002
    %v3005 = vunpack.c.l.s4 1966171168
    %v3006 = vunpack.c.0.s8 %v3005
    %v3007 = vlaneseq
    %v3008 = vshrl.u32 %v3007, 7
    %v3009 = vsub.s32 %v3006, %v3008
    %v3010 = vrot.slane %v2988, %v3009
    %v3012 = vunpack.c.l.s4 1966171168
    %v3013 = vunpack.c.0.s8 %v3012
    %v3014 = vlaneseq
    %v3015 = vshrl.u32 %v3014, 7
    %v3016 = vsub.s32 %v3013, %v3015
    %v3017 = vrot.slane %v2989, %v3016
    %v3018 = vcombine.high %v2996, %v2996
    %v3019 = vcombine.high %v3003, %v3003
    %v3020 = vcombine.high %v3010, %v3010
    %v3021 = vcombine.high %v3017, %v3017
    %v3022 = vlaneseq
    %v3023 = vshrl.u32 %v3022, 7
    %v3024 = vsub.s32 0, %v3023
    %v3025 = vrot.slane %v2996, %v3024
    %v3026 = vlaneseq
    %v3027 = vshrl.u32 %v3026, 7
    %v3028 = vsub.s32 0, %v3027
    %v3029 = vrot.slane %v3010, %v3028
    %v3030 = vlaneseq
    %v3031 = vshrl.u32 %v3030, 7
    %v3032 = vsub.s32 0, %v3031
    %v3033 = vrot.slane %v3018, %v3032
    %v3034 = vlaneseq
    %v3035 = vshrl.u32 %v3034, 7
    %v3036 = vsub.s32 0, %v3035
    %v3037 = vrot.slane %v3020, %v3036
    %v3038 = vlaneseq
    %v3039 = vshrl.u32 %v3038, 7
    %v3040 = vsub.s32 0, %v3039
    %v3041 = vrot.slane %v3003, %v3040
    %v3042 = vlaneseq
    %v3043 = vshrl.u32 %v3042, 7
    %v3044 = vsub.s32 0, %v3043
    %v3045 = vrot.slane %v3017, %v3044
    %v3046 = vlaneseq
    %v3047 = vshrl.u32 %v3046, 7
    %v3048 = vsub.s32 0, %v3047
    %v3049 = vrot.slane %v3019, %v3048
    %v3050 = vlaneseq
    %v3051 = vshrl.u32 %v3050, 7
    %v3052 = vsub.s32 0, %v3051
    %v3053 = vrot.slane %v3021, %v3052
    %v3062 = vmul.f32 %v102, %v3025
    %v3063 = vmul.f32 %v103, %v3025
    %v3064 = vmul.f32 %v104, %v3029
    %v3065 = vmul.f32 %v105, %v3029
    %v3066 = vmul.f32 %v106, %v3033
    %v3067 = vmul.f32 %v107, %v3033
    %v3068 = vmul.f32 %v108, %v3037
    %v3069 = vmul.f32 %v109, %v3037
    %v3070 = vmul.f32 %v110, %v3041
    %v3071 = vmul.f32 %v111, %v3041
    %v3072 = vmul.f32 %v112, %v3045
    %v3073 = vmul.f32 %v113, %v3045
    %v3074 = vmul.f32 %v114, %v3049
    %v3075 = vmul.f32 %v115, %v3049
    %v3076 = vmul.f32 %v116, %v3053
    %v3077 = vmul.f32 %v117, %v3053
    %v3078 = vsel %vm185, %v3062, 0.0
    %3079 = vadd.xlane.f32.xlu0 %v3078
    %v3080 = vpop.xlane.xlu0 %3079
    %v3081 = vsel %vm583, %v3063, 0.0
    %3082 = vadd.xlane.f32.xlu0 %v3081
    %v3083 = vpop.xlane.xlu0 %3082
    %v3084 = vsel %vm185, %v3064, 0.0
    %3085 = vadd.xlane.f32.xlu0 %v3084
    %v3086 = vpop.xlane.xlu0 %3085
    %v3087 = vsel %vm583, %v3065, 0.0
    %3088 = vadd.xlane.f32.xlu0 %v3087
    %v3089 = vpop.xlane.xlu0 %3088
    %v3090 = vsel %vm185, %v3066, 0.0
    %3091 = vadd.xlane.f32.xlu0 %v3090
    %v3092 = vpop.xlane.xlu0 %3091
    %v3093 = vsel %vm583, %v3067, 0.0
    %3094 = vadd.xlane.f32.xlu0 %v3093
    %v3095 = vpop.xlane.xlu0 %3094
    %v3096 = vsel %vm185, %v3068, 0.0
    %3097 = vadd.xlane.f32.xlu0 %v3096
    %v3098 = vpop.xlane.xlu0 %3097
    %v3099 = vsel %vm583, %v3069, 0.0
    %3100 = vadd.xlane.f32.xlu0 %v3099
    %v3101 = vpop.xlane.xlu0 %3100
    %v3102 = vsel %vm185, %v3070, 0.0
    %3103 = vadd.xlane.f32.xlu0 %v3102
    %v3104 = vpop.xlane.xlu0 %3103
    %v3105 = vsel %vm583, %v3071, 0.0
    %3106 = vadd.xlane.f32.xlu0 %v3105
    %v3107 = vpop.xlane.xlu0 %3106
    %v3108 = vsel %vm185, %v3072, 0.0
    %3109 = vadd.xlane.f32.xlu0 %v3108
    %v3110 = vpop.xlane.xlu0 %3109
    %v3111 = vsel %vm583, %v3073, 0.0
    %3112 = vadd.xlane.f32.xlu0 %v3111
    %v3113 = vpop.xlane.xlu0 %3112
    %v3114 = vsel %vm185, %v3074, 0.0
    %3115 = vadd.xlane.f32.xlu0 %v3114
    %v3116 = vpop.xlane.xlu0 %3115
    %v3117 = vsel %vm583, %v3075, 0.0
    %3118 = vadd.xlane.f32.xlu0 %v3117
    %v3119 = vpop.xlane.xlu0 %3118
    %v3120 = vsel %vm185, %v3076, 0.0
    %3121 = vadd.xlane.f32.xlu0 %v3120
    %v3122 = vpop.xlane.xlu0 %3121
    %v3123 = vsel %vm583, %v3077, 0.0
    %3124 = vadd.xlane.f32.xlu0 %v3123
    %v3125 = vpop.xlane.xlu0 %3124
    %v3142 = vlaneseq
    %v3143 = vshrl.u32 %v3142, 7
    %v3144 = vsub.s32 %v646, %v3143
    %v3145 = vrot.slane %v3080, %v3144
    %v3146 = vlaneseq
    %v3147 = vshrl.u32 %v3146, 7
    %v3148 = vsub.s32 %v651, %v3147
    %v3149 = vrot.slane %v3083, %v3148
    %v3150 = vsel %vm656, %v3149, %v3145
    %v3151 = vlaneseq
    %v3152 = vshrl.u32 %v3151, 7
    %v3153 = vsub.s32 %v646, %v3152
    %v3154 = vrot.slane %v3086, %v3153
    %v3155 = vlaneseq
    %v3156 = vshrl.u32 %v3155, 7
    %v3157 = vsub.s32 %v651, %v3156
    %v3158 = vrot.slane %v3089, %v3157
    %v3159 = vsel %vm656, %v3158, %v3154
    %v3160 = vlaneseq
    %v3161 = vshrl.u32 %v3160, 7
    %v3162 = vsub.s32 %v646, %v3161
    %v3163 = vrot.slane %v3092, %v3162
    %v3164 = vlaneseq
    %v3165 = vshrl.u32 %v3164, 7
    %v3166 = vsub.s32 %v651, %v3165
    %v3167 = vrot.slane %v3095, %v3166
    %v3168 = vsel %vm656, %v3167, %v3163
    %v3169 = vlaneseq
    %v3170 = vshrl.u32 %v3169, 7
    %v3171 = vsub.s32 %v646, %v3170
    %v3172 = vrot.slane %v3098, %v3171
    %v3173 = vlaneseq
    %v3174 = vshrl.u32 %v3173, 7
    %v3175 = vsub.s32 %v651, %v3174
    %v3176 = vrot.slane %v3101, %v3175
    %v3177 = vsel %vm656, %v3176, %v3172
    %v3178 = vlaneseq
    %v3179 = vshrl.u32 %v3178, 7
    %v3180 = vsub.s32 %v646, %v3179
    %v3181 = vrot.slane %v3104, %v3180
    %v3182 = vlaneseq
    %v3183 = vshrl.u32 %v3182, 7
    %v3184 = vsub.s32 %v651, %v3183
    %v3185 = vrot.slane %v3107, %v3184
    %v3186 = vsel %vm656, %v3185, %v3181
    %v3187 = vlaneseq
    %v3188 = vshrl.u32 %v3187, 7
    %v3189 = vsub.s32 %v646, %v3188
    %v3190 = vrot.slane %v3110, %v3189
    %v3191 = vlaneseq
    %v3192 = vshrl.u32 %v3191, 7
    %v3193 = vsub.s32 %v651, %v3192
    %v3194 = vrot.slane %v3113, %v3193
    %v3195 = vsel %vm656, %v3194, %v3190
    %v3196 = vlaneseq
    %v3197 = vshrl.u32 %v3196, 7
    %v3198 = vsub.s32 %v646, %v3197
    %v3199 = vrot.slane %v3116, %v3198
    %v3200 = vlaneseq
    %v3201 = vshrl.u32 %v3200, 7
    %v3202 = vsub.s32 %v651, %v3201
    %v3203 = vrot.slane %v3119, %v3202
    %v3204 = vsel %vm656, %v3203, %v3199
    %v3205 = vlaneseq
    %v3206 = vshrl.u32 %v3205, 7
    %v3207 = vsub.s32 %v646, %v3206
    %v3208 = vrot.slane %v3122, %v3207
    %v3209 = vlaneseq
    %v3210 = vshrl.u32 %v3209, 7
    %v3211 = vsub.s32 %v651, %v3210
    %v3212 = vrot.slane %v3125, %v3211
    %v3213 = vsel %vm656, %v3212, %v3208
    %v3214 = vsel %vm721, %v3159, %v3150
    %v3215 = vsel %vm723, %v3168, %v3214
    %v3216 = vsel %vm725, %v3177, %v3215
    %v3217 = vsel %vm727, %v3186, %v3216
    %v3218 = vsel %vm729, %v3195, %v3217
    %v3219 = vsel %vm731, %v3204, %v3218
    %v3220 = vsel %vm733, %v3213, %v3219
    %v3222 = vsel %vm736, %v3220, -inf
    %3223 = vmax.xlane.f32.xlu0 %v3222
    %v3224 = vpop.xlane.xlu0 %3223
    %v3226 = vlaneseq
    %v3227 = vshrl.u32 %v3226, 7
    %v3228 = vsub.s32 0, %v3227
    %v3229 = vrot.slane %v3224, %v3228
    %v3230 = vlaneseq
    %v3231 = vshrl.u32 %v3230, 7
    %v3232 = vsub.s32 1, %v3231
    %v3233 = vrot.slane %v3224, %v3232
    %v3234 = vlaneseq
    %v3235 = vshrl.u32 %v3234, 7
    %v3236 = vsub.s32 2, %v3235
    %v3237 = vrot.slane %v3224, %v3236
    %v3238 = vlaneseq
    %v3239 = vshrl.u32 %v3238, 7
    %v3240 = vsub.s32 3, %v3239
    %v3241 = vrot.slane %v3224, %v3240
    %v3242 = vlaneseq
    %v3243 = vshrl.u32 %v3242, 7
    %v3244 = vsub.s32 4, %v3243
    %v3245 = vrot.slane %v3224, %v3244
    %v3246 = vlaneseq
    %v3247 = vshrl.u32 %v3246, 7
    %v3248 = vsub.s32 5, %v3247
    %v3249 = vrot.slane %v3224, %v3248
    %v3250 = vlaneseq
    %v3251 = vshrl.u32 %v3250, 7
    %v3252 = vsub.s32 6, %v3251
    %v3253 = vrot.slane %v3224, %v3252
    %v3254 = vlaneseq
    %v3255 = vshrl.u32 %v3254, 7
    %v3256 = vsub.s32 7, %v3255
    %v3257 = vrot.slane %v3224, %v3256
    %v3266 = vsub.f32 %v3080, %v3229
    %v3267 = vsub.f32 %v3083, %v3229
    %v3268 = vsub.f32 %v3086, %v3233
    %v3269 = vsub.f32 %v3089, %v3233
    %v3270 = vsub.f32 %v3092, %v3237
    %v3271 = vsub.f32 %v3095, %v3237
    %v3272 = vsub.f32 %v3098, %v3241
    %v3273 = vsub.f32 %v3101, %v3241
    %v3274 = vsub.f32 %v3104, %v3245
    %v3275 = vsub.f32 %v3107, %v3245
    %v3276 = vsub.f32 %v3110, %v3249
    %v3277 = vsub.f32 %v3113, %v3249
    %v3278 = vsub.f32 %v3116, %v3253
    %v3279 = vsub.f32 %v3119, %v3253
    %v3280 = vsub.f32 %v3122, %v3257
    %v3281 = vsub.f32 %v3125, %v3257
    %v3282 = vmul.f32 %v3266, 1.442695
    %v3283 = vpow.pop %v3282
    %v3284 = vmul.f32 %v3267, 1.442695
    %v3285 = vpow.pop %v3284
    %v3286 = vmul.f32 %v3268, 1.442695
    %v3287 = vpow.pop %v3286
    %v3288 = vmul.f32 %v3269, 1.442695
    %v3289 = vpow.pop %v3288
    %v3290 = vmul.f32 %v3270, 1.442695
    %v3291 = vpow.pop %v3290
    %v3292 = vmul.f32 %v3271, 1.442695
    %v3293 = vpow.pop %v3292
    %v3294 = vmul.f32 %v3272, 1.442695
    %v3295 = vpow.pop %v3294
    %v3296 = vmul.f32 %v3273, 1.442695
    %v3297 = vpow.pop %v3296
    %v3298 = vmul.f32 %v3274, 1.442695
    %v3299 = vpow.pop %v3298
    %v3300 = vmul.f32 %v3275, 1.442695
    %v3301 = vpow.pop %v3300
    %v3302 = vmul.f32 %v3276, 1.442695
    %v3303 = vpow.pop %v3302
    %v3304 = vmul.f32 %v3277, 1.442695
    %v3305 = vpow.pop %v3304
    %v3306 = vmul.f32 %v3278, 1.442695
    %v3307 = vpow.pop %v3306
    %v3308 = vmul.f32 %v3279, 1.442695
    %v3309 = vpow.pop %v3308
    %v3310 = vmul.f32 %v3280, 1.442695
    %v3311 = vpow.pop %v3310
    %v3312 = vmul.f32 %v3281, 1.442695
    %v3313 = vpow.pop %v3312
    %3330 = vset.pattern.permute.xlu0 0
    %3331 = vperm.xlu0 %3330, %v3283
    %v3332 = vpop.permute.xlu0 %3331
    %3333 = vset.pattern.permute.xlu0 0
    %3334 = vperm.xlu0 %3333, %v3285
    %v3335 = vpop.permute.xlu0 %3334
    %3336 = vset.pattern.permute.xlu0 0
    %3337 = vperm.xlu0 %3336, %v3287
    %v3338 = vpop.permute.xlu0 %3337
    %3339 = vset.pattern.permute.xlu0 0
    %3340 = vperm.xlu0 %3339, %v3289
    %v3341 = vpop.permute.xlu0 %3340
    %3342 = vset.pattern.permute.xlu0 0
    %3343 = vperm.xlu0 %3342, %v3291
    %v3344 = vpop.permute.xlu0 %3343
    %3345 = vset.pattern.permute.xlu0 0
    %3346 = vperm.xlu0 %3345, %v3293
    %v3347 = vpop.permute.xlu0 %3346
    %3348 = vset.pattern.permute.xlu0 0
    %3349 = vperm.xlu0 %3348, %v3295
    %v3350 = vpop.permute.xlu0 %3349
    %3351 = vset.pattern.permute.xlu0 0
    %3352 = vperm.xlu0 %3351, %v3297
    %v3353 = vpop.permute.xlu0 %3352
    %3354 = vset.pattern.permute.xlu0 0
    %3355 = vperm.xlu0 %3354, %v3299
    %v3356 = vpop.permute.xlu0 %3355
    %3357 = vset.pattern.permute.xlu0 0
    %3358 = vperm.xlu0 %3357, %v3301
    %v3359 = vpop.permute.xlu0 %3358
    %3360 = vset.pattern.permute.xlu0 0
    %3361 = vperm.xlu0 %3360, %v3303
    %v3362 = vpop.permute.xlu0 %3361
    %3363 = vset.pattern.permute.xlu0 0
    %3364 = vperm.xlu0 %3363, %v3305
    %v3365 = vpop.permute.xlu0 %3364
    %3366 = vset.pattern.permute.xlu0 0
    %3367 = vperm.xlu0 %3366, %v3307
    %v3368 = vpop.permute.xlu0 %3367
    %3369 = vset.pattern.permute.xlu0 0
    %3370 = vperm.xlu0 %3369, %v3309
    %v3371 = vpop.permute.xlu0 %3370
    %3372 = vset.pattern.permute.xlu0 0
    %3373 = vperm.xlu0 %3372, %v3311
    %v3374 = vpop.permute.xlu0 %3373
    %3375 = vset.pattern.permute.xlu0 0
    %3376 = vperm.xlu0 %3375, %v3313
    %v3377 = vpop.permute.xlu0 %3376
    %v3378 = vlaneseq
    %v3379 = vshrl.u32 %v3378, 7
    %v3380 = vsub.s32 %v646, %v3379
    %v3381 = vrot.slane %v3332, %v3380
    %v3382 = vlaneseq
    %v3383 = vshrl.u32 %v3382, 7
    %v3384 = vsub.s32 %v651, %v3383
    %v3385 = vrot.slane %v3335, %v3384
    %v3386 = vsel %vm656, %v3385, %v3381
    %v3387 = vlaneseq
    %v3388 = vshrl.u32 %v3387, 7
    %v3389 = vsub.s32 %v646, %v3388
    %v3390 = vrot.slane %v3338, %v3389
    %v3391 = vlaneseq
    %v3392 = vshrl.u32 %v3391, 7
    %v3393 = vsub.s32 %v651, %v3392
    %v3394 = vrot.slane %v3341, %v3393
    %v3395 = vsel %vm656, %v3394, %v3390
    %v3396 = vlaneseq
    %v3397 = vshrl.u32 %v3396, 7
    %v3398 = vsub.s32 %v646, %v3397
    %v3399 = vrot.slane %v3344, %v3398
    %v3400 = vlaneseq
    %v3401 = vshrl.u32 %v3400, 7
    %v3402 = vsub.s32 %v651, %v3401
    %v3403 = vrot.slane %v3347, %v3402
    %v3404 = vsel %vm656, %v3403, %v3399
    %v3405 = vlaneseq
    %v3406 = vshrl.u32 %v3405, 7
    %v3407 = vsub.s32 %v646, %v3406
    %v3408 = vrot.slane %v3350, %v3407
    %v3409 = vlaneseq
    %v3410 = vshrl.u32 %v3409, 7
    %v3411 = vsub.s32 %v651, %v3410
    %v3412 = vrot.slane %v3353, %v3411
    %v3413 = vsel %vm656, %v3412, %v3408
    %v3414 = vlaneseq
    %v3415 = vshrl.u32 %v3414, 7
    %v3416 = vsub.s32 %v646, %v3415
    %v3417 = vrot.slane %v3356, %v3416
    %v3418 = vlaneseq
    %v3419 = vshrl.u32 %v3418, 7
    %v3420 = vsub.s32 %v651, %v3419
    %v3421 = vrot.slane %v3359, %v3420
    %v3422 = vsel %vm656, %v3421, %v3417
    %v3423 = vlaneseq
    %v3424 = vshrl.u32 %v3423, 7
    %v3425 = vsub.s32 %v646, %v3424
    %v3426 = vrot.slane %v3362, %v3425
    %v3427 = vlaneseq
    %v3428 = vshrl.u32 %v3427, 7
    %v3429 = vsub.s32 %v651, %v3428
    %v3430 = vrot.slane %v3365, %v3429
    %v3431 = vsel %vm656, %v3430, %v3426
    %v3432 = vlaneseq
    %v3433 = vshrl.u32 %v3432, 7
    %v3434 = vsub.s32 %v646, %v3433
    %v3435 = vrot.slane %v3368, %v3434
    %v3436 = vlaneseq
    %v3437 = vshrl.u32 %v3436, 7
    %v3438 = vsub.s32 %v651, %v3437
    %v3439 = vrot.slane %v3371, %v3438
    %v3440 = vsel %vm656, %v3439, %v3435
    %v3441 = vlaneseq
    %v3442 = vshrl.u32 %v3441, 7
    %v3443 = vsub.s32 %v646, %v3442
    %v3444 = vrot.slane %v3374, %v3443
    %v3445 = vlaneseq
    %v3446 = vshrl.u32 %v3445, 7
    %v3447 = vsub.s32 %v651, %v3446
    %v3448 = vrot.slane %v3377, %v3447
    %v3449 = vsel %vm656, %v3448, %v3444
    %v3450 = vsel %vm721, %v3395, %v3386
    %v3451 = vsel %vm723, %v3404, %v3450
    %v3452 = vsel %vm725, %v3413, %v3451
    %v3453 = vsel %vm727, %v3422, %v3452
    %v3454 = vsel %vm729, %v3431, %v3453
    %v3455 = vsel %vm731, %v3440, %v3454
    %v3456 = vsel %vm733, %v3449, %v3455
    %v3458 = vsel %vm736, %v3456, 0.0
    %3459 = vadd.xlane.f32.xlu0 %v3458
    %v3460 = vpop.xlane.xlu0 %3459
    %v3461 = vrcp.pop %v3460
    %v3463 = vlaneseq
    %v3464 = vshrl.u32 %v3463, 7
    %v3465 = vsub.s32 0, %v3464
    %v3466 = vrot.slane %v3461, %v3465
    %v3467 = vlaneseq
    %v3468 = vshrl.u32 %v3467, 7
    %v3469 = vsub.s32 1, %v3468
    %v3470 = vrot.slane %v3461, %v3469
    %v3471 = vlaneseq
    %v3472 = vshrl.u32 %v3471, 7
    %v3473 = vsub.s32 2, %v3472
    %v3474 = vrot.slane %v3461, %v3473
    %v3475 = vlaneseq
    %v3476 = vshrl.u32 %v3475, 7
    %v3477 = vsub.s32 3, %v3476
    %v3478 = vrot.slane %v3461, %v3477
    %v3479 = vlaneseq
    %v3480 = vshrl.u32 %v3479, 7
    %v3481 = vsub.s32 4, %v3480
    %v3482 = vrot.slane %v3461, %v3481
    %v3483 = vlaneseq
    %v3484 = vshrl.u32 %v3483, 7
    %v3485 = vsub.s32 5, %v3484
    %v3486 = vrot.slane %v3461, %v3485
    %v3487 = vlaneseq
    %v3488 = vshrl.u32 %v3487, 7
    %v3489 = vsub.s32 6, %v3488
    %v3490 = vrot.slane %v3461, %v3489
    %v3491 = vlaneseq
    %v3492 = vshrl.u32 %v3491, 7
    %v3493 = vsub.s32 7, %v3492
    %v3494 = vrot.slane %v3461, %v3493
    %v3503 = vmul.f32 %v3283, %v3466
    %v3504 = vmul.f32 %v3285, %v3466
    %v3505 = vmul.f32 %v3287, %v3470
    %v3506 = vmul.f32 %v3289, %v3470
    %v3507 = vmul.f32 %v3291, %v3474
    %v3508 = vmul.f32 %v3293, %v3474
    %v3509 = vmul.f32 %v3295, %v3478
    %v3510 = vmul.f32 %v3297, %v3478
    %v3511 = vmul.f32 %v3299, %v3482
    %v3512 = vmul.f32 %v3301, %v3482
    %v3513 = vmul.f32 %v3303, %v3486
    %v3514 = vmul.f32 %v3305, %v3486
    %v3515 = vmul.f32 %v3307, %v3490
    %v3516 = vmul.f32 %v3309, %v3490
    %v3517 = vmul.f32 %v3311, %v3494
    %v3518 = vmul.f32 %v3313, %v3494
    %3520 = vset.pattern.permute.xlu0 0
    %3521 = vperm.xlu0 %3520, %v3503
    %v3522 = vpop.permute.xlu0 %3521
    %3525 = vset.pattern.permute.xlu0 0
    %3526 = vperm.xlu0 %3525, %v3504
    %v3527 = vpop.permute.xlu0 %3526
    %3530 = vset.pattern.permute.xlu0 0
    %3531 = vperm.xlu0 %3530, %v3505
    %v3532 = vpop.permute.xlu0 %3531
    %3535 = vset.pattern.permute.xlu0 0
    %3536 = vperm.xlu0 %3535, %v3506
    %v3537 = vpop.permute.xlu0 %3536
    %3540 = vset.pattern.permute.xlu0 0
    %3541 = vperm.xlu0 %3540, %v3507
    %v3542 = vpop.permute.xlu0 %3541
    %3545 = vset.pattern.permute.xlu0 0
    %3546 = vperm.xlu0 %3545, %v3508
    %v3547 = vpop.permute.xlu0 %3546
    %3550 = vset.pattern.permute.xlu0 0
    %3551 = vperm.xlu0 %3550, %v3509
    %v3552 = vpop.permute.xlu0 %3551
    %3555 = vset.pattern.permute.xlu0 0
    %3556 = vperm.xlu0 %3555, %v3510
    %v3557 = vpop.permute.xlu0 %3556
    %3560 = vset.pattern.permute.xlu0 0
    %3561 = vperm.xlu0 %3560, %v3511
    %v3562 = vpop.permute.xlu0 %3561
    %3565 = vset.pattern.permute.xlu0 0
    %3566 = vperm.xlu0 %3565, %v3512
    %v3567 = vpop.permute.xlu0 %3566
    %3570 = vset.pattern.permute.xlu0 0
    %3571 = vperm.xlu0 %3570, %v3513
    %v3572 = vpop.permute.xlu0 %3571
    %3575 = vset.pattern.permute.xlu0 0
    %3576 = vperm.xlu0 %3575, %v3514
    %v3577 = vpop.permute.xlu0 %3576
    %3580 = vset.pattern.permute.xlu0 0
    %3581 = vperm.xlu0 %3580, %v3515
    %v3582 = vpop.permute.xlu0 %3581
    %3585 = vset.pattern.permute.xlu0 0
    %3586 = vperm.xlu0 %3585, %v3516
    %v3587 = vpop.permute.xlu0 %3586
    %3590 = vset.pattern.permute.xlu0 0
    %3591 = vperm.xlu0 %3590, %v3517
    %v3592 = vpop.permute.xlu0 %3591
    %3595 = vset.pattern.permute.xlu0 0
    %3596 = vperm.xlu0 %3595, %v3518
    %v3597 = vpop.permute.xlu0 %3596
    %v3599 = vmul.f32 %v3522, %v102
    %v3600 = vmul.f32 %v3527, %v103
    %v3601 = vmul.f32 %v3532, %v104
    %v3602 = vmul.f32 %v3537, %v105
    %v3603 = vmul.f32 %v3542, %v106
    %v3604 = vmul.f32 %v3547, %v107
    %v3605 = vmul.f32 %v3552, %v108
    %v3606 = vmul.f32 %v3557, %v109
    %v3607 = vmul.f32 %v3562, %v110
    %v3608 = vmul.f32 %v3567, %v111
    %v3609 = vmul.f32 %v3572, %v112
    %v3610 = vmul.f32 %v3577, %v113
    %v3611 = vmul.f32 %v3582, %v114
    %v3612 = vmul.f32 %v3587, %v115
    %v3613 = vmul.f32 %v3592, %v116
    %v3614 = vmul.f32 %v3597, %v117
    %v3615 = vsel %vm185, %v3599, 0.0
    %v3616 = vsel %vm583, %v3600, 0.0
    %v3617 = vadd.f32 %v3615, %v3616
    %v3618 = vrot.slane %v3617, 4
    %v3619 = vadd.f32 %v3617, %v3618
    %v3620 = vrot.slane %v3619, 2
    %v3621 = vadd.f32 %v3619, %v3620
    %v3622 = vrot.slane %v3621, 1
    %v3623 = vadd.f32 %v3621, %v3622
    %v3624 = vsel %vm185, %v3601, 0.0
    %v3625 = vsel %vm583, %v3602, 0.0
    %v3626 = vadd.f32 %v3624, %v3625
    %v3627 = vrot.slane %v3626, 4
    %v3628 = vadd.f32 %v3626, %v3627
    %v3629 = vrot.slane %v3628, 2
    %v3630 = vadd.f32 %v3628, %v3629
    %v3631 = vrot.slane %v3630, 1
    %v3632 = vadd.f32 %v3630, %v3631
    %v3633 = vsel %vm185, %v3603, 0.0
    %v3634 = vsel %vm583, %v3604, 0.0
    %v3635 = vadd.f32 %v3633, %v3634
    %v3636 = vrot.slane %v3635, 4
    %v3637 = vadd.f32 %v3635, %v3636
    %v3638 = vrot.slane %v3637, 2
    %v3639 = vadd.f32 %v3637, %v3638
    %v3640 = vrot.slane %v3639, 1
    %v3641 = vadd.f32 %v3639, %v3640
    %v3642 = vsel %vm185, %v3605, 0.0
    %v3643 = vsel %vm583, %v3606, 0.0
    %v3644 = vadd.f32 %v3642, %v3643
    %v3645 = vrot.slane %v3644, 4
    %v3646 = vadd.f32 %v3644, %v3645
    %v3647 = vrot.slane %v3646, 2
    %v3648 = vadd.f32 %v3646, %v3647
    %v3649 = vrot.slane %v3648, 1
    %v3650 = vadd.f32 %v3648, %v3649
    %v3651 = vsel %vm185, %v3607, 0.0
    %v3652 = vsel %vm583, %v3608, 0.0
    %v3653 = vadd.f32 %v3651, %v3652
    %v3654 = vrot.slane %v3653, 4
    %v3655 = vadd.f32 %v3653, %v3654
    %v3656 = vrot.slane %v3655, 2
    %v3657 = vadd.f32 %v3655, %v3656
    %v3658 = vrot.slane %v3657, 1
    %v3659 = vadd.f32 %v3657, %v3658
    %v3660 = vsel %vm185, %v3609, 0.0
    %v3661 = vsel %vm583, %v3610, 0.0
    %v3662 = vadd.f32 %v3660, %v3661
    %v3663 = vrot.slane %v3662, 4
    %v3664 = vadd.f32 %v3662, %v3663
    %v3665 = vrot.slane %v3664, 2
    %v3666 = vadd.f32 %v3664, %v3665
    %v3667 = vrot.slane %v3666, 1
    %v3668 = vadd.f32 %v3666, %v3667
    %v3669 = vsel %vm185, %v3611, 0.0
    %v3670 = vsel %vm583, %v3612, 0.0
    %v3671 = vadd.f32 %v3669, %v3670
    %v3672 = vrot.slane %v3671, 4
    %v3673 = vadd.f32 %v3671, %v3672
    %v3674 = vrot.slane %v3673, 2
    %v3675 = vadd.f32 %v3673, %v3674
    %v3676 = vrot.slane %v3675, 1
    %v3677 = vadd.f32 %v3675, %v3676
    %v3678 = vsel %vm185, %v3613, 0.0
    %v3679 = vsel %vm583, %v3614, 0.0
    %v3680 = vadd.f32 %v3678, %v3679
    %v3681 = vrot.slane %v3680, 4
    %v3682 = vadd.f32 %v3680, %v3681
    %v3683 = vrot.slane %v3682, 2
    %v3684 = vadd.f32 %v3682, %v3683
    %v3685 = vrot.slane %v3684, 1
    %v3686 = vadd.f32 %v3684, %v3685
    %3687 = vmatprep.subr.mxu0 0.0
    %3688 = vmatpush1.msra.mxu0 %v163
    %3689 = vmatprep.subr.mxu0 0.0
    %3690 = vmatpush1.msra.mxu0 %v164
    %3691 = vmatprep.subr.mxu0 0.0
    %3692 = vmatpush1.msra.mxu0 %v165
    %3693 = vmatprep.subr.mxu0 0.0
    %3694 = vmatpush1.msra.mxu0 %v166
    %3695 = vmatprep.subr.mxu0 0.0
    %3696 = vmatpush1.msra.mxu0 0.0
    %3697 = vmatprep.subr.mxu0 0.0
    %3698 = vmatpush1.msra.mxu0 0.0
    %3699 = vmatprep.subr.mxu0 0.0
    %3700 = vmatpush1.msra.mxu0 0.0
    %3701 = vmatprep.subr.mxu0 0.0
    %3702 = vmatpush1.msra.mxu0 0.0
    %3703 = vmatprep.subr.mxu0 0.0
    %3704 = vmatpush1.msra.mxu0 0.0
    %3705 = vmatprep.subr.mxu0 0.0
    %3706 = vmatpush1.msra.mxu0 0.0
    %3707 = vmatprep.subr.mxu0 0.0
    %3708 = vmatpush1.msra.mxu0 0.0
    %3709 = vmatprep.subr.mxu0 0.0
    %3710 = vmatpush1.msra.mxu0 0.0
    %3711 = vmatprep.subr.mxu0 0.0
    %3712 = vmatpush1.msra.mxu0 0.0
    %3713 = vmatprep.subr.mxu0 0.0
    %3714 = vmatpush1.msra.mxu0 0.0
    %3715 = vmatprep.subr.mxu0 0.0
    %3716 = vmatpush1.msra.mxu0 0.0
    %3717 = vmatprep.subr.mxu0 0.0
    %3718 = vmatpush1.msra.mxu0 0.0
    %3719 = vmatprep.subr.mxu0 0.0
    %3720 = vmatpush1.msra.mxu0 0.0
    %3721 = vmatprep.subr.mxu0 0.0
    %3722 = vmatpush1.msra.mxu0 0.0
    %3723 = vmatprep.subr.mxu0 0.0
    %3724 = vmatpush1.msra.mxu0 0.0
    %3725 = vmatprep.subr.mxu0 0.0
    %3726 = vmatpush1.msra.mxu0 0.0
    %3727 = vmatprep.subr.mxu0 0.0
    %3728 = vmatpush1.msra.mxu0 0.0
    %3729 = vmatprep.subr.mxu0 0.0
    %3730 = vmatpush1.msra.mxu0 0.0
    %3731 = vmatprep.subr.mxu0 0.0
    %3732 = vmatpush1.msra.mxu0 0.0
    %3733 = vmatprep.subr.mxu0 0.0
    %3734 = vmatpush1.msra.mxu0 0.0
    %3735 = vmatprep.subr.mxu0 0.0
    %3736 = vmatpush1.msra.mxu0 0.0
    %3737 = vmatprep.subr.mxu0 0.0
    %3738 = vmatpush1.msra.mxu0 0.0
    %3739 = vmatprep.subr.mxu0 0.0
    %3740 = vmatpush1.msra.mxu0 0.0
    %3741 = vmatprep.subr.mxu0 0.0
    %3742 = vmatpush1.msra.mxu0 0.0
    %3743 = vmatprep.subr.mxu0 0.0
    %3744 = vmatpush1.msra.mxu0 0.0
    %3745 = vmatprep.subr.mxu0 0.0
    %3746 = vmatpush1.msra.mxu0 0.0
    %3747 = vmatprep.subr.mxu0 0.0
    %3748 = vmatpush1.msra.mxu0 0.0
    %3749 = vmatprep.subr.mxu0 0.0
    %3750 = vmatpush1.msra.mxu0 0.0
    %3751 = vmatprep.mubr.f32.mxu0 0.0
    %3752 = vmatmul.mubr.f32.gmra.mrb[0].mxu0 %v2900
    %v3753 = vpop.f32.mrb[0].mxu0
    %v3754 = vadd.f32 0.0, %v3753
    %v3755 = vpop.f32.mrb[0].mxu0
    %3756 = vdwg.mxu0
    %v3765 = vsel %vm721, %v3632, %v3623
    %v3766 = vsel %vm723, %v3641, %v3765
    %v3767 = vsel %vm725, %v3650, %v3766
    %v3768 = vsel %vm727, %v3659, %v3767
    %v3769 = vsel %vm729, %v3668, %v3768
    %v3770 = vsel %vm731, %v3677, %v3769
    %v3771 = vsel %vm733, %v3686, %v3770
    %v3772 = vsel %vm185, %v3771, 0
    %3774 = vmatprep.subr.mxu0 0.0
    %3775 = vmatpush1.msra.mxu0 %v159
    %3776 = vmatprep.subr.mxu0 0.0
    %3777 = vmatpush1.msra.mxu0 %v160
    %3778 = vmatprep.subr.mxu0 0.0
    %3779 = vmatpush1.msra.mxu0 %v161
    %3780 = vmatprep.subr.mxu0 0.0
    %3781 = vmatpush1.msra.mxu0 %v162
    %3782 = vmatprep.subr.mxu0 0.0
    %3783 = vmatpush1.msra.mxu0 0.0
    %3784 = vmatprep.subr.mxu0 0.0
    %3785 = vmatpush1.msra.mxu0 0.0
    %3786 = vmatprep.subr.mxu0 0.0
    %3787 = vmatpush1.msra.mxu0 0.0
    %3788 = vmatprep.subr.mxu0 0.0
    %3789 = vmatpush1.msra.mxu0 0.0
    %3790 = vmatprep.subr.mxu0 0.0
    %3791 = vmatpush1.msra.mxu0 0.0
    %3792 = vmatprep.subr.mxu0 0.0
    %3793 = vmatpush1.msra.mxu0 0.0
    %3794 = vmatprep.subr.mxu0 0.0
    %3795 = vmatpush1.msra.mxu0 0.0
    %3796 = vmatprep.subr.mxu0 0.0
    %3797 = vmatpush1.msra.mxu0 0.0
    %3798 = vmatprep.subr.mxu0 0.0
    %3799 = vmatpush1.msra.mxu0 0.0
    %3800 = vmatprep.subr.mxu0 0.0
    %3801 = vmatpush1.msra.mxu0 0.0
    %3802 = vmatprep.subr.mxu0 0.0
    %3803 = vmatpush1.msra.mxu0 0.0
    %3804 = vmatprep.subr.mxu0 0.0
    %3805 = vmatpush1.msra.mxu0 0.0
    %3806 = vmatprep.subr.mxu0 0.0
    %3807 = vmatpush1.msra.mxu0 0.0
    %3808 = vmatprep.subr.mxu0 0.0
    %3809 = vmatpush1.msra.mxu0 0.0
    %3810 = vmatprep.subr.mxu0 0.0
    %3811 = vmatpush1.msra.mxu0 0.0
    %3812 = vmatprep.subr.mxu0 0.0
    %3813 = vmatpush1.msra.mxu0 0.0
    %3814 = vmatprep.subr.mxu0 0.0
    %3815 = vmatpush1.msra.mxu0 0.0
    %3816 = vmatprep.subr.mxu0 0.0
    %3817 = vmatpush1.msra.mxu0 0.0
    %3818 = vmatprep.subr.mxu0 0.0
    %3819 = vmatpush1.msra.mxu0 0.0
    %3820 = vmatprep.subr.mxu0 0.0
    %3821 = vmatpush1.msra.mxu0 0.0
    %3822 = vmatprep.subr.mxu0 0.0
    %3823 = vmatpush1.msra.mxu0 0.0
    %3824 = vmatprep.subr.mxu0 0.0
    %3825 = vmatpush1.msra.mxu0 0.0
    %3826 = vmatprep.subr.mxu0 0.0
    %3827 = vmatpush1.msra.mxu0 0.0
    %3828 = vmatprep.subr.mxu0 0.0
    %3829 = vmatpush1.msra.mxu0 0.0
    %3830 = vmatprep.subr.mxu0 0.0
    %3831 = vmatpush1.msra.mxu0 0.0
    %3832 = vmatprep.subr.mxu0 0.0
    %3833 = vmatpush1.msra.mxu0 0.0
    %3834 = vmatprep.subr.mxu0 0.0
    %3835 = vmatpush1.msra.mxu0 0.0
    %3836 = vmatprep.subr.mxu0 0.0
    %3837 = vmatpush1.msra.mxu0 0.0
    %3838 = vmatprep.mubr.f32.mxu0 0.0
    %3839 = vmatmul.mubr.f32.gmra.mrb[0].mxu0 %v3772
    %v3840 = vpop.f32.mrb[0].mxu0
    %v3841 = vadd.f32 %v3754, %v3840
    %v3842 = vpop.f32.mrb[0].mxu0
    %3843 = vdwg.mxu0
    %v3844 = vadd.f32 %v3841, %v172
    %v3845 = vtanh.pop %v3844
    %v3846 = vlaneseq
    %v3847 = vshrl.u32 %v3846, 7
    %v3848 = vsub.s32 %v1361, %v3847
    %v3849 = vrot.slane %v3522, %v3848
    %v3850 = vlaneseq
    %v3851 = vshrl.u32 %v3850, 7
    %v3852 = vsub.s32 %v1366, %v3851
    %v3853 = vrot.slane %v3527, %v3852
    %v3854 = vsel %vm1371, %v3853, %v3849
    %v3855 = vlaneseq
    %v3856 = vshrl.u32 %v3855, 7
    %v3857 = vsub.s32 %v1361, %v3856
    %v3858 = vrot.slane %v3532, %v3857
    %v3859 = vlaneseq
    %v3860 = vshrl.u32 %v3859, 7
    %v3861 = vsub.s32 %v1366, %v3860
    %v3862 = vrot.slane %v3537, %v3861
    %v3863 = vsel %vm1371, %v3862, %v3858
    %v3864 = vlaneseq
    %v3865 = vshrl.u32 %v3864, 7
    %v3866 = vsub.s32 %v1361, %v3865
    %v3867 = vrot.slane %v3542, %v3866
    %v3868 = vlaneseq
    %v3869 = vshrl.u32 %v3868, 7
    %v3870 = vsub.s32 %v1366, %v3869
    %v3871 = vrot.slane %v3547, %v3870
    %v3872 = vsel %vm1371, %v3871, %v3867
    %v3873 = vlaneseq
    %v3874 = vshrl.u32 %v3873, 7
    %v3875 = vsub.s32 %v1361, %v3874
    %v3876 = vrot.slane %v3552, %v3875
    %v3877 = vlaneseq
    %v3878 = vshrl.u32 %v3877, 7
    %v3879 = vsub.s32 %v1366, %v3878
    %v3880 = vrot.slane %v3557, %v3879
    %v3881 = vsel %vm1371, %v3880, %v3876
    %v3882 = vlaneseq
    %v3883 = vshrl.u32 %v3882, 7
    %v3884 = vsub.s32 %v1361, %v3883
    %v3885 = vrot.slane %v3562, %v3884
    %v3886 = vlaneseq
    %v3887 = vshrl.u32 %v3886, 7
    %v3888 = vsub.s32 %v1366, %v3887
    %v3889 = vrot.slane %v3567, %v3888
    %v3890 = vsel %vm1371, %v3889, %v3885
    %v3891 = vlaneseq
    %v3892 = vshrl.u32 %v3891, 7
    %v3893 = vsub.s32 %v1361, %v3892
    %v3894 = vrot.slane %v3572, %v3893
    %v3895 = vlaneseq
    %v3896 = vshrl.u32 %v3895, 7
    %v3897 = vsub.s32 %v1366, %v3896
    %v3898 = vrot.slane %v3577, %v3897
    %v3899 = vsel %vm1371, %v3898, %v3894
    %v3900 = vlaneseq
    %v3901 = vshrl.u32 %v3900, 7
    %v3902 = vsub.s32 %v1361, %v3901
    %v3903 = vrot.slane %v3582, %v3902
    %v3904 = vlaneseq
    %v3905 = vshrl.u32 %v3904, 7
    %v3906 = vsub.s32 %v1366, %v3905
    %v3907 = vrot.slane %v3587, %v3906
    %v3908 = vsel %vm1371, %v3907, %v3903
    %v3909 = vlaneseq
    %v3910 = vshrl.u32 %v3909, 7
    %v3911 = vsub.s32 %v1361, %v3910
    %v3912 = vrot.slane %v3592, %v3911
    %v3913 = vlaneseq
    %v3914 = vshrl.u32 %v3913, 7
    %v3915 = vsub.s32 %v1366, %v3914
    %v3916 = vrot.slane %v3597, %v3915
    %v3917 = vsel %vm1371, %v3916, %v3912
    %v3918 = vsel %vm721, %v3863, %v3854
    %v3919 = vsel %vm723, %v3872, %v3918
    %v3920 = vsel %vm725, %v3881, %v3919
    %v3921 = vsel %vm727, %v3890, %v3920
    %v3922 = vsel %vm729, %v3899, %v3921
    %v3923 = vsel %vm731, %v3908, %v3922
    %v3924 = vsel %vm733, %v3917, %v3923
    %v3926 = vsel %vm185, %v3845, %v3924
    %v3927 = vsel %vm1445, %v3926, 0.0
    %s3928 = scalar_lea.vmem [#allocation10], 16
    %3929 = vst [vmem:[%s3928] sm:$0xff] %v3927
    %s3930 = scalar_lea.vmem %s0, 24
    %v3931 = vld [vmem:[%s3930] sm:$0xff]
    %3932 = vrot.lane.b32.xlu0 %v2791, 64
    %v3933 = vpop.permute.xlu0 %3932
    %v3935 = vsel %vm185, %v3931, %v3933
    %v3937 = vsel %vm187, %v3935, 0
    %3939 = vmatprep.subr.mxu0 0.0
    %3940 = vmatpush1.msra.mxu0 %v118
    %3941 = vmatprep.subr.mxu0 0.0
    %3942 = vmatpush1.msra.mxu0 %v119
    %3943 = vmatprep.subr.mxu0 0.0
    %3944 = vmatpush1.msra.mxu0 %v120
    %3945 = vmatprep.subr.mxu0 0.0
    %3946 = vmatpush1.msra.mxu0 %v121
    %3947 = vmatprep.subr.mxu0 0.0
    %3948 = vmatpush1.msra.mxu0 %v122
    %3949 = vmatprep.subr.mxu0 0.0
    %3950 = vmatpush1.msra.mxu0 %v123
    %3951 = vmatprep.subr.mxu0 0.0
    %3952 = vmatpush1.msra.mxu0 %v124
    %3953 = vmatprep.subr.mxu0 0.0
    %3954 = vmatpush1.msra.mxu0 %v125
    %3955 = vmatprep.subr.mxu0 0.0
    %3956 = vmatpush1.msra.mxu0 0.0
    %3957 = vmatprep.subr.mxu0 0.0
    %3958 = vmatpush1.msra.mxu0 0.0
    %3959 = vmatprep.subr.mxu0 0.0
    %3960 = vmatpush1.msra.mxu0 0.0
    %3961 = vmatprep.subr.mxu0 0.0
    %3962 = vmatpush1.msra.mxu0 0.0
    %3963 = vmatprep.subr.mxu0 0.0
    %3964 = vmatpush1.msra.mxu0 0.0
    %3965 = vmatprep.subr.mxu0 0.0
    %3966 = vmatpush1.msra.mxu0 0.0
    %3967 = vmatprep.subr.mxu0 0.0
    %3968 = vmatpush1.msra.mxu0 0.0
    %3969 = vmatprep.subr.mxu0 0.0
    %3970 = vmatpush1.msra.mxu0 0.0
    %3971 = vmatprep.subr.mxu0 0.0
    %3972 = vmatpush1.msra.mxu0 0.0
    %3973 = vmatprep.subr.mxu0 0.0
    %3974 = vmatpush1.msra.mxu0 0.0
    %3975 = vmatprep.subr.mxu0 0.0
    %3976 = vmatpush1.msra.mxu0 0.0
    %3977 = vmatprep.subr.mxu0 0.0
    %3978 = vmatpush1.msra.mxu0 0.0
    %3979 = vmatprep.subr.mxu0 0.0
    %3980 = vmatpush1.msra.mxu0 0.0
    %3981 = vmatprep.subr.mxu0 0.0
    %3982 = vmatpush1.msra.mxu0 0.0
    %3983 = vmatprep.subr.mxu0 0.0
    %3984 = vmatpush1.msra.mxu0 0.0
    %3985 = vmatprep.subr.mxu0 0.0
    %3986 = vmatpush1.msra.mxu0 0.0
    %3987 = vmatprep.subr.mxu0 0.0
    %3988 = vmatpush1.msra.mxu0 0.0
    %3989 = vmatprep.subr.mxu0 0.0
    %3990 = vmatpush1.msra.mxu0 0.0
    %3991 = vmatprep.subr.mxu0 0.0
    %3992 = vmatpush1.msra.mxu0 0.0
    %3993 = vmatprep.subr.mxu0 0.0
    %3994 = vmatpush1.msra.mxu0 0.0
    %3995 = vmatprep.subr.mxu0 0.0
    %3996 = vmatpush1.msra.mxu0 0.0
    %3997 = vmatprep.subr.mxu0 0.0
    %3998 = vmatpush1.msra.mxu0 0.0
    %3999 = vmatprep.subr.mxu0 0.0
    %4000 = vmatpush1.msra.mxu0 0.0
    %4001 = vmatprep.subr.mxu0 0.0
    %4002 = vmatpush1.msra.mxu0 0.0
    %4003 = vmatprep.mubr.f32.mxu0 0.0
    %4004 = vmatmul.mubr.f32.gmra.mrb[0].mxu0 %v3937
    %v4005 = vpop.f32.mrb[0].mxu0
    %v4006 = vadd.f32 %v139, %v4005
    %v4007 = vpop.f32.mrb[0].mxu0
    %4008 = vdwg.mxu0
    %v4009 = vxor.u32 %v4006, 2147483648
    %v4010 = vmul.f32 %v4009, 1.442695
    %v4011 = vpow.pop %v4010
    %v4012 = vadd.f32 %v4011, 1.0
    %v4013 = vrcp.pop %v4012
    %v4014 = vmul.f32 1.0, %v4013
    %v4015 = vtanh.pop %v4006
    %v4016 = vmul.f32 %v4014, %v2785
    %4018 = vrot.lane.b32.xlu0 %v4015, 64
    %v4019 = vpop.permute.xlu0 %4018
    %v4021 = vmul.f32 %v4014, %v4019
    %4023 = vrot.lane.b32.xlu0 %v4021, 32
    %v4024 = vpop.permute.xlu0 %4023
    %v4026 = vadd.f32 %v4016, %v4024
    %v4027 = vtanh.pop %v4026
    %4029 = vrot.lane.b32.xlu0 %v4027, 64
    %v4030 = vpop.permute.xlu0 %4029
    %v4032 = vmul.f32 %v4014, %v4030
    %4034 = vrot.lane.b32.xlu0 %v4032, 32
    %v4035 = vpop.permute.xlu0 %4034
    %4037 = vrot.lane.b32.xlu0 %v2896, 64
    %v4038 = vpop.permute.xlu0 %4037
    %v4040 = vsel %vm185, %v4035, %v4038
    %v4042 = vsel %vm187, %v4040, 0
    %4044 = vmatprep.subr.mxu0 0.0
    %4045 = vmatpush1.msra.mxu0 %v126
    %4046 = vmatprep.subr.mxu0 0.0
    %4047 = vmatpush1.msra.mxu0 %v127
    %4048 = vmatprep.subr.mxu0 0.0
    %4049 = vmatpush1.msra.mxu0 %v128
    %4050 = vmatprep.subr.mxu0 0.0
    %4051 = vmatpush1.msra.mxu0 %v129
    %4052 = vmatprep.subr.mxu0 0.0
    %4053 = vmatpush1.msra.mxu0 %v130
    %4054 = vmatprep.subr.mxu0 0.0
    %4055 = vmatpush1.msra.mxu0 %v131
    %4056 = vmatprep.subr.mxu0 0.0
    %4057 = vmatpush1.msra.mxu0 %v132
    %4058 = vmatprep.subr.mxu0 0.0
    %4059 = vmatpush1.msra.mxu0 %v133
    %4060 = vmatprep.subr.mxu0 0.0
    %4061 = vmatpush1.msra.mxu0 0.0
    %4062 = vmatprep.subr.mxu0 0.0
    %4063 = vmatpush1.msra.mxu0 0.0
    %4064 = vmatprep.subr.mxu0 0.0
    %4065 = vmatpush1.msra.mxu0 0.0
    %4066 = vmatprep.subr.mxu0 0.0
    %4067 = vmatpush1.msra.mxu0 0.0
    %4068 = vmatprep.subr.mxu0 0.0
    %4069 = vmatpush1.msra.mxu0 0.0
    %4070 = vmatprep.subr.mxu0 0.0
    %4071 = vmatpush1.msra.mxu0 0.0
    %4072 = vmatprep.subr.mxu0 0.0
    %4073 = vmatpush1.msra.mxu0 0.0
    %4074 = vmatprep.subr.mxu0 0.0
    %4075 = vmatpush1.msra.mxu0 0.0
    %4076 = vmatprep.subr.mxu0 0.0
    %4077 = vmatpush1.msra.mxu0 0.0
    %4078 = vmatprep.subr.mxu0 0.0
    %4079 = vmatpush1.msra.mxu0 0.0
    %4080 = vmatprep.subr.mxu0 0.0
    %4081 = vmatpush1.msra.mxu0 0.0
    %4082 = vmatprep.subr.mxu0 0.0
    %4083 = vmatpush1.msra.mxu0 0.0
    %4084 = vmatprep.subr.mxu0 0.0
    %4085 = vmatpush1.msra.mxu0 0.0
    %4086 = vmatprep.subr.mxu0 0.0
    %4087 = vmatpush1.msra.mxu0 0.0
    %4088 = vmatprep.subr.mxu0 0.0
    %4089 = vmatpush1.msra.mxu0 0.0
    %4090 = vmatprep.subr.mxu0 0.0
    %4091 = vmatpush1.msra.mxu0 0.0
    %4092 = vmatprep.subr.mxu0 0.0
    %4093 = vmatpush1.msra.mxu0 0.0
    %4094 = vmatprep.subr.mxu0 0.0
    %4095 = vmatpush1.msra.mxu0 0.0
    %4096 = vmatprep.subr.mxu0 0.0
    %4097 = vmatpush1.msra.mxu0 0.0
    %4098 = vmatprep.subr.mxu0 0.0
    %4099 = vmatpush1.msra.mxu0 0.0
    %4100 = vmatprep.subr.mxu0 0.0
    %4101 = vmatpush1.msra.mxu0 0.0
    %4102 = vmatprep.subr.mxu0 0.0
    %4103 = vmatpush1.msra.mxu0 0.0
    %4104 = vmatprep.subr.mxu0 0.0
    %4105 = vmatpush1.msra.mxu0 0.0
    %4106 = vmatprep.subr.mxu0 0.0
    %4107 = vmatpush1.msra.mxu0 0.0
    %4108 = vmatprep.mubr.f32.mxu0 0.0
    %4109 = vmatmul.mubr.f32.gmra.mrb[0].mxu0 %v4042
    %v4110 = vpop.f32.mrb[0].mxu0
    %v4111 = vadd.f32 %v146, %v4110
    %v4112 = vpop.f32.mrb[0].mxu0
    %4113 = vdwg.mxu0
    %v4114 = vxor.u32 %v4111, 2147483648
    %v4115 = vmul.f32 %v4114, 1.442695
    %v4116 = vpow.pop %v4115
    %v4117 = vadd.f32 %v4116, 1.0
    %v4118 = vrcp.pop %v4117
    %v4119 = vmul.f32 1.0, %v4118
    %v4120 = vtanh.pop %v4111
    %v4121 = vmul.f32 %v4119, %v2890
    %4123 = vrot.lane.b32.xlu0 %v4120, 64
    %v4124 = vpop.permute.xlu0 %4123
    %v4126 = vmul.f32 %v4119, %v4124
    %4128 = vrot.lane.b32.xlu0 %v4126, 32
    %v4129 = vpop.permute.xlu0 %4128
    %v4131 = vadd.f32 %v4121, %v4129
    %v4132 = vtanh.pop %v4131
    %4134 = vrot.lane.b32.xlu0 %v4132, 64
    %v4135 = vpop.permute.xlu0 %4134
    %v4137 = vmul.f32 %v4119, %v4135
    %4139 = vrot.lane.b32.xlu0 %v4137, 32
    %v4140 = vpop.permute.xlu0 %4139
    %v4141 = vsel %vm185, %v4140, 0
    %4143 = vmatprep.subr.mxu0 0.0
    %4144 = vmatpush1.msra.mxu0 %v148
    %4145 = vmatprep.subr.mxu0 0.0
    %4146 = vmatpush1.msra.mxu0 %v149
    %4147 = vmatprep.subr.mxu0 0.0
    %4148 = vmatpush1.msra.mxu0 %v150
    %4149 = vmatprep.subr.mxu0 0.0
    %4150 = vmatpush1.msra.mxu0 %v151
    %4151 = vmatprep.subr.mxu0 0.0
    %4152 = vmatpush1.msra.mxu0 0.0
    %4153 = vmatprep.subr.mxu0 0.0
    %4154 = vmatpush1.msra.mxu0 0.0
    %4155 = vmatprep.subr.mxu0 0.0
    %4156 = vmatpush1.msra.mxu0 0.0
    %4157 = vmatprep.subr.mxu0 0.0
    %4158 = vmatpush1.msra.mxu0 0.0
    %4159 = vmatprep.subr.mxu0 0.0
    %4160 = vmatpush1.msra.mxu0 0.0
    %4161 = vmatprep.subr.mxu0 0.0
    %4162 = vmatpush1.msra.mxu0 0.0
    %4163 = vmatprep.subr.mxu0 0.0
    %4164 = vmatpush1.msra.mxu0 0.0
    %4165 = vmatprep.subr.mxu0 0.0
    %4166 = vmatpush1.msra.mxu0 0.0
    %4167 = vmatprep.subr.mxu0 0.0
    %4168 = vmatpush1.msra.mxu0 0.0
    %4169 = vmatprep.subr.mxu0 0.0
    %4170 = vmatpush1.msra.mxu0 0.0
    %4171 = vmatprep.subr.mxu0 0.0
    %4172 = vmatpush1.msra.mxu0 0.0
    %4173 = vmatprep.subr.mxu0 0.0
    %4174 = vmatpush1.msra.mxu0 0.0
    %4175 = vmatprep.subr.mxu0 0.0
    %4176 = vmatpush1.msra.mxu0 0.0
    %4177 = vmatprep.subr.mxu0 0.0
    %4178 = vmatpush1.msra.mxu0 0.0
    %4179 = vmatprep.subr.mxu0 0.0
    %4180 = vmatpush1.msra.mxu0 0.0
    %4181 = vmatprep.subr.mxu0 0.0
    %4182 = vmatpush1.msra.mxu0 0.0
    %4183 = vmatprep.subr.mxu0 0.0
    %4184 = vmatpush1.msra.mxu0 0.0
    %4185 = vmatprep.subr.mxu0 0.0
    %4186 = vmatpush1.msra.mxu0 0.0
    %4187 = vmatprep.subr.mxu0 0.0
    %4188 = vmatpush1.msra.mxu0 0.0
    %4189 = vmatprep.subr.mxu0 0.0
    %4190 = vmatpush1.msra.mxu0 0.0
    %4191 = vmatprep.subr.mxu0 0.0
    %4192 = vmatpush1.msra.mxu0 0.0
    %4193 = vmatprep.subr.mxu0 0.0
    %4194 = vmatpush1.msra.mxu0 0.0
    %4195 = vmatprep.subr.mxu0 0.0
    %4196 = vmatpush1.msra.mxu0 0.0
    %4197 = vmatprep.subr.mxu0 0.0
    %4198 = vmatpush1.msra.mxu0 0.0
    %4199 = vmatprep.subr.mxu0 0.0
    %4200 = vmatpush1.msra.mxu0 0.0
    %4201 = vmatprep.subr.mxu0 0.0
    %4202 = vmatpush1.msra.mxu0 0.0
    %4203 = vmatprep.subr.mxu0 0.0
    %4204 = vmatpush1.msra.mxu0 0.0
    %4205 = vmatprep.subr.mxu0 0.0
    %4206 = vmatpush1.msra.mxu0 0.0
    %4207 = vmatprep.mubr.f32.mxu0 0.0
    %4208 = vmatmul.mubr.f32.gmra.mrb[0].mxu0 %v4141
    %v4209 = vpop.f32.mrb[0].mxu0
    %v4210 = vadd.f32 %v157, %v4209
    %v4211 = vpop.f32.mrb[0].mxu0
    %4212 = vdwg.mxu0
    %v4214 = vcombine.high %v4210, %v4210
    %v4216 = vunpack.c.l.s4 1966171168
    %v4217 = vunpack.c.0.s8 %v4216
    %v4218 = vlaneseq
    %v4219 = vshrl.u32 %v4218, 7
    %v4220 = vsub.s32 %v4217, %v4219
    %v4221 = vrot.slane %v4210, %v4220
    %v4223 = vunpack.c.l.s4 1966171168
    %v4224 = vunpack.c.0.s8 %v4223
    %v4225 = vlaneseq
    %v4226 = vshrl.u32 %v4225, 7
    %v4227 = vsub.s32 %v4224, %v4226
    %v4228 = vrot.slane %v4214, %v4227
    %v4229 = vcombine.high %v4221, %v4221
    %v4230 = vcombine.high %v4228, %v4228
    %v4232 = vunpack.c.l.s4 1966171168
    %v4233 = vunpack.c.0.s8 %v4232
    %v4234 = vlaneseq
    %v4235 = vshrl.u32 %v4234, 7
    %v4236 = vsub.s32 %v4233, %v4235
    %v4237 = vrot.slane %v4221, %v4236
    %v4239 = vunpack.c.l.s4 1966171168
    %v4240 = vunpack.c.0.s8 %v4239
    %v4241 = vlaneseq
    %v4242 = vshrl.u32 %v4241, 7
    %v4243 = vsub.s32 %v4240, %v4242
    %v4244 = vrot.slane %v4228, %v4243
    %v4246 = vunpack.c.l.s4 1966171168
    %v4247 = vunpack.c.0.s8 %v4246
    %v4248 = vlaneseq
    %v4249 = vshrl.u32 %v4248, 7
    %v4250 = vsub.s32 %v4247, %v4249
    %v4251 = vrot.slane %v4229, %v4250
    %v4253 = vunpack.c.l.s4 1966171168
    %v4254 = vunpack.c.0.s8 %v4253
    %v4255 = vlaneseq
    %v4256 = vshrl.u32 %v4255, 7
    %v4257 = vsub.s32 %v4254, %v4256
    %v4258 = vrot.slane %v4230, %v4257
    %v4259 = vcombine.high %v4237, %v4237
    %v4260 = vcombine.high %v4244, %v4244
    %v4261 = vcombine.high %v4251, %v4251
    %v4262 = vcombine.high %v4258, %v4258
    %v4263 = vlaneseq
    %v4264 = vshrl.u32 %v4263, 7
    %v4265 = vsub.s32 0, %v4264
    %v4266 = vrot.slane %v4237, %v4265
    %v4267 = vlaneseq
    %v4268 = vshrl.u32 %v4267, 7
    %v4269 = vsub.s32 0, %v4268
    %v4270 = vrot.slane %v4251, %v4269
    %v4271 = vlaneseq
    %v4272 = vshrl.u32 %v4271, 7
    %v4273 = vsub.s32 0, %v4272
    %v4274 = vrot.slane %v4259, %v4273
    %v4275 = vlaneseq
    %v4276 = vshrl.u32 %v4275, 7
    %v4277 = vsub.s32 0, %v4276
    %v4278 = vrot.slane %v4261, %v4277
    %v4279 = vlaneseq
    %v4280 = vshrl.u32 %v4279, 7
    %v4281 = vsub.s32 0, %v4280
    %v4282 = vrot.slane %v4244, %v4281
    %v4283 = vlaneseq
    %v4284 = vshrl.u32 %v4283, 7
    %v4285 = vsub.s32 0, %v4284
    %v4286 = vrot.slane %v4258, %v4285
    %v4287 = vlaneseq
    %v4288 = vshrl.u32 %v4287, 7
    %v4289 = vsub.s32 0, %v4288
    %v4290 = vrot.slane %v4260, %v4289
    %v4291 = vlaneseq
    %v4292 = vshrl.u32 %v4291, 7
    %v4293 = vsub.s32 0, %v4292
    %v4294 = vrot.slane %v4262, %v4293
    %v4303 = vmul.f32 %v102, %v4266
    %v4304 = vmul.f32 %v103, %v4266
    %v4305 = vmul.f32 %v104, %v4270
    %v4306 = vmul.f32 %v105, %v4270
    %v4307 = vmul.f32 %v106, %v4274
    %v4308 = vmul.f32 %v107, %v4274
    %v4309 = vmul.f32 %v108, %v4278
    %v4310 = vmul.f32 %v109, %v4278
    %v4311 = vmul.f32 %v110, %v4282
    %v4312 = vmul.f32 %v111, %v4282
    %v4313 = vmul.f32 %v112, %v4286
    %v4314 = vmul.f32 %v113, %v4286
    %v4315 = vmul.f32 %v114, %v4290
    %v4316 = vmul.f32 %v115, %v4290
    %v4317 = vmul.f32 %v116, %v4294
    %v4318 = vmul.f32 %v117, %v4294
    %v4319 = vsel %vm185, %v4303, 0.0
    %4320 = vadd.xlane.f32.xlu0 %v4319
    %v4321 = vpop.xlane.xlu0 %4320
    %v4322 = vsel %vm583, %v4304, 0.0
    %4323 = vadd.xlane.f32.xlu0 %v4322
    %v4324 = vpop.xlane.xlu0 %4323
    %v4325 = vsel %vm185, %v4305, 0.0
    %4326 = vadd.xlane.f32.xlu0 %v4325
    %v4327 = vpop.xlane.xlu0 %4326
    %v4328 = vsel %vm583, %v4306, 0.0
    %4329 = vadd.xlane.f32.xlu0 %v4328
    %v4330 = vpop.xlane.xlu0 %4329
    %v4331 = vsel %vm185, %v4307, 0.0
    %4332 = vadd.xlane.f32.xlu0 %v4331
    %v4333 = vpop.xlane.xlu0 %4332
    %v4334 = vsel %vm583, %v4308, 0.0
    %4335 = vadd.xlane.f32.xlu0 %v4334
    %v4336 = vpop.xlane.xlu0 %4335
    %v4337 = vsel %vm185, %v4309, 0.0
    %4338 = vadd.xlane.f32.xlu0 %v4337
    %v4339 = vpop.xlane.xlu0 %4338
    %v4340 = vsel %vm583, %v4310, 0.0
    %4341 = vadd.xlane.f32.xlu0 %v4340
    %v4342 = vpop.xlane.xlu0 %4341
    %v4343 = vsel %vm185, %v4311, 0.0
    %4344 = vadd.xlane.f32.xlu0 %v4343
    %v4345 = vpop.xlane.xlu0 %4344
    %v4346 = vsel %vm583, %v4312, 0.0
    %4347 = vadd.xlane.f32.xlu0 %v4346
    %v4348 = vpop.xlane.xlu0 %4347
    %v4349 = vsel %vm185, %v4313, 0.0
    %4350 = vadd.xlane.f32.xlu0 %v4349
    %v4351 = vpop.xlane.xlu0 %4350
    %v4352 = vsel %vm583, %v4314, 0.0
    %4353 = vadd.xlane.f32.xlu0 %v4352
    %v4354 = vpop.xlane.xlu0 %4353
    %v4355 = vsel %vm185, %v4315, 0.0
    %4356 = vadd.xlane.f32.xlu0 %v4355
    %v4357 = vpop.xlane.xlu0 %4356
    %v4358 = vsel %vm583, %v4316, 0.0
    %4359 = vadd.xlane.f32.xlu0 %v4358
    %v4360 = vpop.xlane.xlu0 %4359
    %v4361 = vsel %vm185, %v4317, 0.0
    %4362 = vadd.xlane.f32.xlu0 %v4361
    %v4363 = vpop.xlane.xlu0 %4362
    %v4364 = vsel %vm583, %v4318, 0.0
    %4365 = vadd.xlane.f32.xlu0 %v4364
    %v4366 = vpop.xlane.xlu0 %4365
    %v4383 = vlaneseq
    %v4384 = vshrl.u32 %v4383, 7
    %v4385 = vsub.s32 %v646, %v4384
    %v4386 = vrot.slane %v4321, %v4385
    %v4387 = vlaneseq
    %v4388 = vshrl.u32 %v4387, 7
    %v4389 = vsub.s32 %v651, %v4388
    %v4390 = vrot.slane %v4324, %v4389
    %v4391 = vsel %vm656, %v4390, %v4386
    %v4392 = vlaneseq
    %v4393 = vshrl.u32 %v4392, 7
    %v4394 = vsub.s32 %v646, %v4393
    %v4395 = vrot.slane %v4327, %v4394
    %v4396 = vlaneseq
    %v4397 = vshrl.u32 %v4396, 7
    %v4398 = vsub.s32 %v651, %v4397
    %v4399 = vrot.slane %v4330, %v4398
    %v4400 = vsel %vm656, %v4399, %v4395
    %v4401 = vlaneseq
    %v4402 = vshrl.u32 %v4401, 7
    %v4403 = vsub.s32 %v646, %v4402
    %v4404 = vrot.slane %v4333, %v4403
    %v4405 = vlaneseq
    %v4406 = vshrl.u32 %v4405, 7
    %v4407 = vsub.s32 %v651, %v4406
    %v4408 = vrot.slane %v4336, %v4407
    %v4409 = vsel %vm656, %v4408, %v4404
    %v4410 = vlaneseq
    %v4411 = vshrl.u32 %v4410, 7
    %v4412 = vsub.s32 %v646, %v4411
    %v4413 = vrot.slane %v4339, %v4412
    %v4414 = vlaneseq
    %v4415 = vshrl.u32 %v4414, 7
    %v4416 = vsub.s32 %v651, %v4415
    %v4417 = vrot.slane %v4342, %v4416
    %v4418 = vsel %vm656, %v4417, %v4413
    %v4419 = vlaneseq
    %v4420 = vshrl.u32 %v4419, 7
    %v4421 = vsub.s32 %v646, %v4420
    %v4422 = vrot.slane %v4345, %v4421
    %v4423 = vlaneseq
    %v4424 = vshrl.u32 %v4423, 7
    %v4425 = vsub.s32 %v651, %v4424
    %v4426 = vrot.slane %v4348, %v4425
    %v4427 = vsel %vm656, %v4426, %v4422
    %v4428 = vlaneseq
    %v4429 = vshrl.u32 %v4428, 7
    %v4430 = vsub.s32 %v646, %v4429
    %v4431 = vrot.slane %v4351, %v4430
    %v4432 = vlaneseq
    %v4433 = vshrl.u32 %v4432, 7
    %v4434 = vsub.s32 %v651, %v4433
    %v4435 = vrot.slane %v4354, %v4434
    %v4436 = vsel %vm656, %v4435, %v4431
    %v4437 = vlaneseq
    %v4438 = vshrl.u32 %v4437, 7
    %v4439 = vsub.s32 %v646, %v4438
    %v4440 = vrot.slane %v4357, %v4439
    %v4441 = vlaneseq
    %v4442 = vshrl.u32 %v4441, 7
    %v4443 = vsub.s32 %v651, %v4442
    %v4444 = vrot.slane %v4360, %v4443
    %v4445 = vsel %vm656, %v4444, %v4440
    %v4446 = vlaneseq
    %v4447 = vshrl.u32 %v4446, 7
    %v4448 = vsub.s32 %v646, %v4447
    %v4449 = vrot.slane %v4363, %v4448
    %v4450 = vlaneseq
    %v4451 = vshrl.u32 %v4450, 7
    %v4452 = vsub.s32 %v651, %v4451
    %v4453 = vrot.slane %v4366, %v4452
    %v4454 = vsel %vm656, %v4453, %v4449
    %v4455 = vsel %vm721, %v4400, %v4391
    %v4456 = vsel %vm723, %v4409, %v4455
    %v4457 = vsel %vm725, %v4418, %v4456
    %v4458 = vsel %vm727, %v4427, %v4457
    %v4459 = vsel %vm729, %v4436, %v4458
    %v4460 = vsel %vm731, %v4445, %v4459
    %v4461 = vsel %vm733, %v4454, %v4460
    %v4463 = vsel %vm736, %v4461, -inf
    %4464 = vmax.xlane.f32.xlu0 %v4463
    %v4465 = vpop.xlane.xlu0 %4464
    %v4467 = vlaneseq
    %v4468 = vshrl.u32 %v4467, 7
    %v4469 = vsub.s32 0, %v4468
    %v4470 = vrot.slane %v4465, %v4469
    %v4471 = vlaneseq
    %v4472 = vshrl.u32 %v4471, 7
    %v4473 = vsub.s32 1, %v4472
    %v4474 = vrot.slane %v4465, %v4473
    %v4475 = vlaneseq
    %v4476 = vshrl.u32 %v4475, 7
    %v4477 = vsub.s32 2, %v4476
    %v4478 = vrot.slane %v4465, %v4477
    %v4479 = vlaneseq
    %v4480 = vshrl.u32 %v4479, 7
    %v4481 = vsub.s32 3, %v4480
    %v4482 = vrot.slane %v4465, %v4481
    %v4483 = vlaneseq
    %v4484 = vshrl.u32 %v4483, 7
    %v4485 = vsub.s32 4, %v4484
    %v4486 = vrot.slane %v4465, %v4485
    %v4487 = vlaneseq
    %v4488 = vshrl.u32 %v4487, 7
    %v4489 = vsub.s32 5, %v4488
    %v4490 = vrot.slane %v4465, %v4489
    %v4491 = vlaneseq
    %v4492 = vshrl.u32 %v4491, 7
    %v4493 = vsub.s32 6, %v4492
    %v4494 = vrot.slane %v4465, %v4493
    %v4495 = vlaneseq
    %v4496 = vshrl.u32 %v4495, 7
    %v4497 = vsub.s32 7, %v4496
    %v4498 = vrot.slane %v4465, %v4497
    %v4507 = vsub.f32 %v4321, %v4470
    %v4508 = vsub.f32 %v4324, %v4470
    %v4509 = vsub.f32 %v4327, %v4474
    %v4510 = vsub.f32 %v4330, %v4474
    %v4511 = vsub.f32 %v4333, %v4478
    %v4512 = vsub.f32 %v4336, %v4478
    %v4513 = vsub.f32 %v4339, %v4482
    %v4514 = vsub.f32 %v4342, %v4482
    %v4515 = vsub.f32 %v4345, %v4486
    %v4516 = vsub.f32 %v4348, %v4486
    %v4517 = vsub.f32 %v4351, %v4490
    %v4518 = vsub.f32 %v4354, %v4490
    %v4519 = vsub.f32 %v4357, %v4494
    %v4520 = vsub.f32 %v4360, %v4494
    %v4521 = vsub.f32 %v4363, %v4498
    %v4522 = vsub.f32 %v4366, %v4498
    %v4523 = vmul.f32 %v4507, 1.442695
    %v4524 = vpow.pop %v4523
    %v4525 = vmul.f32 %v4508, 1.442695
    %v4526 = vpow.pop %v4525
    %v4527 = vmul.f32 %v4509, 1.442695
    %v4528 = vpow.pop %v4527
    %v4529 = vmul.f32 %v4510, 1.442695
    %v4530 = vpow.pop %v4529
    %v4531 = vmul.f32 %v4511, 1.442695
    %v4532 = vpow.pop %v4531
    %v4533 = vmul.f32 %v4512, 1.442695
    %v4534 = vpow.pop %v4533
    %v4535 = vmul.f32 %v4513, 1.442695
    %v4536 = vpow.pop %v4535
    %v4537 = vmul.f32 %v4514, 1.442695
    %v4538 = vpow.pop %v4537
    %v4539 = vmul.f32 %v4515, 1.442695
    %v4540 = vpow.pop %v4539
    %v4541 = vmul.f32 %v4516, 1.442695
    %v4542 = vpow.pop %v4541
    %v4543 = vmul.f32 %v4517, 1.442695
    %v4544 = vpow.pop %v4543
    %v4545 = vmul.f32 %v4518, 1.442695
    %v4546 = vpow.pop %v4545
    %v4547 = vmul.f32 %v4519, 1.442695
    %v4548 = vpow.pop %v4547
    %v4549 = vmul.f32 %v4520, 1.442695
    %v4550 = vpow.pop %v4549
    %v4551 = vmul.f32 %v4521, 1.442695
    %v4552 = vpow.pop %v4551
    %v4553 = vmul.f32 %v4522, 1.442695
    %v4554 = vpow.pop %v4553
    %4571 = vset.pattern.permute.xlu0 0
    %4572 = vperm.xlu0 %4571, %v4524
    %v4573 = vpop.permute.xlu0 %4572
    %4574 = vset.pattern.permute.xlu0 0
    %4575 = vperm.xlu0 %4574, %v4526
    %v4576 = vpop.permute.xlu0 %4575
    %4577 = vset.pattern.permute.xlu0 0
    %4578 = vperm.xlu0 %4577, %v4528
    %v4579 = vpop.permute.xlu0 %4578
    %4580 = vset.pattern.permute.xlu0 0
    %4581 = vperm.xlu0 %4580, %v4530
    %v4582 = vpop.permute.xlu0 %4581
    %4583 = vset.pattern.permute.xlu0 0
    %4584 = vperm.xlu0 %4583, %v4532
    %v4585 = vpop.permute.xlu0 %4584
    %4586 = vset.pattern.permute.xlu0 0
    %4587 = vperm.xlu0 %4586, %v4534
    %v4588 = vpop.permute.xlu0 %4587
    %4589 = vset.pattern.permute.xlu0 0
    %4590 = vperm.xlu0 %4589, %v4536
    %v4591 = vpop.permute.xlu0 %4590
    %4592 = vset.pattern.permute.xlu0 0
    %4593 = vperm.xlu0 %4592, %v4538
    %v4594 = vpop.permute.xlu0 %4593
    %4595 = vset.pattern.permute.xlu0 0
    %4596 = vperm.xlu0 %4595, %v4540
    %v4597 = vpop.permute.xlu0 %4596
    %4598 = vset.pattern.permute.xlu0 0
    %4599 = vperm.xlu0 %4598, %v4542
    %v4600 = vpop.permute.xlu0 %4599
    %4601 = vset.pattern.permute.xlu0 0
    %4602 = vperm.xlu0 %4601, %v4544
    %v4603 = vpop.permute.xlu0 %4602
    %4604 = vset.pattern.permute.xlu0 0
    %4605 = vperm.xlu0 %4604, %v4546
    %v4606 = vpop.permute.xlu0 %4605
    %4607 = vset.pattern.permute.xlu0 0
    %4608 = vperm.xlu0 %4607, %v4548
    %v4609 = vpop.permute.xlu0 %4608
    %4610 = vset.pattern.permute.xlu0 0
    %4611 = vperm.xlu0 %4610, %v4550
    %v4612 = vpop.permute.xlu0 %4611
    %4613 = vset.pattern.permute.xlu0 0
    %4614 = vperm.xlu0 %4613, %v4552
    %v4615 = vpop.permute.xlu0 %4614
    %4616 = vset.pattern.permute.xlu0 0
    %4617 = vperm.xlu0 %4616, %v4554
    %v4618 = vpop.permute.xlu0 %4617
    %v4619 = vlaneseq
    %v4620 = vshrl.u32 %v4619, 7
    %v4621 = vsub.s32 %v646, %v4620
    %v4622 = vrot.slane %v4573, %v4621
    %v4623 = vlaneseq
    %v4624 = vshrl.u32 %v4623, 7
    %v4625 = vsub.s32 %v651, %v4624
    %v4626 = vrot.slane %v4576, %v4625
    %v4627 = vsel %vm656, %v4626, %v4622
    %v4628 = vlaneseq
    %v4629 = vshrl.u32 %v4628, 7
    %v4630 = vsub.s32 %v646, %v4629
    %v4631 = vrot.slane %v4579, %v4630
    %v4632 = vlaneseq
    %v4633 = vshrl.u32 %v4632, 7
    %v4634 = vsub.s32 %v651, %v4633
    %v4635 = vrot.slane %v4582, %v4634
    %v4636 = vsel %vm656, %v4635, %v4631
    %v4637 = vlaneseq
    %v4638 = vshrl.u32 %v4637, 7
    %v4639 = vsub.s32 %v646, %v4638
    %v4640 = vrot.slane %v4585, %v4639
    %v4641 = vlaneseq
    %v4642 = vshrl.u32 %v4641, 7
    %v4643 = vsub.s32 %v651, %v4642
    %v4644 = vrot.slane %v4588, %v4643
    %v4645 = vsel %vm656, %v4644, %v4640
    %v4646 = vlaneseq
    %v4647 = vshrl.u32 %v4646, 7
    %v4648 = vsub.s32 %v646, %v4647
    %v4649 = vrot.slane %v4591, %v4648
    %v4650 = vlaneseq
    %v4651 = vshrl.u32 %v4650, 7
    %v4652 = vsub.s32 %v651, %v4651
    %v4653 = vrot.slane %v4594, %v4652
    %v4654 = vsel %vm656, %v4653, %v4649
    %v4655 = vlaneseq
    %v4656 = vshrl.u32 %v4655, 7
    %v4657 = vsub.s32 %v646, %v4656
    %v4658 = vrot.slane %v4597, %v4657
    %v4659 = vlaneseq
    %v4660 = vshrl.u32 %v4659, 7
    %v4661 = vsub.s32 %v651, %v4660
    %v4662 = vrot.slane %v4600, %v4661
    %v4663 = vsel %vm656, %v4662, %v4658
    %v4664 = vlaneseq
    %v4665 = vshrl.u32 %v4664, 7
    %v4666 = vsub.s32 %v646, %v4665
    %v4667 = vrot.slane %v4603, %v4666
    %v4668 = vlaneseq
    %v4669 = vshrl.u32 %v4668, 7
    %v4670 = vsub.s32 %v651, %v4669
    %v4671 = vrot.slane %v4606, %v4670
    %v4672 = vsel %vm656, %v4671, %v4667
    %v4673 = vlaneseq
    %v4674 = vshrl.u32 %v4673, 7
    %v4675 = vsub.s32 %v646, %v4674
    %v4676 = vrot.slane %v4609, %v4675
    %v4677 = vlaneseq
    %v4678 = vshrl.u32 %v4677, 7
    %v4679 = vsub.s32 %v651, %v4678
    %v4680 = vrot.slane %v4612, %v4679
    %v4681 = vsel %vm656, %v4680, %v4676
    %v4682 = vlaneseq
    %v4683 = vshrl.u32 %v4682, 7
    %v4684 = vsub.s32 %v646, %v4683
    %v4685 = vrot.slane %v4615, %v4684
    %v4686 = vlaneseq
    %v4687 = vshrl.u32 %v4686, 7
    %v4688 = vsub.s32 %v651, %v4687
    %v4689 = vrot.slane %v4618, %v4688
    %v4690 = vsel %vm656, %v4689, %v4685
    %v4691 = vsel %vm721, %v4636, %v4627
    %v4692 = vsel %vm723, %v4645, %v4691
    %v4693 = vsel %vm725, %v4654, %v4692
    %v4694 = vsel %vm727, %v4663, %v4693
    %v4695 = vsel %vm729, %v4672, %v4694
    %v4696 = vsel %vm731, %v4681, %v4695
    %v4697 = vsel %vm733, %v4690, %v4696
    %v4699 = vsel %vm736, %v4697, 0.0
    %4700 = vadd.xlane.f32.xlu0 %v4699
    %v4701 = vpop.xlane.xlu0 %4700
    %v4702 = vrcp.pop %v4701
    %v4704 = vlaneseq
    %v4705 = vshrl.u32 %v4704, 7
    %v4706 = vsub.s32 0, %v4705
    %v4707 = vrot.slane %v4702, %v4706
    %v4708 = vlaneseq
    %v4709 = vshrl.u32 %v4708, 7
    %v4710 = vsub.s32 1, %v4709
    %v4711 = vrot.slane %v4702, %v4710
    %v4712 = vlaneseq
    %v4713 = vshrl.u32 %v4712, 7
    %v4714 = vsub.s32 2, %v4713
    %v4715 = vrot.slane %v4702, %v4714
    %v4716 = vlaneseq
    %v4717 = vshrl.u32 %v4716, 7
    %v4718 = vsub.s32 3, %v4717
    %v4719 = vrot.slane %v4702, %v4718
    %v4720 = vlaneseq
    %v4721 = vshrl.u32 %v4720, 7
    %v4722 = vsub.s32 4, %v4721
    %v4723 = vrot.slane %v4702, %v4722
    %v4724 = vlaneseq
    %v4725 = vshrl.u32 %v4724, 7
    %v4726 = vsub.s32 5, %v4725
    %v4727 = vrot.slane %v4702, %v4726
    %v4728 = vlaneseq
    %v4729 = vshrl.u32 %v4728, 7
    %v4730 = vsub.s32 6, %v4729
    %v4731 = vrot.slane %v4702, %v4730
    %v4732 = vlaneseq
    %v4733 = vshrl.u32 %v4732, 7
    %v4734 = vsub.s32 7, %v4733
    %v4735 = vrot.slane %v4702, %v4734
    %v4744 = vmul.f32 %v4524, %v4707
    %v4745 = vmul.f32 %v4526, %v4707
    %v4746 = vmul.f32 %v4528, %v4711
    %v4747 = vmul.f32 %v4530, %v4711
    %v4748 = vmul.f32 %v4532, %v4715
    %v4749 = vmul.f32 %v4534, %v4715
    %v4750 = vmul.f32 %v4536, %v4719
    %v4751 = vmul.f32 %v4538, %v4719
    %v4752 = vmul.f32 %v4540, %v4723
    %v4753 = vmul.f32 %v4542, %v4723
    %v4754 = vmul.f32 %v4544, %v4727
    %v4755 = vmul.f32 %v4546, %v4727
    %v4756 = vmul.f32 %v4548, %v4731
    %v4757 = vmul.f32 %v4550, %v4731
    %v4758 = vmul.f32 %v4552, %v4735
    %v4759 = vmul.f32 %v4554, %v4735
    %4761 = vset.pattern.permute.xlu0 0
    %4762 = vperm.xlu0 %4761, %v4744
    %v4763 = vpop.permute.xlu0 %4762
    %4766 = vset.pattern.permute.xlu0 0
    %4767 = vperm.xlu0 %4766, %v4745
    %v4768 = vpop.permute.xlu0 %4767
    %4771 = vset.pattern.permute.xlu0 0
    %4772 = vperm.xlu0 %4771, %v4746
    %v4773 = vpop.permute.xlu0 %4772
    %4776 = vset.pattern.permute.xlu0 0
    %4777 = vperm.xlu0 %4776, %v4747
    %v4778 = vpop.permute.xlu0 %4777
    %4781 = vset.pattern.permute.xlu0 0
    %4782 = vperm.xlu0 %4781, %v4748
    %v4783 = vpop.permute.xlu0 %4782
    %4786 = vset.pattern.permute.xlu0 0
    %4787 = vperm.xlu0 %4786, %v4749
    %v4788 = vpop.permute.xlu0 %4787
    %4791 = vset.pattern.permute.xlu0 0
    %4792 = vperm.xlu0 %4791, %v4750
    %v4793 = vpop.permute.xlu0 %4792
    %4796 = vset.pattern.permute.xlu0 0
    %4797 = vperm.xlu0 %4796, %v4751
    %v4798 = vpop.permute.xlu0 %4797
    %4801 = vset.pattern.permute.xlu0 0
    %4802 = vperm.xlu0 %4801, %v4752
    %v4803 = vpop.permute.xlu0 %4802
    %4806 = vset.pattern.permute.xlu0 0
    %4807 = vperm.xlu0 %4806, %v4753
    %v4808 = vpop.permute.xlu0 %4807
    %4811 = vset.pattern.permute.xlu0 0
    %4812 = vperm.xlu0 %4811, %v4754
    %v4813 = vpop.permute.xlu0 %4812
    %4816 = vset.pattern.permute.xlu0 0
    %4817 = vperm.xlu0 %4816, %v4755
    %v4818 = vpop.permute.xlu0 %4817
    %4821 = vset.pattern.permute.xlu0 0
    %4822 = vperm.xlu0 %4821, %v4756
    %v4823 = vpop.permute.xlu0 %4822
    %4826 = vset.pattern.permute.xlu0 0
    %4827 = vperm.xlu0 %4826, %v4757
    %v4828 = vpop.permute.xlu0 %4827
    %4831 = vset.pattern.permute.xlu0 0
    %4832 = vperm.xlu0 %4831, %v4758
    %v4833 = vpop.permute.xlu0 %4832
    %4836 = vset.pattern.permute.xlu0 0
    %4837 = vperm.xlu0 %4836, %v4759
    %v4838 = vpop.permute.xlu0 %4837
    %v4840 = vmul.f32 %v4763, %v102
    %v4841 = vmul.f32 %v4768, %v103
    %v4842 = vmul.f32 %v4773, %v104
    %v4843 = vmul.f32 %v4778, %v105
    %v4844 = vmul.f32 %v4783, %v106
    %v4845 = vmul.f32 %v4788, %v107
    %v4846 = vmul.f32 %v4793, %v108
    %v4847 = vmul.f32 %v4798, %v109
    %v4848 = vmul.f32 %v4803, %v110
    %v4849 = vmul.f32 %v4808, %v111
    %v4850 = vmul.f32 %v4813, %v112
    %v4851 = vmul.f32 %v4818, %v113
    %v4852 = vmul.f32 %v4823, %v114
    %v4853 = vmul.f32 %v4828, %v115
    %v4854 = vmul.f32 %v4833, %v116
    %v4855 = vmul.f32 %v4838, %v117
    %v4856 = vsel %vm185, %v4840, 0.0
    %v4857 = vsel %vm583, %v4841, 0.0
    %v4858 = vadd.f32 %v4856, %v4857
    %v4859 = vrot.slane %v4858, 4
    %v4860 = vadd.f32 %v4858, %v4859
    %v4861 = vrot.slane %v4860, 2
    %v4862 = vadd.f32 %v4860, %v4861
    %v4863 = vrot.slane %v4862, 1
    %v4864 = vadd.f32 %v4862, %v4863
    %v4865 = vsel %vm185, %v4842, 0.0
    %v4866 = vsel %vm583, %v4843, 0.0
    %v4867 = vadd.f32 %v4865, %v4866
    %v4868 = vrot.slane %v4867, 4
    %v4869 = vadd.f32 %v4867, %v4868
    %v4870 = vrot.slane %v4869, 2
    %v4871 = vadd.f32 %v4869, %v4870
    %v4872 = vrot.slane %v4871, 1
    %v4873 = vadd.f32 %v4871, %v4872
    %v4874 = vsel %vm185, %v4844, 0.0
    %v4875 = vsel %vm583, %v4845, 0.0
    %v4876 = vadd.f32 %v4874, %v4875
    %v4877 = vrot.slane %v4876, 4
    %v4878 = vadd.f32 %v4876, %v4877
    %v4879 = vrot.slane %v4878, 2
    %v4880 = vadd.f32 %v4878, %v4879
    %v4881 = vrot.slane %v4880, 1
    %v4882 = vadd.f32 %v4880, %v4881
    %v4883 = vsel %vm185, %v4846, 0.0
    %v4884 = vsel %vm583, %v4847, 0.0
    %v4885 = vadd.f32 %v4883, %v4884
    %v4886 = vrot.slane %v4885, 4
    %v4887 = vadd.f32 %v4885, %v4886
    %v4888 = vrot.slane %v4887, 2
    %v4889 = vadd.f32 %v4887, %v4888
    %v4890 = vrot.slane %v4889, 1
    %v4891 = vadd.f32 %v4889, %v4890
    %v4892 = vsel %vm185, %v4848, 0.0
    %v4893 = vsel %vm583, %v4849, 0.0
    %v4894 = vadd.f32 %v4892, %v4893
    %v4895 = vrot.slane %v4894, 4
    %v4896 = vadd.f32 %v4894, %v4895
    %v4897 = vrot.slane %v4896, 2
    %v4898 = vadd.f32 %v4896, %v4897
    %v4899 = vrot.slane %v4898, 1
    %v4900 = vadd.f32 %v4898, %v4899
    %v4901 = vsel %vm185, %v4850, 0.0
    %v4902 = vsel %vm583, %v4851, 0.0
    %v4903 = vadd.f32 %v4901, %v4902
    %v4904 = vrot.slane %v4903, 4
    %v4905 = vadd.f32 %v4903, %v4904
    %v4906 = vrot.slane %v4905, 2
    %v4907 = vadd.f32 %v4905, %v4906
    %v4908 = vrot.slane %v4907, 1
    %v4909 = vadd.f32 %v4907, %v4908
    %v4910 = vsel %vm185, %v4852, 0.0
    %v4911 = vsel %vm583, %v4853, 0.0
    %v4912 = vadd.f32 %v4910, %v4911
    %v4913 = vrot.slane %v4912, 4
    %v4914 = vadd.f32 %v4912, %v4913
    %v4915 = vrot.slane %v4914, 2
    %v4916 = vadd.f32 %v4914, %v4915
    %v4917 = vrot.slane %v4916, 1
    %v4918 = vadd.f32 %v4916, %v4917
    %v4919 = vsel %vm185, %v4854, 0.0
    %v4920 = vsel %vm583, %v4855, 0.0
    %v4921 = vadd.f32 %v4919, %v4920
    %v4922 = vrot.slane %v4921, 4
    %v4923 = vadd.f32 %v4921, %v4922
    %v4924 = vrot.slane %v4923, 2
    %v4925 = vadd.f32 %v4923, %v4924
    %v4926 = vrot.slane %v4925, 1
    %v4927 = vadd.f32 %v4925, %v4926
    %4928 = vmatprep.subr.mxu0 0.0
    %4929 = vmatpush1.msra.mxu0 %v163
    %4930 = vmatprep.subr.mxu0 0.0
    %4931 = vmatpush1.msra.mxu0 %v164
    %4932 = vmatprep.subr.mxu0 0.0
    %4933 = vmatpush1.msra.mxu0 %v165
    %4934 = vmatprep.subr.mxu0 0.0
    %4935 = vmatpush1.msra.mxu0 %v166
    %4936 = vmatprep.subr.mxu0 0.0
    %4937 = vmatpush1.msra.mxu0 0.0
    %4938 = vmatprep.subr.mxu0 0.0
    %4939 = vmatpush1.msra.mxu0 0.0
    %4940 = vmatprep.subr.mxu0 0.0
    %4941 = vmatpush1.msra.mxu0 0.0
    %4942 = vmatprep.subr.mxu0 0.0
    %4943 = vmatpush1.msra.mxu0 0.0
    %4944 = vmatprep.subr.mxu0 0.0
    %4945 = vmatpush1.msra.mxu0 0.0
    %4946 = vmatprep.subr.mxu0 0.0
    %4947 = vmatpush1.msra.mxu0 0.0
    %4948 = vmatprep.subr.mxu0 0.0
    %4949 = vmatpush1.msra.mxu0 0.0
    %4950 = vmatprep.subr.mxu0 0.0
    %4951 = vmatpush1.msra.mxu0 0.0
    %4952 = vmatprep.subr.mxu0 0.0
    %4953 = vmatpush1.msra.mxu0 0.0
    %4954 = vmatprep.subr.mxu0 0.0
    %4955 = vmatpush1.msra.mxu0 0.0
    %4956 = vmatprep.subr.mxu0 0.0
    %4957 = vmatpush1.msra.mxu0 0.0
    %4958 = vmatprep.subr.mxu0 0.0
    %4959 = vmatpush1.msra.mxu0 0.0
    %4960 = vmatprep.subr.mxu0 0.0
    %4961 = vmatpush1.msra.mxu0 0.0
    %4962 = vmatprep.subr.mxu0 0.0
    %4963 = vmatpush1.msra.mxu0 0.0
    %4964 = vmatprep.subr.mxu0 0.0
    %4965 = vmatpush1.msra.mxu0 0.0
    %4966 = vmatprep.subr.mxu0 0.0
    %4967 = vmatpush1.msra.mxu0 0.0
    %4968 = vmatprep.subr.mxu0 0.0
    %4969 = vmatpush1.msra.mxu0 0.0
    %4970 = vmatprep.subr.mxu0 0.0
    %4971 = vmatpush1.msra.mxu0 0.0
    %4972 = vmatprep.subr.mxu0 0.0
    %4973 = vmatpush1.msra.mxu0 0.0
    %4974 = vmatprep.subr.mxu0 0.0
    %4975 = vmatpush1.msra.mxu0 0.0
    %4976 = vmatprep.subr.mxu0 0.0
    %4977 = vmatpush1.msra.mxu0 0.0
    %4978 = vmatprep.subr.mxu0 0.0
    %4979 = vmatpush1.msra.mxu0 0.0
    %4980 = vmatprep.subr.mxu0 0.0
    %4981 = vmatpush1.msra.mxu0 0.0
    %4982 = vmatprep.subr.mxu0 0.0
    %4983 = vmatpush1.msra.mxu0 0.0
    %4984 = vmatprep.subr.mxu0 0.0
    %4985 = vmatpush1.msra.mxu0 0.0
    %4986 = vmatprep.subr.mxu0 0.0
    %4987 = vmatpush1.msra.mxu0 0.0
    %4988 = vmatprep.subr.mxu0 0.0
    %4989 = vmatpush1.msra.mxu0 0.0
    %4990 = vmatprep.subr.mxu0 0.0
    %4991 = vmatpush1.msra.mxu0 0.0
    %4992 = vmatprep.mubr.f32.mxu0 0.0
    %4993 = vmatmul.mubr.f32.gmra.mrb[0].mxu0 %v4141
    %v4994 = vpop.f32.mrb[0].mxu0
    %v4995 = vadd.f32 0.0, %v4994
    %v4996 = vpop.f32.mrb[0].mxu0
    %4997 = vdwg.mxu0
    %v5006 = vsel %vm721, %v4873, %v4864
    %v5007 = vsel %vm723, %v4882, %v5006
    %v5008 = vsel %vm725, %v4891, %v5007
    %v5009 = vsel %vm727, %v4900, %v5008
    %v5010 = vsel %vm729, %v4909, %v5009
    %v5011 = vsel %vm731, %v4918, %v5010
    %v5012 = vsel %vm733, %v4927, %v5011
    %v5013 = vsel %vm185, %v5012, 0
    %5015 = vmatprep.subr.mxu0 0.0
    %5016 = vmatpush1.msra.mxu0 %v159
    %5017 = vmatprep.subr.mxu0 0.0
    %5018 = vmatpush1.msra.mxu0 %v160
    %5019 = vmatprep.subr.mxu0 0.0
    %5020 = vmatpush1.msra.mxu0 %v161
    %5021 = vmatprep.subr.mxu0 0.0
    %5022 = vmatpush1.msra.mxu0 %v162
    %5023 = vmatprep.subr.mxu0 0.0
    %5024 = vmatpush1.msra.mxu0 0.0
    %5025 = vmatprep.subr.mxu0 0.0
    %5026 = vmatpush1.msra.mxu0 0.0
    %5027 = vmatprep.subr.mxu0 0.0
    %5028 = vmatpush1.msra.mxu0 0.0
    %5029 = vmatprep.subr.mxu0 0.0
    %5030 = vmatpush1.msra.mxu0 0.0
    %5031 = vmatprep.subr.mxu0 0.0
    %5032 = vmatpush1.msra.mxu0 0.0
    %5033 = vmatprep.subr.mxu0 0.0
    %5034 = vmatpush1.msra.mxu0 0.0
    %5035 = vmatprep.subr.mxu0 0.0
    %5036 = vmatpush1.msra.mxu0 0.0
    %5037 = vmatprep.subr.mxu0 0.0
    %5038 = vmatpush1.msra.mxu0 0.0
    %5039 = vmatprep.subr.mxu0 0.0
    %5040 = vmatpush1.msra.mxu0 0.0
    %5041 = vmatprep.subr.mxu0 0.0
    %5042 = vmatpush1.msra.mxu0 0.0
    %5043 = vmatprep.subr.mxu0 0.0
    %5044 = vmatpush1.msra.mxu0 0.0
    %5045 = vmatprep.subr.mxu0 0.0
    %5046 = vmatpush1.msra.mxu0 0.0
    %5047 = vmatprep.subr.mxu0 0.0
    %5048 = vmatpush1.msra.mxu0 0.0
    %5049 = vmatprep.subr.mxu0 0.0
    %5050 = vmatpush1.msra.mxu0 0.0
    %5051 = vmatprep.subr.mxu0 0.0
    %5052 = vmatpush1.msra.mxu0 0.0
    %5053 = vmatprep.subr.mxu0 0.0
    %5054 = vmatpush1.msra.mxu0 0.0
    %5055 = vmatprep.subr.mxu0 0.0
    %5056 = vmatpush1.msra.mxu0 0.0
    %5057 = vmatprep.subr.mxu0 0.0
    %5058 = vmatpush1.msra.mxu0 0.0
    %5059 = vmatprep.subr.mxu0 0.0
    %5060 = vmatpush1.msra.mxu0 0.0
    %5061 = vmatprep.subr.mxu0 0.0
    %5062 = vmatpush1.msra.mxu0 0.0
    %5063 = vmatprep.subr.mxu0 0.0
    %5064 = vmatpush1.msra.mxu0 0.0
    %5065 = vmatprep.subr.mxu0 0.0
    %5066 = vmatpush1.msra.mxu0 0.0
    %5067 = vmatprep.subr.mxu0 0.0
    %5068 = vmatpush1.msra.mxu0 0.0
    %5069 = vmatprep.subr.mxu0 0.0
    %5070 = vmatpush1.msra.mxu0 0.0
    %5071 = vmatprep.subr.mxu0 0.0
    %5072 = vmatpush1.msra.mxu0 0.0
    %5073 = vmatprep.subr.mxu0 0.0
    %5074 = vmatpush1.msra.mxu0 0.0
    %5075 = vmatprep.subr.mxu0 0.0
    %5076 = vmatpush1.msra.mxu0 0.0
    %5077 = vmatprep.subr.mxu0 0.0
    %5078 = vmatpush1.msra.mxu0 0.0
    %5079 = vmatprep.mubr.f32.mxu0 0.0
    %5080 = vmatmul.mubr.f32.gmra.mrb[0].mxu0 %v5013
    %v5081 = vpop.f32.mrb[0].mxu0
    %v5082 = vadd.f32 %v4995, %v5081
    %v5083 = vpop.f32.mrb[0].mxu0
    %5084 = vdwg.mxu0
    %v5085 = vadd.f32 %v5082, %v172
    %v5086 = vtanh.pop %v5085
    %v5087 = vlaneseq
    %v5088 = vshrl.u32 %v5087, 7
    %v5089 = vsub.s32 %v1361, %v5088
    %v5090 = vrot.slane %v4763, %v5089
    %v5091 = vlaneseq
    %v5092 = vshrl.u32 %v5091, 7
    %v5093 = vsub.s32 %v1366, %v5092
    %v5094 = vrot.slane %v4768, %v5093
    %v5095 = vsel %vm1371, %v5094, %v5090
    %v5096 = vlaneseq
    %v5097 = vshrl.u32 %v5096, 7
    %v5098 = vsub.s32 %v1361, %v5097
    %v5099 = vrot.slane %v4773, %v5098
    %v5100 = vlaneseq
    %v5101 = vshrl.u32 %v5100, 7
    %v5102 = vsub.s32 %v1366, %v5101
    %v5103 = vrot.slane %v4778, %v5102
    %v5104 = vsel %vm1371, %v5103, %v5099
    %v5105 = vlaneseq
    %v5106 = vshrl.u32 %v5105, 7
    %v5107 = vsub.s32 %v1361, %v5106
    %v5108 = vrot.slane %v4783, %v5107
    %v5109 = vlaneseq
    %v5110 = vshrl.u32 %v5109, 7
    %v5111 = vsub.s32 %v1366, %v5110
    %v5112 = vrot.slane %v4788, %v5111
    %v5113 = vsel %vm1371, %v5112, %v5108
    %v5114 = vlaneseq
    %v5115 = vshrl.u32 %v5114, 7
    %v5116 = vsub.s32 %v1361, %v5115
    %v5117 = vrot.slane %v4793, %v5116
    %v5118 = vlaneseq
    %v5119 = vshrl.u32 %v5118, 7
    %v5120 = vsub.s32 %v1366, %v5119
    %v5121 = vrot.slane %v4798, %v5120
    %v5122 = vsel %vm1371, %v5121, %v5117
    %v5123 = vlaneseq
    %v5124 = vshrl.u32 %v5123, 7
    %v5125 = vsub.s32 %v1361, %v5124
    %v5126 = vrot.slane %v4803, %v5125
    %v5127 = vlaneseq
    %v5128 = vshrl.u32 %v5127, 7
    %v5129 = vsub.s32 %v1366, %v5128
    %v5130 = vrot.slane %v4808, %v5129
    %v5131 = vsel %vm1371, %v5130, %v5126
    %v5132 = vlaneseq
    %v5133 = vshrl.u32 %v5132, 7
    %v5134 = vsub.s32 %v1361, %v5133
    %v5135 = vrot.slane %v4813, %v5134
    %v5136 = vlaneseq
    %v5137 = vshrl.u32 %v5136, 7
    %v5138 = vsub.s32 %v1366, %v5137
    %v5139 = vrot.slane %v4818, %v5138
    %v5140 = vsel %vm1371, %v5139, %v5135
    %v5141 = vlaneseq
    %v5142 = vshrl.u32 %v5141, 7
    %v5143 = vsub.s32 %v1361, %v5142
    %v5144 = vrot.slane %v4823, %v5143
    %v5145 = vlaneseq
    %v5146 = vshrl.u32 %v5145, 7
    %v5147 = vsub.s32 %v1366, %v5146
    %v5148 = vrot.slane %v4828, %v5147
    %v5149 = vsel %vm1371, %v5148, %v5144
    %v5150 = vlaneseq
    %v5151 = vshrl.u32 %v5150, 7
    %v5152 = vsub.s32 %v1361, %v5151
    %v5153 = vrot.slane %v4833, %v5152
    %v5154 = vlaneseq
    %v5155 = vshrl.u32 %v5154, 7
    %v5156 = vsub.s32 %v1366, %v5155
    %v5157 = vrot.slane %v4838, %v5156
    %v5158 = vsel %vm1371, %v5157, %v5153
    %v5159 = vsel %vm721, %v5104, %v5095
    %v5160 = vsel %vm723, %v5113, %v5159
    %v5161 = vsel %vm725, %v5122, %v5160
    %v5162 = vsel %vm727, %v5131, %v5161
    %v5163 = vsel %vm729, %v5140, %v5162
    %v5164 = vsel %vm731, %v5149, %v5163
    %v5165 = vsel %vm733, %v5158, %v5164
    %v5167 = vsel %vm185, %v5086, %v5165
    %v5168 = vsel %vm1445, %v5167, 0.0
    %s5169 = scalar_lea.vmem [#allocation10], 24
    %5170 = vst [vmem:[%s5169] sm:$0xff] %v5168
    %s5171 = scalar_lea.vmem %s0, 32
    %v5172 = vld [vmem:[%s5171] sm:$0xff]
    %5173 = vrot.lane.b32.xlu0 %v4032, 64
    %v5174 = vpop.permute.xlu0 %5173
    %v5176 = vsel %vm185, %v5172, %v5174
    %v5178 = vsel %vm187, %v5176, 0
    %5180 = vmatprep.subr.mxu0 0.0
    %5181 = vmatpush1.msra.mxu0 %v118
    %5182 = vmatprep.subr.mxu0 0.0
    %5183 = vmatpush1.msra.mxu0 %v119
    %5184 = vmatprep.subr.mxu0 0.0
    %5185 = vmatpush1.msra.mxu0 %v120
    %5186 = vmatprep.subr.mxu0 0.0
    %5187 = vmatpush1.msra.mxu0 %v121
    %5188 = vmatprep.subr.mxu0 0.0
    %5189 = vmatpush1.msra.mxu0 %v122
    %5190 = vmatprep.subr.mxu0 0.0
    %5191 = vmatpush1.msra.mxu0 %v123
    %5192 = vmatprep.subr.mxu0 0.0
    %5193 = vmatpush1.msra.mxu0 %v124
    %5194 = vmatprep.subr.mxu0 0.0
    %5195 = vmatpush1.msra.mxu0 %v125
    %5196 = vmatprep.subr.mxu0 0.0
    %5197 = vmatpush1.msra.mxu0 0.0
    %5198 = vmatprep.subr.mxu0 0.0
    %5199 = vmatpush1.msra.mxu0 0.0
    %5200 = vmatprep.subr.mxu0 0.0
    %5201 = vmatpush1.msra.mxu0 0.0
    %5202 = vmatprep.subr.mxu0 0.0
    %5203 = vmatpush1.msra.mxu0 0.0
    %5204 = vmatprep.subr.mxu0 0.0
    %5205 = vmatpush1.msra.mxu0 0.0
    %5206 = vmatprep.subr.mxu0 0.0
    %5207 = vmatpush1.msra.mxu0 0.0
    %5208 = vmatprep.subr.mxu0 0.0
    %5209 = vmatpush1.msra.mxu0 0.0
    %5210 = vmatprep.subr.mxu0 0.0
    %5211 = vmatpush1.msra.mxu0 0.0
    %5212 = vmatprep.subr.mxu0 0.0
    %5213 = vmatpush1.msra.mxu0 0.0
    %5214 = vmatprep.subr.mxu0 0.0
    %5215 = vmatpush1.msra.mxu0 0.0
    %5216 = vmatprep.subr.mxu0 0.0
    %5217 = vmatpush1.msra.mxu0 0.0
    %5218 = vmatprep.subr.mxu0 0.0
    %5219 = vmatpush1.msra.mxu0 0.0
    %5220 = vmatprep.subr.mxu0 0.0
    %5221 = vmatpush1.msra.mxu0 0.0
    %5222 = vmatprep.subr.mxu0 0.0
    %5223 = vmatpush1.msra.mxu0 0.0
    %5224 = vmatprep.subr.mxu0 0.0
    %5225 = vmatpush1.msra.mxu0 0.0
    %5226 = vmatprep.subr.mxu0 0.0
    %5227 = vmatpush1.msra.mxu0 0.0
    %5228 = vmatprep.subr.mxu0 0.0
    %5229 = vmatpush1.msra.mxu0 0.0
    %5230 = vmatprep.subr.mxu0 0.0
    %5231 = vmatpush1.msra.mxu0 0.0
    %5232 = vmatprep.subr.mxu0 0.0
    %5233 = vmatpush1.msra.mxu0 0.0
    %5234 = vmatprep.subr.mxu0 0.0
    %5235 = vmatpush1.msra.mxu0 0.0
    %5236 = vmatprep.subr.mxu0 0.0
    %5237 = vmatpush1.msra.mxu0 0.0
    %5238 = vmatprep.subr.mxu0 0.0
    %5239 = vmatpush1.msra.mxu0 0.0
    %5240 = vmatprep.subr.mxu0 0.0
    %5241 = vmatpush1.msra.mxu0 0.0
    %5242 = vmatprep.subr.mxu0 0.0
    %5243 = vmatpush1.msra.mxu0 0.0
    %5244 = vmatprep.mubr.f32.mxu0 0.0
    %5245 = vmatmul.mubr.f32.gmra.mrb[0].mxu0 %v5178
    %v5246 = vpop.f32.mrb[0].mxu0
    %v5247 = vadd.f32 %v139, %v5246
    %v5248 = vpop.f32.mrb[0].mxu0
    %5249 = vdwg.mxu0
    %v5250 = vxor.u32 %v5247, 2147483648
    %v5251 = vmul.f32 %v5250, 1.442695
    %v5252 = vpow.pop %v5251
    %v5253 = vadd.f32 %v5252, 1.0
    %v5254 = vrcp.pop %v5253
    %v5255 = vmul.f32 1.0, %v5254
    %v5256 = vtanh.pop %v5247
    %v5257 = vmul.f32 %v5255, %v4026
    %5259 = vrot.lane.b32.xlu0 %v5256, 64
    %v5260 = vpop.permute.xlu0 %5259
    %v5262 = vmul.f32 %v5255, %v5260
    %5264 = vrot.lane.b32.xlu0 %v5262, 32
    %v5265 = vpop.permute.xlu0 %5264
    %v5267 = vadd.f32 %v5257, %v5265
    %v5268 = vtanh.pop %v5267
    %5270 = vrot.lane.b32.xlu0 %v5268, 64
    %v5271 = vpop.permute.xlu0 %5270
    %v5273 = vmul.f32 %v5255, %v5271
    %5275 = vrot.lane.b32.xlu0 %v5273, 32
    %v5276 = vpop.permute.xlu0 %5275
    %5278 = vrot.lane.b32.xlu0 %v4137, 64
    %v5279 = vpop.permute.xlu0 %5278
    %v5281 = vsel %vm185, %v5276, %v5279
    %v5283 = vsel %vm187, %v5281, 0
    %5285 = vmatprep.subr.mxu0 0.0
    %5286 = vmatpush1.msra.mxu0 %v126
    %5287 = vmatprep.subr.mxu0 0.0
    %5288 = vmatpush1.msra.mxu0 %v127
    %5289 = vmatprep.subr.mxu0 0.0
    %5290 = vmatpush1.msra.mxu0 %v128
    %5291 = vmatprep.subr.mxu0 0.0
    %5292 = vmatpush1.msra.mxu0 %v129
    %5293 = vmatprep.subr.mxu0 0.0
    %5294 = vmatpush1.msra.mxu0 %v130
    %5295 = vmatprep.subr.mxu0 0.0
    %5296 = vmatpush1.msra.mxu0 %v131
    %5297 = vmatprep.subr.mxu0 0.0
    %5298 = vmatpush1.msra.mxu0 %v132
    %5299 = vmatprep.subr.mxu0 0.0
    %5300 = vmatpush1.msra.mxu0 %v133
    %5301 = vmatprep.subr.mxu0 0.0
    %5302 = vmatpush1.msra.mxu0 0.0
    %5303 = vmatprep.subr.mxu0 0.0
    %5304 = vmatpush1.msra.mxu0 0.0
    %5305 = vmatprep.subr.mxu0 0.0
    %5306 = vmatpush1.msra.mxu0 0.0
    %5307 = vmatprep.subr.mxu0 0.0
    %5308 = vmatpush1.msra.mxu0 0.0
    %5309 = vmatprep.subr.mxu0 0.0
    %5310 = vmatpush1.msra.mxu0 0.0
    %5311 = vmatprep.subr.mxu0 0.0
    %5312 = vmatpush1.msra.mxu0 0.0
    %5313 = vmatprep.subr.mxu0 0.0
    %5314 = vmatpush1.msra.mxu0 0.0
    %5315 = vmatprep.subr.mxu0 0.0
    %5316 = vmatpush1.msra.mxu0 0.0
    %5317 = vmatprep.subr.mxu0 0.0
    %5318 = vmatpush1.msra.mxu0 0.0
    %5319 = vmatprep.subr.mxu0 0.0
    %5320 = vmatpush1.msra.mxu0 0.0
    %5321 = vmatprep.subr.mxu0 0.0
    %5322 = vmatpush1.msra.mxu0 0.0
    %5323 = vmatprep.subr.mxu0 0.0
    %5324 = vmatpush1.msra.mxu0 0.0
    %5325 = vmatprep.subr.mxu0 0.0
    %5326 = vmatpush1.msra.mxu0 0.0
    %5327 = vmatprep.subr.mxu0 0.0
    %5328 = vmatpush1.msra.mxu0 0.0
    %5329 = vmatprep.subr.mxu0 0.0
    %5330 = vmatpush1.msra.mxu0 0.0
    %5331 = vmatprep.subr.mxu0 0.0
    %5332 = vmatpush1.msra.mxu0 0.0
    %5333 = vmatprep.subr.mxu0 0.0
    %5334 = vmatpush1.msra.mxu0 0.0
    %5335 = vmatprep.subr.mxu0 0.0
    %5336 = vmatpush1.msra.mxu0 0.0
    %5337 = vmatprep.subr.mxu0 0.0
    %5338 = vmatpush1.msra.mxu0 0.0
    %5339 = vmatprep.subr.mxu0 0.0
    %5340 = vmatpush1.msra.mxu0 0.0
    %5341 = vmatprep.subr.mxu0 0.0
    %5342 = vmatpush1.msra.mxu0 0.0
    %5343 = vmatprep.subr.mxu0 0.0
    %5344 = vmatpush1.msra.mxu0 0.0
    %5345 = vmatprep.subr.mxu0 0.0
    %5346 = vmatpush1.msra.mxu0 0.0
    %5347 = vmatprep.subr.mxu0 0.0
    %5348 = vmatpush1.msra.mxu0 0.0
    %5349 = vmatprep.mubr.f32.mxu0 0.0
    %5350 = vmatmul.mubr.f32.gmra.mrb[0].mxu0 %v5283
    %v5351 = vpop.f32.mrb[0].mxu0
    %v5352 = vadd.f32 %v146, %v5351
    %v5353 = vpop.f32.mrb[0].mxu0
    %5354 = vdwg.mxu0
    %v5355 = vxor.u32 %v5352, 2147483648
    %v5356 = vmul.f32 %v5355, 1.442695
    %v5357 = vpow.pop %v5356
    %v5358 = vadd.f32 %v5357, 1.0
    %v5359 = vrcp.pop %v5358
    %v5360 = vmul.f32 1.0, %v5359
    %v5361 = vtanh.pop %v5352
    %v5362 = vmul.f32 %v5360, %v4131
    %5364 = vrot.lane.b32.xlu0 %v5361, 64
    %v5365 = vpop.permute.xlu0 %5364
    %v5367 = vmul.f32 %v5360, %v5365
    %5369 = vrot.lane.b32.xlu0 %v5367, 32
    %v5370 = vpop.permute.xlu0 %5369
    %v5372 = vadd.f32 %v5362, %v5370
    %v5373 = vtanh.pop %v5372
    %5375 = vrot.lane.b32.xlu0 %v5373, 64
    %v5376 = vpop.permute.xlu0 %5375
    %v5378 = vmul.f32 %v5360, %v5376
    %5380 = vrot.lane.b32.xlu0 %v5378, 32
    %v5381 = vpop.permute.xlu0 %5380
    %v5382 = vsel %vm185, %v5381, 0
    %5384 = vmatprep.subr.mxu0 0.0
    %5385 = vmatpush1.msra.mxu0 %v148
    %5386 = vmatprep.subr.mxu0 0.0
    %5387 = vmatpush1.msra.mxu0 %v149
    %5388 = vmatprep.subr.mxu0 0.0
    %5389 = vmatpush1.msra.mxu0 %v150
    %5390 = vmatprep.subr.mxu0 0.0
    %5391 = vmatpush1.msra.mxu0 %v151
    %5392 = vmatprep.subr.mxu0 0.0
    %5393 = vmatpush1.msra.mxu0 0.0
    %5394 = vmatprep.subr.mxu0 0.0
    %5395 = vmatpush1.msra.mxu0 0.0
    %5396 = vmatprep.subr.mxu0 0.0
    %5397 = vmatpush1.msra.mxu0 0.0
    %5398 = vmatprep.subr.mxu0 0.0
    %5399 = vmatpush1.msra.mxu0 0.0
    %5400 = vmatprep.subr.mxu0 0.0
    %5401 = vmatpush1.msra.mxu0 0.0
    %5402 = vmatprep.subr.mxu0 0.0
    %5403 = vmatpush1.msra.mxu0 0.0
    %5404 = vmatprep.subr.mxu0 0.0
    %5405 = vmatpush1.msra.mxu0 0.0
    %5406 = vmatprep.subr.mxu0 0.0
    %5407 = vmatpush1.msra.mxu0 0.0
    %5408 = vmatprep.subr.mxu0 0.0
    %5409 = vmatpush1.msra.mxu0 0.0
    %5410 = vmatprep.subr.mxu0 0.0
    %5411 = vmatpush1.msra.mxu0 0.0
    %5412 = vmatprep.subr.mxu0 0.0
    %5413 = vmatpush1.msra.mxu0 0.0
    %5414 = vmatprep.subr.mxu0 0.0
    %5415 = vmatpush1.msra.mxu0 0.0
    %5416 = vmatprep.subr.mxu0 0.0
    %5417 = vmatpush1.msra.mxu0 0.0
    %5418 = vmatprep.subr.mxu0 0.0
    %5419 = vmatpush1.msra.mxu0 0.0
    %5420 = vmatprep.subr.mxu0 0.0
    %5421 = vmatpush1.msra.mxu0 0.0
    %5422 = vmatprep.subr.mxu0 0.0
    %5423 = vmatpush1.msra.mxu0 0.0
    %5424 = vmatprep.subr.mxu0 0.0
    %5425 = vmatpush1.msra.mxu0 0.0
    %5426 = vmatprep.subr.mxu0 0.0
    %5427 = vmatpush1.msra.mxu0 0.0
    %5428 = vmatprep.subr.mxu0 0.0
    %5429 = vmatpush1.msra.mxu0 0.0
    %5430 = vmatprep.subr.mxu0 0.0
    %5431 = vmatpush1.msra.mxu0 0.0
    %5432 = vmatprep.subr.mxu0 0.0
    %5433 = vmatpush1.msra.mxu0 0.0
    %5434 = vmatprep.subr.mxu0 0.0
    %5435 = vmatpush1.msra.mxu0 0.0
    %5436 = vmatprep.subr.mxu0 0.0
    %5437 = vmatpush1.msra.mxu0 0.0
    %5438 = vmatprep.subr.mxu0 0.0
    %5439 = vmatpush1.msra.mxu0 0.0
    %5440 = vmatprep.subr.mxu0 0.0
    %5441 = vmatpush1.msra.mxu0 0.0
    %5442 = vmatprep.subr.mxu0 0.0
    %5443 = vmatpush1.msra.mxu0 0.0
    %5444 = vmatprep.subr.mxu0 0.0
    %5445 = vmatpush1.msra.mxu0 0.0
    %5446 = vmatprep.subr.mxu0 0.0
    %5447 = vmatpush1.msra.mxu0 0.0
    %5448 = vmatprep.mubr.f32.mxu0 0.0
    %5449 = vmatmul.mubr.f32.gmra.mrb[0].mxu0 %v5382
    %v5450 = vpop.f32.mrb[0].mxu0
    %v5451 = vadd.f32 %v157, %v5450
    %v5452 = vpop.f32.mrb[0].mxu0
    %5453 = vdwg.mxu0
    %v5455 = vcombine.high %v5451, %v5451
    %v5457 = vunpack.c.l.s4 1966171168
    %v5458 = vunpack.c.0.s8 %v5457
    %v5459 = vlaneseq
    %v5460 = vshrl.u32 %v5459, 7
    %v5461 = vsub.s32 %v5458, %v5460
    %v5462 = vrot.slane %v5451, %v5461
    %v5464 = vunpack.c.l.s4 1966171168
    %v5465 = vunpack.c.0.s8 %v5464
    %v5466 = vlaneseq
    %v5467 = vshrl.u32 %v5466, 7
    %v5468 = vsub.s32 %v5465, %v5467
    %v5469 = vrot.slane %v5455, %v5468
    %v5470 = vcombine.high %v5462, %v5462
    %v5471 = vcombine.high %v5469, %v5469
    %v5473 = vunpack.c.l.s4 1966171168
    %v5474 = vunpack.c.0.s8 %v5473
    %v5475 = vlaneseq
    %v5476 = vshrl.u32 %v5475, 7
    %v5477 = vsub.s32 %v5474, %v5476
    %v5478 = vrot.slane %v5462, %v5477
    %v5480 = vunpack.c.l.s4 1966171168
    %v5481 = vunpack.c.0.s8 %v5480
    %v5482 = vlaneseq
    %v5483 = vshrl.u32 %v5482, 7
    %v5484 = vsub.s32 %v5481, %v5483
    %v5485 = vrot.slane %v5469, %v5484
    %v5487 = vunpack.c.l.s4 1966171168
    %v5488 = vunpack.c.0.s8 %v5487
    %v5489 = vlaneseq
    %v5490 = vshrl.u32 %v5489, 7
    %v5491 = vsub.s32 %v5488, %v5490
    %v5492 = vrot.slane %v5470, %v5491
    %v5494 = vunpack.c.l.s4 1966171168
    %v5495 = vunpack.c.0.s8 %v5494
    %v5496 = vlaneseq
    %v5497 = vshrl.u32 %v5496, 7
    %v5498 = vsub.s32 %v5495, %v5497
    %v5499 = vrot.slane %v5471, %v5498
    %v5500 = vcombine.high %v5478, %v5478
    %v5501 = vcombine.high %v5485, %v5485
    %v5502 = vcombine.high %v5492, %v5492
    %v5503 = vcombine.high %v5499, %v5499
    %v5504 = vlaneseq
    %v5505 = vshrl.u32 %v5504, 7
    %v5506 = vsub.s32 0, %v5505
    %v5507 = vrot.slane %v5478, %v5506
    %v5508 = vlaneseq
    %v5509 = vshrl.u32 %v5508, 7
    %v5510 = vsub.s32 0, %v5509
    %v5511 = vrot.slane %v5492, %v5510
    %v5512 = vlaneseq
    %v5513 = vshrl.u32 %v5512, 7
    %v5514 = vsub.s32 0, %v5513
    %v5515 = vrot.slane %v5500, %v5514
    %v5516 = vlaneseq
    %v5517 = vshrl.u32 %v5516, 7
    %v5518 = vsub.s32 0, %v5517
    %v5519 = vrot.slane %v5502, %v5518
    %v5520 = vlaneseq
    %v5521 = vshrl.u32 %v5520, 7
    %v5522 = vsub.s32 0, %v5521
    %v5523 = vrot.slane %v5485, %v5522
    %v5524 = vlaneseq
    %v5525 = vshrl.u32 %v5524, 7
    %v5526 = vsub.s32 0, %v5525
    %v5527 = vrot.slane %v5499, %v5526
    %v5528 = vlaneseq
    %v5529 = vshrl.u32 %v5528, 7
    %v5530 = vsub.s32 0, %v5529
    %v5531 = vrot.slane %v5501, %v5530
    %v5532 = vlaneseq
    %v5533 = vshrl.u32 %v5532, 7
    %v5534 = vsub.s32 0, %v5533
    %v5535 = vrot.slane %v5503, %v5534
    %v5544 = vmul.f32 %v102, %v5507
    %v5545 = vmul.f32 %v103, %v5507
    %v5546 = vmul.f32 %v104, %v5511
    %v5547 = vmul.f32 %v105, %v5511
    %v5548 = vmul.f32 %v106, %v5515
    %v5549 = vmul.f32 %v107, %v5515
    %v5550 = vmul.f32 %v108, %v5519
    %v5551 = vmul.f32 %v109, %v5519
    %v5552 = vmul.f32 %v110, %v5523
    %v5553 = vmul.f32 %v111, %v5523
    %v5554 = vmul.f32 %v112, %v5527
    %v5555 = vmul.f32 %v113, %v5527
    %v5556 = vmul.f32 %v114, %v5531
    %v5557 = vmul.f32 %v115, %v5531
    %v5558 = vmul.f32 %v116, %v5535
    %v5559 = vmul.f32 %v117, %v5535
    %v5560 = vsel %vm185, %v5544, 0.0
    %5561 = vadd.xlane.f32.xlu0 %v5560
    %v5562 = vpop.xlane.xlu0 %5561
    %v5563 = vsel %vm583, %v5545, 0.0
    %5564 = vadd.xlane.f32.xlu0 %v5563
    %v5565 = vpop.xlane.xlu0 %5564
    %v5566 = vsel %vm185, %v5546, 0.0
    %5567 = vadd.xlane.f32.xlu0 %v5566
    %v5568 = vpop.xlane.xlu0 %5567
    %v5569 = vsel %vm583, %v5547, 0.0
    %5570 = vadd.xlane.f32.xlu0 %v5569
    %v5571 = vpop.xlane.xlu0 %5570
    %v5572 = vsel %vm185, %v5548, 0.0
    %5573 = vadd.xlane.f32.xlu0 %v5572
    %v5574 = vpop.xlane.xlu0 %5573
    %v5575 = vsel %vm583, %v5549, 0.0
    %5576 = vadd.xlane.f32.xlu0 %v5575
    %v5577 = vpop.xlane.xlu0 %5576
    %v5578 = vsel %vm185, %v5550, 0.0
    %5579 = vadd.xlane.f32.xlu0 %v5578
    %v5580 = vpop.xlane.xlu0 %5579
    %v5581 = vsel %vm583, %v5551, 0.0
    %5582 = vadd.xlane.f32.xlu0 %v5581
    %v5583 = vpop.xlane.xlu0 %5582
    %v5584 = vsel %vm185, %v5552, 0.0
    %5585 = vadd.xlane.f32.xlu0 %v5584
    %v5586 = vpop.xlane.xlu0 %5585
    %v5587 = vsel %vm583, %v5553, 0.0
    %5588 = vadd.xlane.f32.xlu0 %v5587
    %v5589 = vpop.xlane.xlu0 %5588
    %v5590 = vsel %vm185, %v5554, 0.0
    %5591 = vadd.xlane.f32.xlu0 %v5590
    %v5592 = vpop.xlane.xlu0 %5591
    %v5593 = vsel %vm583, %v5555, 0.0
    %5594 = vadd.xlane.f32.xlu0 %v5593
    %v5595 = vpop.xlane.xlu0 %5594
    %v5596 = vsel %vm185, %v5556, 0.0
    %5597 = vadd.xlane.f32.xlu0 %v5596
    %v5598 = vpop.xlane.xlu0 %5597
    %v5599 = vsel %vm583, %v5557, 0.0
    %5600 = vadd.xlane.f32.xlu0 %v5599
    %v5601 = vpop.xlane.xlu0 %5600
    %v5602 = vsel %vm185, %v5558, 0.0
    %5603 = vadd.xlane.f32.xlu0 %v5602
    %v5604 = vpop.xlane.xlu0 %5603
    %v5605 = vsel %vm583, %v5559, 0.0
    %5606 = vadd.xlane.f32.xlu0 %v5605
    %v5607 = vpop.xlane.xlu0 %5606
    %v5624 = vlaneseq
    %v5625 = vshrl.u32 %v5624, 7
    %v5626 = vsub.s32 %v646, %v5625
    %v5627 = vrot.slane %v5562, %v5626
    %v5628 = vlaneseq
    %v5629 = vshrl.u32 %v5628, 7
    %v5630 = vsub.s32 %v651, %v5629
    %v5631 = vrot.slane %v5565, %v5630
    %v5632 = vsel %vm656, %v5631, %v5627
    %v5633 = vlaneseq
    %v5634 = vshrl.u32 %v5633, 7
    %v5635 = vsub.s32 %v646, %v5634
    %v5636 = vrot.slane %v5568, %v5635
    %v5637 = vlaneseq
    %v5638 = vshrl.u32 %v5637, 7
    %v5639 = vsub.s32 %v651, %v5638
    %v5640 = vrot.slane %v5571, %v5639
    %v5641 = vsel %vm656, %v5640, %v5636
    %v5642 = vlaneseq
    %v5643 = vshrl.u32 %v5642, 7
    %v5644 = vsub.s32 %v646, %v5643
    %v5645 = vrot.slane %v5574, %v5644
    %v5646 = vlaneseq
    %v5647 = vshrl.u32 %v5646, 7
    %v5648 = vsub.s32 %v651, %v5647
    %v5649 = vrot.slane %v5577, %v5648
    %v5650 = vsel %vm656, %v5649, %v5645
    %v5651 = vlaneseq
    %v5652 = vshrl.u32 %v5651, 7
    %v5653 = vsub.s32 %v646, %v5652
    %v5654 = vrot.slane %v5580, %v5653
    %v5655 = vlaneseq
    %v5656 = vshrl.u32 %v5655, 7
    %v5657 = vsub.s32 %v651, %v5656
    %v5658 = vrot.slane %v5583, %v5657
    %v5659 = vsel %vm656, %v5658, %v5654
    %v5660 = vlaneseq
    %v5661 = vshrl.u32 %v5660, 7
    %v5662 = vsub.s32 %v646, %v5661
    %v5663 = vrot.slane %v5586, %v5662
    %v5664 = vlaneseq
    %v5665 = vshrl.u32 %v5664, 7
    %v5666 = vsub.s32 %v651, %v5665
    %v5667 = vrot.slane %v5589, %v5666
    %v5668 = vsel %vm656, %v5667, %v5663
    %v5669 = vlaneseq
    %v5670 = vshrl.u32 %v5669, 7
    %v5671 = vsub.s32 %v646, %v5670
    %v5672 = vrot.slane %v5592, %v5671
    %v5673 = vlaneseq
    %v5674 = vshrl.u32 %v5673, 7
    %v5675 = vsub.s32 %v651, %v5674
    %v5676 = vrot.slane %v5595, %v5675
    %v5677 = vsel %vm656, %v5676, %v5672
    %v5678 = vlaneseq
    %v5679 = vshrl.u32 %v5678, 7
    %v5680 = vsub.s32 %v646, %v5679
    %v5681 = vrot.slane %v5598, %v5680
    %v5682 = vlaneseq
    %v5683 = vshrl.u32 %v5682, 7
    %v5684 = vsub.s32 %v651, %v5683
    %v5685 = vrot.slane %v5601, %v5684
    %v5686 = vsel %vm656, %v5685, %v5681
    %v5687 = vlaneseq
    %v5688 = vshrl.u32 %v5687, 7
    %v5689 = vsub.s32 %v646, %v5688
    %v5690 = vrot.slane %v5604, %v5689
    %v5691 = vlaneseq
    %v5692 = vshrl.u32 %v5691, 7
    %v5693 = vsub.s32 %v651, %v5692
    %v5694 = vrot.slane %v5607, %v5693
    %v5695 = vsel %vm656, %v5694, %v5690
    %v5696 = vsel %vm721, %v5641, %v5632
    %v5697 = vsel %vm723, %v5650, %v5696
    %v5698 = vsel %vm725, %v5659, %v5697
    %v5699 = vsel %vm727, %v5668, %v5698
    %v5700 = vsel %vm729, %v5677, %v5699
    %v5701 = vsel %vm731, %v5686, %v5700
    %v5702 = vsel %vm733, %v5695, %v5701
    %v5704 = vsel %vm736, %v5702, -inf
    %5705 = vmax.xlane.f32.xlu0 %v5704
    %v5706 = vpop.xlane.xlu0 %5705
    %v5708 = vlaneseq
    %v5709 = vshrl.u32 %v5708, 7
    %v5710 = vsub.s32 0, %v5709
    %v5711 = vrot.slane %v5706, %v5710
    %v5712 = vlaneseq
    %v5713 = vshrl.u32 %v5712, 7
    %v5714 = vsub.s32 1, %v5713
    %v5715 = vrot.slane %v5706, %v5714
    %v5716 = vlaneseq
    %v5717 = vshrl.u32 %v5716, 7
    %v5718 = vsub.s32 2, %v5717
    %v5719 = vrot.slane %v5706, %v5718
    %v5720 = vlaneseq
    %v5721 = vshrl.u32 %v5720, 7
    %v5722 = vsub.s32 3, %v5721
    %v5723 = vrot.slane %v5706, %v5722
    %v5724 = vlaneseq
    %v5725 = vshrl.u32 %v5724, 7
    %v5726 = vsub.s32 4, %v5725
    %v5727 = vrot.slane %v5706, %v5726
    %v5728 = vlaneseq
    %v5729 = vshrl.u32 %v5728, 7
    %v5730 = vsub.s32 5, %v5729
    %v5731 = vrot.slane %v5706, %v5730
    %v5732 = vlaneseq
    %v5733 = vshrl.u32 %v5732, 7
    %v5734 = vsub.s32 6, %v5733
    %v5735 = vrot.slane %v5706, %v5734
    %v5736 = vlaneseq
    %v5737 = vshrl.u32 %v5736, 7
    %v5738 = vsub.s32 7, %v5737
    %v5739 = vrot.slane %v5706, %v5738
    %v5748 = vsub.f32 %v5562, %v5711
    %v5749 = vsub.f32 %v5565, %v5711
    %v5750 = vsub.f32 %v5568, %v5715
    %v5751 = vsub.f32 %v5571, %v5715
    %v5752 = vsub.f32 %v5574, %v5719
    %v5753 = vsub.f32 %v5577, %v5719
    %v5754 = vsub.f32 %v5580, %v5723
    %v5755 = vsub.f32 %v5583, %v5723
    %v5756 = vsub.f32 %v5586, %v5727
    %v5757 = vsub.f32 %v5589, %v5727
    %v5758 = vsub.f32 %v5592, %v5731
    %v5759 = vsub.f32 %v5595, %v5731
    %v5760 = vsub.f32 %v5598, %v5735
    %v5761 = vsub.f32 %v5601, %v5735
    %v5762 = vsub.f32 %v5604, %v5739
    %v5763 = vsub.f32 %v5607, %v5739
    %v5764 = vmul.f32 %v5748, 1.442695
    %v5765 = vpow.pop %v5764
    %v5766 = vmul.f32 %v5749, 1.442695
    %v5767 = vpow.pop %v5766
    %v5768 = vmul.f32 %v5750, 1.442695
    %v5769 = vpow.pop %v5768
    %v5770 = vmul.f32 %v5751, 1.442695
    %v5771 = vpow.pop %v5770
    %v5772 = vmul.f32 %v5752, 1.442695
    %v5773 = vpow.pop %v5772
    %v5774 = vmul.f32 %v5753, 1.442695
    %v5775 = vpow.pop %v5774
    %v5776 = vmul.f32 %v5754, 1.442695
    %v5777 = vpow.pop %v5776
    %v5778 = vmul.f32 %v5755, 1.442695
    %v5779 = vpow.pop %v5778
    %v5780 = vmul.f32 %v5756, 1.442695
    %v5781 = vpow.pop %v5780
    %v5782 = vmul.f32 %v5757, 1.442695
    %v5783 = vpow.pop %v5782
    %v5784 = vmul.f32 %v5758, 1.442695
    %v5785 = vpow.pop %v5784
    %v5786 = vmul.f32 %v5759, 1.442695
    %v5787 = vpow.pop %v5786
    %v5788 = vmul.f32 %v5760, 1.442695
    %v5789 = vpow.pop %v5788
    %v5790 = vmul.f32 %v5761, 1.442695
    %v5791 = vpow.pop %v5790
    %v5792 = vmul.f32 %v5762, 1.442695
    %v5793 = vpow.pop %v5792
    %v5794 = vmul.f32 %v5763, 1.442695
    %v5795 = vpow.pop %v5794
    %5812 = vset.pattern.permute.xlu0 0
    %5813 = vperm.xlu0 %5812, %v5765
    %v5814 = vpop.permute.xlu0 %5813
    %5815 = vset.pattern.permute.xlu0 0
    %5816 = vperm.xlu0 %5815, %v5767
    %v5817 = vpop.permute.xlu0 %5816
    %5818 = vset.pattern.permute.xlu0 0
    %5819 = vperm.xlu0 %5818, %v5769
    %v5820 = vpop.permute.xlu0 %5819
    %5821 = vset.pattern.permute.xlu0 0
    %5822 = vperm.xlu0 %5821, %v5771
    %v5823 = vpop.permute.xlu0 %5822
    %5824 = vset.pattern.permute.xlu0 0
    %5825 = vperm.xlu0 %5824, %v5773
    %v5826 = vpop.permute.xlu0 %5825
    %5827 = vset.pattern.permute.xlu0 0
    %5828 = vperm.xlu0 %5827, %v5775
    %v5829 = vpop.permute.xlu0 %5828
    %5830 = vset.pattern.permute.xlu0 0
    %5831 = vperm.xlu0 %5830, %v5777
    %v5832 = vpop.permute.xlu0 %5831
    %5833 = vset.pattern.permute.xlu0 0
    %5834 = vperm.xlu0 %5833, %v5779
    %v5835 = vpop.permute.xlu0 %5834
    %5836 = vset.pattern.permute.xlu0 0
    %5837 = vperm.xlu0 %5836, %v5781
    %v5838 = vpop.permute.xlu0 %5837
    %5839 = vset.pattern.permute.xlu0 0
    %5840 = vperm.xlu0 %5839, %v5783
    %v5841 = vpop.permute.xlu0 %5840
    %5842 = vset.pattern.permute.xlu0 0
    %5843 = vperm.xlu0 %5842, %v5785
    %v5844 = vpop.permute.xlu0 %5843
    %5845 = vset.pattern.permute.xlu0 0
    %5846 = vperm.xlu0 %5845, %v5787
    %v5847 = vpop.permute.xlu0 %5846
    %5848 = vset.pattern.permute.xlu0 0
    %5849 = vperm.xlu0 %5848, %v5789
    %v5850 = vpop.permute.xlu0 %5849
    %5851 = vset.pattern.permute.xlu0 0
    %5852 = vperm.xlu0 %5851, %v5791
    %v5853 = vpop.permute.xlu0 %5852
    %5854 = vset.pattern.permute.xlu0 0
    %5855 = vperm.xlu0 %5854, %v5793
    %v5856 = vpop.permute.xlu0 %5855
    %5857 = vset.pattern.permute.xlu0 0
    %5858 = vperm.xlu0 %5857, %v5795
    %v5859 = vpop.permute.xlu0 %5858
    %v5860 = vlaneseq
    %v5861 = vshrl.u32 %v5860, 7
    %v5862 = vsub.s32 %v646, %v5861
    %v5863 = vrot.slane %v5814, %v5862
    %v5864 = vlaneseq
    %v5865 = vshrl.u32 %v5864, 7
    %v5866 = vsub.s32 %v651, %v5865
    %v5867 = vrot.slane %v5817, %v5866
    %v5868 = vsel %vm656, %v5867, %v5863
    %v5869 = vlaneseq
    %v5870 = vshrl.u32 %v5869, 7
    %v5871 = vsub.s32 %v646, %v5870
    %v5872 = vrot.slane %v5820, %v5871
    %v5873 = vlaneseq
    %v5874 = vshrl.u32 %v5873, 7
    %v5875 = vsub.s32 %v651, %v5874
    %v5876 = vrot.slane %v5823, %v5875
    %v5877 = vsel %vm656, %v5876, %v5872
    %v5878 = vlaneseq
    %v5879 = vshrl.u32 %v5878, 7
    %v5880 = vsub.s32 %v646, %v5879
    %v5881 = vrot.slane %v5826, %v5880
    %v5882 = vlaneseq
    %v5883 = vshrl.u32 %v5882, 7
    %v5884 = vsub.s32 %v651, %v5883
    %v5885 = vrot.slane %v5829, %v5884
    %v5886 = vsel %vm656, %v5885, %v5881
    %v5887 = vlaneseq
    %v5888 = vshrl.u32 %v5887, 7
    %v5889 = vsub.s32 %v646, %v5888
    %v5890 = vrot.slane %v5832, %v5889
    %v5891 = vlaneseq
    %v5892 = vshrl.u32 %v5891, 7
    %v5893 = vsub.s32 %v651, %v5892
    %v5894 = vrot.slane %v5835, %v5893
    %v5895 = vsel %vm656, %v5894, %v5890
    %v5896 = vlaneseq
    %v5897 = vshrl.u32 %v5896, 7
    %v5898 = vsub.s32 %v646, %v5897
    %v5899 = vrot.slane %v5838, %v5898
    %v5900 = vlaneseq
    %v5901 = vshrl.u32 %v5900, 7
    %v5902 = vsub.s32 %v651, %v5901
    %v5903 = vrot.slane %v5841, %v5902
    %v5904 = vsel %vm656, %v5903, %v5899
    %v5905 = vlaneseq
    %v5906 = vshrl.u32 %v5905, 7
    %v5907 = vsub.s32 %v646, %v5906
    %v5908 = vrot.slane %v5844, %v5907
    %v5909 = vlaneseq
    %v5910 = vshrl.u32 %v5909, 7
    %v5911 = vsub.s32 %v651, %v5910
    %v5912 = vrot.slane %v5847, %v5911
    %v5913 = vsel %vm656, %v5912, %v5908
    %v5914 = vlaneseq
    %v5915 = vshrl.u32 %v5914, 7
    %v5916 = vsub.s32 %v646, %v5915
    %v5917 = vrot.slane %v5850, %v5916
    %v5918 = vlaneseq
    %v5919 = vshrl.u32 %v5918, 7
    %v5920 = vsub.s32 %v651, %v5919
    %v5921 = vrot.slane %v5853, %v5920
    %v5922 = vsel %vm656, %v5921, %v5917
    %v5923 = vlaneseq
    %v5924 = vshrl.u32 %v5923, 7
    %v5925 = vsub.s32 %v646, %v5924
    %v5926 = vrot.slane %v5856, %v5925
    %v5927 = vlaneseq
    %v5928 = vshrl.u32 %v5927, 7
    %v5929 = vsub.s32 %v651, %v5928
    %v5930 = vrot.slane %v5859, %v5929
    %v5931 = vsel %vm656, %v5930, %v5926
    %v5932 = vsel %vm721, %v5877, %v5868
    %v5933 = vsel %vm723, %v5886, %v5932
    %v5934 = vsel %vm725, %v5895, %v5933
    %v5935 = vsel %vm727, %v5904, %v5934
    %v5936 = vsel %vm729, %v5913, %v5935
    %v5937 = vsel %vm731, %v5922, %v5936
    %v5938 = vsel %vm733, %v5931, %v5937
    %v5940 = vsel %vm736, %v5938, 0.0
    %5941 = vadd.xlane.f32.xlu0 %v5940
    %v5942 = vpop.xlane.xlu0 %5941
    %v5943 = vrcp.pop %v5942
    %v5945 = vlaneseq
    %v5946 = vshrl.u32 %v5945, 7
    %v5947 = vsub.s32 0, %v5946
    %v5948 = vrot.slane %v5943, %v5947
    %v5949 = vlaneseq
    %v5950 = vshrl.u32 %v5949, 7
    %v5951 = vsub.s32 1, %v5950
    %v5952 = vrot.slane %v5943, %v5951
    %v5953 = vlaneseq
    %v5954 = vshrl.u32 %v5953, 7
    %v5955 = vsub.s32 2, %v5954
    %v5956 = vrot.slane %v5943, %v5955
    %v5957 = vlaneseq
    %v5958 = vshrl.u32 %v5957, 7
    %v5959 = vsub.s32 3, %v5958
    %v5960 = vrot.slane %v5943, %v5959
    %v5961 = vlaneseq
    %v5962 = vshrl.u32 %v5961, 7
    %v5963 = vsub.s32 4, %v5962
    %v5964 = vrot.slane %v5943, %v5963
    %v5965 = vlaneseq
    %v5966 = vshrl.u32 %v5965, 7
    %v5967 = vsub.s32 5, %v5966
    %v5968 = vrot.slane %v5943, %v5967
    %v5969 = vlaneseq
    %v5970 = vshrl.u32 %v5969, 7
    %v5971 = vsub.s32 6, %v5970
    %v5972 = vrot.slane %v5943, %v5971
    %v5973 = vlaneseq
    %v5974 = vshrl.u32 %v5973, 7
    %v5975 = vsub.s32 7, %v5974
    %v5976 = vrot.slane %v5943, %v5975
    %v5985 = vmul.f32 %v5765, %v5948
    %v5986 = vmul.f32 %v5767, %v5948
    %v5987 = vmul.f32 %v5769, %v5952
    %v5988 = vmul.f32 %v5771, %v5952
    %v5989 = vmul.f32 %v5773, %v5956
    %v5990 = vmul.f32 %v5775, %v5956
    %v5991 = vmul.f32 %v5777, %v5960
    %v5992 = vmul.f32 %v5779, %v5960
    %v5993 = vmul.f32 %v5781, %v5964
    %v5994 = vmul.f32 %v5783, %v5964
    %v5995 = vmul.f32 %v5785, %v5968
    %v5996 = vmul.f32 %v5787, %v5968
    %v5997 = vmul.f32 %v5789, %v5972
    %v5998 = vmul.f32 %v5791, %v5972
    %v5999 = vmul.f32 %v5793, %v5976
    %v6000 = vmul.f32 %v5795, %v5976
    %6002 = vset.pattern.permute.xlu0 0
    %6003 = vperm.xlu0 %6002, %v5985
    %v6004 = vpop.permute.xlu0 %6003
    %6007 = vset.pattern.permute.xlu0 0
    %6008 = vperm.xlu0 %6007, %v5986
    %v6009 = vpop.permute.xlu0 %6008
    %6012 = vset.pattern.permute.xlu0 0
    %6013 = vperm.xlu0 %6012, %v5987
    %v6014 = vpop.permute.xlu0 %6013
    %6017 = vset.pattern.permute.xlu0 0
    %6018 = vperm.xlu0 %6017, %v5988
    %v6019 = vpop.permute.xlu0 %6018
    %6022 = vset.pattern.permute.xlu0 0
    %6023 = vperm.xlu0 %6022, %v5989
    %v6024 = vpop.permute.xlu0 %6023
    %6027 = vset.pattern.permute.xlu0 0
    %6028 = vperm.xlu0 %6027, %v5990
    %v6029 = vpop.permute.xlu0 %6028
    %6032 = vset.pattern.permute.xlu0 0
    %6033 = vperm.xlu0 %6032, %v5991
    %v6034 = vpop.permute.xlu0 %6033
    %6037 = vset.pattern.permute.xlu0 0
    %6038 = vperm.xlu0 %6037, %v5992
    %v6039 = vpop.permute.xlu0 %6038
    %6042 = vset.pattern.permute.xlu0 0
    %6043 = vperm.xlu0 %6042, %v5993
    %v6044 = vpop.permute.xlu0 %6043
    %6047 = vset.pattern.permute.xlu0 0
    %6048 = vperm.xlu0 %6047, %v5994
    %v6049 = vpop.permute.xlu0 %6048
    %6052 = vset.pattern.permute.xlu0 0
    %6053 = vperm.xlu0 %6052, %v5995
    %v6054 = vpop.permute.xlu0 %6053
    %6057 = vset.pattern.permute.xlu0 0
    %6058 = vperm.xlu0 %6057, %v5996
    %v6059 = vpop.permute.xlu0 %6058
    %6062 = vset.pattern.permute.xlu0 0
    %6063 = vperm.xlu0 %6062, %v5997
    %v6064 = vpop.permute.xlu0 %6063
    %6067 = vset.pattern.permute.xlu0 0
    %6068 = vperm.xlu0 %6067, %v5998
    %v6069 = vpop.permute.xlu0 %6068
    %6072 = vset.pattern.permute.xlu0 0
    %6073 = vperm.xlu0 %6072, %v5999
    %v6074 = vpop.permute.xlu0 %6073
    %6077 = vset.pattern.permute.xlu0 0
    %6078 = vperm.xlu0 %6077, %v6000
    %v6079 = vpop.permute.xlu0 %6078
    %v6081 = vmul.f32 %v6004, %v102
    %v6082 = vmul.f32 %v6009, %v103
    %v6083 = vmul.f32 %v6014, %v104
    %v6084 = vmul.f32 %v6019, %v105
    %v6085 = vmul.f32 %v6024, %v106
    %v6086 = vmul.f32 %v6029, %v107
    %v6087 = vmul.f32 %v6034, %v108
    %v6088 = vmul.f32 %v6039, %v109
    %v6089 = vmul.f32 %v6044, %v110
    %v6090 = vmul.f32 %v6049, %v111
    %v6091 = vmul.f32 %v6054, %v112
    %v6092 = vmul.f32 %v6059, %v113
    %v6093 = vmul.f32 %v6064, %v114
    %v6094 = vmul.f32 %v6069, %v115
    %v6095 = vmul.f32 %v6074, %v116
    %v6096 = vmul.f32 %v6079, %v117
    %v6097 = vsel %vm185, %v6081, 0.0
    %v6098 = vsel %vm583, %v6082, 0.0
    %v6099 = vadd.f32 %v6097, %v6098
    %v6100 = vrot.slane %v6099, 4
    %v6101 = vadd.f32 %v6099, %v6100
    %v6102 = vrot.slane %v6101, 2
    %v6103 = vadd.f32 %v6101, %v6102
    %v6104 = vrot.slane %v6103, 1
    %v6105 = vadd.f32 %v6103, %v6104
    %v6106 = vsel %vm185, %v6083, 0.0
    %v6107 = vsel %vm583, %v6084, 0.0
    %v6108 = vadd.f32 %v6106, %v6107
    %v6109 = vrot.slane %v6108, 4
    %v6110 = vadd.f32 %v6108, %v6109
    %v6111 = vrot.slane %v6110, 2
    %v6112 = vadd.f32 %v6110, %v6111
    %v6113 = vrot.slane %v6112, 1
    %v6114 = vadd.f32 %v6112, %v6113
    %v6115 = vsel %vm185, %v6085, 0.0
    %v6116 = vsel %vm583, %v6086, 0.0
    %v6117 = vadd.f32 %v6115, %v6116
    %v6118 = vrot.slane %v6117, 4
    %v6119 = vadd.f32 %v6117, %v6118
    %v6120 = vrot.slane %v6119, 2
    %v6121 = vadd.f32 %v6119, %v6120
    %v6122 = vrot.slane %v6121, 1
    %v6123 = vadd.f32 %v6121, %v6122
    %v6124 = vsel %vm185, %v6087, 0.0
    %v6125 = vsel %vm583, %v6088, 0.0
    %v6126 = vadd.f32 %v6124, %v6125
    %v6127 = vrot.slane %v6126, 4
    %v6128 = vadd.f32 %v6126, %v6127
    %v6129 = vrot.slane %v6128, 2
    %v6130 = vadd.f32 %v6128, %v6129
    %v6131 = vrot.slane %v6130, 1
    %v6132 = vadd.f32 %v6130, %v6131
    %v6133 = vsel %vm185, %v6089, 0.0
    %v6134 = vsel %vm583, %v6090, 0.0
    %v6135 = vadd.f32 %v6133, %v6134
    %v6136 = vrot.slane %v6135, 4
    %v6137 = vadd.f32 %v6135, %v6136
    %v6138 = vrot.slane %v6137, 2
    %v6139 = vadd.f32 %v6137, %v6138
    %v6140 = vrot.slane %v6139, 1
    %v6141 = vadd.f32 %v6139, %v6140
    %v6142 = vsel %vm185, %v6091, 0.0
    %v6143 = vsel %vm583, %v6092, 0.0
    %v6144 = vadd.f32 %v6142, %v6143
    %v6145 = vrot.slane %v6144, 4
    %v6146 = vadd.f32 %v6144, %v6145
    %v6147 = vrot.slane %v6146, 2
    %v6148 = vadd.f32 %v6146, %v6147
    %v6149 = vrot.slane %v6148, 1
    %v6150 = vadd.f32 %v6148, %v6149
    %v6151 = vsel %vm185, %v6093, 0.0
    %v6152 = vsel %vm583, %v6094, 0.0
    %v6153 = vadd.f32 %v6151, %v6152
    %v6154 = vrot.slane %v6153, 4
    %v6155 = vadd.f32 %v6153, %v6154
    %v6156 = vrot.slane %v6155, 2
    %v6157 = vadd.f32 %v6155, %v6156
    %v6158 = vrot.slane %v6157, 1
    %v6159 = vadd.f32 %v6157, %v6158
    %v6160 = vsel %vm185, %v6095, 0.0
    %v6161 = vsel %vm583, %v6096, 0.0
    %v6162 = vadd.f32 %v6160, %v6161
    %v6163 = vrot.slane %v6162, 4
    %v6164 = vadd.f32 %v6162, %v6163
    %v6165 = vrot.slane %v6164, 2
    %v6166 = vadd.f32 %v6164, %v6165
    %v6167 = vrot.slane %v6166, 1
    %v6168 = vadd.f32 %v6166, %v6167
    %6169 = vmatprep.subr.mxu0 0.0
    %6170 = vmatpush1.msra.mxu0 %v163
    %6171 = vmatprep.subr.mxu0 0.0
    %6172 = vmatpush1.msra.mxu0 %v164
    %6173 = vmatprep.subr.mxu0 0.0
    %6174 = vmatpush1.msra.mxu0 %v165
    %6175 = vmatprep.subr.mxu0 0.0
    %6176 = vmatpush1.msra.mxu0 %v166
    %6177 = vmatprep.subr.mxu0 0.0
    %6178 = vmatpush1.msra.mxu0 0.0
    %6179 = vmatprep.subr.mxu0 0.0
    %6180 = vmatpush1.msra.mxu0 0.0
    %6181 = vmatprep.subr.mxu0 0.0
    %6182 = vmatpush1.msra.mxu0 0.0
    %6183 = vmatprep.subr.mxu0 0.0
    %6184 = vmatpush1.msra.mxu0 0.0
    %6185 = vmatprep.subr.mxu0 0.0
    %6186 = vmatpush1.msra.mxu0 0.0
    %6187 = vmatprep.subr.mxu0 0.0
    %6188 = vmatpush1.msra.mxu0 0.0
    %6189 = vmatprep.subr.mxu0 0.0
    %6190 = vmatpush1.msra.mxu0 0.0
    %6191 = vmatprep.subr.mxu0 0.0
    %6192 = vmatpush1.msra.mxu0 0.0
    %6193 = vmatprep.subr.mxu0 0.0
    %6194 = vmatpush1.msra.mxu0 0.0
    %6195 = vmatprep.subr.mxu0 0.0
    %6196 = vmatpush1.msra.mxu0 0.0
    %6197 = vmatprep.subr.mxu0 0.0
    %6198 = vmatpush1.msra.mxu0 0.0
    %6199 = vmatprep.subr.mxu0 0.0
    %6200 = vmatpush1.msra.mxu0 0.0
    %6201 = vmatprep.subr.mxu0 0.0
    %6202 = vmatpush1.msra.mxu0 0.0
    %6203 = vmatprep.subr.mxu0 0.0
    %6204 = vmatpush1.msra.mxu0 0.0
    %6205 = vmatprep.subr.mxu0 0.0
    %6206 = vmatpush1.msra.mxu0 0.0
    %6207 = vmatprep.subr.mxu0 0.0
    %6208 = vmatpush1.msra.mxu0 0.0
    %6209 = vmatprep.subr.mxu0 0.0
    %6210 = vmatpush1.msra.mxu0 0.0
    %6211 = vmatprep.subr.mxu0 0.0
    %6212 = vmatpush1.msra.mxu0 0.0
    %6213 = vmatprep.subr.mxu0 0.0
    %6214 = vmatpush1.msra.mxu0 0.0
    %6215 = vmatprep.subr.mxu0 0.0
    %6216 = vmatpush1.msra.mxu0 0.0
    %6217 = vmatprep.subr.mxu0 0.0
    %6218 = vmatpush1.msra.mxu0 0.0
    %6219 = vmatprep.subr.mxu0 0.0
    %6220 = vmatpush1.msra.mxu0 0.0
    %6221 = vmatprep.subr.mxu0 0.0
    %6222 = vmatpush1.msra.mxu0 0.0
    %6223 = vmatprep.subr.mxu0 0.0
    %6224 = vmatpush1.msra.mxu0 0.0
    %6225 = vmatprep.subr.mxu0 0.0
    %6226 = vmatpush1.msra.mxu0 0.0
    %6227 = vmatprep.subr.mxu0 0.0
    %6228 = vmatpush1.msra.mxu0 0.0
    %6229 = vmatprep.subr.mxu0 0.0
    %6230 = vmatpush1.msra.mxu0 0.0
    %6231 = vmatprep.subr.mxu0 0.0
    %6232 = vmatpush1.msra.mxu0 0.0
    %6233 = vmatprep.mubr.f32.mxu0 0.0
    %6234 = vmatmul.mubr.f32.gmra.mrb[0].mxu0 %v5382
    %v6235 = vpop.f32.mrb[0].mxu0
    %v6236 = vadd.f32 0.0, %v6235
    %v6237 = vpop.f32.mrb[0].mxu0
    %6238 = vdwg.mxu0
    %v6247 = vsel %vm721, %v6114, %v6105
    %v6248 = vsel %vm723, %v6123, %v6247
    %v6249 = vsel %vm725, %v6132, %v6248
    %v6250 = vsel %vm727, %v6141, %v6249
    %v6251 = vsel %vm729, %v6150, %v6250
    %v6252 = vsel %vm731, %v6159, %v6251
    %v6253 = vsel %vm733, %v6168, %v6252
    %v6254 = vsel %vm185, %v6253, 0
    %6256 = vmatprep.subr.mxu0 0.0
    %6257 = vmatpush1.msra.mxu0 %v159
    %6258 = vmatprep.subr.mxu0 0.0
    %6259 = vmatpush1.msra.mxu0 %v160
    %6260 = vmatprep.subr.mxu0 0.0
    %6261 = vmatpush1.msra.mxu0 %v161
    %6262 = vmatprep.subr.mxu0 0.0
    %6263 = vmatpush1.msra.mxu0 %v162
    %6264 = vmatprep.subr.mxu0 0.0
    %6265 = vmatpush1.msra.mxu0 0.0
    %6266 = vmatprep.subr.mxu0 0.0
    %6267 = vmatpush1.msra.mxu0 0.0
    %6268 = vmatprep.subr.mxu0 0.0
    %6269 = vmatpush1.msra.mxu0 0.0
    %6270 = vmatprep.subr.mxu0 0.0
    %6271 = vmatpush1.msra.mxu0 0.0
    %6272 = vmatprep.subr.mxu0 0.0
    %6273 = vmatpush1.msra.mxu0 0.0
    %6274 = vmatprep.subr.mxu0 0.0
    %6275 = vmatpush1.msra.mxu0 0.0
    %6276 = vmatprep.subr.mxu0 0.0
    %6277 = vmatpush1.msra.mxu0 0.0
    %6278 = vmatprep.subr.mxu0 0.0
    %6279 = vmatpush1.msra.mxu0 0.0
    %6280 = vmatprep.subr.mxu0 0.0
    %6281 = vmatpush1.msra.mxu0 0.0
    %6282 = vmatprep.subr.mxu0 0.0
    %6283 = vmatpush1.msra.mxu0 0.0
    %6284 = vmatprep.subr.mxu0 0.0
    %6285 = vmatpush1.msra.mxu0 0.0
    %6286 = vmatprep.subr.mxu0 0.0
    %6287 = vmatpush1.msra.mxu0 0.0
    %6288 = vmatprep.subr.mxu0 0.0
    %6289 = vmatpush1.msra.mxu0 0.0
    %6290 = vmatprep.subr.mxu0 0.0
    %6291 = vmatpush1.msra.mxu0 0.0
    %6292 = vmatprep.subr.mxu0 0.0
    %6293 = vmatpush1.msra.mxu0 0.0
    %6294 = vmatprep.subr.mxu0 0.0
    %6295 = vmatpush1.msra.mxu0 0.0
    %6296 = vmatprep.subr.mxu0 0.0
    %6297 = vmatpush1.msra.mxu0 0.0
    %6298 = vmatprep.subr.mxu0 0.0
    %6299 = vmatpush1.msra.mxu0 0.0
    %6300 = vmatprep.subr.mxu0 0.0
    %6301 = vmatpush1.msra.mxu0 0.0
    %6302 = vmatprep.subr.mxu0 0.0
    %6303 = vmatpush1.msra.mxu0 0.0
    %6304 = vmatprep.subr.mxu0 0.0
    %6305 = vmatpush1.msra.mxu0 0.0
    %6306 = vmatprep.subr.mxu0 0.0
    %6307 = vmatpush1.msra.mxu0 0.0
    %6308 = vmatprep.subr.mxu0 0.0
    %6309 = vmatpush1.msra.mxu0 0.0
    %6310 = vmatprep.subr.mxu0 0.0
    %6311 = vmatpush1.msra.mxu0 0.0
    %6312 = vmatprep.subr.mxu0 0.0
    %6313 = vmatpush1.msra.mxu0 0.0
    %6314 = vmatprep.subr.mxu0 0.0
    %6315 = vmatpush1.msra.mxu0 0.0
    %6316 = vmatprep.subr.mxu0 0.0
    %6317 = vmatpush1.msra.mxu0 0.0
    %6318 = vmatprep.subr.mxu0 0.0
    %6319 = vmatpush1.msra.mxu0 0.0
    %6320 = vmatprep.mubr.f32.mxu0 0.0
    %6321 = vmatmul.mubr.f32.gmra.mrb[0].mxu0 %v6254
    %v6322 = vpop.f32.mrb[0].mxu0
    %v6323 = vadd.f32 %v6236, %v6322
    %v6324 = vpop.f32.mrb[0].mxu0
    %6325 = vdwg.mxu0
    %v6326 = vadd.f32 %v6323, %v172
    %v6327 = vtanh.pop %v6326
    %v6328 = vlaneseq
    %v6329 = vshrl.u32 %v6328, 7
    %v6330 = vsub.s32 %v1361, %v6329
    %v6331 = vrot.slane %v6004, %v6330
    %v6332 = vlaneseq
    %v6333 = vshrl.u32 %v6332, 7
    %v6334 = vsub.s32 %v1366, %v6333
    %v6335 = vrot.slane %v6009, %v6334
    %v6336 = vsel %vm1371, %v6335, %v6331
    %v6337 = vlaneseq
    %v6338 = vshrl.u32 %v6337, 7
    %v6339 = vsub.s32 %v1361, %v6338
    %v6340 = vrot.slane %v6014, %v6339
    %v6341 = vlaneseq
    %v6342 = vshrl.u32 %v6341, 7
    %v6343 = vsub.s32 %v1366, %v6342
    %v6344 = vrot.slane %v6019, %v6343
    %v6345 = vsel %vm1371, %v6344, %v6340
    %v6346 = vlaneseq
    %v6347 = vshrl.u32 %v6346, 7
    %v6348 = vsub.s32 %v1361, %v6347
    %v6349 = vrot.slane %v6024, %v6348
    %v6350 = vlaneseq
    %v6351 = vshrl.u32 %v6350, 7
    %v6352 = vsub.s32 %v1366, %v6351
    %v6353 = vrot.slane %v6029, %v6352
    %v6354 = vsel %vm1371, %v6353, %v6349
    %v6355 = vlaneseq
    %v6356 = vshrl.u32 %v6355, 7
    %v6357 = vsub.s32 %v1361, %v6356
    %v6358 = vrot.slane %v6034, %v6357
    %v6359 = vlaneseq
    %v6360 = vshrl.u32 %v6359, 7
    %v6361 = vsub.s32 %v1366, %v6360
    %v6362 = vrot.slane %v6039, %v6361
    %v6363 = vsel %vm1371, %v6362, %v6358
    %v6364 = vlaneseq
    %v6365 = vshrl.u32 %v6364, 7
    %v6366 = vsub.s32 %v1361, %v6365
    %v6367 = vrot.slane %v6044, %v6366
    %v6368 = vlaneseq
    %v6369 = vshrl.u32 %v6368, 7
    %v6370 = vsub.s32 %v1366, %v6369
    %v6371 = vrot.slane %v6049, %v6370
    %v6372 = vsel %vm1371, %v6371, %v6367
    %v6373 = vlaneseq
    %v6374 = vshrl.u32 %v6373, 7
    %v6375 = vsub.s32 %v1361, %v6374
    %v6376 = vrot.slane %v6054, %v6375
    %v6377 = vlaneseq
    %v6378 = vshrl.u32 %v6377, 7
    %v6379 = vsub.s32 %v1366, %v6378
    %v6380 = vrot.slane %v6059, %v6379
    %v6381 = vsel %vm1371, %v6380, %v6376
    %v6382 = vlaneseq
    %v6383 = vshrl.u32 %v6382, 7
    %v6384 = vsub.s32 %v1361, %v6383
    %v6385 = vrot.slane %v6064, %v6384
    %v6386 = vlaneseq
    %v6387 = vshrl.u32 %v6386, 7
    %v6388 = vsub.s32 %v1366, %v6387
    %v6389 = vrot.slane %v6069, %v6388
    %v6390 = vsel %vm1371, %v6389, %v6385
    %v6391 = vlaneseq
    %v6392 = vshrl.u32 %v6391, 7
    %v6393 = vsub.s32 %v1361, %v6392
    %v6394 = vrot.slane %v6074, %v6393
    %v6395 = vlaneseq
    %v6396 = vshrl.u32 %v6395, 7
    %v6397 = vsub.s32 %v1366, %v6396
    %v6398 = vrot.slane %v6079, %v6397
    %v6399 = vsel %vm1371, %v6398, %v6394
    %v6400 = vsel %vm721, %v6345, %v6336
    %v6401 = vsel %vm723, %v6354, %v6400
    %v6402 = vsel %vm725, %v6363, %v6401
    %v6403 = vsel %vm727, %v6372, %v6402
    %v6404 = vsel %vm729, %v6381, %v6403
    %v6405 = vsel %vm731, %v6390, %v6404
    %v6406 = vsel %vm733, %v6399, %v6405
    %v6408 = vsel %vm185, %v6327, %v6406
    %v6409 = vsel %vm1445, %v6408, 0.0
    %s6410 = scalar_lea.vmem [#allocation10], 32
    %6411 = vst [vmem:[%s6410] sm:$0xff] %v6409
    %s6412 = scalar_lea.vmem %s0, 40
    %v6413 = vld [vmem:[%s6412] sm:$0xff]
    %6414 = vrot.lane.b32.xlu0 %v5273, 64
    %v6415 = vpop.permute.xlu0 %6414
    %v6417 = vsel %vm185, %v6413, %v6415
    %v6419 = vsel %vm187, %v6417, 0
    %6421 = vmatprep.subr.mxu0 0.0
    %6422 = vmatpush1.msra.mxu0 %v118
    %6423 = vmatprep.subr.mxu0 0.0
    %6424 = vmatpush1.msra.mxu0 %v119
    %6425 = vmatprep.subr.mxu0 0.0
    %6426 = vmatpush1.msra.mxu0 %v120
    %6427 = vmatprep.subr.mxu0 0.0
    %6428 = vmatpush1.msra.mxu0 %v121
    %6429 = vmatprep.subr.mxu0 0.0
    %6430 = vmatpush1.msra.mxu0 %v122
    %6431 = vmatprep.subr.mxu0 0.0
    %6432 = vmatpush1.msra.mxu0 %v123
    %6433 = vmatprep.subr.mxu0 0.0
    %6434 = vmatpush1.msra.mxu0 %v124
    %6435 = vmatprep.subr.mxu0 0.0
    %6436 = vmatpush1.msra.mxu0 %v125
    %6437 = vmatprep.subr.mxu0 0.0
    %6438 = vmatpush1.msra.mxu0 0.0
    %6439 = vmatprep.subr.mxu0 0.0
    %6440 = vmatpush1.msra.mxu0 0.0
    %6441 = vmatprep.subr.mxu0 0.0
    %6442 = vmatpush1.msra.mxu0 0.0
    %6443 = vmatprep.subr.mxu0 0.0
    %6444 = vmatpush1.msra.mxu0 0.0
    %6445 = vmatprep.subr.mxu0 0.0
    %6446 = vmatpush1.msra.mxu0 0.0
    %6447 = vmatprep.subr.mxu0 0.0
    %6448 = vmatpush1.msra.mxu0 0.0
    %6449 = vmatprep.subr.mxu0 0.0
    %6450 = vmatpush1.msra.mxu0 0.0
    %6451 = vmatprep.subr.mxu0 0.0
    %6452 = vmatpush1.msra.mxu0 0.0
    %6453 = vmatprep.subr.mxu0 0.0
    %6454 = vmatpush1.msra.mxu0 0.0
    %6455 = vmatprep.subr.mxu0 0.0
    %6456 = vmatpush1.msra.mxu0 0.0
    %6457 = vmatprep.subr.mxu0 0.0
    %6458 = vmatpush1.msra.mxu0 0.0
    %6459 = vmatprep.subr.mxu0 0.0
    %6460 = vmatpush1.msra.mxu0 0.0
    %6461 = vmatprep.subr.mxu0 0.0
    %6462 = vmatpush1.msra.mxu0 0.0
    %6463 = vmatprep.subr.mxu0 0.0
    %6464 = vmatpush1.msra.mxu0 0.0
    %6465 = vmatprep.subr.mxu0 0.0
    %6466 = vmatpush1.msra.mxu0 0.0
    %6467 = vmatprep.subr.mxu0 0.0
    %6468 = vmatpush1.msra.mxu0 0.0
    %6469 = vmatprep.subr.mxu0 0.0
    %6470 = vmatpush1.msra.mxu0 0.0
    %6471 = vmatprep.subr.mxu0 0.0
    %6472 = vmatpush1.msra.mxu0 0.0
    %6473 = vmatprep.subr.mxu0 0.0
    %6474 = vmatpush1.msra.mxu0 0.0
    %6475 = vmatprep.subr.mxu0 0.0
    %6476 = vmatpush1.msra.mxu0 0.0
    %6477 = vmatprep.subr.mxu0 0.0
    %6478 = vmatpush1.msra.mxu0 0.0
    %6479 = vmatprep.subr.mxu0 0.0
    %6480 = vmatpush1.msra.mxu0 0.0
    %6481 = vmatprep.subr.mxu0 0.0
    %6482 = vmatpush1.msra.mxu0 0.0
    %6483 = vmatprep.subr.mxu0 0.0
    %6484 = vmatpush1.msra.mxu0 0.0
    %6485 = vmatprep.mubr.f32.mxu0 0.0
    %6486 = vmatmul.mubr.f32.gmra.mrb[0].mxu0 %v6419
    %v6487 = vpop.f32.mrb[0].mxu0
    %v6488 = vadd.f32 %v139, %v6487
    %v6489 = vpop.f32.mrb[0].mxu0
    %6490 = vdwg.mxu0
    %v6491 = vxor.u32 %v6488, 2147483648
    %v6492 = vmul.f32 %v6491, 1.442695
    %v6493 = vpow.pop %v6492
    %v6494 = vadd.f32 %v6493, 1.0
    %v6495 = vrcp.pop %v6494
    %v6496 = vmul.f32 1.0, %v6495
    %v6497 = vtanh.pop %v6488
    %v6498 = vmul.f32 %v6496, %v5267
    %6500 = vrot.lane.b32.xlu0 %v6497, 64
    %v6501 = vpop.permute.xlu0 %6500
    %v6503 = vmul.f32 %v6496, %v6501
    %6505 = vrot.lane.b32.xlu0 %v6503, 32
    %v6506 = vpop.permute.xlu0 %6505
    %v6508 = vadd.f32 %v6498, %v6506
    %v6509 = vtanh.pop %v6508
    %6511 = vrot.lane.b32.xlu0 %v6509, 64
    %v6512 = vpop.permute.xlu0 %6511
    %v6514 = vmul.f32 %v6496, %v6512
    %6516 = vrot.lane.b32.xlu0 %v6514, 32
    %v6517 = vpop.permute.xlu0 %6516
    %6519 = vrot.lane.b32.xlu0 %v5378, 64
    %v6520 = vpop.permute.xlu0 %6519
    %v6522 = vsel %vm185, %v6517, %v6520
    %v6524 = vsel %vm187, %v6522, 0
    %6526 = vmatprep.subr.mxu0 0.0
    %6527 = vmatpush1.msra.mxu0 %v126
    %6528 = vmatprep.subr.mxu0 0.0
    %6529 = vmatpush1.msra.mxu0 %v127
    %6530 = vmatprep.subr.mxu0 0.0
    %6531 = vmatpush1.msra.mxu0 %v128
    %6532 = vmatprep.subr.mxu0 0.0
    %6533 = vmatpush1.msra.mxu0 %v129
    %6534 = vmatprep.subr.mxu0 0.0
    %6535 = vmatpush1.msra.mxu0 %v130
    %6536 = vmatprep.subr.mxu0 0.0
    %6537 = vmatpush1.msra.mxu0 %v131
    %6538 = vmatprep.subr.mxu0 0.0
    %6539 = vmatpush1.msra.mxu0 %v132
    %6540 = vmatprep.subr.mxu0 0.0
    %6541 = vmatpush1.msra.mxu0 %v133
    %6542 = vmatprep.subr.mxu0 0.0
    %6543 = vmatpush1.msra.mxu0 0.0
    %6544 = vmatprep.subr.mxu0 0.0
    %6545 = vmatpush1.msra.mxu0 0.0
    %6546 = vmatprep.subr.mxu0 0.0
    %6547 = vmatpush1.msra.mxu0 0.0
    %6548 = vmatprep.subr.mxu0 0.0
    %6549 = vmatpush1.msra.mxu0 0.0
    %6550 = vmatprep.subr.mxu0 0.0
    %6551 = vmatpush1.msra.mxu0 0.0
    %6552 = vmatprep.subr.mxu0 0.0
    %6553 = vmatpush1.msra.mxu0 0.0
    %6554 = vmatprep.subr.mxu0 0.0
    %6555 = vmatpush1.msra.mxu0 0.0
    %6556 = vmatprep.subr.mxu0 0.0
    %6557 = vmatpush1.msra.mxu0 0.0
    %6558 = vmatprep.subr.mxu0 0.0
    %6559 = vmatpush1.msra.mxu0 0.0
    %6560 = vmatprep.subr.mxu0 0.0
    %6561 = vmatpush1.msra.mxu0 0.0
    %6562 = vmatprep.subr.mxu0 0.0
    %6563 = vmatpush1.msra.mxu0 0.0
    %6564 = vmatprep.subr.mxu0 0.0
    %6565 = vmatpush1.msra.mxu0 0.0
    %6566 = vmatprep.subr.mxu0 0.0
    %6567 = vmatpush1.msra.mxu0 0.0
    %6568 = vmatprep.subr.mxu0 0.0
    %6569 = vmatpush1.msra.mxu0 0.0
    %6570 = vmatprep.subr.mxu0 0.0
    %6571 = vmatpush1.msra.mxu0 0.0
    %6572 = vmatprep.subr.mxu0 0.0
    %6573 = vmatpush1.msra.mxu0 0.0
    %6574 = vmatprep.subr.mxu0 0.0
    %6575 = vmatpush1.msra.mxu0 0.0
    %6576 = vmatprep.subr.mxu0 0.0
    %6577 = vmatpush1.msra.mxu0 0.0
    %6578 = vmatprep.subr.mxu0 0.0
    %6579 = vmatpush1.msra.mxu0 0.0
    %6580 = vmatprep.subr.mxu0 0.0
    %6581 = vmatpush1.msra.mxu0 0.0
    %6582 = vmatprep.subr.mxu0 0.0
    %6583 = vmatpush1.msra.mxu0 0.0
    %6584 = vmatprep.subr.mxu0 0.0
    %6585 = vmatpush1.msra.mxu0 0.0
    %6586 = vmatprep.subr.mxu0 0.0
    %6587 = vmatpush1.msra.mxu0 0.0
    %6588 = vmatprep.subr.mxu0 0.0
    %6589 = vmatpush1.msra.mxu0 0.0
    %6590 = vmatprep.mubr.f32.mxu0 0.0
    %6591 = vmatmul.mubr.f32.gmra.mrb[0].mxu0 %v6524
    %v6592 = vpop.f32.mrb[0].mxu0
    %v6593 = vadd.f32 %v146, %v6592
    %v6594 = vpop.f32.mrb[0].mxu0
    %6595 = vdwg.mxu0
    %v6596 = vxor.u32 %v6593, 2147483648
    %v6597 = vmul.f32 %v6596, 1.442695
    %v6598 = vpow.pop %v6597
    %v6599 = vadd.f32 %v6598, 1.0
    %v6600 = vrcp.pop %v6599
    %v6601 = vmul.f32 1.0, %v6600
    %v6602 = vtanh.pop %v6593
    %v6603 = vmul.f32 %v6601, %v5372
    %6605 = vrot.lane.b32.xlu0 %v6602, 64
    %v6606 = vpop.permute.xlu0 %6605
    %v6608 = vmul.f32 %v6601, %v6606
    %6610 = vrot.lane.b32.xlu0 %v6608, 32
    %v6611 = vpop.permute.xlu0 %6610
    %v6613 = vadd.f32 %v6603, %v6611
    %v6614 = vtanh.pop %v6613
    %6616 = vrot.lane.b32.xlu0 %v6614, 64
    %v6617 = vpop.permute.xlu0 %6616
    %v6619 = vmul.f32 %v6601, %v6617
    %6621 = vrot.lane.b32.xlu0 %v6619, 32
    %v6622 = vpop.permute.xlu0 %6621
    %v6623 = vsel %vm185, %v6622, 0
    %6625 = vmatprep.subr.mxu0 0.0
    %6626 = vmatpush1.msra.mxu0 %v148
    %6627 = vmatprep.subr.mxu0 0.0
    %6628 = vmatpush1.msra.mxu0 %v149
    %6629 = vmatprep.subr.mxu0 0.0
    %6630 = vmatpush1.msra.mxu0 %v150
    %6631 = vmatprep.subr.mxu0 0.0
    %6632 = vmatpush1.msra.mxu0 %v151
    %6633 = vmatprep.subr.mxu0 0.0
    %6634 = vmatpush1.msra.mxu0 0.0
    %6635 = vmatprep.subr.mxu0 0.0
    %6636 = vmatpush1.msra.mxu0 0.0
    %6637 = vmatprep.subr.mxu0 0.0
    %6638 = vmatpush1.msra.mxu0 0.0
    %6639 = vmatprep.subr.mxu0 0.0
    %6640 = vmatpush1.msra.mxu0 0.0
    %6641 = vmatprep.subr.mxu0 0.0
    %6642 = vmatpush1.msra.mxu0 0.0
    %6643 = vmatprep.subr.mxu0 0.0
    %6644 = vmatpush1.msra.mxu0 0.0
    %6645 = vmatprep.subr.mxu0 0.0
    %6646 = vmatpush1.msra.mxu0 0.0
    %6647 = vmatprep.subr.mxu0 0.0
    %6648 = vmatpush1.msra.mxu0 0.0
    %6649 = vmatprep.subr.mxu0 0.0
    %6650 = vmatpush1.msra.mxu0 0.0
    %6651 = vmatprep.subr.mxu0 0.0
    %6652 = vmatpush1.msra.mxu0 0.0
    %6653 = vmatprep.subr.mxu0 0.0
    %6654 = vmatpush1.msra.mxu0 0.0
    %6655 = vmatprep.subr.mxu0 0.0
    %6656 = vmatpush1.msra.mxu0 0.0
    %6657 = vmatprep.subr.mxu0 0.0
    %6658 = vmatpush1.msra.mxu0 0.0
    %6659 = vmatprep.subr.mxu0 0.0
    %6660 = vmatpush1.msra.mxu0 0.0
    %6661 = vmatprep.subr.mxu0 0.0
    %6662 = vmatpush1.msra.mxu0 0.0
    %6663 = vmatprep.subr.mxu0 0.0
    %6664 = vmatpush1.msra.mxu0 0.0
    %6665 = vmatprep.subr.mxu0 0.0
    %6666 = vmatpush1.msra.mxu0 0.0
    %6667 = vmatprep.subr.mxu0 0.0
    %6668 = vmatpush1.msra.mxu0 0.0
    %6669 = vmatprep.subr.mxu0 0.0
    %6670 = vmatpush1.msra.mxu0 0.0
    %6671 = vmatprep.subr.mxu0 0.0
    %6672 = vmatpush1.msra.mxu0 0.0
    %6673 = vmatprep.subr.mxu0 0.0
    %6674 = vmatpush1.msra.mxu0 0.0
    %6675 = vmatprep.subr.mxu0 0.0
    %6676 = vmatpush1.msra.mxu0 0.0
    %6677 = vmatprep.subr.mxu0 0.0
    %6678 = vmatpush1.msra.mxu0 0.0
    %6679 = vmatprep.subr.mxu0 0.0
    %6680 = vmatpush1.msra.mxu0 0.0
    %6681 = vmatprep.subr.mxu0 0.0
    %6682 = vmatpush1.msra.mxu0 0.0
    %6683 = vmatprep.subr.mxu0 0.0
    %6684 = vmatpush1.msra.mxu0 0.0
    %6685 = vmatprep.subr.mxu0 0.0
    %6686 = vmatpush1.msra.mxu0 0.0
    %6687 = vmatprep.subr.mxu0 0.0
    %6688 = vmatpush1.msra.mxu0 0.0
    %6689 = vmatprep.mubr.f32.mxu0 0.0
    %6690 = vmatmul.mubr.f32.gmra.mrb[0].mxu0 %v6623
    %v6691 = vpop.f32.mrb[0].mxu0
    %v6692 = vadd.f32 %v157, %v6691
    %v6693 = vpop.f32.mrb[0].mxu0
    %6694 = vdwg.mxu0
    %v6696 = vcombine.high %v6692, %v6692
    %v6698 = vunpack.c.l.s4 1966171168
    %v6699 = vunpack.c.0.s8 %v6698
    %v6700 = vlaneseq
    %v6701 = vshrl.u32 %v6700, 7
    %v6702 = vsub.s32 %v6699, %v6701
    %v6703 = vrot.slane %v6692, %v6702
    %v6705 = vunpack.c.l.s4 1966171168
    %v6706 = vunpack.c.0.s8 %v6705
    %v6707 = vlaneseq
    %v6708 = vshrl.u32 %v6707, 7
    %v6709 = vsub.s32 %v6706, %v6708
    %v6710 = vrot.slane %v6696, %v6709
    %v6711 = vcombine.high %v6703, %v6703
    %v6712 = vcombine.high %v6710, %v6710
    %v6714 = vunpack.c.l.s4 1966171168
    %v6715 = vunpack.c.0.s8 %v6714
    %v6716 = vlaneseq
    %v6717 = vshrl.u32 %v6716, 7
    %v6718 = vsub.s32 %v6715, %v6717
    %v6719 = vrot.slane %v6703, %v6718
    %v6721 = vunpack.c.l.s4 1966171168
    %v6722 = vunpack.c.0.s8 %v6721
    %v6723 = vlaneseq
    %v6724 = vshrl.u32 %v6723, 7
    %v6725 = vsub.s32 %v6722, %v6724
    %v6726 = vrot.slane %v6710, %v6725
    %v6728 = vunpack.c.l.s4 1966171168
    %v6729 = vunpack.c.0.s8 %v6728
    %v6730 = vlaneseq
    %v6731 = vshrl.u32 %v6730, 7
    %v6732 = vsub.s32 %v6729, %v6731
    %v6733 = vrot.slane %v6711, %v6732
    %v6735 = vunpack.c.l.s4 1966171168
    %v6736 = vunpack.c.0.s8 %v6735
    %v6737 = vlaneseq
    %v6738 = vshrl.u32 %v6737, 7
    %v6739 = vsub.s32 %v6736, %v6738
    %v6740 = vrot.slane %v6712, %v6739
    %v6741 = vcombine.high %v6719, %v6719
    %v6742 = vcombine.high %v6726, %v6726
    %v6743 = vcombine.high %v6733, %v6733
    %v6744 = vcombine.high %v6740, %v6740
    %v6745 = vlaneseq
    %v6746 = vshrl.u32 %v6745, 7
    %v6747 = vsub.s32 0, %v6746
    %v6748 = vrot.slane %v6719, %v6747
    %v6749 = vlaneseq
    %v6750 = vshrl.u32 %v6749, 7
    %v6751 = vsub.s32 0, %v6750
    %v6752 = vrot.slane %v6733, %v6751
    %v6753 = vlaneseq
    %v6754 = vshrl.u32 %v6753, 7
    %v6755 = vsub.s32 0, %v6754
    %v6756 = vrot.slane %v6741, %v6755
    %v6757 = vlaneseq
    %v6758 = vshrl.u32 %v6757, 7
    %v6759 = vsub.s32 0, %v6758
    %v6760 = vrot.slane %v6743, %v6759
    %v6761 = vlaneseq
    %v6762 = vshrl.u32 %v6761, 7
    %v6763 = vsub.s32 0, %v6762
    %v6764 = vrot.slane %v6726, %v6763
    %v6765 = vlaneseq
    %v6766 = vshrl.u32 %v6765, 7
    %v6767 = vsub.s32 0, %v6766
    %v6768 = vrot.slane %v6740, %v6767
    %v6769 = vlaneseq
    %v6770 = vshrl.u32 %v6769, 7
    %v6771 = vsub.s32 0, %v6770
    %v6772 = vrot.slane %v6742, %v6771
    %v6773 = vlaneseq
    %v6774 = vshrl.u32 %v6773, 7
    %v6775 = vsub.s32 0, %v6774
    %v6776 = vrot.slane %v6744, %v6775
    %v6785 = vmul.f32 %v102, %v6748
    %v6786 = vmul.f32 %v103, %v6748
    %v6787 = vmul.f32 %v104, %v6752
    %v6788 = vmul.f32 %v105, %v6752
    %v6789 = vmul.f32 %v106, %v6756
    %v6790 = vmul.f32 %v107, %v6756
    %v6791 = vmul.f32 %v108, %v6760
    %v6792 = vmul.f32 %v109, %v6760
    %v6793 = vmul.f32 %v110, %v6764
    %v6794 = vmul.f32 %v111, %v6764
    %v6795 = vmul.f32 %v112, %v6768
    %v6796 = vmul.f32 %v113, %v6768
    %v6797 = vmul.f32 %v114, %v6772
    %v6798 = vmul.f32 %v115, %v6772
    %v6799 = vmul.f32 %v116, %v6776
    %v6800 = vmul.f32 %v117, %v6776
    %v6801 = vsel %vm185, %v6785, 0.0
    %6802 = vadd.xlane.f32.xlu0 %v6801
    %v6803 = vpop.xlane.xlu0 %6802
    %v6804 = vsel %vm583, %v6786, 0.0
    %6805 = vadd.xlane.f32.xlu0 %v6804
    %v6806 = vpop.xlane.xlu0 %6805
    %v6807 = vsel %vm185, %v6787, 0.0
    %6808 = vadd.xlane.f32.xlu0 %v6807
    %v6809 = vpop.xlane.xlu0 %6808
    %v6810 = vsel %vm583, %v6788, 0.0
    %6811 = vadd.xlane.f32.xlu0 %v6810
    %v6812 = vpop.xlane.xlu0 %6811
    %v6813 = vsel %vm185, %v6789, 0.0
    %6814 = vadd.xlane.f32.xlu0 %v6813
    %v6815 = vpop.xlane.xlu0 %6814
    %v6816 = vsel %vm583, %v6790, 0.0
    %6817 = vadd.xlane.f32.xlu0 %v6816
    %v6818 = vpop.xlane.xlu0 %6817
    %v6819 = vsel %vm185, %v6791, 0.0
    %6820 = vadd.xlane.f32.xlu0 %v6819
    %v6821 = vpop.xlane.xlu0 %6820
    %v6822 = vsel %vm583, %v6792, 0.0
    %6823 = vadd.xlane.f32.xlu0 %v6822
    %v6824 = vpop.xlane.xlu0 %6823
    %v6825 = vsel %vm185, %v6793, 0.0
    %6826 = vadd.xlane.f32.xlu0 %v6825
    %v6827 = vpop.xlane.xlu0 %6826
    %v6828 = vsel %vm583, %v6794, 0.0
    %6829 = vadd.xlane.f32.xlu0 %v6828
    %v6830 = vpop.xlane.xlu0 %6829
    %v6831 = vsel %vm185, %v6795, 0.0
    %6832 = vadd.xlane.f32.xlu0 %v6831
    %v6833 = vpop.xlane.xlu0 %6832
    %v6834 = vsel %vm583, %v6796, 0.0
    %6835 = vadd.xlane.f32.xlu0 %v6834
    %v6836 = vpop.xlane.xlu0 %6835
    %v6837 = vsel %vm185, %v6797, 0.0
    %6838 = vadd.xlane.f32.xlu0 %v6837
    %v6839 = vpop.xlane.xlu0 %6838
    %v6840 = vsel %vm583, %v6798, 0.0
    %6841 = vadd.xlane.f32.xlu0 %v6840
    %v6842 = vpop.xlane.xlu0 %6841
    %v6843 = vsel %vm185, %v6799, 0.0
    %6844 = vadd.xlane.f32.xlu0 %v6843
    %v6845 = vpop.xlane.xlu0 %6844
    %v6846 = vsel %vm583, %v6800, 0.0
    %6847 = vadd.xlane.f32.xlu0 %v6846
    %v6848 = vpop.xlane.xlu0 %6847
    %v6865 = vlaneseq
    %v6866 = vshrl.u32 %v6865, 7
    %v6867 = vsub.s32 %v646, %v6866
    %v6868 = vrot.slane %v6803, %v6867
    %v6869 = vlaneseq
    %v6870 = vshrl.u32 %v6869, 7
    %v6871 = vsub.s32 %v651, %v6870
    %v6872 = vrot.slane %v6806, %v6871
    %v6873 = vsel %vm656, %v6872, %v6868
    %v6874 = vlaneseq
    %v6875 = vshrl.u32 %v6874, 7
    %v6876 = vsub.s32 %v646, %v6875
    %v6877 = vrot.slane %v6809, %v6876
    %v6878 = vlaneseq
    %v6879 = vshrl.u32 %v6878, 7
    %v6880 = vsub.s32 %v651, %v6879
    %v6881 = vrot.slane %v6812, %v6880
    %v6882 = vsel %vm656, %v6881, %v6877
    %v6883 = vlaneseq
    %v6884 = vshrl.u32 %v6883, 7
    %v6885 = vsub.s32 %v646, %v6884
    %v6886 = vrot.slane %v6815, %v6885
    %v6887 = vlaneseq
    %v6888 = vshrl.u32 %v6887, 7
    %v6889 = vsub.s32 %v651, %v6888
    %v6890 = vrot.slane %v6818, %v6889
    %v6891 = vsel %vm656, %v6890, %v6886
    %v6892 = vlaneseq
    %v6893 = vshrl.u32 %v6892, 7
    %v6894 = vsub.s32 %v646, %v6893
    %v6895 = vrot.slane %v6821, %v6894
    %v6896 = vlaneseq
    %v6897 = vshrl.u32 %v6896, 7
    %v6898 = vsub.s32 %v651, %v6897
    %v6899 = vrot.slane %v6824, %v6898
    %v6900 = vsel %vm656, %v6899, %v6895
    %v6901 = vlaneseq
    %v6902 = vshrl.u32 %v6901, 7
    %v6903 = vsub.s32 %v646, %v6902
    %v6904 = vrot.slane %v6827, %v6903
    %v6905 = vlaneseq
    %v6906 = vshrl.u32 %v6905, 7
    %v6907 = vsub.s32 %v651, %v6906
    %v6908 = vrot.slane %v6830, %v6907
    %v6909 = vsel %vm656, %v6908, %v6904
    %v6910 = vlaneseq
    %v6911 = vshrl.u32 %v6910, 7
    %v6912 = vsub.s32 %v646, %v6911
    %v6913 = vrot.slane %v6833, %v6912
    %v6914 = vlaneseq
    %v6915 = vshrl.u32 %v6914, 7
    %v6916 = vsub.s32 %v651, %v6915
    %v6917 = vrot.slane %v6836, %v6916
    %v6918 = vsel %vm656, %v6917, %v6913
    %v6919 = vlaneseq
    %v6920 = vshrl.u32 %v6919, 7
    %v6921 = vsub.s32 %v646, %v6920
    %v6922 = vrot.slane %v6839, %v6921
    %v6923 = vlaneseq
    %v6924 = vshrl.u32 %v6923, 7
    %v6925 = vsub.s32 %v651, %v6924
    %v6926 = vrot.slane %v6842, %v6925
    %v6927 = vsel %vm656, %v6926, %v6922
    %v6928 = vlaneseq
    %v6929 = vshrl.u32 %v6928, 7
    %v6930 = vsub.s32 %v646, %v6929
    %v6931 = vrot.slane %v6845, %v6930
    %v6932 = vlaneseq
    %v6933 = vshrl.u32 %v6932, 7
    %v6934 = vsub.s32 %v651, %v6933
    %v6935 = vrot.slane %v6848, %v6934
    %v6936 = vsel %vm656, %v6935, %v6931
    %v6937 = vsel %vm721, %v6882, %v6873
    %v6938 = vsel %vm723, %v6891, %v6937
    %v6939 = vsel %vm725, %v6900, %v6938
    %v6940 = vsel %vm727, %v6909, %v6939
    %v6941 = vsel %vm729, %v6918, %v6940
    %v6942 = vsel %vm731, %v6927, %v6941
    %v6943 = vsel %vm733, %v6936, %v6942
    %v6945 = vsel %vm736, %v6943, -inf
    %6946 = vmax.xlane.f32.xlu0 %v6945
    %v6947 = vpop.xlane.xlu0 %6946
    %v6949 = vlaneseq
    %v6950 = vshrl.u32 %v6949, 7
    %v6951 = vsub.s32 0, %v6950
    %v6952 = vrot.slane %v6947, %v6951
    %v6953 = vlaneseq
    %v6954 = vshrl.u32 %v6953, 7
    %v6955 = vsub.s32 1, %v6954
    %v6956 = vrot.slane %v6947, %v6955
    %v6957 = vlaneseq
    %v6958 = vshrl.u32 %v6957, 7
    %v6959 = vsub.s32 2, %v6958
    %v6960 = vrot.slane %v6947, %v6959
    %v6961 = vlaneseq
    %v6962 = vshrl.u32 %v6961, 7
    %v6963 = vsub.s32 3, %v6962
    %v6964 = vrot.slane %v6947, %v6963
    %v6965 = vlaneseq
    %v6966 = vshrl.u32 %v6965, 7
    %v6967 = vsub.s32 4, %v6966
    %v6968 = vrot.slane %v6947, %v6967
    %v6969 = vlaneseq
    %v6970 = vshrl.u32 %v6969, 7
    %v6971 = vsub.s32 5, %v6970
    %v6972 = vrot.slane %v6947, %v6971
    %v6973 = vlaneseq
    %v6974 = vshrl.u32 %v6973, 7
    %v6975 = vsub.s32 6, %v6974
    %v6976 = vrot.slane %v6947, %v6975
    %v6977 = vlaneseq
    %v6978 = vshrl.u32 %v6977, 7
    %v6979 = vsub.s32 7, %v6978
    %v6980 = vrot.slane %v6947, %v6979
    %v6989 = vsub.f32 %v6803, %v6952
    %v6990 = vsub.f32 %v6806, %v6952
    %v6991 = vsub.f32 %v6809, %v6956
    %v6992 = vsub.f32 %v6812, %v6956
    %v6993 = vsub.f32 %v6815, %v6960
    %v6994 = vsub.f32 %v6818, %v6960
    %v6995 = vsub.f32 %v6821, %v6964
    %v6996 = vsub.f32 %v6824, %v6964
    %v6997 = vsub.f32 %v6827, %v6968
    %v6998 = vsub.f32 %v6830, %v6968
    %v6999 = vsub.f32 %v6833, %v6972
    %v7000 = vsub.f32 %v6836, %v6972
    %v7001 = vsub.f32 %v6839, %v6976
    %v7002 = vsub.f32 %v6842, %v6976
    %v7003 = vsub.f32 %v6845, %v6980
    %v7004 = vsub.f32 %v6848, %v6980
    %v7005 = vmul.f32 %v6989, 1.442695
    %v7006 = vpow.pop %v7005
    %v7007 = vmul.f32 %v6990, 1.442695
    %v7008 = vpow.pop %v7007
    %v7009 = vmul.f32 %v6991, 1.442695
    %v7010 = vpow.pop %v7009
    %v7011 = vmul.f32 %v6992, 1.442695
    %v7012 = vpow.pop %v7011
    %v7013 = vmul.f32 %v6993, 1.442695
    %v7014 = vpow.pop %v7013
    %v7015 = vmul.f32 %v6994, 1.442695
    %v7016 = vpow.pop %v7015
    %v7017 = vmul.f32 %v6995, 1.442695
    %v7018 = vpow.pop %v7017
    %v7019 = vmul.f32 %v6996, 1.442695
    %v7020 = vpow.pop %v7019
    %v7021 = vmul.f32 %v6997, 1.442695
    %v7022 = vpow.pop %v7021
    %v7023 = vmul.f32 %v6998, 1.442695
    %v7024 = vpow.pop %v7023
    %v7025 = vmul.f32 %v6999, 1.442695
    %v7026 = vpow.pop %v7025
    %v7027 = vmul.f32 %v7000, 1.442695
    %v7028 = vpow.pop %v7027
    %v7029 = vmul.f32 %v7001, 1.442695
    %v7030 = vpow.pop %v7029
    %v7031 = vmul.f32 %v7002, 1.442695
    %v7032 = vpow.pop %v7031
    %v7033 = vmul.f32 %v7003, 1.442695
    %v7034 = vpow.pop %v7033
    %v7035 = vmul.f32 %v7004, 1.442695
    %v7036 = vpow.pop %v7035
    %7053 = vset.pattern.permute.xlu0 0
    %7054 = vperm.xlu0 %7053, %v7006
    %v7055 = vpop.permute.xlu0 %7054
    %7056 = vset.pattern.permute.xlu0 0
    %7057 = vperm.xlu0 %7056, %v7008
    %v7058 = vpop.permute.xlu0 %7057
    %7059 = vset.pattern.permute.xlu0 0
    %7060 = vperm.xlu0 %7059, %v7010
    %v7061 = vpop.permute.xlu0 %7060
    %7062 = vset.pattern.permute.xlu0 0
    %7063 = vperm.xlu0 %7062, %v7012
    %v7064 = vpop.permute.xlu0 %7063
    %7065 = vset.pattern.permute.xlu0 0
    %7066 = vperm.xlu0 %7065, %v7014
    %v7067 = vpop.permute.xlu0 %7066
    %7068 = vset.pattern.permute.xlu0 0
    %7069 = vperm.xlu0 %7068, %v7016
    %v7070 = vpop.permute.xlu0 %7069
    %7071 = vset.pattern.permute.xlu0 0
    %7072 = vperm.xlu0 %7071, %v7018
    %v7073 = vpop.permute.xlu0 %7072
    %7074 = vset.pattern.permute.xlu0 0
    %7075 = vperm.xlu0 %7074, %v7020
    %v7076 = vpop.permute.xlu0 %7075
    %7077 = vset.pattern.permute.xlu0 0
    %7078 = vperm.xlu0 %7077, %v7022
    %v7079 = vpop.permute.xlu0 %7078
    %7080 = vset.pattern.permute.xlu0 0
    %7081 = vperm.xlu0 %7080, %v7024
    %v7082 = vpop.permute.xlu0 %7081
    %7083 = vset.pattern.permute.xlu0 0
    %7084 = vperm.xlu0 %7083, %v7026
    %v7085 = vpop.permute.xlu0 %7084
    %7086 = vset.pattern.permute.xlu0 0
    %7087 = vperm.xlu0 %7086, %v7028
    %v7088 = vpop.permute.xlu0 %7087
    %7089 = vset.pattern.permute.xlu0 0
    %7090 = vperm.xlu0 %7089, %v7030
    %v7091 = vpop.permute.xlu0 %7090
    %7092 = vset.pattern.permute.xlu0 0
    %7093 = vperm.xlu0 %7092, %v7032
    %v7094 = vpop.permute.xlu0 %7093
    %7095 = vset.pattern.permute.xlu0 0
    %7096 = vperm.xlu0 %7095, %v7034
    %v7097 = vpop.permute.xlu0 %7096
    %7098 = vset.pattern.permute.xlu0 0
    %7099 = vperm.xlu0 %7098, %v7036
    %v7100 = vpop.permute.xlu0 %7099
    %v7101 = vlaneseq
    %v7102 = vshrl.u32 %v7101, 7
    %v7103 = vsub.s32 %v646, %v7102
    %v7104 = vrot.slane %v7055, %v7103
    %v7105 = vlaneseq
    %v7106 = vshrl.u32 %v7105, 7
    %v7107 = vsub.s32 %v651, %v7106
    %v7108 = vrot.slane %v7058, %v7107
    %v7109 = vsel %vm656, %v7108, %v7104
    %v7110 = vlaneseq
    %v7111 = vshrl.u32 %v7110, 7
    %v7112 = vsub.s32 %v646, %v7111
    %v7113 = vrot.slane %v7061, %v7112
    %v7114 = vlaneseq
    %v7115 = vshrl.u32 %v7114, 7
    %v7116 = vsub.s32 %v651, %v7115
    %v7117 = vrot.slane %v7064, %v7116
    %v7118 = vsel %vm656, %v7117, %v7113
    %v7119 = vlaneseq
    %v7120 = vshrl.u32 %v7119, 7
    %v7121 = vsub.s32 %v646, %v7120
    %v7122 = vrot.slane %v7067, %v7121
    %v7123 = vlaneseq
    %v7124 = vshrl.u32 %v7123, 7
    %v7125 = vsub.s32 %v651, %v7124
    %v7126 = vrot.slane %v7070, %v7125
    %v7127 = vsel %vm656, %v7126, %v7122
    %v7128 = vlaneseq
    %v7129 = vshrl.u32 %v7128, 7
    %v7130 = vsub.s32 %v646, %v7129
    %v7131 = vrot.slane %v7073, %v7130
    %v7132 = vlaneseq
    %v7133 = vshrl.u32 %v7132, 7
    %v7134 = vsub.s32 %v651, %v7133
    %v7135 = vrot.slane %v7076, %v7134
    %v7136 = vsel %vm656, %v7135, %v7131
    %v7137 = vlaneseq
    %v7138 = vshrl.u32 %v7137, 7
    %v7139 = vsub.s32 %v646, %v7138
    %v7140 = vrot.slane %v7079, %v7139
    %v7141 = vlaneseq
    %v7142 = vshrl.u32 %v7141, 7
    %v7143 = vsub.s32 %v651, %v7142
    %v7144 = vrot.slane %v7082, %v7143
    %v7145 = vsel %vm656, %v7144, %v7140
    %v7146 = vlaneseq
    %v7147 = vshrl.u32 %v7146, 7
    %v7148 = vsub.s32 %v646, %v7147
    %v7149 = vrot.slane %v7085, %v7148
    %v7150 = vlaneseq
    %v7151 = vshrl.u32 %v7150, 7
    %v7152 = vsub.s32 %v651, %v7151
    %v7153 = vrot.slane %v7088, %v7152
    %v7154 = vsel %vm656, %v7153, %v7149
    %v7155 = vlaneseq
    %v7156 = vshrl.u32 %v7155, 7
    %v7157 = vsub.s32 %v646, %v7156
    %v7158 = vrot.slane %v7091, %v7157
    %v7159 = vlaneseq
    %v7160 = vshrl.u32 %v7159, 7
    %v7161 = vsub.s32 %v651, %v7160
    %v7162 = vrot.slane %v7094, %v7161
    %v7163 = vsel %vm656, %v7162, %v7158
    %v7164 = vlaneseq
    %v7165 = vshrl.u32 %v7164, 7
    %v7166 = vsub.s32 %v646, %v7165
    %v7167 = vrot.slane %v7097, %v7166
    %v7168 = vlaneseq
    %v7169 = vshrl.u32 %v7168, 7
    %v7170 = vsub.s32 %v651, %v7169
    %v7171 = vrot.slane %v7100, %v7170
    %v7172 = vsel %vm656, %v7171, %v7167
    %v7173 = vsel %vm721, %v7118, %v7109
    %v7174 = vsel %vm723, %v7127, %v7173
    %v7175 = vsel %vm725, %v7136, %v7174
    %v7176 = vsel %vm727, %v7145, %v7175
    %v7177 = vsel %vm729, %v7154, %v7176
    %v7178 = vsel %vm731, %v7163, %v7177
    %v7179 = vsel %vm733, %v7172, %v7178
    %v7181 = vsel %vm736, %v7179, 0.0
    %7182 = vadd.xlane.f32.xlu0 %v7181
    %v7183 = vpop.xlane.xlu0 %7182
    %v7184 = vrcp.pop %v7183
    %v7186 = vlaneseq
    %v7187 = vshrl.u32 %v7186, 7
    %v7188 = vsub.s32 0, %v7187
    %v7189 = vrot.slane %v7184, %v7188
    %v7190 = vlaneseq
    %v7191 = vshrl.u32 %v7190, 7
    %v7192 = vsub.s32 1, %v7191
    %v7193 = vrot.slane %v7184, %v7192
    %v7194 = vlaneseq
    %v7195 = vshrl.u32 %v7194, 7
    %v7196 = vsub.s32 2, %v7195
    %v7197 = vrot.slane %v7184, %v7196
    %v7198 = vlaneseq
    %v7199 = vshrl.u32 %v7198, 7
    %v7200 = vsub.s32 3, %v7199
    %v7201 = vrot.slane %v7184, %v7200
    %v7202 = vlaneseq
    %v7203 = vshrl.u32 %v7202, 7
    %v7204 = vsub.s32 4, %v7203
    %v7205 = vrot.slane %v7184, %v7204
    %v7206 = vlaneseq
    %v7207 = vshrl.u32 %v7206, 7
    %v7208 = vsub.s32 5, %v7207
    %v7209 = vrot.slane %v7184, %v7208
    %v7210 = vlaneseq
    %v7211 = vshrl.u32 %v7210, 7
    %v7212 = vsub.s32 6, %v7211
    %v7213 = vrot.slane %v7184, %v7212
    %v7214 = vlaneseq
    %v7215 = vshrl.u32 %v7214, 7
    %v7216 = vsub.s32 7, %v7215
    %v7217 = vrot.slane %v7184, %v7216
    %v7226 = vmul.f32 %v7006, %v7189
    %v7227 = vmul.f32 %v7008, %v7189
    %v7228 = vmul.f32 %v7010, %v7193
    %v7229 = vmul.f32 %v7012, %v7193
    %v7230 = vmul.f32 %v7014, %v7197
    %v7231 = vmul.f32 %v7016, %v7197
    %v7232 = vmul.f32 %v7018, %v7201
    %v7233 = vmul.f32 %v7020, %v7201
    %v7234 = vmul.f32 %v7022, %v7205
    %v7235 = vmul.f32 %v7024, %v7205
    %v7236 = vmul.f32 %v7026, %v7209
    %v7237 = vmul.f32 %v7028, %v7209
    %v7238 = vmul.f32 %v7030, %v7213
    %v7239 = vmul.f32 %v7032, %v7213
    %v7240 = vmul.f32 %v7034, %v7217
    %v7241 = vmul.f32 %v7036, %v7217
    %7243 = vset.pattern.permute.xlu0 0
    %7244 = vperm.xlu0 %7243, %v7226
    %v7245 = vpop.permute.xlu0 %7244
    %7248 = vset.pattern.permute.xlu0 0
    %7249 = vperm.xlu0 %7248, %v7227
    %v7250 = vpop.permute.xlu0 %7249
    %7253 = vset.pattern.permute.xlu0 0
    %7254 = vperm.xlu0 %7253, %v7228
    %v7255 = vpop.permute.xlu0 %7254
    %7258 = vset.pattern.permute.xlu0 0
    %7259 = vperm.xlu0 %7258, %v7229
    %v7260 = vpop.permute.xlu0 %7259
    %7263 = vset.pattern.permute.xlu0 0
    %7264 = vperm.xlu0 %7263, %v7230
    %v7265 = vpop.permute.xlu0 %7264
    %7268 = vset.pattern.permute.xlu0 0
    %7269 = vperm.xlu0 %7268, %v7231
    %v7270 = vpop.permute.xlu0 %7269
    %7273 = vset.pattern.permute.xlu0 0
    %7274 = vperm.xlu0 %7273, %v7232
    %v7275 = vpop.permute.xlu0 %7274
    %7278 = vset.pattern.permute.xlu0 0
    %7279 = vperm.xlu0 %7278, %v7233
    %v7280 = vpop.permute.xlu0 %7279
    %7283 = vset.pattern.permute.xlu0 0
    %7284 = vperm.xlu0 %7283, %v7234
    %v7285 = vpop.permute.xlu0 %7284
    %7288 = vset.pattern.permute.xlu0 0
    %7289 = vperm.xlu0 %7288, %v7235
    %v7290 = vpop.permute.xlu0 %7289
    %7293 = vset.pattern.permute.xlu0 0
    %7294 = vperm.xlu0 %7293, %v7236
    %v7295 = vpop.permute.xlu0 %7294
    %7298 = vset.pattern.permute.xlu0 0
    %7299 = vperm.xlu0 %7298, %v7237
    %v7300 = vpop.permute.xlu0 %7299
    %7303 = vset.pattern.permute.xlu0 0
    %7304 = vperm.xlu0 %7303, %v7238
    %v7305 = vpop.permute.xlu0 %7304
    %7308 = vset.pattern.permute.xlu0 0
    %7309 = vperm.xlu0 %7308, %v7239
    %v7310 = vpop.permute.xlu0 %7309
    %7313 = vset.pattern.permute.xlu0 0
    %7314 = vperm.xlu0 %7313, %v7240
    %v7315 = vpop.permute.xlu0 %7314
    %7318 = vset.pattern.permute.xlu0 0
    %7319 = vperm.xlu0 %7318, %v7241
    %v7320 = vpop.permute.xlu0 %7319
    %v7322 = vmul.f32 %v7245, %v102
    %v7323 = vmul.f32 %v7250, %v103
    %v7324 = vmul.f32 %v7255, %v104
    %v7325 = vmul.f32 %v7260, %v105
    %v7326 = vmul.f32 %v7265, %v106
    %v7327 = vmul.f32 %v7270, %v107
    %v7328 = vmul.f32 %v7275, %v108
    %v7329 = vmul.f32 %v7280, %v109
    %v7330 = vmul.f32 %v7285, %v110
    %v7331 = vmul.f32 %v7290, %v111
    %v7332 = vmul.f32 %v7295, %v112
    %v7333 = vmul.f32 %v7300, %v113
    %v7334 = vmul.f32 %v7305, %v114
    %v7335 = vmul.f32 %v7310, %v115
    %v7336 = vmul.f32 %v7315, %v116
    %v7337 = vmul.f32 %v7320, %v117
    %v7338 = vsel %vm185, %v7322, 0.0
    %v7339 = vsel %vm583, %v7323, 0.0
    %v7340 = vadd.f32 %v7338, %v7339
    %v7341 = vrot.slane %v7340, 4
    %v7342 = vadd.f32 %v7340, %v7341
    %v7343 = vrot.slane %v7342, 2
    %v7344 = vadd.f32 %v7342, %v7343
    %v7345 = vrot.slane %v7344, 1
    %v7346 = vadd.f32 %v7344, %v7345
    %v7347 = vsel %vm185, %v7324, 0.0
    %v7348 = vsel %vm583, %v7325, 0.0
    %v7349 = vadd.f32 %v7347, %v7348
    %v7350 = vrot.slane %v7349, 4
    %v7351 = vadd.f32 %v7349, %v7350
    %v7352 = vrot.slane %v7351, 2
    %v7353 = vadd.f32 %v7351, %v7352
    %v7354 = vrot.slane %v7353, 1
    %v7355 = vadd.f32 %v7353, %v7354
    %v7356 = vsel %vm185, %v7326, 0.0
    %v7357 = vsel %vm583, %v7327, 0.0
    %v7358 = vadd.f32 %v7356, %v7357
    %v7359 = vrot.slane %v7358, 4
    %v7360 = vadd.f32 %v7358, %v7359
    %v7361 = vrot.slane %v7360, 2
    %v7362 = vadd.f32 %v7360, %v7361
    %v7363 = vrot.slane %v7362, 1
    %v7364 = vadd.f32 %v7362, %v7363
    %v7365 = vsel %vm185, %v7328, 0.0
    %v7366 = vsel %vm583, %v7329, 0.0
    %v7367 = vadd.f32 %v7365, %v7366
    %v7368 = vrot.slane %v7367, 4
    %v7369 = vadd.f32 %v7367, %v7368
    %v7370 = vrot.slane %v7369, 2
    %v7371 = vadd.f32 %v7369, %v7370
    %v7372 = vrot.slane %v7371, 1
    %v7373 = vadd.f32 %v7371, %v7372
    %v7374 = vsel %vm185, %v7330, 0.0
    %v7375 = vsel %vm583, %v7331, 0.0
    %v7376 = vadd.f32 %v7374, %v7375
    %v7377 = vrot.slane %v7376, 4
    %v7378 = vadd.f32 %v7376, %v7377
    %v7379 = vrot.slane %v7378, 2
    %v7380 = vadd.f32 %v7378, %v7379
    %v7381 = vrot.slane %v7380, 1
    %v7382 = vadd.f32 %v7380, %v7381
    %v7383 = vsel %vm185, %v7332, 0.0
    %v7384 = vsel %vm583, %v7333, 0.0
    %v7385 = vadd.f32 %v7383, %v7384
    %v7386 = vrot.slane %v7385, 4
    %v7387 = vadd.f32 %v7385, %v7386
    %v7388 = vrot.slane %v7387, 2
    %v7389 = vadd.f32 %v7387, %v7388
    %v7390 = vrot.slane %v7389, 1
    %v7391 = vadd.f32 %v7389, %v7390
    %v7392 = vsel %vm185, %v7334, 0.0
    %v7393 = vsel %vm583, %v7335, 0.0
    %v7394 = vadd.f32 %v7392, %v7393
    %v7395 = vrot.slane %v7394, 4
    %v7396 = vadd.f32 %v7394, %v7395
    %v7397 = vrot.slane %v7396, 2
    %v7398 = vadd.f32 %v7396, %v7397
    %v7399 = vrot.slane %v7398, 1
    %v7400 = vadd.f32 %v7398, %v7399
    %v7401 = vsel %vm185, %v7336, 0.0
    %v7402 = vsel %vm583, %v7337, 0.0
    %v7403 = vadd.f32 %v7401, %v7402
    %v7404 = vrot.slane %v7403, 4
    %v7405 = vadd.f32 %v7403, %v7404
    %v7406 = vrot.slane %v7405, 2
    %v7407 = vadd.f32 %v7405, %v7406
    %v7408 = vrot.slane %v7407, 1
    %v7409 = vadd.f32 %v7407, %v7408
    %7410 = vmatprep.subr.mxu0 0.0
    %7411 = vmatpush1.msra.mxu0 %v163
    %7412 = vmatprep.subr.mxu0 0.0
    %7413 = vmatpush1.msra.mxu0 %v164
    %7414 = vmatprep.subr.mxu0 0.0
    %7415 = vmatpush1.msra.mxu0 %v165
    %7416 = vmatprep.subr.mxu0 0.0
    %7417 = vmatpush1.msra.mxu0 %v166
    %7418 = vmatprep.subr.mxu0 0.0
    %7419 = vmatpush1.msra.mxu0 0.0
    %7420 = vmatprep.subr.mxu0 0.0
    %7421 = vmatpush1.msra.mxu0 0.0
    %7422 = vmatprep.subr.mxu0 0.0
    %7423 = vmatpush1.msra.mxu0 0.0
    %7424 = vmatprep.subr.mxu0 0.0
    %7425 = vmatpush1.msra.mxu0 0.0
    %7426 = vmatprep.subr.mxu0 0.0
    %7427 = vmatpush1.msra.mxu0 0.0
    %7428 = vmatprep.subr.mxu0 0.0
    %7429 = vmatpush1.msra.mxu0 0.0
    %7430 = vmatprep.subr.mxu0 0.0
    %7431 = vmatpush1.msra.mxu0 0.0
    %7432 = vmatprep.subr.mxu0 0.0
    %7433 = vmatpush1.msra.mxu0 0.0
    %7434 = vmatprep.subr.mxu0 0.0
    %7435 = vmatpush1.msra.mxu0 0.0
    %7436 = vmatprep.subr.mxu0 0.0
    %7437 = vmatpush1.msra.mxu0 0.0
    %7438 = vmatprep.subr.mxu0 0.0
    %7439 = vmatpush1.msra.mxu0 0.0
    %7440 = vmatprep.subr.mxu0 0.0
    %7441 = vmatpush1.msra.mxu0 0.0
    %7442 = vmatprep.subr.mxu0 0.0
    %7443 = vmatpush1.msra.mxu0 0.0
    %7444 = vmatprep.subr.mxu0 0.0
    %7445 = vmatpush1.msra.mxu0 0.0
    %7446 = vmatprep.subr.mxu0 0.0
    %7447 = vmatpush1.msra.mxu0 0.0
    %7448 = vmatprep.subr.mxu0 0.0
    %7449 = vmatpush1.msra.mxu0 0.0
    %7450 = vmatprep.subr.mxu0 0.0
    %7451 = vmatpush1.msra.mxu0 0.0
    %7452 = vmatprep.subr.mxu0 0.0
    %7453 = vmatpush1.msra.mxu0 0.0
    %7454 = vmatprep.subr.mxu0 0.0
    %7455 = vmatpush1.msra.mxu0 0.0
    %7456 = vmatprep.subr.mxu0 0.0
    %7457 = vmatpush1.msra.mxu0 0.0
    %7458 = vmatprep.subr.mxu0 0.0
    %7459 = vmatpush1.msra.mxu0 0.0
    %7460 = vmatprep.subr.mxu0 0.0
    %7461 = vmatpush1.msra.mxu0 0.0
    %7462 = vmatprep.subr.mxu0 0.0
    %7463 = vmatpush1.msra.mxu0 0.0
    %7464 = vmatprep.subr.mxu0 0.0
    %7465 = vmatpush1.msra.mxu0 0.0
    %7466 = vmatprep.subr.mxu0 0.0
    %7467 = vmatpush1.msra.mxu0 0.0
    %7468 = vmatprep.subr.mxu0 0.0
    %7469 = vmatpush1.msra.mxu0 0.0
    %7470 = vmatprep.subr.mxu0 0.0
    %7471 = vmatpush1.msra.mxu0 0.0
    %7472 = vmatprep.subr.mxu0 0.0
    %7473 = vmatpush1.msra.mxu0 0.0
    %7474 = vmatprep.mubr.f32.mxu0 0.0
    %7475 = vmatmul.mubr.f32.gmra.mrb[0].mxu0 %v6623
    %v7476 = vpop.f32.mrb[0].mxu0
    %v7477 = vadd.f32 0.0, %v7476
    %v7478 = vpop.f32.mrb[0].mxu0
    %7479 = vdwg.mxu0
    %v7488 = vsel %vm721, %v7355, %v7346
    %v7489 = vsel %vm723, %v7364, %v7488
    %v7490 = vsel %vm725, %v7373, %v7489
    %v7491 = vsel %vm727, %v7382, %v7490
    %v7492 = vsel %vm729, %v7391, %v7491
    %v7493 = vsel %vm731, %v7400, %v7492
    %v7494 = vsel %vm733, %v7409, %v7493
    %v7495 = vsel %vm185, %v7494, 0
    %7497 = vmatprep.subr.mxu0 0.0
    %7498 = vmatpush1.msra.mxu0 %v159
    %7499 = vmatprep.subr.mxu0 0.0
    %7500 = vmatpush1.msra.mxu0 %v160
    %7501 = vmatprep.subr.mxu0 0.0
    %7502 = vmatpush1.msra.mxu0 %v161
    %7503 = vmatprep.subr.mxu0 0.0
    %7504 = vmatpush1.msra.mxu0 %v162
    %7505 = vmatprep.subr.mxu0 0.0
    %7506 = vmatpush1.msra.mxu0 0.0
    %7507 = vmatprep.subr.mxu0 0.0
    %7508 = vmatpush1.msra.mxu0 0.0
    %7509 = vmatprep.subr.mxu0 0.0
    %7510 = vmatpush1.msra.mxu0 0.0
    %7511 = vmatprep.subr.mxu0 0.0
    %7512 = vmatpush1.msra.mxu0 0.0
    %7513 = vmatprep.subr.mxu0 0.0
    %7514 = vmatpush1.msra.mxu0 0.0
    %7515 = vmatprep.subr.mxu0 0.0
    %7516 = vmatpush1.msra.mxu0 0.0
    %7517 = vmatprep.subr.mxu0 0.0
    %7518 = vmatpush1.msra.mxu0 0.0
    %7519 = vmatprep.subr.mxu0 0.0
    %7520 = vmatpush1.msra.mxu0 0.0
    %7521 = vmatprep.subr.mxu0 0.0
    %7522 = vmatpush1.msra.mxu0 0.0
    %7523 = vmatprep.subr.mxu0 0.0
    %7524 = vmatpush1.msra.mxu0 0.0
    %7525 = vmatprep.subr.mxu0 0.0
    %7526 = vmatpush1.msra.mxu0 0.0
    %7527 = vmatprep.subr.mxu0 0.0
    %7528 = vmatpush1.msra.mxu0 0.0
    %7529 = vmatprep.subr.mxu0 0.0
    %7530 = vmatpush1.msra.mxu0 0.0
    %7531 = vmatprep.subr.mxu0 0.0
    %7532 = vmatpush1.msra.mxu0 0.0
    %7533 = vmatprep.subr.mxu0 0.0
    %7534 = vmatpush1.msra.mxu0 0.0
    %7535 = vmatprep.subr.mxu0 0.0
    %7536 = vmatpush1.msra.mxu0 0.0
    %7537 = vmatprep.subr.mxu0 0.0
    %7538 = vmatpush1.msra.mxu0 0.0
    %7539 = vmatprep.subr.mxu0 0.0
    %7540 = vmatpush1.msra.mxu0 0.0
    %7541 = vmatprep.subr.mxu0 0.0
    %7542 = vmatpush1.msra.mxu0 0.0
    %7543 = vmatprep.subr.mxu0 0.0
    %7544 = vmatpush1.msra.mxu0 0.0
    %7545 = vmatprep.subr.mxu0 0.0
    %7546 = vmatpush1.msra.mxu0 0.0
    %7547 = vmatprep.subr.mxu0 0.0
    %7548 = vmatpush1.msra.mxu0 0.0
    %7549 = vmatprep.subr.mxu0 0.0
    %7550 = vmatpush1.msra.mxu0 0.0
    %7551 = vmatprep.subr.mxu0 0.0
    %7552 = vmatpush1.msra.mxu0 0.0
    %7553 = vmatprep.subr.mxu0 0.0
    %7554 = vmatpush1.msra.mxu0 0.0
    %7555 = vmatprep.subr.mxu0 0.0
    %7556 = vmatpush1.msra.mxu0 0.0
    %7557 = vmatprep.subr.mxu0 0.0
    %7558 = vmatpush1.msra.mxu0 0.0
    %7559 = vmatprep.subr.mxu0 0.0
    %7560 = vmatpush1.msra.mxu0 0.0
    %7561 = vmatprep.mubr.f32.mxu0 0.0
    %7562 = vmatmul.mubr.f32.gmra.mrb[0].mxu0 %v7495
    %v7563 = vpop.f32.mrb[0].mxu0
    %v7564 = vadd.f32 %v7477, %v7563
    %v7565 = vpop.f32.mrb[0].mxu0
    %7566 = vdwg.mxu0
    %v7567 = vadd.f32 %v7564, %v172
    %v7568 = vtanh.pop %v7567
    %v7569 = vlaneseq
    %v7570 = vshrl.u32 %v7569, 7
    %v7571 = vsub.s32 %v1361, %v7570
    %v7572 = vrot.slane %v7245, %v7571
    %v7573 = vlaneseq
    %v7574 = vshrl.u32 %v7573, 7
    %v7575 = vsub.s32 %v1366, %v7574
    %v7576 = vrot.slane %v7250, %v7575
    %v7577 = vsel %vm1371, %v7576, %v7572
    %v7578 = vlaneseq
    %v7579 = vshrl.u32 %v7578, 7
    %v7580 = vsub.s32 %v1361, %v7579
    %v7581 = vrot.slane %v7255, %v7580
    %v7582 = vlaneseq
    %v7583 = vshrl.u32 %v7582, 7
    %v7584 = vsub.s32 %v1366, %v7583
    %v7585 = vrot.slane %v7260, %v7584
    %v7586 = vsel %vm1371, %v7585, %v7581
    %v7587 = vlaneseq
    %v7588 = vshrl.u32 %v7587, 7
    %v7589 = vsub.s32 %v1361, %v7588
    %v7590 = vrot.slane %v7265, %v7589
    %v7591 = vlaneseq
    %v7592 = vshrl.u32 %v7591, 7
    %v7593 = vsub.s32 %v1366, %v7592
    %v7594 = vrot.slane %v7270, %v7593
    %v7595 = vsel %vm1371, %v7594, %v7590
    %v7596 = vlaneseq
    %v7597 = vshrl.u32 %v7596, 7
    %v7598 = vsub.s32 %v1361, %v7597
    %v7599 = vrot.slane %v7275, %v7598
    %v7600 = vlaneseq
    %v7601 = vshrl.u32 %v7600, 7
    %v7602 = vsub.s32 %v1366, %v7601
    %v7603 = vrot.slane %v7280, %v7602
    %v7604 = vsel %vm1371, %v7603, %v7599
    %v7605 = vlaneseq
    %v7606 = vshrl.u32 %v7605, 7
    %v7607 = vsub.s32 %v1361, %v7606
    %v7608 = vrot.slane %v7285, %v7607
    %v7609 = vlaneseq
    %v7610 = vshrl.u32 %v7609, 7
    %v7611 = vsub.s32 %v1366, %v7610
    %v7612 = vrot.slane %v7290, %v7611
    %v7613 = vsel %vm1371, %v7612, %v7608
    %v7614 = vlaneseq
    %v7615 = vshrl.u32 %v7614, 7
    %v7616 = vsub.s32 %v1361, %v7615
    %v7617 = vrot.slane %v7295, %v7616
    %v7618 = vlaneseq
    %v7619 = vshrl.u32 %v7618, 7
    %v7620 = vsub.s32 %v1366, %v7619
    %v7621 = vrot.slane %v7300, %v7620
    %v7622 = vsel %vm1371, %v7621, %v7617
    %v7623 = vlaneseq
    %v7624 = vshrl.u32 %v7623, 7
    %v7625 = vsub.s32 %v1361, %v7624
    %v7626 = vrot.slane %v7305, %v7625
    %v7627 = vlaneseq
    %v7628 = vshrl.u32 %v7627, 7
    %v7629 = vsub.s32 %v1366, %v7628
    %v7630 = vrot.slane %v7310, %v7629
    %v7631 = vsel %vm1371, %v7630, %v7626
    %v7632 = vlaneseq
    %v7633 = vshrl.u32 %v7632, 7
    %v7634 = vsub.s32 %v1361, %v7633
    %v7635 = vrot.slane %v7315, %v7634
    %v7636 = vlaneseq
    %v7637 = vshrl.u32 %v7636, 7
    %v7638 = vsub.s32 %v1366, %v7637
    %v7639 = vrot.slane %v7320, %v7638
    %v7640 = vsel %vm1371, %v7639, %v7635
    %v7641 = vsel %vm721, %v7586, %v7577
    %v7642 = vsel %vm723, %v7595, %v7641
    %v7643 = vsel %vm725, %v7604, %v7642
    %v7644 = vsel %vm727, %v7613, %v7643
    %v7645 = vsel %vm729, %v7622, %v7644
    %v7646 = vsel %vm731, %v7631, %v7645
    %v7647 = vsel %vm733, %v7640, %v7646
    %v7649 = vsel %vm185, %v7568, %v7647
    %v7650 = vsel %vm1445, %v7649, 0.0
    %s7651 = scalar_lea.vmem [#allocation10], 40
    %7652 = vst [vmem:[%s7651] sm:$0xff] %v7650
    %7653 = vst.msk [vmem:[#allocation11] sm:$0xff] %vm185, %v6517
    %7655 = vrot.lane.b32.xlu0 %v6508, 96
    %v7656 = vpop.permute.xlu0 %7655
    %7658 = vst.msk [vmem:[#allocation13] sm:$0xff] %vm185, %v7656
    %s7660 = scalar_lea.vmem [#allocation11], 8
    %7661 = vst.msk [vmem:[%s7660] sm:$0xff] %vm185, %v6622
    %7663 = vrot.lane.b32.xlu0 %v6613, 96
    %v7664 = vpop.permute.xlu0 %7663
    %s7666 = scalar_lea.vmem [#allocation13], 8
    %7667 = vst.msk [vmem:[%s7666] sm:$0xff] %vm185, %v7664
    // Predicated region
    $region70: #{tpu_custom_call.1} parent=1 // pred_check
      _
    $region71: #{tpu_custom_call.1} parent=1 // pred_check_branch
      %7669 = sbr.rel (0) target = $region73
    $region72: #{tpu_custom_call.1} parent=1 // pred_region
      %s7671 = ssub.s32 768, 768
      %7672 = vsyncadd [#allocation4], %s7671
      %s7673 = sshll.u32 [#allocation10], 4
      %s7674 = int_to_ptr.vmem [resolvable:$true] %s7673
      %7679 = dma.vmem_to_hbm [thread:$0]  %s7674, 768, %s13, [#allocation4], 128, 128, 8
    $region73: #{tpu_custom_call.1} parent=1 // pred_fallthru
      _
    // Predicated region
    $region74: #{tpu_custom_call.1} parent=1 // pred_check
      _
    $region75: #{tpu_custom_call.1} parent=1 // pred_check_branch
      %7681 = sbr.rel (0) target = $region77
    $region76: #{tpu_custom_call.1} parent=1 // pred_region
      %s7683 = ssub.s32 256, 256
      %7684 = vsyncadd [#allocation12], %s7683
      %s7685 = sshll.u32 [#allocation11], 4
      %s7686 = int_to_ptr.vmem [resolvable:$true] %s7685
      %7691 = dma.vmem_to_hbm [thread:$0]  %s7686, 256, %s14, [#allocation12], 128, 128, 8
    $region77: #{tpu_custom_call.1} parent=1 // pred_fallthru
      _
    // Predicated region
    $region78: #{tpu_custom_call.1} parent=1 // pred_check
      _
    $region79: #{tpu_custom_call.1} parent=1 // pred_check_branch
      %7693 = sbr.rel (0) target = $region81
    $region80: #{tpu_custom_call.1} parent=1 // pred_region
      %s7695 = ssub.s32 256, 256
      %7696 = vsyncadd [#allocation12], %s7695
      %s7697 = sshll.u32 [#allocation13], 4
      %s7698 = int_to_ptr.vmem [resolvable:$true] %s7697
      %7703 = dma.vmem_to_hbm [thread:$0]  %s7698, 256, %s15, [#allocation12], 128, 128, 8
    $region81: #{tpu_custom_call.1} parent=1 // pred_fallthru
      _
    // Predicated region
    $region82: #{tpu_custom_call.1} parent=1 // pred_check
      _
    $region83: #{tpu_custom_call.1} parent=1 // pred_check_branch
      %7705 = sbr.rel (0) target = $region85
    $region84: #{tpu_custom_call.1} parent=1 // pred_region
      %7706 = dma.done [#allocation4], 768
    $region85: #{tpu_custom_call.1} parent=1 // pred_fallthru
      _
    // Predicated region
    $region86: #{tpu_custom_call.1} parent=1 // pred_check
      _
    $region87: #{tpu_custom_call.1} parent=1 // pred_check_branch
      %7708 = sbr.rel (0) target = $region89
    $region88: #{tpu_custom_call.1} parent=1 // pred_region
      %7709 = dma.done [#allocation12], 256
    $region89: #{tpu_custom_call.1} parent=1 // pred_fallthru
      _
    // Predicated region
    $region90: #{tpu_custom_call.1} parent=1 // pred_check
      _
    $region91: #{tpu_custom_call.1} parent=1 // pred_check_branch
      %7711 = sbr.rel (0) target = $region93
    $region92: #{tpu_custom_call.1} parent=1 // pred_region
      %7712 = dma.done [#allocation12], 256
    $region93: #{tpu_custom_call.1} parent=1 // pred_fallthru
      _
    %7713 = vsyncpa [#allocation3], 1
    %7714 = vsyncpa [#allocation6], 1
    %7715 = vsyncpa [#allocation9], 1
    %7716 = vsyncpa [#allocation4], 1
    %7717 = vsyncpa [#allocation12], 1

</llo_original>
